<compile_context>
chip_gen: v7x
topology: tpu7x:2x2x1
jax: 0.10.0
libtpu: 0.0.40
codegen_flags: <defaults>
</compile_context>

<pallas_src>
import functools

import jax
import jax.numpy as jnp
from jax.experimental import pallas as pl
from jax.experimental.pallas import tpu as pltpu  # noqa: F401  (kept for optional tuning)

# ---------------- config (mirrors cfg.* used by the module) ----------------
FEAT = 8          # len(cfg.feature_cols)
DENSE = 32        # cfg.dense_dim
HIDDEN = 32       # cfg.hidden_size (must equal dense_dim for the head shapes to line up)
SEQ = 8
BS = 2

LSTM_DIMS = [                    # (input_size, hidden_size) per bidirectional layer
    (DENSE, DENSE),
    (2 * DENSE, DENSE // 2),
    (DENSE, DENSE // 4),
    (DENSE // 2, DENSE // 8),
]


# ---------------- the single fused Pallas kernel ----------------
def fused_forward_kernel(x_ref, w1_ref, b1_ref, w2_ref, b2_ref, *rest, seq, bs):
    # rest = 4 layers x (wx, bx, whf, whb) + (ln_g, ln_b, head_w, head_b) + out_ref
    f32 = jnp.float32
    n_layers = len(LSTM_DIMS)
    layer_refs = [tuple(rest[4 * l: 4 * l + 4]) for l in range(n_layers)]
    lng_ref, lnb_ref, hw_ref, hbias_ref, o_ref = rest[4 * n_layers: 4 * n_layers + 5]

    # ---- gather batch-major rows (row = b*seq + t) into time-major (row = t*bs + b)
    #      with strided ref reads; no wrapper-side XLA transpose launch.
    x_tm = jnp.concatenate(
        [x_ref[pl.ds(t, bs, stride=seq), :] for t in range(seq)], axis=0)   # (seq*bs, FEAT)

    # ---- MLP (row-wise) ----
    a = jnp.dot(x_tm, w1_ref[...], preferred_element_type=f32) + b1_ref[...]
    a = jnp.maximum(a, 0.0)
    a = jnp.dot(a, w2_ref[...], preferred_element_type=f32) + b2_ref[...]
    cur = jnp.maximum(a, 0.0)                                               # (seq*bs, DENSE)

    # ---- 4 fused bidirectional LSTM layers (states and outputs live in vregs) ----
    rows = None
    for li, ((_, H), (wx_ref, bx_ref, whf_ref, whb_ref)) in enumerate(zip(LSTM_DIMS, layer_refs)):
        whf = whf_ref[...]                         # (H, 4H) forward recurrent weights
        whb = whb_ref[...]                         # (H, 4H) backward recurrent weights
        # both directions' input projection for the whole sequence, one matmul
        xproj = jnp.dot(cur, wx_ref[...], preferred_element_type=f32) + bx_ref[...]  # (seq*bs, 8H)

        def cell(g, c_prev, H=H):                  # PyTorch gate order i, f, g, o
            i = jax.nn.sigmoid(g[:, 0:H])
            f = jax.nn.sigmoid(g[:, H:2 * H])
            gg = jnp.tanh(g[:, 2 * H:3 * H])
            o = jax.nn.sigmoid(g[:, 3 * H:4 * H])
            c_new = f * c_prev + i * gg
            return o * jnp.tanh(c_new), c_new

        outs_f = [None] * seq                      # fwd output at absolute time t
        outs_b = [None] * seq                      # bwd output at absolute time t
        c_f = jnp.zeros((bs, H), f32)
        c_b = jnp.zeros((bs, H), f32)
        h_f = h_b = None

        for s in range(seq):                       # fully unrolled (seq is static)
            tb = seq - 1 - s
            gx_f = xproj[s * bs:(s + 1) * bs, 0:4 * H]
            gx_b = xproj[tb * bs:(tb + 1) * bs, 4 * H:8 * H]
            if s == 0:
                # hidden state is zero: skip the recurrent matmuls entirely
                gf, gb = gx_f, gx_b
            else:
                gf = gx_f + jnp.dot(h_f, whf, preferred_element_type=f32)
                gb = gx_b + jnp.dot(h_b, whb, preferred_element_type=f32)
            h_f, c_f = cell(gf, c_f)
            h_b, c_b = cell(gb, c_b)
            outs_f[s] = h_f
            outs_b[tb] = h_b

        # per-time rows [h_fwd(t) | h_bwd(t)]  (bs, 2H) -- one concat per time step,
        # done once after the recurrence (not on the per-step critical path).
        rows = [jnp.concatenate([outs_f[t], outs_b[t]], axis=1) for t in range(seq)]
        if li < n_layers - 1:
            cur = jnp.concatenate(rows, axis=0)    # (seq*bs, 2H) time-major, next layer input

    # ---- head: LayerNorm(eps=1e-5, biased var) -> exact GELU -> Linear(d, 1),
    #      applied per time step so the output is emitted directly as (bs, seq).
    ln_g = lng_ref[...]                            # (1, d)
    ln_b = lnb_ref[...]                            # (1, d)
    head_w = hw_ref[...]                           # (1, d)  (row form of the (d,1) weight)
    head_b = hbias_ref[...]                        # (1, 1)
    inv_sqrt2 = 0.7071067811865476
    cols = []
    for t in range(seq):
        r = rows[t]                                # (bs, d)
        mean = jnp.mean(r, axis=-1, keepdims=True)
        var = jnp.mean((r - mean) ** 2, axis=-1, keepdims=True)
        xn = (r - mean) * jax.lax.rsqrt(var + 1e-5) * ln_g + ln_b
        gelu = 0.5 * xn * (1.0 + jax.lax.erf(xn * inv_sqrt2))
        cols.append(jnp.sum(gelu * head_w, axis=-1, keepdims=True) + head_b)   # (bs, 1)
    o_ref[...] = jnp.concatenate(cols, axis=1)     # (bs, seq), single store


# ---------------- parameter packing (done ONCE, outside the jitted forward) ----------------
def _pack_bilstm(layer):
    # PyTorch layout: Wih (4H, In), Whh (4H, H), gate row order i, f, g, o.
    Wih_f, Whh_f, bih_f, bhh_f = layer["fwd"]
    Wih_b, Whh_b, bih_b, bhh_b = layer["bwd"]
    H = Whh_f.shape[1]
    wx = jnp.concatenate([Wih_f.T, Wih_b.T], axis=1)                     # (In, 8H)
    bx = jnp.concatenate([bih_f + bhh_f, bih_b + bhh_b]).reshape(1, 8 * H)
    whf = Whh_f.T                                                        # (H, 4H)
    whb = Whh_b.T                                                        # (H, 4H)
    return wx, bx, whf, whb


def pack_params(params):
    ops = [params["mlp_w1"], params["mlp_b1"].reshape(1, -1),
           params["mlp_w2"], params["mlp_b2"].reshape(1, -1)]
    for name in ("lstm1", "lstm2", "lstm3", "lstm4"):
        ops.extend(_pack_bilstm(params[name]))
    d_head = params["ln_g"].shape[0]
    ops.extend([params["ln_g"].reshape(1, d_head), params["ln_b"].reshape(1, d_head),
                params["head_w"].reshape(1, -1), params["head_b"].reshape(1, 1)])
    return tuple(jnp.asarray(o, jnp.float32) for o in ops)


@jax.jit
def forward(packed, x):
    bs, seq, feat = x.shape
    x2 = x.reshape(bs * seq, feat)                 # contiguous collapse -> bitcast, no copy
    kernel = functools.partial(fused_forward_kernel, seq=seq, bs=bs)
    return pl.pallas_call(
        kernel,
        out_shape=jax.ShapeDtypeStruct((bs, seq), jnp.float32),
    )(x2, *packed)


# ---------------- pure-JAX reference (correctness cross-check only) ----------------
def reference_forward(params, x):
    bs, seq, feat = x.shape
    h = jnp.maximum(x.reshape(bs * seq, feat) @ params["mlp_w1"] + params["mlp_b1"], 0.0)
    h = jnp.maximum(h @ params["mlp_w2"] + params["mlp_b2"], 0.0)
    h = h.reshape(bs, seq, -1)
    for name in ("lstm1", "lstm2", "lstm3", "lstm4"):
        outs = []
        for d in ("fwd", "bwd"):
            Wih, Whh, bih, bhh = params[name][d]
            H = Whh.shape[1]
            xs = h if d == "fwd" else h[:, ::-1]

            def step(carry, x_t, Wih=Wih, Whh=Whh, bih=bih, bhh=bhh, H=H):
                hp, cp = carry
                g = x_t @ Wih.T + bih + hp @ Whh.T + bhh
                i = jax.nn.sigmoid(g[:, 0:H]); f = jax.nn.sigmoid(g[:, H:2 * H])
                gg = jnp.tanh(g[:, 2 * H:3 * H]); o = jax.nn.sigmoid(g[:, 3 * H:4 * H])
                c = f * cp + i * gg
                hh = o * jnp.tanh(c)
                return (hh, c), hh

            init = (jnp.zeros((bs, H), jnp.float32), jnp.zeros((bs, H), jnp.float32))
            _, ys = jax.lax.scan(step, init, xs.transpose(1, 0, 2))
            ys = ys.transpose(1, 0, 2)
            if d == "bwd":
                ys = ys[:, ::-1]
            outs.append(ys)
        h = jnp.concatenate(outs, axis=-1)
    x2 = h.reshape(bs * seq, -1)
    mean = x2.mean(-1, keepdims=True)
    var = ((x2 - mean) ** 2).mean(-1, keepdims=True)
    xn = (x2 - mean) / jnp.sqrt(var + 1e-5) * params["ln_g"] + params["ln_b"]
    gelu = 0.5 * xn * (1.0 + jax.lax.erf(xn / jnp.sqrt(2.0)))
    out = gelu @ params["head_w"] + params["head_b"]
    return out.reshape(bs, seq)


# ---------------- deterministic parameter init ----------------
def init_params(key):
    orth = jax.nn.initializers.orthogonal()
    keys = iter(jax.random.split(key, 64))
    p = {}
    p["mlp_w1"] = 0.1 * jax.random.normal(next(keys), (FEAT, DENSE // 2), jnp.float32)
    p["mlp_b1"] = 0.1 * jax.random.normal(next(keys), (DENSE // 2,), jnp.float32)
    p["mlp_w2"] = 0.1 * jax.random.normal(next(keys), (DENSE // 2, DENSE), jnp.float32)
    p["mlp_b2"] = 0.1 * jax.random.normal(next(keys), (DENSE,), jnp.float32)

    for li, (In, H) in enumerate(LSTM_DIMS, start=1):
        layer = {}
        for d in ("fwd", "bwd"):
            Wih = orth(next(keys), (4 * H, In), jnp.float32)   # orthogonal, like module init
            Whh = orth(next(keys), (4 * H, H), jnp.float32)
            bih = jax.random.normal(next(keys), (4 * H,), jnp.float32)
            bhh = jax.random.normal(next(keys), (4 * H,), jnp.float32)
            layer[d] = (Wih, Whh, bih, bhh)
        p[f"lstm{li}"] = layer

    d_head = HIDDEN // 8 * 2   # = 8
    p["ln_g"] = jnp.ones((d_head,), jnp.float32)
    p["ln_b"] = jnp.zeros((d_head,), jnp.float32)
    p["head_w"] = 0.1 * jax.random.normal(next(keys), (d_head, 1), jnp.float32)
    p["head_b"] = jnp.zeros((1,), jnp.float32)
    return p


if __name__ == "__main__":
    key = jax.random.PRNGKey(0)
    pkey, xkey = jax.random.split(key)
    params = init_params(pkey)
    packed = pack_params(params)                     # weight packing hoisted out of forward
    x = jax.random.normal(xkey, (BS, SEQ, FEAT), jnp.float32)

    out = forward(packed, x)
    jax.block_until_ready(out)
    assert out.shape == (BS, SEQ) and out.dtype == jnp.float32

    ref = reference_forward(params, x)
    err = float(jnp.max(jnp.abs(out - ref)))
    tol = 1e-2 + 1e-2 * float(jnp.max(jnp.abs(ref)))
    assert err <= tol, f"kernel/reference mismatch: max abs err {err} > {tol}"
    print("KERNEL_OK")
</pallas_src>

<mosaic_0001>
module attributes {stable_mosaic.version = 11 : i64} {
  func.func @fused_forward_kernel(%arg0: memref<16x8xf32, #tpu.memory_space<vmem>>, %arg1: memref<8x16xf32, #tpu.memory_space<vmem>>, %arg2: memref<1x16xf32, #tpu.memory_space<vmem>>, %arg3: memref<16x32xf32, #tpu.memory_space<vmem>>, %arg4: memref<1x32xf32, #tpu.memory_space<vmem>>, %arg5: memref<32x256xf32, #tpu.memory_space<vmem>>, %arg6: memref<1x256xf32, #tpu.memory_space<vmem>>, %arg7: memref<32x128xf32, #tpu.memory_space<vmem>>, %arg8: memref<32x128xf32, #tpu.memory_space<vmem>>, %arg9: memref<64x128xf32, #tpu.memory_space<vmem>>, %arg10: memref<1x128xf32, #tpu.memory_space<vmem>>, %arg11: memref<16x64xf32, #tpu.memory_space<vmem>>, %arg12: memref<16x64xf32, #tpu.memory_space<vmem>>, %arg13: memref<32x64xf32, #tpu.memory_space<vmem>>, %arg14: memref<1x64xf32, #tpu.memory_space<vmem>>, %arg15: memref<8x32xf32, #tpu.memory_space<vmem>>, %arg16: memref<8x32xf32, #tpu.memory_space<vmem>>, %arg17: memref<16x32xf32, #tpu.memory_space<vmem>>, %arg18: memref<1x32xf32, #tpu.memory_space<vmem>>, %arg19: memref<4x16xf32, #tpu.memory_space<vmem>>, %arg20: memref<4x16xf32, #tpu.memory_space<vmem>>, %arg21: memref<1x8xf32, #tpu.memory_space<vmem>>, %arg22: memref<1x8xf32, #tpu.memory_space<vmem>>, %arg23: memref<1x8xf32, #tpu.memory_space<vmem>>, %arg24: memref<1x1xf32, #tpu.memory_space<vmem>>, %arg25: memref<2x8xf32, #tpu.memory_space<vmem>>) attributes {dimension_semantics = [], scalar_prefetch = 0 : i64, scratch_operands = 0 : i64, tpu.core_type = #tpu.core_type<tc>} {
    %c0 = arith.constant 0 : index
    %c0_0 = arith.constant 0 : index
    %0 = tpu.strided_load %arg0[%c0, %c0_0] {strides = array<i32: 8, 1>} : memref<16x8xf32, #tpu.memory_space<vmem>>, vector<2x8xf32>
    %c1 = arith.constant 1 : index
    %c0_1 = arith.constant 0 : index
    %1 = tpu.strided_load %arg0[%c1, %c0_1] {strides = array<i32: 8, 1>} : memref<16x8xf32, #tpu.memory_space<vmem>>, vector<2x8xf32>
    %c2 = arith.constant 2 : index
    %c0_2 = arith.constant 0 : index
    %2 = tpu.strided_load %arg0[%c2, %c0_2] {strides = array<i32: 8, 1>} : memref<16x8xf32, #tpu.memory_space<vmem>>, vector<2x8xf32>
    %c3 = arith.constant 3 : index
    %c0_3 = arith.constant 0 : index
    %3 = tpu.strided_load %arg0[%c3, %c0_3] {strides = array<i32: 8, 1>} : memref<16x8xf32, #tpu.memory_space<vmem>>, vector<2x8xf32>
    %c4 = arith.constant 4 : index
    %c0_4 = arith.constant 0 : index
    %4 = tpu.strided_load %arg0[%c4, %c0_4] {strides = array<i32: 8, 1>} : memref<16x8xf32, #tpu.memory_space<vmem>>, vector<2x8xf32>
    %c5 = arith.constant 5 : index
    %c0_5 = arith.constant 0 : index
    %5 = tpu.strided_load %arg0[%c5, %c0_5] {strides = array<i32: 8, 1>} : memref<16x8xf32, #tpu.memory_space<vmem>>, vector<2x8xf32>
    %c6 = arith.constant 6 : index
    %c0_6 = arith.constant 0 : index
    %6 = tpu.strided_load %arg0[%c6, %c0_6] {strides = array<i32: 8, 1>} : memref<16x8xf32, #tpu.memory_space<vmem>>, vector<2x8xf32>
    %c7 = arith.constant 7 : index
    %c0_7 = arith.constant 0 : index
    %7 = tpu.strided_load %arg0[%c7, %c0_7] {strides = array<i32: 8, 1>} : memref<16x8xf32, #tpu.memory_space<vmem>>, vector<2x8xf32>
    %8 = tpu.concatenate %0, %1, %2, %3, %4, %5, %6, %7 in 0 : vector<2x8xf32>, vector<2x8xf32>, vector<2x8xf32>, vector<2x8xf32>, vector<2x8xf32>, vector<2x8xf32>, vector<2x8xf32>, vector<2x8xf32> -> vector<16x8xf32>
    %c0_8 = arith.constant 0 : index
    %c0_9 = arith.constant 0 : index
    %9 = vector.load %arg1[%c0_8, %c0_9] : memref<8x16xf32, #tpu.memory_space<vmem>>, vector<8x16xf32>
    %cst = arith.constant dense<0.000000e+00> : vector<16x16xf32>
    %10 = tpu.matmul %8, %9, %cst {dimension_numbers = #tpu.dot_dimension_numbers<[1], [0], [0], [1], [0, 0, 1, 1], [], []>} : vector<16x8xf32>, vector<8x16xf32>, vector<16x16xf32> -> vector<16x16xf32>
    %c0_10 = arith.constant 0 : index
    %c0_11 = arith.constant 0 : index
    %11 = vector.load %arg2[%c0_10, %c0_11] : memref<1x16xf32, #tpu.memory_space<vmem>>, vector<1x16xf32>
    %12 = vector.broadcast %11 : vector<1x16xf32> to vector<16x16xf32>
    %13 = arith.addf %10, %12 : vector<16x16xf32>
    %cst_12 = arith.constant 0.000000e+00 : f32
    %14 = vector.broadcast %cst_12 : f32 to vector<16x16xf32>
    %15 = arith.maximumf %13, %14 : vector<16x16xf32>
    %c0_13 = arith.constant 0 : index
    %c0_14 = arith.constant 0 : index
    %16 = vector.load %arg3[%c0_13, %c0_14] : memref<16x32xf32, #tpu.memory_space<vmem>>, vector<16x32xf32>
    %cst_15 = arith.constant dense<0.000000e+00> : vector<16x32xf32>
    %17 = tpu.matmul %15, %16, %cst_15 {dimension_numbers = #tpu.dot_dimension_numbers<[1], [0], [0], [1], [0, 0, 1, 1], [], []>} : vector<16x16xf32>, vector<16x32xf32>, vector<16x32xf32> -> vector<16x32xf32>
    %c0_16 = arith.constant 0 : index
    %c0_17 = arith.constant 0 : index
    %18 = vector.load %arg4[%c0_16, %c0_17] : memref<1x32xf32, #tpu.memory_space<vmem>>, vector<1x32xf32>
    %19 = vector.broadcast %18 : vector<1x32xf32> to vector<16x32xf32>
    %20 = arith.addf %17, %19 : vector<16x32xf32>
    %cst_18 = arith.constant 0.000000e+00 : f32
    %21 = vector.broadcast %cst_18 : f32 to vector<16x32xf32>
    %22 = arith.maximumf %20, %21 : vector<16x32xf32>
    %c0_19 = arith.constant 0 : index
    %c0_20 = arith.constant 0 : index
    %23 = vector.load %arg7[%c0_19, %c0_20] : memref<32x128xf32, #tpu.memory_space<vmem>>, vector<32x128xf32>
    %c0_21 = arith.constant 0 : index
    %c0_22 = arith.constant 0 : index
    %24 = vector.load %arg8[%c0_21, %c0_22] : memref<32x128xf32, #tpu.memory_space<vmem>>, vector<32x128xf32>
    %c0_23 = arith.constant 0 : index
    %c0_24 = arith.constant 0 : index
    %25 = vector.load %arg5[%c0_23, %c0_24] : memref<32x256xf32, #tpu.memory_space<vmem>>, vector<32x256xf32>
    %cst_25 = arith.constant dense<0.000000e+00> : vector<16x256xf32>
    %26 = tpu.matmul %22, %25, %cst_25 {dimension_numbers = #tpu.dot_dimension_numbers<[1], [0], [0], [1], [0, 0, 1, 1], [], []>} : vector<16x32xf32>, vector<32x256xf32>, vector<16x256xf32> -> vector<16x256xf32>
    %c0_26 = arith.constant 0 : index
    %c0_27 = arith.constant 0 : index
    %27 = vector.load %arg6[%c0_26, %c0_27] : memref<1x256xf32, #tpu.memory_space<vmem>>, vector<1x256xf32>
    %28 = vector.broadcast %27 : vector<1x256xf32> to vector<16x256xf32>
    %29 = arith.addf %26, %28 : vector<16x256xf32>
    %cst_28 = arith.constant 0.000000e+00 : f32
    %30 = vector.broadcast %cst_28 : f32 to vector<2x32xf32>
    %cst_29 = arith.constant 0.000000e+00 : f32
    %31 = vector.broadcast %cst_29 : f32 to vector<2x32xf32>
    %32 = vector.extract_strided_slice %29 {offsets = [0, 0], sizes = [2, 128], strides = [1, 1]} : vector<16x256xf32> to vector<2x128xf32>
    %33 = vector.extract_strided_slice %29 {offsets = [14, 128], sizes = [2, 128], strides = [1, 1]} : vector<16x256xf32> to vector<2x128xf32>
    %34 = vector.extract_strided_slice %32 {offsets = [0, 0], sizes = [2, 32], strides = [1, 1]} : vector<2x128xf32> to vector<2x32xf32>
    %35 = arith.negf %34 : vector<2x32xf32>
    %36 = math.exp %35 : vector<2x32xf32>
    %cst_30 = arith.constant 1.000000e+00 : f32
    %37 = vector.broadcast %cst_30 : f32 to vector<2x32xf32>
    %38 = arith.addf %37, %36 : vector<2x32xf32>
    %39 = arith.divf %37, %38 : vector<2x32xf32>
    %40 = vector.extract_strided_slice %32 {offsets = [0, 32], sizes = [2, 32], strides = [1, 1]} : vector<2x128xf32> to vector<2x32xf32>
    %41 = arith.negf %40 : vector<2x32xf32>
    %42 = math.exp %41 : vector<2x32xf32>
    %cst_31 = arith.constant 1.000000e+00 : f32
    %43 = vector.broadcast %cst_31 : f32 to vector<2x32xf32>
    %44 = arith.addf %43, %42 : vector<2x32xf32>
    %45 = arith.divf %43, %44 : vector<2x32xf32>
    %46 = vector.extract_strided_slice %32 {offsets = [0, 64], sizes = [2, 32], strides = [1, 1]} : vector<2x128xf32> to vector<2x32xf32>
    %47 = math.tanh %46 : vector<2x32xf32>
    %48 = vector.extract_strided_slice %32 {offsets = [0, 96], sizes = [2, 32], strides = [1, 1]} : vector<2x128xf32> to vector<2x32xf32>
    %49 = arith.negf %48 : vector<2x32xf32>
    %50 = math.exp %49 : vector<2x32xf32>
    %cst_32 = arith.constant 1.000000e+00 : f32
    %51 = vector.broadcast %cst_32 : f32 to vector<2x32xf32>
    %52 = arith.addf %51, %50 : vector<2x32xf32>
    %53 = arith.divf %51, %52 : vector<2x32xf32>
    %54 = arith.mulf %45, %30 : vector<2x32xf32>
    %55 = arith.mulf %39, %47 : vector<2x32xf32>
    %56 = arith.addf %54, %55 : vector<2x32xf32>
    %57 = math.tanh %56 : vector<2x32xf32>
    %58 = arith.mulf %53, %57 : vector<2x32xf32>
    %59 = vector.extract_strided_slice %33 {offsets = [0, 0], sizes = [2, 32], strides = [1, 1]} : vector<2x128xf32> to vector<2x32xf32>
    %60 = arith.negf %59 : vector<2x32xf32>
    %61 = math.exp %60 : vector<2x32xf32>
    %cst_33 = arith.constant 1.000000e+00 : f32
    %62 = vector.broadcast %cst_33 : f32 to vector<2x32xf32>
    %63 = arith.addf %62, %61 : vector<2x32xf32>
    %64 = arith.divf %62, %63 : vector<2x32xf32>
    %65 = vector.extract_strided_slice %33 {offsets = [0, 32], sizes = [2, 32], strides = [1, 1]} : vector<2x128xf32> to vector<2x32xf32>
    %66 = arith.negf %65 : vector<2x32xf32>
    %67 = math.exp %66 : vector<2x32xf32>
    %cst_34 = arith.constant 1.000000e+00 : f32
    %68 = vector.broadcast %cst_34 : f32 to vector<2x32xf32>
    %69 = arith.addf %68, %67 : vector<2x32xf32>
    %70 = arith.divf %68, %69 : vector<2x32xf32>
    %71 = vector.extract_strided_slice %33 {offsets = [0, 64], sizes = [2, 32], strides = [1, 1]} : vector<2x128xf32> to vector<2x32xf32>
    %72 = math.tanh %71 : vector<2x32xf32>
    %73 = vector.extract_strided_slice %33 {offsets = [0, 96], sizes = [2, 32], strides = [1, 1]} : vector<2x128xf32> to vector<2x32xf32>
    %74 = arith.negf %73 : vector<2x32xf32>
    %75 = math.exp %74 : vector<2x32xf32>
    %cst_35 = arith.constant 1.000000e+00 : f32
    %76 = vector.broadcast %cst_35 : f32 to vector<2x32xf32>
    %77 = arith.addf %76, %75 : vector<2x32xf32>
    %78 = arith.divf %76, %77 : vector<2x32xf32>
    %79 = arith.mulf %70, %31 : vector<2x32xf32>
    %80 = arith.mulf %64, %72 : vector<2x32xf32>
    %81 = arith.addf %79, %80 : vector<2x32xf32>
    %82 = math.tanh %81 : vector<2x32xf32>
    %83 = arith.mulf %78, %82 : vector<2x32xf32>
    %84 = vector.extract_strided_slice %29 {offsets = [2, 0], sizes = [2, 128], strides = [1, 1]} : vector<16x256xf32> to vector<2x128xf32>
    %85 = vector.extract_strided_slice %29 {offsets = [12, 128], sizes = [2, 128], strides = [1, 1]} : vector<16x256xf32> to vector<2x128xf32>
    %cst_36 = arith.constant dense<0.000000e+00> : vector<2x128xf32>
    %86 = tpu.matmul %58, %23, %cst_36 {dimension_numbers = #tpu.dot_dimension_numbers<[1], [0], [0], [1], [0, 0, 1, 1], [], []>} : vector<2x32xf32>, vector<32x128xf32>, vector<2x128xf32> -> vector<2x128xf32>
    %87 = arith.addf %84, %86 : vector<2x128xf32>
    %cst_37 = arith.constant dense<0.000000e+00> : vector<2x128xf32>
    %88 = tpu.matmul %83, %24, %cst_37 {dimension_numbers = #tpu.dot_dimension_numbers<[1], [0], [0], [1], [0, 0, 1, 1], [], []>} : vector<2x32xf32>, vector<32x128xf32>, vector<2x128xf32> -> vector<2x128xf32>
    %89 = arith.addf %85, %88 : vector<2x128xf32>
    %90 = vector.extract_strided_slice %87 {offsets = [0, 0], sizes = [2, 32], strides = [1, 1]} : vector<2x128xf32> to vector<2x32xf32>
    %91 = arith.negf %90 : vector<2x32xf32>
    %92 = math.exp %91 : vector<2x32xf32>
    %cst_38 = arith.constant 1.000000e+00 : f32
    %93 = vector.broadcast %cst_38 : f32 to vector<2x32xf32>
    %94 = arith.addf %93, %92 : vector<2x32xf32>
    %95 = arith.divf %93, %94 : vector<2x32xf32>
    %96 = vector.extract_strided_slice %87 {offsets = [0, 32], sizes = [2, 32], strides = [1, 1]} : vector<2x128xf32> to vector<2x32xf32>
    %97 = arith.negf %96 : vector<2x32xf32>
    %98 = math.exp %97 : vector<2x32xf32>
    %cst_39 = arith.constant 1.000000e+00 : f32
    %99 = vector.broadcast %cst_39 : f32 to vector<2x32xf32>
    %100 = arith.addf %99, %98 : vector<2x32xf32>
    %101 = arith.divf %99, %100 : vector<2x32xf32>
    %102 = vector.extract_strided_slice %87 {offsets = [0, 64], sizes = [2, 32], strides = [1, 1]} : vector<2x128xf32> to vector<2x32xf32>
    %103 = math.tanh %102 : vector<2x32xf32>
    %104 = vector.extract_strided_slice %87 {offsets = [0, 96], sizes = [2, 32], strides = [1, 1]} : vector<2x128xf32> to vector<2x32xf32>
    %105 = arith.negf %104 : vector<2x32xf32>
    %106 = math.exp %105 : vector<2x32xf32>
    %cst_40 = arith.constant 1.000000e+00 : f32
    %107 = vector.broadcast %cst_40 : f32 to vector<2x32xf32>
    %108 = arith.addf %107, %106 : vector<2x32xf32>
    %109 = arith.divf %107, %108 : vector<2x32xf32>
    %110 = arith.mulf %101, %56 : vector<2x32xf32>
    %111 = arith.mulf %95, %103 : vector<2x32xf32>
    %112 = arith.addf %110, %111 : vector<2x32xf32>
    %113 = math.tanh %112 : vector<2x32xf32>
    %114 = arith.mulf %109, %113 : vector<2x32xf32>
    %115 = vector.extract_strided_slice %89 {offsets = [0, 0], sizes = [2, 32], strides = [1, 1]} : vector<2x128xf32> to vector<2x32xf32>
    %116 = arith.negf %115 : vector<2x32xf32>
    %117 = math.exp %116 : vector<2x32xf32>
    %cst_41 = arith.constant 1.000000e+00 : f32
    %118 = vector.broadcast %cst_41 : f32 to vector<2x32xf32>
    %119 = arith.addf %118, %117 : vector<2x32xf32>
    %120 = arith.divf %118, %119 : vector<2x32xf32>
    %121 = vector.extract_strided_slice %89 {offsets = [0, 32], sizes = [2, 32], strides = [1, 1]} : vector<2x128xf32> to vector<2x32xf32>
    %122 = arith.negf %121 : vector<2x32xf32>
    %123 = math.exp %122 : vector<2x32xf32>
    %cst_42 = arith.constant 1.000000e+00 : f32
    %124 = vector.broadcast %cst_42 : f32 to vector<2x32xf32>
    %125 = arith.addf %124, %123 : vector<2x32xf32>
    %126 = arith.divf %124, %125 : vector<2x32xf32>
    %127 = vector.extract_strided_slice %89 {offsets = [0, 64], sizes = [2, 32], strides = [1, 1]} : vector<2x128xf32> to vector<2x32xf32>
    %128 = math.tanh %127 : vector<2x32xf32>
    %129 = vector.extract_strided_slice %89 {offsets = [0, 96], sizes = [2, 32], strides = [1, 1]} : vector<2x128xf32> to vector<2x32xf32>
    %130 = arith.negf %129 : vector<2x32xf32>
    %131 = math.exp %130 : vector<2x32xf32>
    %cst_43 = arith.constant 1.000000e+00 : f32
    %132 = vector.broadcast %cst_43 : f32 to vector<2x32xf32>
    %133 = arith.addf %132, %131 : vector<2x32xf32>
    %134 = arith.divf %132, %133 : vector<2x32xf32>
    %135 = arith.mulf %126, %81 : vector<2x32xf32>
    %136 = arith.mulf %120, %128 : vector<2x32xf32>
    %137 = arith.addf %135, %136 : vector<2x32xf32>
    %138 = math.tanh %137 : vector<2x32xf32>
    %139 = arith.mulf %134, %138 : vector<2x32xf32>
    %140 = vector.extract_strided_slice %29 {offsets = [4, 0], sizes = [2, 128], strides = [1, 1]} : vector<16x256xf32> to vector<2x128xf32>
    %141 = vector.extract_strided_slice %29 {offsets = [10, 128], sizes = [2, 128], strides = [1, 1]} : vector<16x256xf32> to vector<2x128xf32>
    %cst_44 = arith.constant dense<0.000000e+00> : vector<2x128xf32>
    %142 = tpu.matmul %114, %23, %cst_44 {dimension_numbers = #tpu.dot_dimension_numbers<[1], [0], [0], [1], [0, 0, 1, 1], [], []>} : vector<2x32xf32>, vector<32x128xf32>, vector<2x128xf32> -> vector<2x128xf32>
    %143 = arith.addf %140, %142 : vector<2x128xf32>
    %cst_45 = arith.constant dense<0.000000e+00> : vector<2x128xf32>
    %144 = tpu.matmul %139, %24, %cst_45 {dimension_numbers = #tpu.dot_dimension_numbers<[1], [0], [0], [1], [0, 0, 1, 1], [], []>} : vector<2x32xf32>, vector<32x128xf32>, vector<2x128xf32> -> vector<2x128xf32>
    %145 = arith.addf %141, %144 : vector<2x128xf32>
    %146 = vector.extract_strided_slice %143 {offsets = [0, 0], sizes = [2, 32], strides = [1, 1]} : vector<2x128xf32> to vector<2x32xf32>
    %147 = arith.negf %146 : vector<2x32xf32>
    %148 = math.exp %147 : vector<2x32xf32>
    %cst_46 = arith.constant 1.000000e+00 : f32
    %149 = vector.broadcast %cst_46 : f32 to vector<2x32xf32>
    %150 = arith.addf %149, %148 : vector<2x32xf32>
    %151 = arith.divf %149, %150 : vector<2x32xf32>
    %152 = vector.extract_strided_slice %143 {offsets = [0, 32], sizes = [2, 32], strides = [1, 1]} : vector<2x128xf32> to vector<2x32xf32>
    %153 = arith.negf %152 : vector<2x32xf32>
    %154 = math.exp %153 : vector<2x32xf32>
    %cst_47 = arith.constant 1.000000e+00 : f32
    %155 = vector.broadcast %cst_47 : f32 to vector<2x32xf32>
    %156 = arith.addf %155, %154 : vector<2x32xf32>
    %157 = arith.divf %155, %156 : vector<2x32xf32>
    %158 = vector.extract_strided_slice %143 {offsets = [0, 64], sizes = [2, 32], strides = [1, 1]} : vector<2x128xf32> to vector<2x32xf32>
    %159 = math.tanh %158 : vector<2x32xf32>
    %160 = vector.extract_strided_slice %143 {offsets = [0, 96], sizes = [2, 32], strides = [1, 1]} : vector<2x128xf32> to vector<2x32xf32>
    %161 = arith.negf %160 : vector<2x32xf32>
    %162 = math.exp %161 : vector<2x32xf32>
    %cst_48 = arith.constant 1.000000e+00 : f32
    %163 = vector.broadcast %cst_48 : f32 to vector<2x32xf32>
    %164 = arith.addf %163, %162 : vector<2x32xf32>
    %165 = arith.divf %163, %164 : vector<2x32xf32>
    %166 = arith.mulf %157, %112 : vector<2x32xf32>
    %167 = arith.mulf %151, %159 : vector<2x32xf32>
    %168 = arith.addf %166, %167 : vector<2x32xf32>
    %169 = math.tanh %168 : vector<2x32xf32>
    %170 = arith.mulf %165, %169 : vector<2x32xf32>
    %171 = vector.extract_strided_slice %145 {offsets = [0, 0], sizes = [2, 32], strides = [1, 1]} : vector<2x128xf32> to vector<2x32xf32>
    %172 = arith.negf %171 : vector<2x32xf32>
    %173 = math.exp %172 : vector<2x32xf32>
    %cst_49 = arith.constant 1.000000e+00 : f32
    %174 = vector.broadcast %cst_49 : f32 to vector<2x32xf32>
    %175 = arith.addf %174, %173 : vector<2x32xf32>
    %176 = arith.divf %174, %175 : vector<2x32xf32>
    %177 = vector.extract_strided_slice %145 {offsets = [0, 32], sizes = [2, 32], strides = [1, 1]} : vector<2x128xf32> to vector<2x32xf32>
    %178 = arith.negf %177 : vector<2x32xf32>
    %179 = math.exp %178 : vector<2x32xf32>
    %cst_50 = arith.constant 1.000000e+00 : f32
    %180 = vector.broadcast %cst_50 : f32 to vector<2x32xf32>
    %181 = arith.addf %180, %179 : vector<2x32xf32>
    %182 = arith.divf %180, %181 : vector<2x32xf32>
    %183 = vector.extract_strided_slice %145 {offsets = [0, 64], sizes = [2, 32], strides = [1, 1]} : vector<2x128xf32> to vector<2x32xf32>
    %184 = math.tanh %183 : vector<2x32xf32>
    %185 = vector.extract_strided_slice %145 {offsets = [0, 96], sizes = [2, 32], strides = [1, 1]} : vector<2x128xf32> to vector<2x32xf32>
    %186 = arith.negf %185 : vector<2x32xf32>
    %187 = math.exp %186 : vector<2x32xf32>
    %cst_51 = arith.constant 1.000000e+00 : f32
    %188 = vector.broadcast %cst_51 : f32 to vector<2x32xf32>
    %189 = arith.addf %188, %187 : vector<2x32xf32>
    %190 = arith.divf %188, %189 : vector<2x32xf32>
    %191 = arith.mulf %182, %137 : vector<2x32xf32>
    %192 = arith.mulf %176, %184 : vector<2x32xf32>
    %193 = arith.addf %191, %192 : vector<2x32xf32>
    %194 = math.tanh %193 : vector<2x32xf32>
    %195 = arith.mulf %190, %194 : vector<2x32xf32>
    %196 = vector.extract_strided_slice %29 {offsets = [6, 0], sizes = [2, 128], strides = [1, 1]} : vector<16x256xf32> to vector<2x128xf32>
    %197 = vector.extract_strided_slice %29 {offsets = [8, 128], sizes = [2, 128], strides = [1, 1]} : vector<16x256xf32> to vector<2x128xf32>
    %cst_52 = arith.constant dense<0.000000e+00> : vector<2x128xf32>
    %198 = tpu.matmul %170, %23, %cst_52 {dimension_numbers = #tpu.dot_dimension_numbers<[1], [0], [0], [1], [0, 0, 1, 1], [], []>} : vector<2x32xf32>, vector<32x128xf32>, vector<2x128xf32> -> vector<2x128xf32>
    %199 = arith.addf %196, %198 : vector<2x128xf32>
    %cst_53 = arith.constant dense<0.000000e+00> : vector<2x128xf32>
    %200 = tpu.matmul %195, %24, %cst_53 {dimension_numbers = #tpu.dot_dimension_numbers<[1], [0], [0], [1], [0, 0, 1, 1], [], []>} : vector<2x32xf32>, vector<32x128xf32>, vector<2x128xf32> -> vector<2x128xf32>
    %201 = arith.addf %197, %200 : vector<2x128xf32>
    %202 = vector.extract_strided_slice %199 {offsets = [0, 0], sizes = [2, 32], strides = [1, 1]} : vector<2x128xf32> to vector<2x32xf32>
    %203 = arith.negf %202 : vector<2x32xf32>
    %204 = math.exp %203 : vector<2x32xf32>
    %cst_54 = arith.constant 1.000000e+00 : f32
    %205 = vector.broadcast %cst_54 : f32 to vector<2x32xf32>
    %206 = arith.addf %205, %204 : vector<2x32xf32>
    %207 = arith.divf %205, %206 : vector<2x32xf32>
    %208 = vector.extract_strided_slice %199 {offsets = [0, 32], sizes = [2, 32], strides = [1, 1]} : vector<2x128xf32> to vector<2x32xf32>
    %209 = arith.negf %208 : vector<2x32xf32>
    %210 = math.exp %209 : vector<2x32xf32>
    %cst_55 = arith.constant 1.000000e+00 : f32
    %211 = vector.broadcast %cst_55 : f32 to vector<2x32xf32>
    %212 = arith.addf %211, %210 : vector<2x32xf32>
    %213 = arith.divf %211, %212 : vector<2x32xf32>
    %214 = vector.extract_strided_slice %199 {offsets = [0, 64], sizes = [2, 32], strides = [1, 1]} : vector<2x128xf32> to vector<2x32xf32>
    %215 = math.tanh %214 : vector<2x32xf32>
    %216 = vector.extract_strided_slice %199 {offsets = [0, 96], sizes = [2, 32], strides = [1, 1]} : vector<2x128xf32> to vector<2x32xf32>
    %217 = arith.negf %216 : vector<2x32xf32>
    %218 = math.exp %217 : vector<2x32xf32>
    %cst_56 = arith.constant 1.000000e+00 : f32
    %219 = vector.broadcast %cst_56 : f32 to vector<2x32xf32>
    %220 = arith.addf %219, %218 : vector<2x32xf32>
    %221 = arith.divf %219, %220 : vector<2x32xf32>
    %222 = arith.mulf %213, %168 : vector<2x32xf32>
    %223 = arith.mulf %207, %215 : vector<2x32xf32>
    %224 = arith.addf %222, %223 : vector<2x32xf32>
    %225 = math.tanh %224 : vector<2x32xf32>
    %226 = arith.mulf %221, %225 : vector<2x32xf32>
    %227 = vector.extract_strided_slice %201 {offsets = [0, 0], sizes = [2, 32], strides = [1, 1]} : vector<2x128xf32> to vector<2x32xf32>
    %228 = arith.negf %227 : vector<2x32xf32>
    %229 = math.exp %228 : vector<2x32xf32>
    %cst_57 = arith.constant 1.000000e+00 : f32
    %230 = vector.broadcast %cst_57 : f32 to vector<2x32xf32>
    %231 = arith.addf %230, %229 : vector<2x32xf32>
    %232 = arith.divf %230, %231 : vector<2x32xf32>
    %233 = vector.extract_strided_slice %201 {offsets = [0, 32], sizes = [2, 32], strides = [1, 1]} : vector<2x128xf32> to vector<2x32xf32>
    %234 = arith.negf %233 : vector<2x32xf32>
    %235 = math.exp %234 : vector<2x32xf32>
    %cst_58 = arith.constant 1.000000e+00 : f32
    %236 = vector.broadcast %cst_58 : f32 to vector<2x32xf32>
    %237 = arith.addf %236, %235 : vector<2x32xf32>
    %238 = arith.divf %236, %237 : vector<2x32xf32>
    %239 = vector.extract_strided_slice %201 {offsets = [0, 64], sizes = [2, 32], strides = [1, 1]} : vector<2x128xf32> to vector<2x32xf32>
    %240 = math.tanh %239 : vector<2x32xf32>
    %241 = vector.extract_strided_slice %201 {offsets = [0, 96], sizes = [2, 32], strides = [1, 1]} : vector<2x128xf32> to vector<2x32xf32>
    %242 = arith.negf %241 : vector<2x32xf32>
    %243 = math.exp %242 : vector<2x32xf32>
    %cst_59 = arith.constant 1.000000e+00 : f32
    %244 = vector.broadcast %cst_59 : f32 to vector<2x32xf32>
    %245 = arith.addf %244, %243 : vector<2x32xf32>
    %246 = arith.divf %244, %245 : vector<2x32xf32>
    %247 = arith.mulf %238, %193 : vector<2x32xf32>
    %248 = arith.mulf %232, %240 : vector<2x32xf32>
    %249 = arith.addf %247, %248 : vector<2x32xf32>
    %250 = math.tanh %249 : vector<2x32xf32>
    %251 = arith.mulf %246, %250 : vector<2x32xf32>
    %252 = vector.extract_strided_slice %29 {offsets = [8, 0], sizes = [2, 128], strides = [1, 1]} : vector<16x256xf32> to vector<2x128xf32>
    %253 = vector.extract_strided_slice %29 {offsets = [6, 128], sizes = [2, 128], strides = [1, 1]} : vector<16x256xf32> to vector<2x128xf32>
    %cst_60 = arith.constant dense<0.000000e+00> : vector<2x128xf32>
    %254 = tpu.matmul %226, %23, %cst_60 {dimension_numbers = #tpu.dot_dimension_numbers<[1], [0], [0], [1], [0, 0, 1, 1], [], []>} : vector<2x32xf32>, vector<32x128xf32>, vector<2x128xf32> -> vector<2x128xf32>
    %255 = arith.addf %252, %254 : vector<2x128xf32>
    %cst_61 = arith.constant dense<0.000000e+00> : vector<2x128xf32>
    %256 = tpu.matmul %251, %24, %cst_61 {dimension_numbers = #tpu.dot_dimension_numbers<[1], [0], [0], [1], [0, 0, 1, 1], [], []>} : vector<2x32xf32>, vector<32x128xf32>, vector<2x128xf32> -> vector<2x128xf32>
    %257 = arith.addf %253, %256 : vector<2x128xf32>
    %258 = vector.extract_strided_slice %255 {offsets = [0, 0], sizes = [2, 32], strides = [1, 1]} : vector<2x128xf32> to vector<2x32xf32>
    %259 = arith.negf %258 : vector<2x32xf32>
    %260 = math.exp %259 : vector<2x32xf32>
    %cst_62 = arith.constant 1.000000e+00 : f32
    %261 = vector.broadcast %cst_62 : f32 to vector<2x32xf32>
    %262 = arith.addf %261, %260 : vector<2x32xf32>
    %263 = arith.divf %261, %262 : vector<2x32xf32>
    %264 = vector.extract_strided_slice %255 {offsets = [0, 32], sizes = [2, 32], strides = [1, 1]} : vector<2x128xf32> to vector<2x32xf32>
    %265 = arith.negf %264 : vector<2x32xf32>
    %266 = math.exp %265 : vector<2x32xf32>
    %cst_63 = arith.constant 1.000000e+00 : f32
    %267 = vector.broadcast %cst_63 : f32 to vector<2x32xf32>
    %268 = arith.addf %267, %266 : vector<2x32xf32>
    %269 = arith.divf %267, %268 : vector<2x32xf32>
    %270 = vector.extract_strided_slice %255 {offsets = [0, 64], sizes = [2, 32], strides = [1, 1]} : vector<2x128xf32> to vector<2x32xf32>
    %271 = math.tanh %270 : vector<2x32xf32>
    %272 = vector.extract_strided_slice %255 {offsets = [0, 96], sizes = [2, 32], strides = [1, 1]} : vector<2x128xf32> to vector<2x32xf32>
    %273 = arith.negf %272 : vector<2x32xf32>
    %274 = math.exp %273 : vector<2x32xf32>
    %cst_64 = arith.constant 1.000000e+00 : f32
    %275 = vector.broadcast %cst_64 : f32 to vector<2x32xf32>
    %276 = arith.addf %275, %274 : vector<2x32xf32>
    %277 = arith.divf %275, %276 : vector<2x32xf32>
    %278 = arith.mulf %269, %224 : vector<2x32xf32>
    %279 = arith.mulf %263, %271 : vector<2x32xf32>
    %280 = arith.addf %278, %279 : vector<2x32xf32>
    %281 = math.tanh %280 : vector<2x32xf32>
    %282 = arith.mulf %277, %281 : vector<2x32xf32>
    %283 = vector.extract_strided_slice %257 {offsets = [0, 0], sizes = [2, 32], strides = [1, 1]} : vector<2x128xf32> to vector<2x32xf32>
    %284 = arith.negf %283 : vector<2x32xf32>
    %285 = math.exp %284 : vector<2x32xf32>
    %cst_65 = arith.constant 1.000000e+00 : f32
    %286 = vector.broadcast %cst_65 : f32 to vector<2x32xf32>
    %287 = arith.addf %286, %285 : vector<2x32xf32>
    %288 = arith.divf %286, %287 : vector<2x32xf32>
    %289 = vector.extract_strided_slice %257 {offsets = [0, 32], sizes = [2, 32], strides = [1, 1]} : vector<2x128xf32> to vector<2x32xf32>
    %290 = arith.negf %289 : vector<2x32xf32>
    %291 = math.exp %290 : vector<2x32xf32>
    %cst_66 = arith.constant 1.000000e+00 : f32
    %292 = vector.broadcast %cst_66 : f32 to vector<2x32xf32>
    %293 = arith.addf %292, %291 : vector<2x32xf32>
    %294 = arith.divf %292, %293 : vector<2x32xf32>
    %295 = vector.extract_strided_slice %257 {offsets = [0, 64], sizes = [2, 32], strides = [1, 1]} : vector<2x128xf32> to vector<2x32xf32>
    %296 = math.tanh %295 : vector<2x32xf32>
    %297 = vector.extract_strided_slice %257 {offsets = [0, 96], sizes = [2, 32], strides = [1, 1]} : vector<2x128xf32> to vector<2x32xf32>
    %298 = arith.negf %297 : vector<2x32xf32>
    %299 = math.exp %298 : vector<2x32xf32>
    %cst_67 = arith.constant 1.000000e+00 : f32
    %300 = vector.broadcast %cst_67 : f32 to vector<2x32xf32>
    %301 = arith.addf %300, %299 : vector<2x32xf32>
    %302 = arith.divf %300, %301 : vector<2x32xf32>
    %303 = arith.mulf %294, %249 : vector<2x32xf32>
    %304 = arith.mulf %288, %296 : vector<2x32xf32>
    %305 = arith.addf %303, %304 : vector<2x32xf32>
    %306 = math.tanh %305 : vector<2x32xf32>
    %307 = arith.mulf %302, %306 : vector<2x32xf32>
    %308 = vector.extract_strided_slice %29 {offsets = [10, 0], sizes = [2, 128], strides = [1, 1]} : vector<16x256xf32> to vector<2x128xf32>
    %309 = vector.extract_strided_slice %29 {offsets = [4, 128], sizes = [2, 128], strides = [1, 1]} : vector<16x256xf32> to vector<2x128xf32>
    %cst_68 = arith.constant dense<0.000000e+00> : vector<2x128xf32>
    %310 = tpu.matmul %282, %23, %cst_68 {dimension_numbers = #tpu.dot_dimension_numbers<[1], [0], [0], [1], [0, 0, 1, 1], [], []>} : vector<2x32xf32>, vector<32x128xf32>, vector<2x128xf32> -> vector<2x128xf32>
    %311 = arith.addf %308, %310 : vector<2x128xf32>
    %cst_69 = arith.constant dense<0.000000e+00> : vector<2x128xf32>
    %312 = tpu.matmul %307, %24, %cst_69 {dimension_numbers = #tpu.dot_dimension_numbers<[1], [0], [0], [1], [0, 0, 1, 1], [], []>} : vector<2x32xf32>, vector<32x128xf32>, vector<2x128xf32> -> vector<2x128xf32>
    %313 = arith.addf %309, %312 : vector<2x128xf32>
    %314 = vector.extract_strided_slice %311 {offsets = [0, 0], sizes = [2, 32], strides = [1, 1]} : vector<2x128xf32> to vector<2x32xf32>
    %315 = arith.negf %314 : vector<2x32xf32>
    %316 = math.exp %315 : vector<2x32xf32>
    %cst_70 = arith.constant 1.000000e+00 : f32
    %317 = vector.broadcast %cst_70 : f32 to vector<2x32xf32>
    %318 = arith.addf %317, %316 : vector<2x32xf32>
    %319 = arith.divf %317, %318 : vector<2x32xf32>
    %320 = vector.extract_strided_slice %311 {offsets = [0, 32], sizes = [2, 32], strides = [1, 1]} : vector<2x128xf32> to vector<2x32xf32>
    %321 = arith.negf %320 : vector<2x32xf32>
    %322 = math.exp %321 : vector<2x32xf32>
    %cst_71 = arith.constant 1.000000e+00 : f32
    %323 = vector.broadcast %cst_71 : f32 to vector<2x32xf32>
    %324 = arith.addf %323, %322 : vector<2x32xf32>
    %325 = arith.divf %323, %324 : vector<2x32xf32>
    %326 = vector.extract_strided_slice %311 {offsets = [0, 64], sizes = [2, 32], strides = [1, 1]} : vector<2x128xf32> to vector<2x32xf32>
    %327 = math.tanh %326 : vector<2x32xf32>
    %328 = vector.extract_strided_slice %311 {offsets = [0, 96], sizes = [2, 32], strides = [1, 1]} : vector<2x128xf32> to vector<2x32xf32>
    %329 = arith.negf %328 : vector<2x32xf32>
    %330 = math.exp %329 : vector<2x32xf32>
    %cst_72 = arith.constant 1.000000e+00 : f32
    %331 = vector.broadcast %cst_72 : f32 to vector<2x32xf32>
    %332 = arith.addf %331, %330 : vector<2x32xf32>
    %333 = arith.divf %331, %332 : vector<2x32xf32>
    %334 = arith.mulf %325, %280 : vector<2x32xf32>
    %335 = arith.mulf %319, %327 : vector<2x32xf32>
    %336 = arith.addf %334, %335 : vector<2x32xf32>
    %337 = math.tanh %336 : vector<2x32xf32>
    %338 = arith.mulf %333, %337 : vector<2x32xf32>
    %339 = vector.extract_strided_slice %313 {offsets = [0, 0], sizes = [2, 32], strides = [1, 1]} : vector<2x128xf32> to vector<2x32xf32>
    %340 = arith.negf %339 : vector<2x32xf32>
    %341 = math.exp %340 : vector<2x32xf32>
    %cst_73 = arith.constant 1.000000e+00 : f32
    %342 = vector.broadcast %cst_73 : f32 to vector<2x32xf32>
    %343 = arith.addf %342, %341 : vector<2x32xf32>
    %344 = arith.divf %342, %343 : vector<2x32xf32>
    %345 = vector.extract_strided_slice %313 {offsets = [0, 32], sizes = [2, 32], strides = [1, 1]} : vector<2x128xf32> to vector<2x32xf32>
    %346 = arith.negf %345 : vector<2x32xf32>
    %347 = math.exp %346 : vector<2x32xf32>
    %cst_74 = arith.constant 1.000000e+00 : f32
    %348 = vector.broadcast %cst_74 : f32 to vector<2x32xf32>
    %349 = arith.addf %348, %347 : vector<2x32xf32>
    %350 = arith.divf %348, %349 : vector<2x32xf32>
    %351 = vector.extract_strided_slice %313 {offsets = [0, 64], sizes = [2, 32], strides = [1, 1]} : vector<2x128xf32> to vector<2x32xf32>
    %352 = math.tanh %351 : vector<2x32xf32>
    %353 = vector.extract_strided_slice %313 {offsets = [0, 96], sizes = [2, 32], strides = [1, 1]} : vector<2x128xf32> to vector<2x32xf32>
    %354 = arith.negf %353 : vector<2x32xf32>
    %355 = math.exp %354 : vector<2x32xf32>
    %cst_75 = arith.constant 1.000000e+00 : f32
    %356 = vector.broadcast %cst_75 : f32 to vector<2x32xf32>
    %357 = arith.addf %356, %355 : vector<2x32xf32>
    %358 = arith.divf %356, %357 : vector<2x32xf32>
    %359 = arith.mulf %350, %305 : vector<2x32xf32>
    %360 = arith.mulf %344, %352 : vector<2x32xf32>
    %361 = arith.addf %359, %360 : vector<2x32xf32>
    %362 = math.tanh %361 : vector<2x32xf32>
    %363 = arith.mulf %358, %362 : vector<2x32xf32>
    %364 = vector.extract_strided_slice %29 {offsets = [12, 0], sizes = [2, 128], strides = [1, 1]} : vector<16x256xf32> to vector<2x128xf32>
    %365 = vector.extract_strided_slice %29 {offsets = [2, 128], sizes = [2, 128], strides = [1, 1]} : vector<16x256xf32> to vector<2x128xf32>
    %cst_76 = arith.constant dense<0.000000e+00> : vector<2x128xf32>
    %366 = tpu.matmul %338, %23, %cst_76 {dimension_numbers = #tpu.dot_dimension_numbers<[1], [0], [0], [1], [0, 0, 1, 1], [], []>} : vector<2x32xf32>, vector<32x128xf32>, vector<2x128xf32> -> vector<2x128xf32>
    %367 = arith.addf %364, %366 : vector<2x128xf32>
    %cst_77 = arith.constant dense<0.000000e+00> : vector<2x128xf32>
    %368 = tpu.matmul %363, %24, %cst_77 {dimension_numbers = #tpu.dot_dimension_numbers<[1], [0], [0], [1], [0, 0, 1, 1], [], []>} : vector<2x32xf32>, vector<32x128xf32>, vector<2x128xf32> -> vector<2x128xf32>
    %369 = arith.addf %365, %368 : vector<2x128xf32>
    %370 = vector.extract_strided_slice %367 {offsets = [0, 0], sizes = [2, 32], strides = [1, 1]} : vector<2x128xf32> to vector<2x32xf32>
    %371 = arith.negf %370 : vector<2x32xf32>
    %372 = math.exp %371 : vector<2x32xf32>
    %cst_78 = arith.constant 1.000000e+00 : f32
    %373 = vector.broadcast %cst_78 : f32 to vector<2x32xf32>
    %374 = arith.addf %373, %372 : vector<2x32xf32>
    %375 = arith.divf %373, %374 : vector<2x32xf32>
    %376 = vector.extract_strided_slice %367 {offsets = [0, 32], sizes = [2, 32], strides = [1, 1]} : vector<2x128xf32> to vector<2x32xf32>
    %377 = arith.negf %376 : vector<2x32xf32>
    %378 = math.exp %377 : vector<2x32xf32>
    %cst_79 = arith.constant 1.000000e+00 : f32
    %379 = vector.broadcast %cst_79 : f32 to vector<2x32xf32>
    %380 = arith.addf %379, %378 : vector<2x32xf32>
    %381 = arith.divf %379, %380 : vector<2x32xf32>
    %382 = vector.extract_strided_slice %367 {offsets = [0, 64], sizes = [2, 32], strides = [1, 1]} : vector<2x128xf32> to vector<2x32xf32>
    %383 = math.tanh %382 : vector<2x32xf32>
    %384 = vector.extract_strided_slice %367 {offsets = [0, 96], sizes = [2, 32], strides = [1, 1]} : vector<2x128xf32> to vector<2x32xf32>
    %385 = arith.negf %384 : vector<2x32xf32>
    %386 = math.exp %385 : vector<2x32xf32>
    %cst_80 = arith.constant 1.000000e+00 : f32
    %387 = vector.broadcast %cst_80 : f32 to vector<2x32xf32>
    %388 = arith.addf %387, %386 : vector<2x32xf32>
    %389 = arith.divf %387, %388 : vector<2x32xf32>
    %390 = arith.mulf %381, %336 : vector<2x32xf32>
    %391 = arith.mulf %375, %383 : vector<2x32xf32>
    %392 = arith.addf %390, %391 : vector<2x32xf32>
    %393 = math.tanh %392 : vector<2x32xf32>
    %394 = arith.mulf %389, %393 : vector<2x32xf32>
    %395 = vector.extract_strided_slice %369 {offsets = [0, 0], sizes = [2, 32], strides = [1, 1]} : vector<2x128xf32> to vector<2x32xf32>
    %396 = arith.negf %395 : vector<2x32xf32>
    %397 = math.exp %396 : vector<2x32xf32>
    %cst_81 = arith.constant 1.000000e+00 : f32
    %398 = vector.broadcast %cst_81 : f32 to vector<2x32xf32>
    %399 = arith.addf %398, %397 : vector<2x32xf32>
    %400 = arith.divf %398, %399 : vector<2x32xf32>
    %401 = vector.extract_strided_slice %369 {offsets = [0, 32], sizes = [2, 32], strides = [1, 1]} : vector<2x128xf32> to vector<2x32xf32>
    %402 = arith.negf %401 : vector<2x32xf32>
    %403 = math.exp %402 : vector<2x32xf32>
    %cst_82 = arith.constant 1.000000e+00 : f32
    %404 = vector.broadcast %cst_82 : f32 to vector<2x32xf32>
    %405 = arith.addf %404, %403 : vector<2x32xf32>
    %406 = arith.divf %404, %405 : vector<2x32xf32>
    %407 = vector.extract_strided_slice %369 {offsets = [0, 64], sizes = [2, 32], strides = [1, 1]} : vector<2x128xf32> to vector<2x32xf32>
    %408 = math.tanh %407 : vector<2x32xf32>
    %409 = vector.extract_strided_slice %369 {offsets = [0, 96], sizes = [2, 32], strides = [1, 1]} : vector<2x128xf32> to vector<2x32xf32>
    %410 = arith.negf %409 : vector<2x32xf32>
    %411 = math.exp %410 : vector<2x32xf32>
    %cst_83 = arith.constant 1.000000e+00 : f32
    %412 = vector.broadcast %cst_83 : f32 to vector<2x32xf32>
    %413 = arith.addf %412, %411 : vector<2x32xf32>
    %414 = arith.divf %412, %413 : vector<2x32xf32>
    %415 = arith.mulf %406, %361 : vector<2x32xf32>
    %416 = arith.mulf %400, %408 : vector<2x32xf32>
    %417 = arith.addf %415, %416 : vector<2x32xf32>
    %418 = math.tanh %417 : vector<2x32xf32>
    %419 = arith.mulf %414, %418 : vector<2x32xf32>
    %420 = vector.extract_strided_slice %29 {offsets = [14, 0], sizes = [2, 128], strides = [1, 1]} : vector<16x256xf32> to vector<2x128xf32>
    %421 = vector.extract_strided_slice %29 {offsets = [0, 128], sizes = [2, 128], strides = [1, 1]} : vector<16x256xf32> to vector<2x128xf32>
    %cst_84 = arith.constant dense<0.000000e+00> : vector<2x128xf32>
    %422 = tpu.matmul %394, %23, %cst_84 {dimension_numbers = #tpu.dot_dimension_numbers<[1], [0], [0], [1], [0, 0, 1, 1], [], []>} : vector<2x32xf32>, vector<32x128xf32>, vector<2x128xf32> -> vector<2x128xf32>
    %423 = arith.addf %420, %422 : vector<2x128xf32>
    %cst_85 = arith.constant dense<0.000000e+00> : vector<2x128xf32>
    %424 = tpu.matmul %419, %24, %cst_85 {dimension_numbers = #tpu.dot_dimension_numbers<[1], [0], [0], [1], [0, 0, 1, 1], [], []>} : vector<2x32xf32>, vector<32x128xf32>, vector<2x128xf32> -> vector<2x128xf32>
    %425 = arith.addf %421, %424 : vector<2x128xf32>
    %426 = vector.extract_strided_slice %423 {offsets = [0, 0], sizes = [2, 32], strides = [1, 1]} : vector<2x128xf32> to vector<2x32xf32>
    %427 = arith.negf %426 : vector<2x32xf32>
    %428 = math.exp %427 : vector<2x32xf32>
    %cst_86 = arith.constant 1.000000e+00 : f32
    %429 = vector.broadcast %cst_86 : f32 to vector<2x32xf32>
    %430 = arith.addf %429, %428 : vector<2x32xf32>
    %431 = arith.divf %429, %430 : vector<2x32xf32>
    %432 = vector.extract_strided_slice %423 {offsets = [0, 32], sizes = [2, 32], strides = [1, 1]} : vector<2x128xf32> to vector<2x32xf32>
    %433 = arith.negf %432 : vector<2x32xf32>
    %434 = math.exp %433 : vector<2x32xf32>
    %cst_87 = arith.constant 1.000000e+00 : f32
    %435 = vector.broadcast %cst_87 : f32 to vector<2x32xf32>
    %436 = arith.addf %435, %434 : vector<2x32xf32>
    %437 = arith.divf %435, %436 : vector<2x32xf32>
    %438 = vector.extract_strided_slice %423 {offsets = [0, 64], sizes = [2, 32], strides = [1, 1]} : vector<2x128xf32> to vector<2x32xf32>
    %439 = math.tanh %438 : vector<2x32xf32>
    %440 = vector.extract_strided_slice %423 {offsets = [0, 96], sizes = [2, 32], strides = [1, 1]} : vector<2x128xf32> to vector<2x32xf32>
    %441 = arith.negf %440 : vector<2x32xf32>
    %442 = math.exp %441 : vector<2x32xf32>
    %cst_88 = arith.constant 1.000000e+00 : f32
    %443 = vector.broadcast %cst_88 : f32 to vector<2x32xf32>
    %444 = arith.addf %443, %442 : vector<2x32xf32>
    %445 = arith.divf %443, %444 : vector<2x32xf32>
    %446 = arith.mulf %437, %392 : vector<2x32xf32>
    %447 = arith.mulf %431, %439 : vector<2x32xf32>
    %448 = arith.addf %446, %447 : vector<2x32xf32>
    %449 = math.tanh %448 : vector<2x32xf32>
    %450 = arith.mulf %445, %449 : vector<2x32xf32>
    %451 = vector.extract_strided_slice %425 {offsets = [0, 0], sizes = [2, 32], strides = [1, 1]} : vector<2x128xf32> to vector<2x32xf32>
    %452 = arith.negf %451 : vector<2x32xf32>
    %453 = math.exp %452 : vector<2x32xf32>
    %cst_89 = arith.constant 1.000000e+00 : f32
    %454 = vector.broadcast %cst_89 : f32 to vector<2x32xf32>
    %455 = arith.addf %454, %453 : vector<2x32xf32>
    %456 = arith.divf %454, %455 : vector<2x32xf32>
    %457 = vector.extract_strided_slice %425 {offsets = [0, 32], sizes = [2, 32], strides = [1, 1]} : vector<2x128xf32> to vector<2x32xf32>
    %458 = arith.negf %457 : vector<2x32xf32>
    %459 = math.exp %458 : vector<2x32xf32>
    %cst_90 = arith.constant 1.000000e+00 : f32
    %460 = vector.broadcast %cst_90 : f32 to vector<2x32xf32>
    %461 = arith.addf %460, %459 : vector<2x32xf32>
    %462 = arith.divf %460, %461 : vector<2x32xf32>
    %463 = vector.extract_strided_slice %425 {offsets = [0, 64], sizes = [2, 32], strides = [1, 1]} : vector<2x128xf32> to vector<2x32xf32>
    %464 = math.tanh %463 : vector<2x32xf32>
    %465 = vector.extract_strided_slice %425 {offsets = [0, 96], sizes = [2, 32], strides = [1, 1]} : vector<2x128xf32> to vector<2x32xf32>
    %466 = arith.negf %465 : vector<2x32xf32>
    %467 = math.exp %466 : vector<2x32xf32>
    %cst_91 = arith.constant 1.000000e+00 : f32
    %468 = vector.broadcast %cst_91 : f32 to vector<2x32xf32>
    %469 = arith.addf %468, %467 : vector<2x32xf32>
    %470 = arith.divf %468, %469 : vector<2x32xf32>
    %471 = arith.mulf %462, %417 : vector<2x32xf32>
    %472 = arith.mulf %456, %464 : vector<2x32xf32>
    %473 = arith.addf %471, %472 : vector<2x32xf32>
    %474 = math.tanh %473 : vector<2x32xf32>
    %475 = arith.mulf %470, %474 : vector<2x32xf32>
    %476 = tpu.concatenate %58, %475 in 1 : vector<2x32xf32>, vector<2x32xf32> -> vector<2x64xf32>
    %477 = tpu.concatenate %114, %419 in 1 : vector<2x32xf32>, vector<2x32xf32> -> vector<2x64xf32>
    %478 = tpu.concatenate %170, %363 in 1 : vector<2x32xf32>, vector<2x32xf32> -> vector<2x64xf32>
    %479 = tpu.concatenate %226, %307 in 1 : vector<2x32xf32>, vector<2x32xf32> -> vector<2x64xf32>
    %480 = tpu.concatenate %282, %251 in 1 : vector<2x32xf32>, vector<2x32xf32> -> vector<2x64xf32>
    %481 = tpu.concatenate %338, %195 in 1 : vector<2x32xf32>, vector<2x32xf32> -> vector<2x64xf32>
    %482 = tpu.concatenate %394, %139 in 1 : vector<2x32xf32>, vector<2x32xf32> -> vector<2x64xf32>
    %483 = tpu.concatenate %450, %83 in 1 : vector<2x32xf32>, vector<2x32xf32> -> vector<2x64xf32>
    %484 = tpu.concatenate %476, %477, %478, %479, %480, %481, %482, %483 in 0 : vector<2x64xf32>, vector<2x64xf32>, vector<2x64xf32>, vector<2x64xf32>, vector<2x64xf32>, vector<2x64xf32>, vector<2x64xf32>, vector<2x64xf32> -> vector<16x64xf32>
    %c0_92 = arith.constant 0 : index
    %c0_93 = arith.constant 0 : index
    %485 = vector.load %arg11[%c0_92, %c0_93] : memref<16x64xf32, #tpu.memory_space<vmem>>, vector<16x64xf32>
    %c0_94 = arith.constant 0 : index
    %c0_95 = arith.constant 0 : index
    %486 = vector.load %arg12[%c0_94, %c0_95] : memref<16x64xf32, #tpu.memory_space<vmem>>, vector<16x64xf32>
    %c0_96 = arith.constant 0 : index
    %c0_97 = arith.constant 0 : index
    %487 = vector.load %arg9[%c0_96, %c0_97] : memref<64x128xf32, #tpu.memory_space<vmem>>, vector<64x128xf32>
    %cst_98 = arith.constant dense<0.000000e+00> : vector<16x128xf32>
    %488 = tpu.matmul %484, %487, %cst_98 {dimension_numbers = #tpu.dot_dimension_numbers<[1], [0], [0], [1], [0, 0, 1, 1], [], []>} : vector<16x64xf32>, vector<64x128xf32>, vector<16x128xf32> -> vector<16x128xf32>
    %c0_99 = arith.constant 0 : index
    %c0_100 = arith.constant 0 : index
    %489 = vector.load %arg10[%c0_99, %c0_100] : memref<1x128xf32, #tpu.memory_space<vmem>>, vector<1x128xf32>
    %490 = vector.broadcast %489 : vector<1x128xf32> to vector<16x128xf32>
    %491 = arith.addf %488, %490 : vector<16x128xf32>
    %cst_101 = arith.constant 0.000000e+00 : f32
    %492 = vector.broadcast %cst_101 : f32 to vector<2x16xf32>
    %cst_102 = arith.constant 0.000000e+00 : f32
    %493 = vector.broadcast %cst_102 : f32 to vector<2x16xf32>
    %494 = vector.extract_strided_slice %491 {offsets = [0, 0], sizes = [2, 64], strides = [1, 1]} : vector<16x128xf32> to vector<2x64xf32>
    %495 = vector.extract_strided_slice %491 {offsets = [14, 64], sizes = [2, 64], strides = [1, 1]} : vector<16x128xf32> to vector<2x64xf32>
    %496 = vector.extract_strided_slice %494 {offsets = [0, 0], sizes = [2, 16], strides = [1, 1]} : vector<2x64xf32> to vector<2x16xf32>
    %497 = arith.negf %496 : vector<2x16xf32>
    %498 = math.exp %497 : vector<2x16xf32>
    %cst_103 = arith.constant 1.000000e+00 : f32
    %499 = vector.broadcast %cst_103 : f32 to vector<2x16xf32>
    %500 = arith.addf %499, %498 : vector<2x16xf32>
    %501 = arith.divf %499, %500 : vector<2x16xf32>
    %502 = vector.extract_strided_slice %494 {offsets = [0, 16], sizes = [2, 16], strides = [1, 1]} : vector<2x64xf32> to vector<2x16xf32>
    %503 = arith.negf %502 : vector<2x16xf32>
    %504 = math.exp %503 : vector<2x16xf32>
    %cst_104 = arith.constant 1.000000e+00 : f32
    %505 = vector.broadcast %cst_104 : f32 to vector<2x16xf32>
    %506 = arith.addf %505, %504 : vector<2x16xf32>
    %507 = arith.divf %505, %506 : vector<2x16xf32>
    %508 = vector.extract_strided_slice %494 {offsets = [0, 32], sizes = [2, 16], strides = [1, 1]} : vector<2x64xf32> to vector<2x16xf32>
    %509 = math.tanh %508 : vector<2x16xf32>
    %510 = vector.extract_strided_slice %494 {offsets = [0, 48], sizes = [2, 16], strides = [1, 1]} : vector<2x64xf32> to vector<2x16xf32>
    %511 = arith.negf %510 : vector<2x16xf32>
    %512 = math.exp %511 : vector<2x16xf32>
    %cst_105 = arith.constant 1.000000e+00 : f32
    %513 = vector.broadcast %cst_105 : f32 to vector<2x16xf32>
    %514 = arith.addf %513, %512 : vector<2x16xf32>
    %515 = arith.divf %513, %514 : vector<2x16xf32>
    %516 = arith.mulf %507, %492 : vector<2x16xf32>
    %517 = arith.mulf %501, %509 : vector<2x16xf32>
    %518 = arith.addf %516, %517 : vector<2x16xf32>
    %519 = math.tanh %518 : vector<2x16xf32>
    %520 = arith.mulf %515, %519 : vector<2x16xf32>
    %521 = vector.extract_strided_slice %495 {offsets = [0, 0], sizes = [2, 16], strides = [1, 1]} : vector<2x64xf32> to vector<2x16xf32>
    %522 = arith.negf %521 : vector<2x16xf32>
    %523 = math.exp %522 : vector<2x16xf32>
    %cst_106 = arith.constant 1.000000e+00 : f32
    %524 = vector.broadcast %cst_106 : f32 to vector<2x16xf32>
    %525 = arith.addf %524, %523 : vector<2x16xf32>
    %526 = arith.divf %524, %525 : vector<2x16xf32>
    %527 = vector.extract_strided_slice %495 {offsets = [0, 16], sizes = [2, 16], strides = [1, 1]} : vector<2x64xf32> to vector<2x16xf32>
    %528 = arith.negf %527 : vector<2x16xf32>
    %529 = math.exp %528 : vector<2x16xf32>
    %cst_107 = arith.constant 1.000000e+00 : f32
    %530 = vector.broadcast %cst_107 : f32 to vector<2x16xf32>
    %531 = arith.addf %530, %529 : vector<2x16xf32>
    %532 = arith.divf %530, %531 : vector<2x16xf32>
    %533 = vector.extract_strided_slice %495 {offsets = [0, 32], sizes = [2, 16], strides = [1, 1]} : vector<2x64xf32> to vector<2x16xf32>
    %534 = math.tanh %533 : vector<2x16xf32>
    %535 = vector.extract_strided_slice %495 {offsets = [0, 48], sizes = [2, 16], strides = [1, 1]} : vector<2x64xf32> to vector<2x16xf32>
    %536 = arith.negf %535 : vector<2x16xf32>
    %537 = math.exp %536 : vector<2x16xf32>
    %cst_108 = arith.constant 1.000000e+00 : f32
    %538 = vector.broadcast %cst_108 : f32 to vector<2x16xf32>
    %539 = arith.addf %538, %537 : vector<2x16xf32>
    %540 = arith.divf %538, %539 : vector<2x16xf32>
    %541 = arith.mulf %532, %493 : vector<2x16xf32>
    %542 = arith.mulf %526, %534 : vector<2x16xf32>
    %543 = arith.addf %541, %542 : vector<2x16xf32>
    %544 = math.tanh %543 : vector<2x16xf32>
    %545 = arith.mulf %540, %544 : vector<2x16xf32>
    %546 = vector.extract_strided_slice %491 {offsets = [2, 0], sizes = [2, 64], strides = [1, 1]} : vector<16x128xf32> to vector<2x64xf32>
    %547 = vector.extract_strided_slice %491 {offsets = [12, 64], sizes = [2, 64], strides = [1, 1]} : vector<16x128xf32> to vector<2x64xf32>
    %cst_109 = arith.constant dense<0.000000e+00> : vector<2x64xf32>
    %548 = tpu.matmul %520, %485, %cst_109 {dimension_numbers = #tpu.dot_dimension_numbers<[1], [0], [0], [1], [0, 0, 1, 1], [], []>} : vector<2x16xf32>, vector<16x64xf32>, vector<2x64xf32> -> vector<2x64xf32>
    %549 = arith.addf %546, %548 : vector<2x64xf32>
    %cst_110 = arith.constant dense<0.000000e+00> : vector<2x64xf32>
    %550 = tpu.matmul %545, %486, %cst_110 {dimension_numbers = #tpu.dot_dimension_numbers<[1], [0], [0], [1], [0, 0, 1, 1], [], []>} : vector<2x16xf32>, vector<16x64xf32>, vector<2x64xf32> -> vector<2x64xf32>
    %551 = arith.addf %547, %550 : vector<2x64xf32>
    %552 = vector.extract_strided_slice %549 {offsets = [0, 0], sizes = [2, 16], strides = [1, 1]} : vector<2x64xf32> to vector<2x16xf32>
    %553 = arith.negf %552 : vector<2x16xf32>
    %554 = math.exp %553 : vector<2x16xf32>
    %cst_111 = arith.constant 1.000000e+00 : f32
    %555 = vector.broadcast %cst_111 : f32 to vector<2x16xf32>
    %556 = arith.addf %555, %554 : vector<2x16xf32>
    %557 = arith.divf %555, %556 : vector<2x16xf32>
    %558 = vector.extract_strided_slice %549 {offsets = [0, 16], sizes = [2, 16], strides = [1, 1]} : vector<2x64xf32> to vector<2x16xf32>
    %559 = arith.negf %558 : vector<2x16xf32>
    %560 = math.exp %559 : vector<2x16xf32>
    %cst_112 = arith.constant 1.000000e+00 : f32
    %561 = vector.broadcast %cst_112 : f32 to vector<2x16xf32>
    %562 = arith.addf %561, %560 : vector<2x16xf32>
    %563 = arith.divf %561, %562 : vector<2x16xf32>
    %564 = vector.extract_strided_slice %549 {offsets = [0, 32], sizes = [2, 16], strides = [1, 1]} : vector<2x64xf32> to vector<2x16xf32>
    %565 = math.tanh %564 : vector<2x16xf32>
    %566 = vector.extract_strided_slice %549 {offsets = [0, 48], sizes = [2, 16], strides = [1, 1]} : vector<2x64xf32> to vector<2x16xf32>
    %567 = arith.negf %566 : vector<2x16xf32>
    %568 = math.exp %567 : vector<2x16xf32>
    %cst_113 = arith.constant 1.000000e+00 : f32
    %569 = vector.broadcast %cst_113 : f32 to vector<2x16xf32>
    %570 = arith.addf %569, %568 : vector<2x16xf32>
    %571 = arith.divf %569, %570 : vector<2x16xf32>
    %572 = arith.mulf %563, %518 : vector<2x16xf32>
    %573 = arith.mulf %557, %565 : vector<2x16xf32>
    %574 = arith.addf %572, %573 : vector<2x16xf32>
    %575 = math.tanh %574 : vector<2x16xf32>
    %576 = arith.mulf %571, %575 : vector<2x16xf32>
    %577 = vector.extract_strided_slice %551 {offsets = [0, 0], sizes = [2, 16], strides = [1, 1]} : vector<2x64xf32> to vector<2x16xf32>
    %578 = arith.negf %577 : vector<2x16xf32>
    %579 = math.exp %578 : vector<2x16xf32>
    %cst_114 = arith.constant 1.000000e+00 : f32
    %580 = vector.broadcast %cst_114 : f32 to vector<2x16xf32>
    %581 = arith.addf %580, %579 : vector<2x16xf32>
    %582 = arith.divf %580, %581 : vector<2x16xf32>
    %583 = vector.extract_strided_slice %551 {offsets = [0, 16], sizes = [2, 16], strides = [1, 1]} : vector<2x64xf32> to vector<2x16xf32>
    %584 = arith.negf %583 : vector<2x16xf32>
    %585 = math.exp %584 : vector<2x16xf32>
    %cst_115 = arith.constant 1.000000e+00 : f32
    %586 = vector.broadcast %cst_115 : f32 to vector<2x16xf32>
    %587 = arith.addf %586, %585 : vector<2x16xf32>
    %588 = arith.divf %586, %587 : vector<2x16xf32>
    %589 = vector.extract_strided_slice %551 {offsets = [0, 32], sizes = [2, 16], strides = [1, 1]} : vector<2x64xf32> to vector<2x16xf32>
    %590 = math.tanh %589 : vector<2x16xf32>
    %591 = vector.extract_strided_slice %551 {offsets = [0, 48], sizes = [2, 16], strides = [1, 1]} : vector<2x64xf32> to vector<2x16xf32>
    %592 = arith.negf %591 : vector<2x16xf32>
    %593 = math.exp %592 : vector<2x16xf32>
    %cst_116 = arith.constant 1.000000e+00 : f32
    %594 = vector.broadcast %cst_116 : f32 to vector<2x16xf32>
    %595 = arith.addf %594, %593 : vector<2x16xf32>
    %596 = arith.divf %594, %595 : vector<2x16xf32>
    %597 = arith.mulf %588, %543 : vector<2x16xf32>
    %598 = arith.mulf %582, %590 : vector<2x16xf32>
    %599 = arith.addf %597, %598 : vector<2x16xf32>
    %600 = math.tanh %599 : vector<2x16xf32>
    %601 = arith.mulf %596, %600 : vector<2x16xf32>
    %602 = vector.extract_strided_slice %491 {offsets = [4, 0], sizes = [2, 64], strides = [1, 1]} : vector<16x128xf32> to vector<2x64xf32>
    %603 = vector.extract_strided_slice %491 {offsets = [10, 64], sizes = [2, 64], strides = [1, 1]} : vector<16x128xf32> to vector<2x64xf32>
    %cst_117 = arith.constant dense<0.000000e+00> : vector<2x64xf32>
    %604 = tpu.matmul %576, %485, %cst_117 {dimension_numbers = #tpu.dot_dimension_numbers<[1], [0], [0], [1], [0, 0, 1, 1], [], []>} : vector<2x16xf32>, vector<16x64xf32>, vector<2x64xf32> -> vector<2x64xf32>
    %605 = arith.addf %602, %604 : vector<2x64xf32>
    %cst_118 = arith.constant dense<0.000000e+00> : vector<2x64xf32>
    %606 = tpu.matmul %601, %486, %cst_118 {dimension_numbers = #tpu.dot_dimension_numbers<[1], [0], [0], [1], [0, 0, 1, 1], [], []>} : vector<2x16xf32>, vector<16x64xf32>, vector<2x64xf32> -> vector<2x64xf32>
    %607 = arith.addf %603, %606 : vector<2x64xf32>
    %608 = vector.extract_strided_slice %605 {offsets = [0, 0], sizes = [2, 16], strides = [1, 1]} : vector<2x64xf32> to vector<2x16xf32>
    %609 = arith.negf %608 : vector<2x16xf32>
    %610 = math.exp %609 : vector<2x16xf32>
    %cst_119 = arith.constant 1.000000e+00 : f32
    %611 = vector.broadcast %cst_119 : f32 to vector<2x16xf32>
    %612 = arith.addf %611, %610 : vector<2x16xf32>
    %613 = arith.divf %611, %612 : vector<2x16xf32>
    %614 = vector.extract_strided_slice %605 {offsets = [0, 16], sizes = [2, 16], strides = [1, 1]} : vector<2x64xf32> to vector<2x16xf32>
    %615 = arith.negf %614 : vector<2x16xf32>
    %616 = math.exp %615 : vector<2x16xf32>
    %cst_120 = arith.constant 1.000000e+00 : f32
    %617 = vector.broadcast %cst_120 : f32 to vector<2x16xf32>
    %618 = arith.addf %617, %616 : vector<2x16xf32>
    %619 = arith.divf %617, %618 : vector<2x16xf32>
    %620 = vector.extract_strided_slice %605 {offsets = [0, 32], sizes = [2, 16], strides = [1, 1]} : vector<2x64xf32> to vector<2x16xf32>
    %621 = math.tanh %620 : vector<2x16xf32>
    %622 = vector.extract_strided_slice %605 {offsets = [0, 48], sizes = [2, 16], strides = [1, 1]} : vector<2x64xf32> to vector<2x16xf32>
    %623 = arith.negf %622 : vector<2x16xf32>
    %624 = math.exp %623 : vector<2x16xf32>
    %cst_121 = arith.constant 1.000000e+00 : f32
    %625 = vector.broadcast %cst_121 : f32 to vector<2x16xf32>
    %626 = arith.addf %625, %624 : vector<2x16xf32>
    %627 = arith.divf %625, %626 : vector<2x16xf32>
    %628 = arith.mulf %619, %574 : vector<2x16xf32>
    %629 = arith.mulf %613, %621 : vector<2x16xf32>
    %630 = arith.addf %628, %629 : vector<2x16xf32>
    %631 = math.tanh %630 : vector<2x16xf32>
    %632 = arith.mulf %627, %631 : vector<2x16xf32>
    %633 = vector.extract_strided_slice %607 {offsets = [0, 0], sizes = [2, 16], strides = [1, 1]} : vector<2x64xf32> to vector<2x16xf32>
    %634 = arith.negf %633 : vector<2x16xf32>
    %635 = math.exp %634 : vector<2x16xf32>
    %cst_122 = arith.constant 1.000000e+00 : f32
    %636 = vector.broadcast %cst_122 : f32 to vector<2x16xf32>
    %637 = arith.addf %636, %635 : vector<2x16xf32>
    %638 = arith.divf %636, %637 : vector<2x16xf32>
    %639 = vector.extract_strided_slice %607 {offsets = [0, 16], sizes = [2, 16], strides = [1, 1]} : vector<2x64xf32> to vector<2x16xf32>
    %640 = arith.negf %639 : vector<2x16xf32>
    %641 = math.exp %640 : vector<2x16xf32>
    %cst_123 = arith.constant 1.000000e+00 : f32
    %642 = vector.broadcast %cst_123 : f32 to vector<2x16xf32>
    %643 = arith.addf %642, %641 : vector<2x16xf32>
    %644 = arith.divf %642, %643 : vector<2x16xf32>
    %645 = vector.extract_strided_slice %607 {offsets = [0, 32], sizes = [2, 16], strides = [1, 1]} : vector<2x64xf32> to vector<2x16xf32>
    %646 = math.tanh %645 : vector<2x16xf32>
    %647 = vector.extract_strided_slice %607 {offsets = [0, 48], sizes = [2, 16], strides = [1, 1]} : vector<2x64xf32> to vector<2x16xf32>
    %648 = arith.negf %647 : vector<2x16xf32>
    %649 = math.exp %648 : vector<2x16xf32>
    %cst_124 = arith.constant 1.000000e+00 : f32
    %650 = vector.broadcast %cst_124 : f32 to vector<2x16xf32>
    %651 = arith.addf %650, %649 : vector<2x16xf32>
    %652 = arith.divf %650, %651 : vector<2x16xf32>
    %653 = arith.mulf %644, %599 : vector<2x16xf32>
    %654 = arith.mulf %638, %646 : vector<2x16xf32>
    %655 = arith.addf %653, %654 : vector<2x16xf32>
    %656 = math.tanh %655 : vector<2x16xf32>
    %657 = arith.mulf %652, %656 : vector<2x16xf32>
    %658 = vector.extract_strided_slice %491 {offsets = [6, 0], sizes = [2, 64], strides = [1, 1]} : vector<16x128xf32> to vector<2x64xf32>
    %659 = vector.extract_strided_slice %491 {offsets = [8, 64], sizes = [2, 64], strides = [1, 1]} : vector<16x128xf32> to vector<2x64xf32>
    %cst_125 = arith.constant dense<0.000000e+00> : vector<2x64xf32>
    %660 = tpu.matmul %632, %485, %cst_125 {dimension_numbers = #tpu.dot_dimension_numbers<[1], [0], [0], [1], [0, 0, 1, 1], [], []>} : vector<2x16xf32>, vector<16x64xf32>, vector<2x64xf32> -> vector<2x64xf32>
    %661 = arith.addf %658, %660 : vector<2x64xf32>
    %cst_126 = arith.constant dense<0.000000e+00> : vector<2x64xf32>
    %662 = tpu.matmul %657, %486, %cst_126 {dimension_numbers = #tpu.dot_dimension_numbers<[1], [0], [0], [1], [0, 0, 1, 1], [], []>} : vector<2x16xf32>, vector<16x64xf32>, vector<2x64xf32> -> vector<2x64xf32>
    %663 = arith.addf %659, %662 : vector<2x64xf32>
    %664 = vector.extract_strided_slice %661 {offsets = [0, 0], sizes = [2, 16], strides = [1, 1]} : vector<2x64xf32> to vector<2x16xf32>
    %665 = arith.negf %664 : vector<2x16xf32>
    %666 = math.exp %665 : vector<2x16xf32>
    %cst_127 = arith.constant 1.000000e+00 : f32
    %667 = vector.broadcast %cst_127 : f32 to vector<2x16xf32>
    %668 = arith.addf %667, %666 : vector<2x16xf32>
    %669 = arith.divf %667, %668 : vector<2x16xf32>
    %670 = vector.extract_strided_slice %661 {offsets = [0, 16], sizes = [2, 16], strides = [1, 1]} : vector<2x64xf32> to vector<2x16xf32>
    %671 = arith.negf %670 : vector<2x16xf32>
    %672 = math.exp %671 : vector<2x16xf32>
    %cst_128 = arith.constant 1.000000e+00 : f32
    %673 = vector.broadcast %cst_128 : f32 to vector<2x16xf32>
    %674 = arith.addf %673, %672 : vector<2x16xf32>
    %675 = arith.divf %673, %674 : vector<2x16xf32>
    %676 = vector.extract_strided_slice %661 {offsets = [0, 32], sizes = [2, 16], strides = [1, 1]} : vector<2x64xf32> to vector<2x16xf32>
    %677 = math.tanh %676 : vector<2x16xf32>
    %678 = vector.extract_strided_slice %661 {offsets = [0, 48], sizes = [2, 16], strides = [1, 1]} : vector<2x64xf32> to vector<2x16xf32>
    %679 = arith.negf %678 : vector<2x16xf32>
    %680 = math.exp %679 : vector<2x16xf32>
    %cst_129 = arith.constant 1.000000e+00 : f32
    %681 = vector.broadcast %cst_129 : f32 to vector<2x16xf32>
    %682 = arith.addf %681, %680 : vector<2x16xf32>
    %683 = arith.divf %681, %682 : vector<2x16xf32>
    %684 = arith.mulf %675, %630 : vector<2x16xf32>
    %685 = arith.mulf %669, %677 : vector<2x16xf32>
    %686 = arith.addf %684, %685 : vector<2x16xf32>
    %687 = math.tanh %686 : vector<2x16xf32>
    %688 = arith.mulf %683, %687 : vector<2x16xf32>
    %689 = vector.extract_strided_slice %663 {offsets = [0, 0], sizes = [2, 16], strides = [1, 1]} : vector<2x64xf32> to vector<2x16xf32>
    %690 = arith.negf %689 : vector<2x16xf32>
    %691 = math.exp %690 : vector<2x16xf32>
    %cst_130 = arith.constant 1.000000e+00 : f32
    %692 = vector.broadcast %cst_130 : f32 to vector<2x16xf32>
    %693 = arith.addf %692, %691 : vector<2x16xf32>
    %694 = arith.divf %692, %693 : vector<2x16xf32>
    %695 = vector.extract_strided_slice %663 {offsets = [0, 16], sizes = [2, 16], strides = [1, 1]} : vector<2x64xf32> to vector<2x16xf32>
    %696 = arith.negf %695 : vector<2x16xf32>
    %697 = math.exp %696 : vector<2x16xf32>
    %cst_131 = arith.constant 1.000000e+00 : f32
    %698 = vector.broadcast %cst_131 : f32 to vector<2x16xf32>
    %699 = arith.addf %698, %697 : vector<2x16xf32>
    %700 = arith.divf %698, %699 : vector<2x16xf32>
    %701 = vector.extract_strided_slice %663 {offsets = [0, 32], sizes = [2, 16], strides = [1, 1]} : vector<2x64xf32> to vector<2x16xf32>
    %702 = math.tanh %701 : vector<2x16xf32>
    %703 = vector.extract_strided_slice %663 {offsets = [0, 48], sizes = [2, 16], strides = [1, 1]} : vector<2x64xf32> to vector<2x16xf32>
    %704 = arith.negf %703 : vector<2x16xf32>
    %705 = math.exp %704 : vector<2x16xf32>
    %cst_132 = arith.constant 1.000000e+00 : f32
    %706 = vector.broadcast %cst_132 : f32 to vector<2x16xf32>
    %707 = arith.addf %706, %705 : vector<2x16xf32>
    %708 = arith.divf %706, %707 : vector<2x16xf32>
    %709 = arith.mulf %700, %655 : vector<2x16xf32>
    %710 = arith.mulf %694, %702 : vector<2x16xf32>
    %711 = arith.addf %709, %710 : vector<2x16xf32>
    %712 = math.tanh %711 : vector<2x16xf32>
    %713 = arith.mulf %708, %712 : vector<2x16xf32>
    %714 = vector.extract_strided_slice %491 {offsets = [8, 0], sizes = [2, 64], strides = [1, 1]} : vector<16x128xf32> to vector<2x64xf32>
    %715 = vector.extract_strided_slice %491 {offsets = [6, 64], sizes = [2, 64], strides = [1, 1]} : vector<16x128xf32> to vector<2x64xf32>
    %cst_133 = arith.constant dense<0.000000e+00> : vector<2x64xf32>
    %716 = tpu.matmul %688, %485, %cst_133 {dimension_numbers = #tpu.dot_dimension_numbers<[1], [0], [0], [1], [0, 0, 1, 1], [], []>} : vector<2x16xf32>, vector<16x64xf32>, vector<2x64xf32> -> vector<2x64xf32>
    %717 = arith.addf %714, %716 : vector<2x64xf32>
    %cst_134 = arith.constant dense<0.000000e+00> : vector<2x64xf32>
    %718 = tpu.matmul %713, %486, %cst_134 {dimension_numbers = #tpu.dot_dimension_numbers<[1], [0], [0], [1], [0, 0, 1, 1], [], []>} : vector<2x16xf32>, vector<16x64xf32>, vector<2x64xf32> -> vector<2x64xf32>
    %719 = arith.addf %715, %718 : vector<2x64xf32>
    %720 = vector.extract_strided_slice %717 {offsets = [0, 0], sizes = [2, 16], strides = [1, 1]} : vector<2x64xf32> to vector<2x16xf32>
    %721 = arith.negf %720 : vector<2x16xf32>
    %722 = math.exp %721 : vector<2x16xf32>
    %cst_135 = arith.constant 1.000000e+00 : f32
    %723 = vector.broadcast %cst_135 : f32 to vector<2x16xf32>
    %724 = arith.addf %723, %722 : vector<2x16xf32>
    %725 = arith.divf %723, %724 : vector<2x16xf32>
    %726 = vector.extract_strided_slice %717 {offsets = [0, 16], sizes = [2, 16], strides = [1, 1]} : vector<2x64xf32> to vector<2x16xf32>
    %727 = arith.negf %726 : vector<2x16xf32>
    %728 = math.exp %727 : vector<2x16xf32>
    %cst_136 = arith.constant 1.000000e+00 : f32
    %729 = vector.broadcast %cst_136 : f32 to vector<2x16xf32>
    %730 = arith.addf %729, %728 : vector<2x16xf32>
    %731 = arith.divf %729, %730 : vector<2x16xf32>
    %732 = vector.extract_strided_slice %717 {offsets = [0, 32], sizes = [2, 16], strides = [1, 1]} : vector<2x64xf32> to vector<2x16xf32>
    %733 = math.tanh %732 : vector<2x16xf32>
    %734 = vector.extract_strided_slice %717 {offsets = [0, 48], sizes = [2, 16], strides = [1, 1]} : vector<2x64xf32> to vector<2x16xf32>
    %735 = arith.negf %734 : vector<2x16xf32>
    %736 = math.exp %735 : vector<2x16xf32>
    %cst_137 = arith.constant 1.000000e+00 : f32
    %737 = vector.broadcast %cst_137 : f32 to vector<2x16xf32>
    %738 = arith.addf %737, %736 : vector<2x16xf32>
    %739 = arith.divf %737, %738 : vector<2x16xf32>
    %740 = arith.mulf %731, %686 : vector<2x16xf32>
    %741 = arith.mulf %725, %733 : vector<2x16xf32>
    %742 = arith.addf %740, %741 : vector<2x16xf32>
    %743 = math.tanh %742 : vector<2x16xf32>
    %744 = arith.mulf %739, %743 : vector<2x16xf32>
    %745 = vector.extract_strided_slice %719 {offsets = [0, 0], sizes = [2, 16], strides = [1, 1]} : vector<2x64xf32> to vector<2x16xf32>
    %746 = arith.negf %745 : vector<2x16xf32>
    %747 = math.exp %746 : vector<2x16xf32>
    %cst_138 = arith.constant 1.000000e+00 : f32
    %748 = vector.broadcast %cst_138 : f32 to vector<2x16xf32>
    %749 = arith.addf %748, %747 : vector<2x16xf32>
    %750 = arith.divf %748, %749 : vector<2x16xf32>
    %751 = vector.extract_strided_slice %719 {offsets = [0, 16], sizes = [2, 16], strides = [1, 1]} : vector<2x64xf32> to vector<2x16xf32>
    %752 = arith.negf %751 : vector<2x16xf32>
    %753 = math.exp %752 : vector<2x16xf32>
    %cst_139 = arith.constant 1.000000e+00 : f32
    %754 = vector.broadcast %cst_139 : f32 to vector<2x16xf32>
    %755 = arith.addf %754, %753 : vector<2x16xf32>
    %756 = arith.divf %754, %755 : vector<2x16xf32>
    %757 = vector.extract_strided_slice %719 {offsets = [0, 32], sizes = [2, 16], strides = [1, 1]} : vector<2x64xf32> to vector<2x16xf32>
    %758 = math.tanh %757 : vector<2x16xf32>
    %759 = vector.extract_strided_slice %719 {offsets = [0, 48], sizes = [2, 16], strides = [1, 1]} : vector<2x64xf32> to vector<2x16xf32>
    %760 = arith.negf %759 : vector<2x16xf32>
    %761 = math.exp %760 : vector<2x16xf32>
    %cst_140 = arith.constant 1.000000e+00 : f32
    %762 = vector.broadcast %cst_140 : f32 to vector<2x16xf32>
    %763 = arith.addf %762, %761 : vector<2x16xf32>
    %764 = arith.divf %762, %763 : vector<2x16xf32>
    %765 = arith.mulf %756, %711 : vector<2x16xf32>
    %766 = arith.mulf %750, %758 : vector<2x16xf32>
    %767 = arith.addf %765, %766 : vector<2x16xf32>
    %768 = math.tanh %767 : vector<2x16xf32>
    %769 = arith.mulf %764, %768 : vector<2x16xf32>
    %770 = vector.extract_strided_slice %491 {offsets = [10, 0], sizes = [2, 64], strides = [1, 1]} : vector<16x128xf32> to vector<2x64xf32>
    %771 = vector.extract_strided_slice %491 {offsets = [4, 64], sizes = [2, 64], strides = [1, 1]} : vector<16x128xf32> to vector<2x64xf32>
    %cst_141 = arith.constant dense<0.000000e+00> : vector<2x64xf32>
    %772 = tpu.matmul %744, %485, %cst_141 {dimension_numbers = #tpu.dot_dimension_numbers<[1], [0], [0], [1], [0, 0, 1, 1], [], []>} : vector<2x16xf32>, vector<16x64xf32>, vector<2x64xf32> -> vector<2x64xf32>
    %773 = arith.addf %770, %772 : vector<2x64xf32>
    %cst_142 = arith.constant dense<0.000000e+00> : vector<2x64xf32>
    %774 = tpu.matmul %769, %486, %cst_142 {dimension_numbers = #tpu.dot_dimension_numbers<[1], [0], [0], [1], [0, 0, 1, 1], [], []>} : vector<2x16xf32>, vector<16x64xf32>, vector<2x64xf32> -> vector<2x64xf32>
    %775 = arith.addf %771, %774 : vector<2x64xf32>
    %776 = vector.extract_strided_slice %773 {offsets = [0, 0], sizes = [2, 16], strides = [1, 1]} : vector<2x64xf32> to vector<2x16xf32>
    %777 = arith.negf %776 : vector<2x16xf32>
    %778 = math.exp %777 : vector<2x16xf32>
    %cst_143 = arith.constant 1.000000e+00 : f32
    %779 = vector.broadcast %cst_143 : f32 to vector<2x16xf32>
    %780 = arith.addf %779, %778 : vector<2x16xf32>
    %781 = arith.divf %779, %780 : vector<2x16xf32>
    %782 = vector.extract_strided_slice %773 {offsets = [0, 16], sizes = [2, 16], strides = [1, 1]} : vector<2x64xf32> to vector<2x16xf32>
    %783 = arith.negf %782 : vector<2x16xf32>
    %784 = math.exp %783 : vector<2x16xf32>
    %cst_144 = arith.constant 1.000000e+00 : f32
    %785 = vector.broadcast %cst_144 : f32 to vector<2x16xf32>
    %786 = arith.addf %785, %784 : vector<2x16xf32>
    %787 = arith.divf %785, %786 : vector<2x16xf32>
    %788 = vector.extract_strided_slice %773 {offsets = [0, 32], sizes = [2, 16], strides = [1, 1]} : vector<2x64xf32> to vector<2x16xf32>
    %789 = math.tanh %788 : vector<2x16xf32>
    %790 = vector.extract_strided_slice %773 {offsets = [0, 48], sizes = [2, 16], strides = [1, 1]} : vector<2x64xf32> to vector<2x16xf32>
    %791 = arith.negf %790 : vector<2x16xf32>
    %792 = math.exp %791 : vector<2x16xf32>
    %cst_145 = arith.constant 1.000000e+00 : f32
    %793 = vector.broadcast %cst_145 : f32 to vector<2x16xf32>
    %794 = arith.addf %793, %792 : vector<2x16xf32>
    %795 = arith.divf %793, %794 : vector<2x16xf32>
    %796 = arith.mulf %787, %742 : vector<2x16xf32>
    %797 = arith.mulf %781, %789 : vector<2x16xf32>
    %798 = arith.addf %796, %797 : vector<2x16xf32>
    %799 = math.tanh %798 : vector<2x16xf32>
    %800 = arith.mulf %795, %799 : vector<2x16xf32>
    %801 = vector.extract_strided_slice %775 {offsets = [0, 0], sizes = [2, 16], strides = [1, 1]} : vector<2x64xf32> to vector<2x16xf32>
    %802 = arith.negf %801 : vector<2x16xf32>
    %803 = math.exp %802 : vector<2x16xf32>
    %cst_146 = arith.constant 1.000000e+00 : f32
    %804 = vector.broadcast %cst_146 : f32 to vector<2x16xf32>
    %805 = arith.addf %804, %803 : vector<2x16xf32>
    %806 = arith.divf %804, %805 : vector<2x16xf32>
    %807 = vector.extract_strided_slice %775 {offsets = [0, 16], sizes = [2, 16], strides = [1, 1]} : vector<2x64xf32> to vector<2x16xf32>
    %808 = arith.negf %807 : vector<2x16xf32>
    %809 = math.exp %808 : vector<2x16xf32>
    %cst_147 = arith.constant 1.000000e+00 : f32
    %810 = vector.broadcast %cst_147 : f32 to vector<2x16xf32>
    %811 = arith.addf %810, %809 : vector<2x16xf32>
    %812 = arith.divf %810, %811 : vector<2x16xf32>
    %813 = vector.extract_strided_slice %775 {offsets = [0, 32], sizes = [2, 16], strides = [1, 1]} : vector<2x64xf32> to vector<2x16xf32>
    %814 = math.tanh %813 : vector<2x16xf32>
    %815 = vector.extract_strided_slice %775 {offsets = [0, 48], sizes = [2, 16], strides = [1, 1]} : vector<2x64xf32> to vector<2x16xf32>
    %816 = arith.negf %815 : vector<2x16xf32>
    %817 = math.exp %816 : vector<2x16xf32>
    %cst_148 = arith.constant 1.000000e+00 : f32
    %818 = vector.broadcast %cst_148 : f32 to vector<2x16xf32>
    %819 = arith.addf %818, %817 : vector<2x16xf32>
    %820 = arith.divf %818, %819 : vector<2x16xf32>
    %821 = arith.mulf %812, %767 : vector<2x16xf32>
    %822 = arith.mulf %806, %814 : vector<2x16xf32>
    %823 = arith.addf %821, %822 : vector<2x16xf32>
    %824 = math.tanh %823 : vector<2x16xf32>
    %825 = arith.mulf %820, %824 : vector<2x16xf32>
    %826 = vector.extract_strided_slice %491 {offsets = [12, 0], sizes = [2, 64], strides = [1, 1]} : vector<16x128xf32> to vector<2x64xf32>
    %827 = vector.extract_strided_slice %491 {offsets = [2, 64], sizes = [2, 64], strides = [1, 1]} : vector<16x128xf32> to vector<2x64xf32>
    %cst_149 = arith.constant dense<0.000000e+00> : vector<2x64xf32>
    %828 = tpu.matmul %800, %485, %cst_149 {dimension_numbers = #tpu.dot_dimension_numbers<[1], [0], [0], [1], [0, 0, 1, 1], [], []>} : vector<2x16xf32>, vector<16x64xf32>, vector<2x64xf32> -> vector<2x64xf32>
    %829 = arith.addf %826, %828 : vector<2x64xf32>
    %cst_150 = arith.constant dense<0.000000e+00> : vector<2x64xf32>
    %830 = tpu.matmul %825, %486, %cst_150 {dimension_numbers = #tpu.dot_dimension_numbers<[1], [0], [0], [1], [0, 0, 1, 1], [], []>} : vector<2x16xf32>, vector<16x64xf32>, vector<2x64xf32> -> vector<2x64xf32>
    %831 = arith.addf %827, %830 : vector<2x64xf32>
    %832 = vector.extract_strided_slice %829 {offsets = [0, 0], sizes = [2, 16], strides = [1, 1]} : vector<2x64xf32> to vector<2x16xf32>
    %833 = arith.negf %832 : vector<2x16xf32>
    %834 = math.exp %833 : vector<2x16xf32>
    %cst_151 = arith.constant 1.000000e+00 : f32
    %835 = vector.broadcast %cst_151 : f32 to vector<2x16xf32>
    %836 = arith.addf %835, %834 : vector<2x16xf32>
    %837 = arith.divf %835, %836 : vector<2x16xf32>
    %838 = vector.extract_strided_slice %829 {offsets = [0, 16], sizes = [2, 16], strides = [1, 1]} : vector<2x64xf32> to vector<2x16xf32>
    %839 = arith.negf %838 : vector<2x16xf32>
    %840 = math.exp %839 : vector<2x16xf32>
    %cst_152 = arith.constant 1.000000e+00 : f32
    %841 = vector.broadcast %cst_152 : f32 to vector<2x16xf32>
    %842 = arith.addf %841, %840 : vector<2x16xf32>
    %843 = arith.divf %841, %842 : vector<2x16xf32>
    %844 = vector.extract_strided_slice %829 {offsets = [0, 32], sizes = [2, 16], strides = [1, 1]} : vector<2x64xf32> to vector<2x16xf32>
    %845 = math.tanh %844 : vector<2x16xf32>
    %846 = vector.extract_strided_slice %829 {offsets = [0, 48], sizes = [2, 16], strides = [1, 1]} : vector<2x64xf32> to vector<2x16xf32>
    %847 = arith.negf %846 : vector<2x16xf32>
    %848 = math.exp %847 : vector<2x16xf32>
    %cst_153 = arith.constant 1.000000e+00 : f32
    %849 = vector.broadcast %cst_153 : f32 to vector<2x16xf32>
    %850 = arith.addf %849, %848 : vector<2x16xf32>
    %851 = arith.divf %849, %850 : vector<2x16xf32>
    %852 = arith.mulf %843, %798 : vector<2x16xf32>
    %853 = arith.mulf %837, %845 : vector<2x16xf32>
    %854 = arith.addf %852, %853 : vector<2x16xf32>
    %855 = math.tanh %854 : vector<2x16xf32>
    %856 = arith.mulf %851, %855 : vector<2x16xf32>
    %857 = vector.extract_strided_slice %831 {offsets = [0, 0], sizes = [2, 16], strides = [1, 1]} : vector<2x64xf32> to vector<2x16xf32>
    %858 = arith.negf %857 : vector<2x16xf32>
    %859 = math.exp %858 : vector<2x16xf32>
    %cst_154 = arith.constant 1.000000e+00 : f32
    %860 = vector.broadcast %cst_154 : f32 to vector<2x16xf32>
    %861 = arith.addf %860, %859 : vector<2x16xf32>
    %862 = arith.divf %860, %861 : vector<2x16xf32>
    %863 = vector.extract_strided_slice %831 {offsets = [0, 16], sizes = [2, 16], strides = [1, 1]} : vector<2x64xf32> to vector<2x16xf32>
    %864 = arith.negf %863 : vector<2x16xf32>
    %865 = math.exp %864 : vector<2x16xf32>
    %cst_155 = arith.constant 1.000000e+00 : f32
    %866 = vector.broadcast %cst_155 : f32 to vector<2x16xf32>
    %867 = arith.addf %866, %865 : vector<2x16xf32>
    %868 = arith.divf %866, %867 : vector<2x16xf32>
    %869 = vector.extract_strided_slice %831 {offsets = [0, 32], sizes = [2, 16], strides = [1, 1]} : vector<2x64xf32> to vector<2x16xf32>
    %870 = math.tanh %869 : vector<2x16xf32>
    %871 = vector.extract_strided_slice %831 {offsets = [0, 48], sizes = [2, 16], strides = [1, 1]} : vector<2x64xf32> to vector<2x16xf32>
    %872 = arith.negf %871 : vector<2x16xf32>
    %873 = math.exp %872 : vector<2x16xf32>
    %cst_156 = arith.constant 1.000000e+00 : f32
    %874 = vector.broadcast %cst_156 : f32 to vector<2x16xf32>
    %875 = arith.addf %874, %873 : vector<2x16xf32>
    %876 = arith.divf %874, %875 : vector<2x16xf32>
    %877 = arith.mulf %868, %823 : vector<2x16xf32>
    %878 = arith.mulf %862, %870 : vector<2x16xf32>
    %879 = arith.addf %877, %878 : vector<2x16xf32>
    %880 = math.tanh %879 : vector<2x16xf32>
    %881 = arith.mulf %876, %880 : vector<2x16xf32>
    %882 = vector.extract_strided_slice %491 {offsets = [14, 0], sizes = [2, 64], strides = [1, 1]} : vector<16x128xf32> to vector<2x64xf32>
    %883 = vector.extract_strided_slice %491 {offsets = [0, 64], sizes = [2, 64], strides = [1, 1]} : vector<16x128xf32> to vector<2x64xf32>
    %cst_157 = arith.constant dense<0.000000e+00> : vector<2x64xf32>
    %884 = tpu.matmul %856, %485, %cst_157 {dimension_numbers = #tpu.dot_dimension_numbers<[1], [0], [0], [1], [0, 0, 1, 1], [], []>} : vector<2x16xf32>, vector<16x64xf32>, vector<2x64xf32> -> vector<2x64xf32>
    %885 = arith.addf %882, %884 : vector<2x64xf32>
    %cst_158 = arith.constant dense<0.000000e+00> : vector<2x64xf32>
    %886 = tpu.matmul %881, %486, %cst_158 {dimension_numbers = #tpu.dot_dimension_numbers<[1], [0], [0], [1], [0, 0, 1, 1], [], []>} : vector<2x16xf32>, vector<16x64xf32>, vector<2x64xf32> -> vector<2x64xf32>
    %887 = arith.addf %883, %886 : vector<2x64xf32>
    %888 = vector.extract_strided_slice %885 {offsets = [0, 0], sizes = [2, 16], strides = [1, 1]} : vector<2x64xf32> to vector<2x16xf32>
    %889 = arith.negf %888 : vector<2x16xf32>
    %890 = math.exp %889 : vector<2x16xf32>
    %cst_159 = arith.constant 1.000000e+00 : f32
    %891 = vector.broadcast %cst_159 : f32 to vector<2x16xf32>
    %892 = arith.addf %891, %890 : vector<2x16xf32>
    %893 = arith.divf %891, %892 : vector<2x16xf32>
    %894 = vector.extract_strided_slice %885 {offsets = [0, 16], sizes = [2, 16], strides = [1, 1]} : vector<2x64xf32> to vector<2x16xf32>
    %895 = arith.negf %894 : vector<2x16xf32>
    %896 = math.exp %895 : vector<2x16xf32>
    %cst_160 = arith.constant 1.000000e+00 : f32
    %897 = vector.broadcast %cst_160 : f32 to vector<2x16xf32>
    %898 = arith.addf %897, %896 : vector<2x16xf32>
    %899 = arith.divf %897, %898 : vector<2x16xf32>
    %900 = vector.extract_strided_slice %885 {offsets = [0, 32], sizes = [2, 16], strides = [1, 1]} : vector<2x64xf32> to vector<2x16xf32>
    %901 = math.tanh %900 : vector<2x16xf32>
    %902 = vector.extract_strided_slice %885 {offsets = [0, 48], sizes = [2, 16], strides = [1, 1]} : vector<2x64xf32> to vector<2x16xf32>
    %903 = arith.negf %902 : vector<2x16xf32>
    %904 = math.exp %903 : vector<2x16xf32>
    %cst_161 = arith.constant 1.000000e+00 : f32
    %905 = vector.broadcast %cst_161 : f32 to vector<2x16xf32>
    %906 = arith.addf %905, %904 : vector<2x16xf32>
    %907 = arith.divf %905, %906 : vector<2x16xf32>
    %908 = arith.mulf %899, %854 : vector<2x16xf32>
    %909 = arith.mulf %893, %901 : vector<2x16xf32>
    %910 = arith.addf %908, %909 : vector<2x16xf32>
    %911 = math.tanh %910 : vector<2x16xf32>
    %912 = arith.mulf %907, %911 : vector<2x16xf32>
    %913 = vector.extract_strided_slice %887 {offsets = [0, 0], sizes = [2, 16], strides = [1, 1]} : vector<2x64xf32> to vector<2x16xf32>
    %914 = arith.negf %913 : vector<2x16xf32>
    %915 = math.exp %914 : vector<2x16xf32>
    %cst_162 = arith.constant 1.000000e+00 : f32
    %916 = vector.broadcast %cst_162 : f32 to vector<2x16xf32>
    %917 = arith.addf %916, %915 : vector<2x16xf32>
    %918 = arith.divf %916, %917 : vector<2x16xf32>
    %919 = vector.extract_strided_slice %887 {offsets = [0, 16], sizes = [2, 16], strides = [1, 1]} : vector<2x64xf32> to vector<2x16xf32>
    %920 = arith.negf %919 : vector<2x16xf32>
    %921 = math.exp %920 : vector<2x16xf32>
    %cst_163 = arith.constant 1.000000e+00 : f32
    %922 = vector.broadcast %cst_163 : f32 to vector<2x16xf32>
    %923 = arith.addf %922, %921 : vector<2x16xf32>
    %924 = arith.divf %922, %923 : vector<2x16xf32>
    %925 = vector.extract_strided_slice %887 {offsets = [0, 32], sizes = [2, 16], strides = [1, 1]} : vector<2x64xf32> to vector<2x16xf32>
    %926 = math.tanh %925 : vector<2x16xf32>
    %927 = vector.extract_strided_slice %887 {offsets = [0, 48], sizes = [2, 16], strides = [1, 1]} : vector<2x64xf32> to vector<2x16xf32>
    %928 = arith.negf %927 : vector<2x16xf32>
    %929 = math.exp %928 : vector<2x16xf32>
    %cst_164 = arith.constant 1.000000e+00 : f32
    %930 = vector.broadcast %cst_164 : f32 to vector<2x16xf32>
    %931 = arith.addf %930, %929 : vector<2x16xf32>
    %932 = arith.divf %930, %931 : vector<2x16xf32>
    %933 = arith.mulf %924, %879 : vector<2x16xf32>
    %934 = arith.mulf %918, %926 : vector<2x16xf32>
    %935 = arith.addf %933, %934 : vector<2x16xf32>
    %936 = math.tanh %935 : vector<2x16xf32>
    %937 = arith.mulf %932, %936 : vector<2x16xf32>
    %938 = tpu.concatenate %520, %937 in 1 : vector<2x16xf32>, vector<2x16xf32> -> vector<2x32xf32>
    %939 = tpu.concatenate %576, %881 in 1 : vector<2x16xf32>, vector<2x16xf32> -> vector<2x32xf32>
    %940 = tpu.concatenate %632, %825 in 1 : vector<2x16xf32>, vector<2x16xf32> -> vector<2x32xf32>
    %941 = tpu.concatenate %688, %769 in 1 : vector<2x16xf32>, vector<2x16xf32> -> vector<2x32xf32>
    %942 = tpu.concatenate %744, %713 in 1 : vector<2x16xf32>, vector<2x16xf32> -> vector<2x32xf32>
    %943 = tpu.concatenate %800, %657 in 1 : vector<2x16xf32>, vector<2x16xf32> -> vector<2x32xf32>
    %944 = tpu.concatenate %856, %601 in 1 : vector<2x16xf32>, vector<2x16xf32> -> vector<2x32xf32>
    %945 = tpu.concatenate %912, %545 in 1 : vector<2x16xf32>, vector<2x16xf32> -> vector<2x32xf32>
    %946 = tpu.concatenate %938, %939, %940, %941, %942, %943, %944, %945 in 0 : vector<2x32xf32>, vector<2x32xf32>, vector<2x32xf32>, vector<2x32xf32>, vector<2x32xf32>, vector<2x32xf32>, vector<2x32xf32>, vector<2x32xf32> -> vector<16x32xf32>
    %c0_165 = arith.constant 0 : index
    %c0_166 = arith.constant 0 : index
    %947 = vector.load %arg15[%c0_165, %c0_166] : memref<8x32xf32, #tpu.memory_space<vmem>>, vector<8x32xf32>
    %c0_167 = arith.constant 0 : index
    %c0_168 = arith.constant 0 : index
    %948 = vector.load %arg16[%c0_167, %c0_168] : memref<8x32xf32, #tpu.memory_space<vmem>>, vector<8x32xf32>
    %c0_169 = arith.constant 0 : index
    %c0_170 = arith.constant 0 : index
    %949 = vector.load %arg13[%c0_169, %c0_170] : memref<32x64xf32, #tpu.memory_space<vmem>>, vector<32x64xf32>
    %cst_171 = arith.constant dense<0.000000e+00> : vector<16x64xf32>
    %950 = tpu.matmul %946, %949, %cst_171 {dimension_numbers = #tpu.dot_dimension_numbers<[1], [0], [0], [1], [0, 0, 1, 1], [], []>} : vector<16x32xf32>, vector<32x64xf32>, vector<16x64xf32> -> vector<16x64xf32>
    %c0_172 = arith.constant 0 : index
    %c0_173 = arith.constant 0 : index
    %951 = vector.load %arg14[%c0_172, %c0_173] : memref<1x64xf32, #tpu.memory_space<vmem>>, vector<1x64xf32>
    %952 = vector.broadcast %951 : vector<1x64xf32> to vector<16x64xf32>
    %953 = arith.addf %950, %952 : vector<16x64xf32>
    %cst_174 = arith.constant 0.000000e+00 : f32
    %954 = vector.broadcast %cst_174 : f32 to vector<2x8xf32>
    %cst_175 = arith.constant 0.000000e+00 : f32
    %955 = vector.broadcast %cst_175 : f32 to vector<2x8xf32>
    %956 = vector.extract_strided_slice %953 {offsets = [0, 0], sizes = [2, 32], strides = [1, 1]} : vector<16x64xf32> to vector<2x32xf32>
    %957 = vector.extract_strided_slice %953 {offsets = [14, 32], sizes = [2, 32], strides = [1, 1]} : vector<16x64xf32> to vector<2x32xf32>
    %958 = vector.extract_strided_slice %956 {offsets = [0, 0], sizes = [2, 8], strides = [1, 1]} : vector<2x32xf32> to vector<2x8xf32>
    %959 = arith.negf %958 : vector<2x8xf32>
    %960 = math.exp %959 : vector<2x8xf32>
    %cst_176 = arith.constant 1.000000e+00 : f32
    %961 = vector.broadcast %cst_176 : f32 to vector<2x8xf32>
    %962 = arith.addf %961, %960 : vector<2x8xf32>
    %963 = arith.divf %961, %962 : vector<2x8xf32>
    %964 = vector.extract_strided_slice %956 {offsets = [0, 8], sizes = [2, 8], strides = [1, 1]} : vector<2x32xf32> to vector<2x8xf32>
    %965 = arith.negf %964 : vector<2x8xf32>
    %966 = math.exp %965 : vector<2x8xf32>
    %cst_177 = arith.constant 1.000000e+00 : f32
    %967 = vector.broadcast %cst_177 : f32 to vector<2x8xf32>
    %968 = arith.addf %967, %966 : vector<2x8xf32>
    %969 = arith.divf %967, %968 : vector<2x8xf32>
    %970 = vector.extract_strided_slice %956 {offsets = [0, 16], sizes = [2, 8], strides = [1, 1]} : vector<2x32xf32> to vector<2x8xf32>
    %971 = math.tanh %970 : vector<2x8xf32>
    %972 = vector.extract_strided_slice %956 {offsets = [0, 24], sizes = [2, 8], strides = [1, 1]} : vector<2x32xf32> to vector<2x8xf32>
    %973 = arith.negf %972 : vector<2x8xf32>
    %974 = math.exp %973 : vector<2x8xf32>
    %cst_178 = arith.constant 1.000000e+00 : f32
    %975 = vector.broadcast %cst_178 : f32 to vector<2x8xf32>
    %976 = arith.addf %975, %974 : vector<2x8xf32>
    %977 = arith.divf %975, %976 : vector<2x8xf32>
    %978 = arith.mulf %969, %954 : vector<2x8xf32>
    %979 = arith.mulf %963, %971 : vector<2x8xf32>
    %980 = arith.addf %978, %979 : vector<2x8xf32>
    %981 = math.tanh %980 : vector<2x8xf32>
    %982 = arith.mulf %977, %981 : vector<2x8xf32>
    %983 = vector.extract_strided_slice %957 {offsets = [0, 0], sizes = [2, 8], strides = [1, 1]} : vector<2x32xf32> to vector<2x8xf32>
    %984 = arith.negf %983 : vector<2x8xf32>
    %985 = math.exp %984 : vector<2x8xf32>
    %cst_179 = arith.constant 1.000000e+00 : f32
    %986 = vector.broadcast %cst_179 : f32 to vector<2x8xf32>
    %987 = arith.addf %986, %985 : vector<2x8xf32>
    %988 = arith.divf %986, %987 : vector<2x8xf32>
    %989 = vector.extract_strided_slice %957 {offsets = [0, 8], sizes = [2, 8], strides = [1, 1]} : vector<2x32xf32> to vector<2x8xf32>
    %990 = arith.negf %989 : vector<2x8xf32>
    %991 = math.exp %990 : vector<2x8xf32>
    %cst_180 = arith.constant 1.000000e+00 : f32
    %992 = vector.broadcast %cst_180 : f32 to vector<2x8xf32>
    %993 = arith.addf %992, %991 : vector<2x8xf32>
    %994 = arith.divf %992, %993 : vector<2x8xf32>
    %995 = vector.extract_strided_slice %957 {offsets = [0, 16], sizes = [2, 8], strides = [1, 1]} : vector<2x32xf32> to vector<2x8xf32>
    %996 = math.tanh %995 : vector<2x8xf32>
    %997 = vector.extract_strided_slice %957 {offsets = [0, 24], sizes = [2, 8], strides = [1, 1]} : vector<2x32xf32> to vector<2x8xf32>
    %998 = arith.negf %997 : vector<2x8xf32>
    %999 = math.exp %998 : vector<2x8xf32>
    %cst_181 = arith.constant 1.000000e+00 : f32
    %1000 = vector.broadcast %cst_181 : f32 to vector<2x8xf32>
    %1001 = arith.addf %1000, %999 : vector<2x8xf32>
    %1002 = arith.divf %1000, %1001 : vector<2x8xf32>
    %1003 = arith.mulf %994, %955 : vector<2x8xf32>
    %1004 = arith.mulf %988, %996 : vector<2x8xf32>
    %1005 = arith.addf %1003, %1004 : vector<2x8xf32>
    %1006 = math.tanh %1005 : vector<2x8xf32>
    %1007 = arith.mulf %1002, %1006 : vector<2x8xf32>
    %1008 = vector.extract_strided_slice %953 {offsets = [2, 0], sizes = [2, 32], strides = [1, 1]} : vector<16x64xf32> to vector<2x32xf32>
    %1009 = vector.extract_strided_slice %953 {offsets = [12, 32], sizes = [2, 32], strides = [1, 1]} : vector<16x64xf32> to vector<2x32xf32>
    %cst_182 = arith.constant dense<0.000000e+00> : vector<2x32xf32>
    %1010 = tpu.matmul %982, %947, %cst_182 {dimension_numbers = #tpu.dot_dimension_numbers<[1], [0], [0], [1], [0, 0, 1, 1], [], []>} : vector<2x8xf32>, vector<8x32xf32>, vector<2x32xf32> -> vector<2x32xf32>
    %1011 = arith.addf %1008, %1010 : vector<2x32xf32>
    %cst_183 = arith.constant dense<0.000000e+00> : vector<2x32xf32>
    %1012 = tpu.matmul %1007, %948, %cst_183 {dimension_numbers = #tpu.dot_dimension_numbers<[1], [0], [0], [1], [0, 0, 1, 1], [], []>} : vector<2x8xf32>, vector<8x32xf32>, vector<2x32xf32> -> vector<2x32xf32>
    %1013 = arith.addf %1009, %1012 : vector<2x32xf32>
    %1014 = vector.extract_strided_slice %1011 {offsets = [0, 0], sizes = [2, 8], strides = [1, 1]} : vector<2x32xf32> to vector<2x8xf32>
    %1015 = arith.negf %1014 : vector<2x8xf32>
    %1016 = math.exp %1015 : vector<2x8xf32>
    %cst_184 = arith.constant 1.000000e+00 : f32
    %1017 = vector.broadcast %cst_184 : f32 to vector<2x8xf32>
    %1018 = arith.addf %1017, %1016 : vector<2x8xf32>
    %1019 = arith.divf %1017, %1018 : vector<2x8xf32>
    %1020 = vector.extract_strided_slice %1011 {offsets = [0, 8], sizes = [2, 8], strides = [1, 1]} : vector<2x32xf32> to vector<2x8xf32>
    %1021 = arith.negf %1020 : vector<2x8xf32>
    %1022 = math.exp %1021 : vector<2x8xf32>
    %cst_185 = arith.constant 1.000000e+00 : f32
    %1023 = vector.broadcast %cst_185 : f32 to vector<2x8xf32>
    %1024 = arith.addf %1023, %1022 : vector<2x8xf32>
    %1025 = arith.divf %1023, %1024 : vector<2x8xf32>
    %1026 = vector.extract_strided_slice %1011 {offsets = [0, 16], sizes = [2, 8], strides = [1, 1]} : vector<2x32xf32> to vector<2x8xf32>
    %1027 = math.tanh %1026 : vector<2x8xf32>
    %1028 = vector.extract_strided_slice %1011 {offsets = [0, 24], sizes = [2, 8], strides = [1, 1]} : vector<2x32xf32> to vector<2x8xf32>
    %1029 = arith.negf %1028 : vector<2x8xf32>
    %1030 = math.exp %1029 : vector<2x8xf32>
    %cst_186 = arith.constant 1.000000e+00 : f32
    %1031 = vector.broadcast %cst_186 : f32 to vector<2x8xf32>
    %1032 = arith.addf %1031, %1030 : vector<2x8xf32>
    %1033 = arith.divf %1031, %1032 : vector<2x8xf32>
    %1034 = arith.mulf %1025, %980 : vector<2x8xf32>
    %1035 = arith.mulf %1019, %1027 : vector<2x8xf32>
    %1036 = arith.addf %1034, %1035 : vector<2x8xf32>
    %1037 = math.tanh %1036 : vector<2x8xf32>
    %1038 = arith.mulf %1033, %1037 : vector<2x8xf32>
    %1039 = vector.extract_strided_slice %1013 {offsets = [0, 0], sizes = [2, 8], strides = [1, 1]} : vector<2x32xf32> to vector<2x8xf32>
    %1040 = arith.negf %1039 : vector<2x8xf32>
    %1041 = math.exp %1040 : vector<2x8xf32>
    %cst_187 = arith.constant 1.000000e+00 : f32
    %1042 = vector.broadcast %cst_187 : f32 to vector<2x8xf32>
    %1043 = arith.addf %1042, %1041 : vector<2x8xf32>
    %1044 = arith.divf %1042, %1043 : vector<2x8xf32>
    %1045 = vector.extract_strided_slice %1013 {offsets = [0, 8], sizes = [2, 8], strides = [1, 1]} : vector<2x32xf32> to vector<2x8xf32>
    %1046 = arith.negf %1045 : vector<2x8xf32>
    %1047 = math.exp %1046 : vector<2x8xf32>
    %cst_188 = arith.constant 1.000000e+00 : f32
    %1048 = vector.broadcast %cst_188 : f32 to vector<2x8xf32>
    %1049 = arith.addf %1048, %1047 : vector<2x8xf32>
    %1050 = arith.divf %1048, %1049 : vector<2x8xf32>
    %1051 = vector.extract_strided_slice %1013 {offsets = [0, 16], sizes = [2, 8], strides = [1, 1]} : vector<2x32xf32> to vector<2x8xf32>
    %1052 = math.tanh %1051 : vector<2x8xf32>
    %1053 = vector.extract_strided_slice %1013 {offsets = [0, 24], sizes = [2, 8], strides = [1, 1]} : vector<2x32xf32> to vector<2x8xf32>
    %1054 = arith.negf %1053 : vector<2x8xf32>
    %1055 = math.exp %1054 : vector<2x8xf32>
    %cst_189 = arith.constant 1.000000e+00 : f32
    %1056 = vector.broadcast %cst_189 : f32 to vector<2x8xf32>
    %1057 = arith.addf %1056, %1055 : vector<2x8xf32>
    %1058 = arith.divf %1056, %1057 : vector<2x8xf32>
    %1059 = arith.mulf %1050, %1005 : vector<2x8xf32>
    %1060 = arith.mulf %1044, %1052 : vector<2x8xf32>
    %1061 = arith.addf %1059, %1060 : vector<2x8xf32>
    %1062 = math.tanh %1061 : vector<2x8xf32>
    %1063 = arith.mulf %1058, %1062 : vector<2x8xf32>
    %1064 = vector.extract_strided_slice %953 {offsets = [4, 0], sizes = [2, 32], strides = [1, 1]} : vector<16x64xf32> to vector<2x32xf32>
    %1065 = vector.extract_strided_slice %953 {offsets = [10, 32], sizes = [2, 32], strides = [1, 1]} : vector<16x64xf32> to vector<2x32xf32>
    %cst_190 = arith.constant dense<0.000000e+00> : vector<2x32xf32>
    %1066 = tpu.matmul %1038, %947, %cst_190 {dimension_numbers = #tpu.dot_dimension_numbers<[1], [0], [0], [1], [0, 0, 1, 1], [], []>} : vector<2x8xf32>, vector<8x32xf32>, vector<2x32xf32> -> vector<2x32xf32>
    %1067 = arith.addf %1064, %1066 : vector<2x32xf32>
    %cst_191 = arith.constant dense<0.000000e+00> : vector<2x32xf32>
    %1068 = tpu.matmul %1063, %948, %cst_191 {dimension_numbers = #tpu.dot_dimension_numbers<[1], [0], [0], [1], [0, 0, 1, 1], [], []>} : vector<2x8xf32>, vector<8x32xf32>, vector<2x32xf32> -> vector<2x32xf32>
    %1069 = arith.addf %1065, %1068 : vector<2x32xf32>
    %1070 = vector.extract_strided_slice %1067 {offsets = [0, 0], sizes = [2, 8], strides = [1, 1]} : vector<2x32xf32> to vector<2x8xf32>
    %1071 = arith.negf %1070 : vector<2x8xf32>
    %1072 = math.exp %1071 : vector<2x8xf32>
    %cst_192 = arith.constant 1.000000e+00 : f32
    %1073 = vector.broadcast %cst_192 : f32 to vector<2x8xf32>
    %1074 = arith.addf %1073, %1072 : vector<2x8xf32>
    %1075 = arith.divf %1073, %1074 : vector<2x8xf32>
    %1076 = vector.extract_strided_slice %1067 {offsets = [0, 8], sizes = [2, 8], strides = [1, 1]} : vector<2x32xf32> to vector<2x8xf32>
    %1077 = arith.negf %1076 : vector<2x8xf32>
    %1078 = math.exp %1077 : vector<2x8xf32>
    %cst_193 = arith.constant 1.000000e+00 : f32
    %1079 = vector.broadcast %cst_193 : f32 to vector<2x8xf32>
    %1080 = arith.addf %1079, %1078 : vector<2x8xf32>
    %1081 = arith.divf %1079, %1080 : vector<2x8xf32>
    %1082 = vector.extract_strided_slice %1067 {offsets = [0, 16], sizes = [2, 8], strides = [1, 1]} : vector<2x32xf32> to vector<2x8xf32>
    %1083 = math.tanh %1082 : vector<2x8xf32>
    %1084 = vector.extract_strided_slice %1067 {offsets = [0, 24], sizes = [2, 8], strides = [1, 1]} : vector<2x32xf32> to vector<2x8xf32>
    %1085 = arith.negf %1084 : vector<2x8xf32>
    %1086 = math.exp %1085 : vector<2x8xf32>
    %cst_194 = arith.constant 1.000000e+00 : f32
    %1087 = vector.broadcast %cst_194 : f32 to vector<2x8xf32>
    %1088 = arith.addf %1087, %1086 : vector<2x8xf32>
    %1089 = arith.divf %1087, %1088 : vector<2x8xf32>
    %1090 = arith.mulf %1081, %1036 : vector<2x8xf32>
    %1091 = arith.mulf %1075, %1083 : vector<2x8xf32>
    %1092 = arith.addf %1090, %1091 : vector<2x8xf32>
    %1093 = math.tanh %1092 : vector<2x8xf32>
    %1094 = arith.mulf %1089, %1093 : vector<2x8xf32>
    %1095 = vector.extract_strided_slice %1069 {offsets = [0, 0], sizes = [2, 8], strides = [1, 1]} : vector<2x32xf32> to vector<2x8xf32>
    %1096 = arith.negf %1095 : vector<2x8xf32>
    %1097 = math.exp %1096 : vector<2x8xf32>
    %cst_195 = arith.constant 1.000000e+00 : f32
    %1098 = vector.broadcast %cst_195 : f32 to vector<2x8xf32>
    %1099 = arith.addf %1098, %1097 : vector<2x8xf32>
    %1100 = arith.divf %1098, %1099 : vector<2x8xf32>
    %1101 = vector.extract_strided_slice %1069 {offsets = [0, 8], sizes = [2, 8], strides = [1, 1]} : vector<2x32xf32> to vector<2x8xf32>
    %1102 = arith.negf %1101 : vector<2x8xf32>
    %1103 = math.exp %1102 : vector<2x8xf32>
    %cst_196 = arith.constant 1.000000e+00 : f32
    %1104 = vector.broadcast %cst_196 : f32 to vector<2x8xf32>
    %1105 = arith.addf %1104, %1103 : vector<2x8xf32>
    %1106 = arith.divf %1104, %1105 : vector<2x8xf32>
    %1107 = vector.extract_strided_slice %1069 {offsets = [0, 16], sizes = [2, 8], strides = [1, 1]} : vector<2x32xf32> to vector<2x8xf32>
    %1108 = math.tanh %1107 : vector<2x8xf32>
    %1109 = vector.extract_strided_slice %1069 {offsets = [0, 24], sizes = [2, 8], strides = [1, 1]} : vector<2x32xf32> to vector<2x8xf32>
    %1110 = arith.negf %1109 : vector<2x8xf32>
    %1111 = math.exp %1110 : vector<2x8xf32>
    %cst_197 = arith.constant 1.000000e+00 : f32
    %1112 = vector.broadcast %cst_197 : f32 to vector<2x8xf32>
    %1113 = arith.addf %1112, %1111 : vector<2x8xf32>
    %1114 = arith.divf %1112, %1113 : vector<2x8xf32>
    %1115 = arith.mulf %1106, %1061 : vector<2x8xf32>
    %1116 = arith.mulf %1100, %1108 : vector<2x8xf32>
    %1117 = arith.addf %1115, %1116 : vector<2x8xf32>
    %1118 = math.tanh %1117 : vector<2x8xf32>
    %1119 = arith.mulf %1114, %1118 : vector<2x8xf32>
    %1120 = vector.extract_strided_slice %953 {offsets = [6, 0], sizes = [2, 32], strides = [1, 1]} : vector<16x64xf32> to vector<2x32xf32>
    %1121 = vector.extract_strided_slice %953 {offsets = [8, 32], sizes = [2, 32], strides = [1, 1]} : vector<16x64xf32> to vector<2x32xf32>
    %cst_198 = arith.constant dense<0.000000e+00> : vector<2x32xf32>
    %1122 = tpu.matmul %1094, %947, %cst_198 {dimension_numbers = #tpu.dot_dimension_numbers<[1], [0], [0], [1], [0, 0, 1, 1], [], []>} : vector<2x8xf32>, vector<8x32xf32>, vector<2x32xf32> -> vector<2x32xf32>
    %1123 = arith.addf %1120, %1122 : vector<2x32xf32>
    %cst_199 = arith.constant dense<0.000000e+00> : vector<2x32xf32>
    %1124 = tpu.matmul %1119, %948, %cst_199 {dimension_numbers = #tpu.dot_dimension_numbers<[1], [0], [0], [1], [0, 0, 1, 1], [], []>} : vector<2x8xf32>, vector<8x32xf32>, vector<2x32xf32> -> vector<2x32xf32>
    %1125 = arith.addf %1121, %1124 : vector<2x32xf32>
    %1126 = vector.extract_strided_slice %1123 {offsets = [0, 0], sizes = [2, 8], strides = [1, 1]} : vector<2x32xf32> to vector<2x8xf32>
    %1127 = arith.negf %1126 : vector<2x8xf32>
    %1128 = math.exp %1127 : vector<2x8xf32>
    %cst_200 = arith.constant 1.000000e+00 : f32
    %1129 = vector.broadcast %cst_200 : f32 to vector<2x8xf32>
    %1130 = arith.addf %1129, %1128 : vector<2x8xf32>
    %1131 = arith.divf %1129, %1130 : vector<2x8xf32>
    %1132 = vector.extract_strided_slice %1123 {offsets = [0, 8], sizes = [2, 8], strides = [1, 1]} : vector<2x32xf32> to vector<2x8xf32>
    %1133 = arith.negf %1132 : vector<2x8xf32>
    %1134 = math.exp %1133 : vector<2x8xf32>
    %cst_201 = arith.constant 1.000000e+00 : f32
    %1135 = vector.broadcast %cst_201 : f32 to vector<2x8xf32>
    %1136 = arith.addf %1135, %1134 : vector<2x8xf32>
    %1137 = arith.divf %1135, %1136 : vector<2x8xf32>
    %1138 = vector.extract_strided_slice %1123 {offsets = [0, 16], sizes = [2, 8], strides = [1, 1]} : vector<2x32xf32> to vector<2x8xf32>
    %1139 = math.tanh %1138 : vector<2x8xf32>
    %1140 = vector.extract_strided_slice %1123 {offsets = [0, 24], sizes = [2, 8], strides = [1, 1]} : vector<2x32xf32> to vector<2x8xf32>
    %1141 = arith.negf %1140 : vector<2x8xf32>
    %1142 = math.exp %1141 : vector<2x8xf32>
    %cst_202 = arith.constant 1.000000e+00 : f32
    %1143 = vector.broadcast %cst_202 : f32 to vector<2x8xf32>
    %1144 = arith.addf %1143, %1142 : vector<2x8xf32>
    %1145 = arith.divf %1143, %1144 : vector<2x8xf32>
    %1146 = arith.mulf %1137, %1092 : vector<2x8xf32>
    %1147 = arith.mulf %1131, %1139 : vector<2x8xf32>
    %1148 = arith.addf %1146, %1147 : vector<2x8xf32>
    %1149 = math.tanh %1148 : vector<2x8xf32>
    %1150 = arith.mulf %1145, %1149 : vector<2x8xf32>
    %1151 = vector.extract_strided_slice %1125 {offsets = [0, 0], sizes = [2, 8], strides = [1, 1]} : vector<2x32xf32> to vector<2x8xf32>
    %1152 = arith.negf %1151 : vector<2x8xf32>
    %1153 = math.exp %1152 : vector<2x8xf32>
    %cst_203 = arith.constant 1.000000e+00 : f32
    %1154 = vector.broadcast %cst_203 : f32 to vector<2x8xf32>
    %1155 = arith.addf %1154, %1153 : vector<2x8xf32>
    %1156 = arith.divf %1154, %1155 : vector<2x8xf32>
    %1157 = vector.extract_strided_slice %1125 {offsets = [0, 8], sizes = [2, 8], strides = [1, 1]} : vector<2x32xf32> to vector<2x8xf32>
    %1158 = arith.negf %1157 : vector<2x8xf32>
    %1159 = math.exp %1158 : vector<2x8xf32>
    %cst_204 = arith.constant 1.000000e+00 : f32
    %1160 = vector.broadcast %cst_204 : f32 to vector<2x8xf32>
    %1161 = arith.addf %1160, %1159 : vector<2x8xf32>
    %1162 = arith.divf %1160, %1161 : vector<2x8xf32>
    %1163 = vector.extract_strided_slice %1125 {offsets = [0, 16], sizes = [2, 8], strides = [1, 1]} : vector<2x32xf32> to vector<2x8xf32>
    %1164 = math.tanh %1163 : vector<2x8xf32>
    %1165 = vector.extract_strided_slice %1125 {offsets = [0, 24], sizes = [2, 8], strides = [1, 1]} : vector<2x32xf32> to vector<2x8xf32>
    %1166 = arith.negf %1165 : vector<2x8xf32>
    %1167 = math.exp %1166 : vector<2x8xf32>
    %cst_205 = arith.constant 1.000000e+00 : f32
    %1168 = vector.broadcast %cst_205 : f32 to vector<2x8xf32>
    %1169 = arith.addf %1168, %1167 : vector<2x8xf32>
    %1170 = arith.divf %1168, %1169 : vector<2x8xf32>
    %1171 = arith.mulf %1162, %1117 : vector<2x8xf32>
    %1172 = arith.mulf %1156, %1164 : vector<2x8xf32>
    %1173 = arith.addf %1171, %1172 : vector<2x8xf32>
    %1174 = math.tanh %1173 : vector<2x8xf32>
    %1175 = arith.mulf %1170, %1174 : vector<2x8xf32>
    %1176 = vector.extract_strided_slice %953 {offsets = [8, 0], sizes = [2, 32], strides = [1, 1]} : vector<16x64xf32> to vector<2x32xf32>
    %1177 = vector.extract_strided_slice %953 {offsets = [6, 32], sizes = [2, 32], strides = [1, 1]} : vector<16x64xf32> to vector<2x32xf32>
    %cst_206 = arith.constant dense<0.000000e+00> : vector<2x32xf32>
    %1178 = tpu.matmul %1150, %947, %cst_206 {dimension_numbers = #tpu.dot_dimension_numbers<[1], [0], [0], [1], [0, 0, 1, 1], [], []>} : vector<2x8xf32>, vector<8x32xf32>, vector<2x32xf32> -> vector<2x32xf32>
    %1179 = arith.addf %1176, %1178 : vector<2x32xf32>
    %cst_207 = arith.constant dense<0.000000e+00> : vector<2x32xf32>
    %1180 = tpu.matmul %1175, %948, %cst_207 {dimension_numbers = #tpu.dot_dimension_numbers<[1], [0], [0], [1], [0, 0, 1, 1], [], []>} : vector<2x8xf32>, vector<8x32xf32>, vector<2x32xf32> -> vector<2x32xf32>
    %1181 = arith.addf %1177, %1180 : vector<2x32xf32>
    %1182 = vector.extract_strided_slice %1179 {offsets = [0, 0], sizes = [2, 8], strides = [1, 1]} : vector<2x32xf32> to vector<2x8xf32>
    %1183 = arith.negf %1182 : vector<2x8xf32>
    %1184 = math.exp %1183 : vector<2x8xf32>
    %cst_208 = arith.constant 1.000000e+00 : f32
    %1185 = vector.broadcast %cst_208 : f32 to vector<2x8xf32>
    %1186 = arith.addf %1185, %1184 : vector<2x8xf32>
    %1187 = arith.divf %1185, %1186 : vector<2x8xf32>
    %1188 = vector.extract_strided_slice %1179 {offsets = [0, 8], sizes = [2, 8], strides = [1, 1]} : vector<2x32xf32> to vector<2x8xf32>
    %1189 = arith.negf %1188 : vector<2x8xf32>
    %1190 = math.exp %1189 : vector<2x8xf32>
    %cst_209 = arith.constant 1.000000e+00 : f32
    %1191 = vector.broadcast %cst_209 : f32 to vector<2x8xf32>
    %1192 = arith.addf %1191, %1190 : vector<2x8xf32>
    %1193 = arith.divf %1191, %1192 : vector<2x8xf32>
    %1194 = vector.extract_strided_slice %1179 {offsets = [0, 16], sizes = [2, 8], strides = [1, 1]} : vector<2x32xf32> to vector<2x8xf32>
    %1195 = math.tanh %1194 : vector<2x8xf32>
    %1196 = vector.extract_strided_slice %1179 {offsets = [0, 24], sizes = [2, 8], strides = [1, 1]} : vector<2x32xf32> to vector<2x8xf32>
    %1197 = arith.negf %1196 : vector<2x8xf32>
    %1198 = math.exp %1197 : vector<2x8xf32>
    %cst_210 = arith.constant 1.000000e+00 : f32
    %1199 = vector.broadcast %cst_210 : f32 to vector<2x8xf32>
    %1200 = arith.addf %1199, %1198 : vector<2x8xf32>
    %1201 = arith.divf %1199, %1200 : vector<2x8xf32>
    %1202 = arith.mulf %1193, %1148 : vector<2x8xf32>
    %1203 = arith.mulf %1187, %1195 : vector<2x8xf32>
    %1204 = arith.addf %1202, %1203 : vector<2x8xf32>
    %1205 = math.tanh %1204 : vector<2x8xf32>
    %1206 = arith.mulf %1201, %1205 : vector<2x8xf32>
    %1207 = vector.extract_strided_slice %1181 {offsets = [0, 0], sizes = [2, 8], strides = [1, 1]} : vector<2x32xf32> to vector<2x8xf32>
    %1208 = arith.negf %1207 : vector<2x8xf32>
    %1209 = math.exp %1208 : vector<2x8xf32>
    %cst_211 = arith.constant 1.000000e+00 : f32
    %1210 = vector.broadcast %cst_211 : f32 to vector<2x8xf32>
    %1211 = arith.addf %1210, %1209 : vector<2x8xf32>
    %1212 = arith.divf %1210, %1211 : vector<2x8xf32>
    %1213 = vector.extract_strided_slice %1181 {offsets = [0, 8], sizes = [2, 8], strides = [1, 1]} : vector<2x32xf32> to vector<2x8xf32>
    %1214 = arith.negf %1213 : vector<2x8xf32>
    %1215 = math.exp %1214 : vector<2x8xf32>
    %cst_212 = arith.constant 1.000000e+00 : f32
    %1216 = vector.broadcast %cst_212 : f32 to vector<2x8xf32>
    %1217 = arith.addf %1216, %1215 : vector<2x8xf32>
    %1218 = arith.divf %1216, %1217 : vector<2x8xf32>
    %1219 = vector.extract_strided_slice %1181 {offsets = [0, 16], sizes = [2, 8], strides = [1, 1]} : vector<2x32xf32> to vector<2x8xf32>
    %1220 = math.tanh %1219 : vector<2x8xf32>
    %1221 = vector.extract_strided_slice %1181 {offsets = [0, 24], sizes = [2, 8], strides = [1, 1]} : vector<2x32xf32> to vector<2x8xf32>
    %1222 = arith.negf %1221 : vector<2x8xf32>
    %1223 = math.exp %1222 : vector<2x8xf32>
    %cst_213 = arith.constant 1.000000e+00 : f32
    %1224 = vector.broadcast %cst_213 : f32 to vector<2x8xf32>
    %1225 = arith.addf %1224, %1223 : vector<2x8xf32>
    %1226 = arith.divf %1224, %1225 : vector<2x8xf32>
    %1227 = arith.mulf %1218, %1173 : vector<2x8xf32>
    %1228 = arith.mulf %1212, %1220 : vector<2x8xf32>
    %1229 = arith.addf %1227, %1228 : vector<2x8xf32>
    %1230 = math.tanh %1229 : vector<2x8xf32>
    %1231 = arith.mulf %1226, %1230 : vector<2x8xf32>
    %1232 = vector.extract_strided_slice %953 {offsets = [10, 0], sizes = [2, 32], strides = [1, 1]} : vector<16x64xf32> to vector<2x32xf32>
    %1233 = vector.extract_strided_slice %953 {offsets = [4, 32], sizes = [2, 32], strides = [1, 1]} : vector<16x64xf32> to vector<2x32xf32>
    %cst_214 = arith.constant dense<0.000000e+00> : vector<2x32xf32>
    %1234 = tpu.matmul %1206, %947, %cst_214 {dimension_numbers = #tpu.dot_dimension_numbers<[1], [0], [0], [1], [0, 0, 1, 1], [], []>} : vector<2x8xf32>, vector<8x32xf32>, vector<2x32xf32> -> vector<2x32xf32>
    %1235 = arith.addf %1232, %1234 : vector<2x32xf32>
    %cst_215 = arith.constant dense<0.000000e+00> : vector<2x32xf32>
    %1236 = tpu.matmul %1231, %948, %cst_215 {dimension_numbers = #tpu.dot_dimension_numbers<[1], [0], [0], [1], [0, 0, 1, 1], [], []>} : vector<2x8xf32>, vector<8x32xf32>, vector<2x32xf32> -> vector<2x32xf32>
    %1237 = arith.addf %1233, %1236 : vector<2x32xf32>
    %1238 = vector.extract_strided_slice %1235 {offsets = [0, 0], sizes = [2, 8], strides = [1, 1]} : vector<2x32xf32> to vector<2x8xf32>
    %1239 = arith.negf %1238 : vector<2x8xf32>
    %1240 = math.exp %1239 : vector<2x8xf32>
    %cst_216 = arith.constant 1.000000e+00 : f32
    %1241 = vector.broadcast %cst_216 : f32 to vector<2x8xf32>
    %1242 = arith.addf %1241, %1240 : vector<2x8xf32>
    %1243 = arith.divf %1241, %1242 : vector<2x8xf32>
    %1244 = vector.extract_strided_slice %1235 {offsets = [0, 8], sizes = [2, 8], strides = [1, 1]} : vector<2x32xf32> to vector<2x8xf32>
    %1245 = arith.negf %1244 : vector<2x8xf32>
    %1246 = math.exp %1245 : vector<2x8xf32>
    %cst_217 = arith.constant 1.000000e+00 : f32
    %1247 = vector.broadcast %cst_217 : f32 to vector<2x8xf32>
    %1248 = arith.addf %1247, %1246 : vector<2x8xf32>
    %1249 = arith.divf %1247, %1248 : vector<2x8xf32>
    %1250 = vector.extract_strided_slice %1235 {offsets = [0, 16], sizes = [2, 8], strides = [1, 1]} : vector<2x32xf32> to vector<2x8xf32>
    %1251 = math.tanh %1250 : vector<2x8xf32>
    %1252 = vector.extract_strided_slice %1235 {offsets = [0, 24], sizes = [2, 8], strides = [1, 1]} : vector<2x32xf32> to vector<2x8xf32>
    %1253 = arith.negf %1252 : vector<2x8xf32>
    %1254 = math.exp %1253 : vector<2x8xf32>
    %cst_218 = arith.constant 1.000000e+00 : f32
    %1255 = vector.broadcast %cst_218 : f32 to vector<2x8xf32>
    %1256 = arith.addf %1255, %1254 : vector<2x8xf32>
    %1257 = arith.divf %1255, %1256 : vector<2x8xf32>
    %1258 = arith.mulf %1249, %1204 : vector<2x8xf32>
    %1259 = arith.mulf %1243, %1251 : vector<2x8xf32>
    %1260 = arith.addf %1258, %1259 : vector<2x8xf32>
    %1261 = math.tanh %1260 : vector<2x8xf32>
    %1262 = arith.mulf %1257, %1261 : vector<2x8xf32>
    %1263 = vector.extract_strided_slice %1237 {offsets = [0, 0], sizes = [2, 8], strides = [1, 1]} : vector<2x32xf32> to vector<2x8xf32>
    %1264 = arith.negf %1263 : vector<2x8xf32>
    %1265 = math.exp %1264 : vector<2x8xf32>
    %cst_219 = arith.constant 1.000000e+00 : f32
    %1266 = vector.broadcast %cst_219 : f32 to vector<2x8xf32>
    %1267 = arith.addf %1266, %1265 : vector<2x8xf32>
    %1268 = arith.divf %1266, %1267 : vector<2x8xf32>
    %1269 = vector.extract_strided_slice %1237 {offsets = [0, 8], sizes = [2, 8], strides = [1, 1]} : vector<2x32xf32> to vector<2x8xf32>
    %1270 = arith.negf %1269 : vector<2x8xf32>
    %1271 = math.exp %1270 : vector<2x8xf32>
    %cst_220 = arith.constant 1.000000e+00 : f32
    %1272 = vector.broadcast %cst_220 : f32 to vector<2x8xf32>
    %1273 = arith.addf %1272, %1271 : vector<2x8xf32>
    %1274 = arith.divf %1272, %1273 : vector<2x8xf32>
    %1275 = vector.extract_strided_slice %1237 {offsets = [0, 16], sizes = [2, 8], strides = [1, 1]} : vector<2x32xf32> to vector<2x8xf32>
    %1276 = math.tanh %1275 : vector<2x8xf32>
    %1277 = vector.extract_strided_slice %1237 {offsets = [0, 24], sizes = [2, 8], strides = [1, 1]} : vector<2x32xf32> to vector<2x8xf32>
    %1278 = arith.negf %1277 : vector<2x8xf32>
    %1279 = math.exp %1278 : vector<2x8xf32>
    %cst_221 = arith.constant 1.000000e+00 : f32
    %1280 = vector.broadcast %cst_221 : f32 to vector<2x8xf32>
    %1281 = arith.addf %1280, %1279 : vector<2x8xf32>
    %1282 = arith.divf %1280, %1281 : vector<2x8xf32>
    %1283 = arith.mulf %1274, %1229 : vector<2x8xf32>
    %1284 = arith.mulf %1268, %1276 : vector<2x8xf32>
    %1285 = arith.addf %1283, %1284 : vector<2x8xf32>
    %1286 = math.tanh %1285 : vector<2x8xf32>
    %1287 = arith.mulf %1282, %1286 : vector<2x8xf32>
    %1288 = vector.extract_strided_slice %953 {offsets = [12, 0], sizes = [2, 32], strides = [1, 1]} : vector<16x64xf32> to vector<2x32xf32>
    %1289 = vector.extract_strided_slice %953 {offsets = [2, 32], sizes = [2, 32], strides = [1, 1]} : vector<16x64xf32> to vector<2x32xf32>
    %cst_222 = arith.constant dense<0.000000e+00> : vector<2x32xf32>
    %1290 = tpu.matmul %1262, %947, %cst_222 {dimension_numbers = #tpu.dot_dimension_numbers<[1], [0], [0], [1], [0, 0, 1, 1], [], []>} : vector<2x8xf32>, vector<8x32xf32>, vector<2x32xf32> -> vector<2x32xf32>
    %1291 = arith.addf %1288, %1290 : vector<2x32xf32>
    %cst_223 = arith.constant dense<0.000000e+00> : vector<2x32xf32>
    %1292 = tpu.matmul %1287, %948, %cst_223 {dimension_numbers = #tpu.dot_dimension_numbers<[1], [0], [0], [1], [0, 0, 1, 1], [], []>} : vector<2x8xf32>, vector<8x32xf32>, vector<2x32xf32> -> vector<2x32xf32>
    %1293 = arith.addf %1289, %1292 : vector<2x32xf32>
    %1294 = vector.extract_strided_slice %1291 {offsets = [0, 0], sizes = [2, 8], strides = [1, 1]} : vector<2x32xf32> to vector<2x8xf32>
    %1295 = arith.negf %1294 : vector<2x8xf32>
    %1296 = math.exp %1295 : vector<2x8xf32>
    %cst_224 = arith.constant 1.000000e+00 : f32
    %1297 = vector.broadcast %cst_224 : f32 to vector<2x8xf32>
    %1298 = arith.addf %1297, %1296 : vector<2x8xf32>
    %1299 = arith.divf %1297, %1298 : vector<2x8xf32>
    %1300 = vector.extract_strided_slice %1291 {offsets = [0, 8], sizes = [2, 8], strides = [1, 1]} : vector<2x32xf32> to vector<2x8xf32>
    %1301 = arith.negf %1300 : vector<2x8xf32>
    %1302 = math.exp %1301 : vector<2x8xf32>
    %cst_225 = arith.constant 1.000000e+00 : f32
    %1303 = vector.broadcast %cst_225 : f32 to vector<2x8xf32>
    %1304 = arith.addf %1303, %1302 : vector<2x8xf32>
    %1305 = arith.divf %1303, %1304 : vector<2x8xf32>
    %1306 = vector.extract_strided_slice %1291 {offsets = [0, 16], sizes = [2, 8], strides = [1, 1]} : vector<2x32xf32> to vector<2x8xf32>
    %1307 = math.tanh %1306 : vector<2x8xf32>
    %1308 = vector.extract_strided_slice %1291 {offsets = [0, 24], sizes = [2, 8], strides = [1, 1]} : vector<2x32xf32> to vector<2x8xf32>
    %1309 = arith.negf %1308 : vector<2x8xf32>
    %1310 = math.exp %1309 : vector<2x8xf32>
    %cst_226 = arith.constant 1.000000e+00 : f32
    %1311 = vector.broadcast %cst_226 : f32 to vector<2x8xf32>
    %1312 = arith.addf %1311, %1310 : vector<2x8xf32>
    %1313 = arith.divf %1311, %1312 : vector<2x8xf32>
    %1314 = arith.mulf %1305, %1260 : vector<2x8xf32>
    %1315 = arith.mulf %1299, %1307 : vector<2x8xf32>
    %1316 = arith.addf %1314, %1315 : vector<2x8xf32>
    %1317 = math.tanh %1316 : vector<2x8xf32>
    %1318 = arith.mulf %1313, %1317 : vector<2x8xf32>
    %1319 = vector.extract_strided_slice %1293 {offsets = [0, 0], sizes = [2, 8], strides = [1, 1]} : vector<2x32xf32> to vector<2x8xf32>
    %1320 = arith.negf %1319 : vector<2x8xf32>
    %1321 = math.exp %1320 : vector<2x8xf32>
    %cst_227 = arith.constant 1.000000e+00 : f32
    %1322 = vector.broadcast %cst_227 : f32 to vector<2x8xf32>
    %1323 = arith.addf %1322, %1321 : vector<2x8xf32>
    %1324 = arith.divf %1322, %1323 : vector<2x8xf32>
    %1325 = vector.extract_strided_slice %1293 {offsets = [0, 8], sizes = [2, 8], strides = [1, 1]} : vector<2x32xf32> to vector<2x8xf32>
    %1326 = arith.negf %1325 : vector<2x8xf32>
    %1327 = math.exp %1326 : vector<2x8xf32>
    %cst_228 = arith.constant 1.000000e+00 : f32
    %1328 = vector.broadcast %cst_228 : f32 to vector<2x8xf32>
    %1329 = arith.addf %1328, %1327 : vector<2x8xf32>
    %1330 = arith.divf %1328, %1329 : vector<2x8xf32>
    %1331 = vector.extract_strided_slice %1293 {offsets = [0, 16], sizes = [2, 8], strides = [1, 1]} : vector<2x32xf32> to vector<2x8xf32>
    %1332 = math.tanh %1331 : vector<2x8xf32>
    %1333 = vector.extract_strided_slice %1293 {offsets = [0, 24], sizes = [2, 8], strides = [1, 1]} : vector<2x32xf32> to vector<2x8xf32>
    %1334 = arith.negf %1333 : vector<2x8xf32>
    %1335 = math.exp %1334 : vector<2x8xf32>
    %cst_229 = arith.constant 1.000000e+00 : f32
    %1336 = vector.broadcast %cst_229 : f32 to vector<2x8xf32>
    %1337 = arith.addf %1336, %1335 : vector<2x8xf32>
    %1338 = arith.divf %1336, %1337 : vector<2x8xf32>
    %1339 = arith.mulf %1330, %1285 : vector<2x8xf32>
    %1340 = arith.mulf %1324, %1332 : vector<2x8xf32>
    %1341 = arith.addf %1339, %1340 : vector<2x8xf32>
    %1342 = math.tanh %1341 : vector<2x8xf32>
    %1343 = arith.mulf %1338, %1342 : vector<2x8xf32>
    %1344 = vector.extract_strided_slice %953 {offsets = [14, 0], sizes = [2, 32], strides = [1, 1]} : vector<16x64xf32> to vector<2x32xf32>
    %1345 = vector.extract_strided_slice %953 {offsets = [0, 32], sizes = [2, 32], strides = [1, 1]} : vector<16x64xf32> to vector<2x32xf32>
    %cst_230 = arith.constant dense<0.000000e+00> : vector<2x32xf32>
    %1346 = tpu.matmul %1318, %947, %cst_230 {dimension_numbers = #tpu.dot_dimension_numbers<[1], [0], [0], [1], [0, 0, 1, 1], [], []>} : vector<2x8xf32>, vector<8x32xf32>, vector<2x32xf32> -> vector<2x32xf32>
    %1347 = arith.addf %1344, %1346 : vector<2x32xf32>
    %cst_231 = arith.constant dense<0.000000e+00> : vector<2x32xf32>
    %1348 = tpu.matmul %1343, %948, %cst_231 {dimension_numbers = #tpu.dot_dimension_numbers<[1], [0], [0], [1], [0, 0, 1, 1], [], []>} : vector<2x8xf32>, vector<8x32xf32>, vector<2x32xf32> -> vector<2x32xf32>
    %1349 = arith.addf %1345, %1348 : vector<2x32xf32>
    %1350 = vector.extract_strided_slice %1347 {offsets = [0, 0], sizes = [2, 8], strides = [1, 1]} : vector<2x32xf32> to vector<2x8xf32>
    %1351 = arith.negf %1350 : vector<2x8xf32>
    %1352 = math.exp %1351 : vector<2x8xf32>
    %cst_232 = arith.constant 1.000000e+00 : f32
    %1353 = vector.broadcast %cst_232 : f32 to vector<2x8xf32>
    %1354 = arith.addf %1353, %1352 : vector<2x8xf32>
    %1355 = arith.divf %1353, %1354 : vector<2x8xf32>
    %1356 = vector.extract_strided_slice %1347 {offsets = [0, 8], sizes = [2, 8], strides = [1, 1]} : vector<2x32xf32> to vector<2x8xf32>
    %1357 = arith.negf %1356 : vector<2x8xf32>
    %1358 = math.exp %1357 : vector<2x8xf32>
    %cst_233 = arith.constant 1.000000e+00 : f32
    %1359 = vector.broadcast %cst_233 : f32 to vector<2x8xf32>
    %1360 = arith.addf %1359, %1358 : vector<2x8xf32>
    %1361 = arith.divf %1359, %1360 : vector<2x8xf32>
    %1362 = vector.extract_strided_slice %1347 {offsets = [0, 16], sizes = [2, 8], strides = [1, 1]} : vector<2x32xf32> to vector<2x8xf32>
    %1363 = math.tanh %1362 : vector<2x8xf32>
    %1364 = vector.extract_strided_slice %1347 {offsets = [0, 24], sizes = [2, 8], strides = [1, 1]} : vector<2x32xf32> to vector<2x8xf32>
    %1365 = arith.negf %1364 : vector<2x8xf32>
    %1366 = math.exp %1365 : vector<2x8xf32>
    %cst_234 = arith.constant 1.000000e+00 : f32
    %1367 = vector.broadcast %cst_234 : f32 to vector<2x8xf32>
    %1368 = arith.addf %1367, %1366 : vector<2x8xf32>
    %1369 = arith.divf %1367, %1368 : vector<2x8xf32>
    %1370 = arith.mulf %1361, %1316 : vector<2x8xf32>
    %1371 = arith.mulf %1355, %1363 : vector<2x8xf32>
    %1372 = arith.addf %1370, %1371 : vector<2x8xf32>
    %1373 = math.tanh %1372 : vector<2x8xf32>
    %1374 = arith.mulf %1369, %1373 : vector<2x8xf32>
    %1375 = vector.extract_strided_slice %1349 {offsets = [0, 0], sizes = [2, 8], strides = [1, 1]} : vector<2x32xf32> to vector<2x8xf32>
    %1376 = arith.negf %1375 : vector<2x8xf32>
    %1377 = math.exp %1376 : vector<2x8xf32>
    %cst_235 = arith.constant 1.000000e+00 : f32
    %1378 = vector.broadcast %cst_235 : f32 to vector<2x8xf32>
    %1379 = arith.addf %1378, %1377 : vector<2x8xf32>
    %1380 = arith.divf %1378, %1379 : vector<2x8xf32>
    %1381 = vector.extract_strided_slice %1349 {offsets = [0, 8], sizes = [2, 8], strides = [1, 1]} : vector<2x32xf32> to vector<2x8xf32>
    %1382 = arith.negf %1381 : vector<2x8xf32>
    %1383 = math.exp %1382 : vector<2x8xf32>
    %cst_236 = arith.constant 1.000000e+00 : f32
    %1384 = vector.broadcast %cst_236 : f32 to vector<2x8xf32>
    %1385 = arith.addf %1384, %1383 : vector<2x8xf32>
    %1386 = arith.divf %1384, %1385 : vector<2x8xf32>
    %1387 = vector.extract_strided_slice %1349 {offsets = [0, 16], sizes = [2, 8], strides = [1, 1]} : vector<2x32xf32> to vector<2x8xf32>
    %1388 = math.tanh %1387 : vector<2x8xf32>
    %1389 = vector.extract_strided_slice %1349 {offsets = [0, 24], sizes = [2, 8], strides = [1, 1]} : vector<2x32xf32> to vector<2x8xf32>
    %1390 = arith.negf %1389 : vector<2x8xf32>
    %1391 = math.exp %1390 : vector<2x8xf32>
    %cst_237 = arith.constant 1.000000e+00 : f32
    %1392 = vector.broadcast %cst_237 : f32 to vector<2x8xf32>
    %1393 = arith.addf %1392, %1391 : vector<2x8xf32>
    %1394 = arith.divf %1392, %1393 : vector<2x8xf32>
    %1395 = arith.mulf %1386, %1341 : vector<2x8xf32>
    %1396 = arith.mulf %1380, %1388 : vector<2x8xf32>
    %1397 = arith.addf %1395, %1396 : vector<2x8xf32>
    %1398 = math.tanh %1397 : vector<2x8xf32>
    %1399 = arith.mulf %1394, %1398 : vector<2x8xf32>
    %1400 = tpu.concatenate %982, %1399 in 1 : vector<2x8xf32>, vector<2x8xf32> -> vector<2x16xf32>
    %1401 = tpu.concatenate %1038, %1343 in 1 : vector<2x8xf32>, vector<2x8xf32> -> vector<2x16xf32>
    %1402 = tpu.concatenate %1094, %1287 in 1 : vector<2x8xf32>, vector<2x8xf32> -> vector<2x16xf32>
    %1403 = tpu.concatenate %1150, %1231 in 1 : vector<2x8xf32>, vector<2x8xf32> -> vector<2x16xf32>
    %1404 = tpu.concatenate %1206, %1175 in 1 : vector<2x8xf32>, vector<2x8xf32> -> vector<2x16xf32>
    %1405 = tpu.concatenate %1262, %1119 in 1 : vector<2x8xf32>, vector<2x8xf32> -> vector<2x16xf32>
    %1406 = tpu.concatenate %1318, %1063 in 1 : vector<2x8xf32>, vector<2x8xf32> -> vector<2x16xf32>
    %1407 = tpu.concatenate %1374, %1007 in 1 : vector<2x8xf32>, vector<2x8xf32> -> vector<2x16xf32>
    %1408 = tpu.concatenate %1400, %1401, %1402, %1403, %1404, %1405, %1406, %1407 in 0 : vector<2x16xf32>, vector<2x16xf32>, vector<2x16xf32>, vector<2x16xf32>, vector<2x16xf32>, vector<2x16xf32>, vector<2x16xf32>, vector<2x16xf32> -> vector<16x16xf32>
    %c0_238 = arith.constant 0 : index
    %c0_239 = arith.constant 0 : index
    %1409 = vector.load %arg19[%c0_238, %c0_239] : memref<4x16xf32, #tpu.memory_space<vmem>>, vector<4x16xf32>
    %c0_240 = arith.constant 0 : index
    %c0_241 = arith.constant 0 : index
    %1410 = vector.load %arg20[%c0_240, %c0_241] : memref<4x16xf32, #tpu.memory_space<vmem>>, vector<4x16xf32>
    %c0_242 = arith.constant 0 : index
    %c0_243 = arith.constant 0 : index
    %1411 = vector.load %arg17[%c0_242, %c0_243] : memref<16x32xf32, #tpu.memory_space<vmem>>, vector<16x32xf32>
    %cst_244 = arith.constant dense<0.000000e+00> : vector<16x32xf32>
    %1412 = tpu.matmul %1408, %1411, %cst_244 {dimension_numbers = #tpu.dot_dimension_numbers<[1], [0], [0], [1], [0, 0, 1, 1], [], []>} : vector<16x16xf32>, vector<16x32xf32>, vector<16x32xf32> -> vector<16x32xf32>
    %c0_245 = arith.constant 0 : index
    %c0_246 = arith.constant 0 : index
    %1413 = vector.load %arg18[%c0_245, %c0_246] : memref<1x32xf32, #tpu.memory_space<vmem>>, vector<1x32xf32>
    %1414 = vector.broadcast %1413 : vector<1x32xf32> to vector<16x32xf32>
    %1415 = arith.addf %1412, %1414 : vector<16x32xf32>
    %cst_247 = arith.constant 0.000000e+00 : f32
    %1416 = vector.broadcast %cst_247 : f32 to vector<2x4xf32>
    %cst_248 = arith.constant 0.000000e+00 : f32
    %1417 = vector.broadcast %cst_248 : f32 to vector<2x4xf32>
    %1418 = vector.extract_strided_slice %1415 {offsets = [0, 0], sizes = [2, 16], strides = [1, 1]} : vector<16x32xf32> to vector<2x16xf32>
    %1419 = vector.extract_strided_slice %1415 {offsets = [14, 16], sizes = [2, 16], strides = [1, 1]} : vector<16x32xf32> to vector<2x16xf32>
    %1420 = vector.extract_strided_slice %1418 {offsets = [0, 0], sizes = [2, 4], strides = [1, 1]} : vector<2x16xf32> to vector<2x4xf32>
    %1421 = arith.negf %1420 : vector<2x4xf32>
    %1422 = math.exp %1421 : vector<2x4xf32>
    %cst_249 = arith.constant 1.000000e+00 : f32
    %1423 = vector.broadcast %cst_249 : f32 to vector<2x4xf32>
    %1424 = arith.addf %1423, %1422 : vector<2x4xf32>
    %1425 = arith.divf %1423, %1424 : vector<2x4xf32>
    %1426 = vector.extract_strided_slice %1418 {offsets = [0, 4], sizes = [2, 4], strides = [1, 1]} : vector<2x16xf32> to vector<2x4xf32>
    %1427 = arith.negf %1426 : vector<2x4xf32>
    %1428 = math.exp %1427 : vector<2x4xf32>
    %cst_250 = arith.constant 1.000000e+00 : f32
    %1429 = vector.broadcast %cst_250 : f32 to vector<2x4xf32>
    %1430 = arith.addf %1429, %1428 : vector<2x4xf32>
    %1431 = arith.divf %1429, %1430 : vector<2x4xf32>
    %1432 = vector.extract_strided_slice %1418 {offsets = [0, 8], sizes = [2, 4], strides = [1, 1]} : vector<2x16xf32> to vector<2x4xf32>
    %1433 = math.tanh %1432 : vector<2x4xf32>
    %1434 = vector.extract_strided_slice %1418 {offsets = [0, 12], sizes = [2, 4], strides = [1, 1]} : vector<2x16xf32> to vector<2x4xf32>
    %1435 = arith.negf %1434 : vector<2x4xf32>
    %1436 = math.exp %1435 : vector<2x4xf32>
    %cst_251 = arith.constant 1.000000e+00 : f32
    %1437 = vector.broadcast %cst_251 : f32 to vector<2x4xf32>
    %1438 = arith.addf %1437, %1436 : vector<2x4xf32>
    %1439 = arith.divf %1437, %1438 : vector<2x4xf32>
    %1440 = arith.mulf %1431, %1416 : vector<2x4xf32>
    %1441 = arith.mulf %1425, %1433 : vector<2x4xf32>
    %1442 = arith.addf %1440, %1441 : vector<2x4xf32>
    %1443 = math.tanh %1442 : vector<2x4xf32>
    %1444 = arith.mulf %1439, %1443 : vector<2x4xf32>
    %1445 = vector.extract_strided_slice %1419 {offsets = [0, 0], sizes = [2, 4], strides = [1, 1]} : vector<2x16xf32> to vector<2x4xf32>
    %1446 = arith.negf %1445 : vector<2x4xf32>
    %1447 = math.exp %1446 : vector<2x4xf32>
    %cst_252 = arith.constant 1.000000e+00 : f32
    %1448 = vector.broadcast %cst_252 : f32 to vector<2x4xf32>
    %1449 = arith.addf %1448, %1447 : vector<2x4xf32>
    %1450 = arith.divf %1448, %1449 : vector<2x4xf32>
    %1451 = vector.extract_strided_slice %1419 {offsets = [0, 4], sizes = [2, 4], strides = [1, 1]} : vector<2x16xf32> to vector<2x4xf32>
    %1452 = arith.negf %1451 : vector<2x4xf32>
    %1453 = math.exp %1452 : vector<2x4xf32>
    %cst_253 = arith.constant 1.000000e+00 : f32
    %1454 = vector.broadcast %cst_253 : f32 to vector<2x4xf32>
    %1455 = arith.addf %1454, %1453 : vector<2x4xf32>
    %1456 = arith.divf %1454, %1455 : vector<2x4xf32>
    %1457 = vector.extract_strided_slice %1419 {offsets = [0, 8], sizes = [2, 4], strides = [1, 1]} : vector<2x16xf32> to vector<2x4xf32>
    %1458 = math.tanh %1457 : vector<2x4xf32>
    %1459 = vector.extract_strided_slice %1419 {offsets = [0, 12], sizes = [2, 4], strides = [1, 1]} : vector<2x16xf32> to vector<2x4xf32>
    %1460 = arith.negf %1459 : vector<2x4xf32>
    %1461 = math.exp %1460 : vector<2x4xf32>
    %cst_254 = arith.constant 1.000000e+00 : f32
    %1462 = vector.broadcast %cst_254 : f32 to vector<2x4xf32>
    %1463 = arith.addf %1462, %1461 : vector<2x4xf32>
    %1464 = arith.divf %1462, %1463 : vector<2x4xf32>
    %1465 = arith.mulf %1456, %1417 : vector<2x4xf32>
    %1466 = arith.mulf %1450, %1458 : vector<2x4xf32>
    %1467 = arith.addf %1465, %1466 : vector<2x4xf32>
    %1468 = math.tanh %1467 : vector<2x4xf32>
    %1469 = arith.mulf %1464, %1468 : vector<2x4xf32>
    %1470 = vector.extract_strided_slice %1415 {offsets = [2, 0], sizes = [2, 16], strides = [1, 1]} : vector<16x32xf32> to vector<2x16xf32>
    %1471 = vector.extract_strided_slice %1415 {offsets = [12, 16], sizes = [2, 16], strides = [1, 1]} : vector<16x32xf32> to vector<2x16xf32>
    %cst_255 = arith.constant dense<0.000000e+00> : vector<2x16xf32>
    %1472 = tpu.matmul %1444, %1409, %cst_255 {dimension_numbers = #tpu.dot_dimension_numbers<[1], [0], [0], [1], [0, 0, 1, 1], [], []>} : vector<2x4xf32>, vector<4x16xf32>, vector<2x16xf32> -> vector<2x16xf32>
    %1473 = arith.addf %1470, %1472 : vector<2x16xf32>
    %cst_256 = arith.constant dense<0.000000e+00> : vector<2x16xf32>
    %1474 = tpu.matmul %1469, %1410, %cst_256 {dimension_numbers = #tpu.dot_dimension_numbers<[1], [0], [0], [1], [0, 0, 1, 1], [], []>} : vector<2x4xf32>, vector<4x16xf32>, vector<2x16xf32> -> vector<2x16xf32>
    %1475 = arith.addf %1471, %1474 : vector<2x16xf32>
    %1476 = vector.extract_strided_slice %1473 {offsets = [0, 0], sizes = [2, 4], strides = [1, 1]} : vector<2x16xf32> to vector<2x4xf32>
    %1477 = arith.negf %1476 : vector<2x4xf32>
    %1478 = math.exp %1477 : vector<2x4xf32>
    %cst_257 = arith.constant 1.000000e+00 : f32
    %1479 = vector.broadcast %cst_257 : f32 to vector<2x4xf32>
    %1480 = arith.addf %1479, %1478 : vector<2x4xf32>
    %1481 = arith.divf %1479, %1480 : vector<2x4xf32>
    %1482 = vector.extract_strided_slice %1473 {offsets = [0, 4], sizes = [2, 4], strides = [1, 1]} : vector<2x16xf32> to vector<2x4xf32>
    %1483 = arith.negf %1482 : vector<2x4xf32>
    %1484 = math.exp %1483 : vector<2x4xf32>
    %cst_258 = arith.constant 1.000000e+00 : f32
    %1485 = vector.broadcast %cst_258 : f32 to vector<2x4xf32>
    %1486 = arith.addf %1485, %1484 : vector<2x4xf32>
    %1487 = arith.divf %1485, %1486 : vector<2x4xf32>
    %1488 = vector.extract_strided_slice %1473 {offsets = [0, 8], sizes = [2, 4], strides = [1, 1]} : vector<2x16xf32> to vector<2x4xf32>
    %1489 = math.tanh %1488 : vector<2x4xf32>
    %1490 = vector.extract_strided_slice %1473 {offsets = [0, 12], sizes = [2, 4], strides = [1, 1]} : vector<2x16xf32> to vector<2x4xf32>
    %1491 = arith.negf %1490 : vector<2x4xf32>
    %1492 = math.exp %1491 : vector<2x4xf32>
    %cst_259 = arith.constant 1.000000e+00 : f32
    %1493 = vector.broadcast %cst_259 : f32 to vector<2x4xf32>
    %1494 = arith.addf %1493, %1492 : vector<2x4xf32>
    %1495 = arith.divf %1493, %1494 : vector<2x4xf32>
    %1496 = arith.mulf %1487, %1442 : vector<2x4xf32>
    %1497 = arith.mulf %1481, %1489 : vector<2x4xf32>
    %1498 = arith.addf %1496, %1497 : vector<2x4xf32>
    %1499 = math.tanh %1498 : vector<2x4xf32>
    %1500 = arith.mulf %1495, %1499 : vector<2x4xf32>
    %1501 = vector.extract_strided_slice %1475 {offsets = [0, 0], sizes = [2, 4], strides = [1, 1]} : vector<2x16xf32> to vector<2x4xf32>
    %1502 = arith.negf %1501 : vector<2x4xf32>
    %1503 = math.exp %1502 : vector<2x4xf32>
    %cst_260 = arith.constant 1.000000e+00 : f32
    %1504 = vector.broadcast %cst_260 : f32 to vector<2x4xf32>
    %1505 = arith.addf %1504, %1503 : vector<2x4xf32>
    %1506 = arith.divf %1504, %1505 : vector<2x4xf32>
    %1507 = vector.extract_strided_slice %1475 {offsets = [0, 4], sizes = [2, 4], strides = [1, 1]} : vector<2x16xf32> to vector<2x4xf32>
    %1508 = arith.negf %1507 : vector<2x4xf32>
    %1509 = math.exp %1508 : vector<2x4xf32>
    %cst_261 = arith.constant 1.000000e+00 : f32
    %1510 = vector.broadcast %cst_261 : f32 to vector<2x4xf32>
    %1511 = arith.addf %1510, %1509 : vector<2x4xf32>
    %1512 = arith.divf %1510, %1511 : vector<2x4xf32>
    %1513 = vector.extract_strided_slice %1475 {offsets = [0, 8], sizes = [2, 4], strides = [1, 1]} : vector<2x16xf32> to vector<2x4xf32>
    %1514 = math.tanh %1513 : vector<2x4xf32>
    %1515 = vector.extract_strided_slice %1475 {offsets = [0, 12], sizes = [2, 4], strides = [1, 1]} : vector<2x16xf32> to vector<2x4xf32>
    %1516 = arith.negf %1515 : vector<2x4xf32>
    %1517 = math.exp %1516 : vector<2x4xf32>
    %cst_262 = arith.constant 1.000000e+00 : f32
    %1518 = vector.broadcast %cst_262 : f32 to vector<2x4xf32>
    %1519 = arith.addf %1518, %1517 : vector<2x4xf32>
    %1520 = arith.divf %1518, %1519 : vector<2x4xf32>
    %1521 = arith.mulf %1512, %1467 : vector<2x4xf32>
    %1522 = arith.mulf %1506, %1514 : vector<2x4xf32>
    %1523 = arith.addf %1521, %1522 : vector<2x4xf32>
    %1524 = math.tanh %1523 : vector<2x4xf32>
    %1525 = arith.mulf %1520, %1524 : vector<2x4xf32>
    %1526 = vector.extract_strided_slice %1415 {offsets = [4, 0], sizes = [2, 16], strides = [1, 1]} : vector<16x32xf32> to vector<2x16xf32>
    %1527 = vector.extract_strided_slice %1415 {offsets = [10, 16], sizes = [2, 16], strides = [1, 1]} : vector<16x32xf32> to vector<2x16xf32>
    %cst_263 = arith.constant dense<0.000000e+00> : vector<2x16xf32>
    %1528 = tpu.matmul %1500, %1409, %cst_263 {dimension_numbers = #tpu.dot_dimension_numbers<[1], [0], [0], [1], [0, 0, 1, 1], [], []>} : vector<2x4xf32>, vector<4x16xf32>, vector<2x16xf32> -> vector<2x16xf32>
    %1529 = arith.addf %1526, %1528 : vector<2x16xf32>
    %cst_264 = arith.constant dense<0.000000e+00> : vector<2x16xf32>
    %1530 = tpu.matmul %1525, %1410, %cst_264 {dimension_numbers = #tpu.dot_dimension_numbers<[1], [0], [0], [1], [0, 0, 1, 1], [], []>} : vector<2x4xf32>, vector<4x16xf32>, vector<2x16xf32> -> vector<2x16xf32>
    %1531 = arith.addf %1527, %1530 : vector<2x16xf32>
    %1532 = vector.extract_strided_slice %1529 {offsets = [0, 0], sizes = [2, 4], strides = [1, 1]} : vector<2x16xf32> to vector<2x4xf32>
    %1533 = arith.negf %1532 : vector<2x4xf32>
    %1534 = math.exp %1533 : vector<2x4xf32>
    %cst_265 = arith.constant 1.000000e+00 : f32
    %1535 = vector.broadcast %cst_265 : f32 to vector<2x4xf32>
    %1536 = arith.addf %1535, %1534 : vector<2x4xf32>
    %1537 = arith.divf %1535, %1536 : vector<2x4xf32>
    %1538 = vector.extract_strided_slice %1529 {offsets = [0, 4], sizes = [2, 4], strides = [1, 1]} : vector<2x16xf32> to vector<2x4xf32>
    %1539 = arith.negf %1538 : vector<2x4xf32>
    %1540 = math.exp %1539 : vector<2x4xf32>
    %cst_266 = arith.constant 1.000000e+00 : f32
    %1541 = vector.broadcast %cst_266 : f32 to vector<2x4xf32>
    %1542 = arith.addf %1541, %1540 : vector<2x4xf32>
    %1543 = arith.divf %1541, %1542 : vector<2x4xf32>
    %1544 = vector.extract_strided_slice %1529 {offsets = [0, 8], sizes = [2, 4], strides = [1, 1]} : vector<2x16xf32> to vector<2x4xf32>
    %1545 = math.tanh %1544 : vector<2x4xf32>
    %1546 = vector.extract_strided_slice %1529 {offsets = [0, 12], sizes = [2, 4], strides = [1, 1]} : vector<2x16xf32> to vector<2x4xf32>
    %1547 = arith.negf %1546 : vector<2x4xf32>
    %1548 = math.exp %1547 : vector<2x4xf32>
    %cst_267 = arith.constant 1.000000e+00 : f32
    %1549 = vector.broadcast %cst_267 : f32 to vector<2x4xf32>
    %1550 = arith.addf %1549, %1548 : vector<2x4xf32>
    %1551 = arith.divf %1549, %1550 : vector<2x4xf32>
    %1552 = arith.mulf %1543, %1498 : vector<2x4xf32>
    %1553 = arith.mulf %1537, %1545 : vector<2x4xf32>
    %1554 = arith.addf %1552, %1553 : vector<2x4xf32>
    %1555 = math.tanh %1554 : vector<2x4xf32>
    %1556 = arith.mulf %1551, %1555 : vector<2x4xf32>
    %1557 = vector.extract_strided_slice %1531 {offsets = [0, 0], sizes = [2, 4], strides = [1, 1]} : vector<2x16xf32> to vector<2x4xf32>
    %1558 = arith.negf %1557 : vector<2x4xf32>
    %1559 = math.exp %1558 : vector<2x4xf32>
    %cst_268 = arith.constant 1.000000e+00 : f32
    %1560 = vector.broadcast %cst_268 : f32 to vector<2x4xf32>
    %1561 = arith.addf %1560, %1559 : vector<2x4xf32>
    %1562 = arith.divf %1560, %1561 : vector<2x4xf32>
    %1563 = vector.extract_strided_slice %1531 {offsets = [0, 4], sizes = [2, 4], strides = [1, 1]} : vector<2x16xf32> to vector<2x4xf32>
    %1564 = arith.negf %1563 : vector<2x4xf32>
    %1565 = math.exp %1564 : vector<2x4xf32>
    %cst_269 = arith.constant 1.000000e+00 : f32
    %1566 = vector.broadcast %cst_269 : f32 to vector<2x4xf32>
    %1567 = arith.addf %1566, %1565 : vector<2x4xf32>
    %1568 = arith.divf %1566, %1567 : vector<2x4xf32>
    %1569 = vector.extract_strided_slice %1531 {offsets = [0, 8], sizes = [2, 4], strides = [1, 1]} : vector<2x16xf32> to vector<2x4xf32>
    %1570 = math.tanh %1569 : vector<2x4xf32>
    %1571 = vector.extract_strided_slice %1531 {offsets = [0, 12], sizes = [2, 4], strides = [1, 1]} : vector<2x16xf32> to vector<2x4xf32>
    %1572 = arith.negf %1571 : vector<2x4xf32>
    %1573 = math.exp %1572 : vector<2x4xf32>
    %cst_270 = arith.constant 1.000000e+00 : f32
    %1574 = vector.broadcast %cst_270 : f32 to vector<2x4xf32>
    %1575 = arith.addf %1574, %1573 : vector<2x4xf32>
    %1576 = arith.divf %1574, %1575 : vector<2x4xf32>
    %1577 = arith.mulf %1568, %1523 : vector<2x4xf32>
    %1578 = arith.mulf %1562, %1570 : vector<2x4xf32>
    %1579 = arith.addf %1577, %1578 : vector<2x4xf32>
    %1580 = math.tanh %1579 : vector<2x4xf32>
    %1581 = arith.mulf %1576, %1580 : vector<2x4xf32>
    %1582 = vector.extract_strided_slice %1415 {offsets = [6, 0], sizes = [2, 16], strides = [1, 1]} : vector<16x32xf32> to vector<2x16xf32>
    %1583 = vector.extract_strided_slice %1415 {offsets = [8, 16], sizes = [2, 16], strides = [1, 1]} : vector<16x32xf32> to vector<2x16xf32>
    %cst_271 = arith.constant dense<0.000000e+00> : vector<2x16xf32>
    %1584 = tpu.matmul %1556, %1409, %cst_271 {dimension_numbers = #tpu.dot_dimension_numbers<[1], [0], [0], [1], [0, 0, 1, 1], [], []>} : vector<2x4xf32>, vector<4x16xf32>, vector<2x16xf32> -> vector<2x16xf32>
    %1585 = arith.addf %1582, %1584 : vector<2x16xf32>
    %cst_272 = arith.constant dense<0.000000e+00> : vector<2x16xf32>
    %1586 = tpu.matmul %1581, %1410, %cst_272 {dimension_numbers = #tpu.dot_dimension_numbers<[1], [0], [0], [1], [0, 0, 1, 1], [], []>} : vector<2x4xf32>, vector<4x16xf32>, vector<2x16xf32> -> vector<2x16xf32>
    %1587 = arith.addf %1583, %1586 : vector<2x16xf32>
    %1588 = vector.extract_strided_slice %1585 {offsets = [0, 0], sizes = [2, 4], strides = [1, 1]} : vector<2x16xf32> to vector<2x4xf32>
    %1589 = arith.negf %1588 : vector<2x4xf32>
    %1590 = math.exp %1589 : vector<2x4xf32>
    %cst_273 = arith.constant 1.000000e+00 : f32
    %1591 = vector.broadcast %cst_273 : f32 to vector<2x4xf32>
    %1592 = arith.addf %1591, %1590 : vector<2x4xf32>
    %1593 = arith.divf %1591, %1592 : vector<2x4xf32>
    %1594 = vector.extract_strided_slice %1585 {offsets = [0, 4], sizes = [2, 4], strides = [1, 1]} : vector<2x16xf32> to vector<2x4xf32>
    %1595 = arith.negf %1594 : vector<2x4xf32>
    %1596 = math.exp %1595 : vector<2x4xf32>
    %cst_274 = arith.constant 1.000000e+00 : f32
    %1597 = vector.broadcast %cst_274 : f32 to vector<2x4xf32>
    %1598 = arith.addf %1597, %1596 : vector<2x4xf32>
    %1599 = arith.divf %1597, %1598 : vector<2x4xf32>
    %1600 = vector.extract_strided_slice %1585 {offsets = [0, 8], sizes = [2, 4], strides = [1, 1]} : vector<2x16xf32> to vector<2x4xf32>
    %1601 = math.tanh %1600 : vector<2x4xf32>
    %1602 = vector.extract_strided_slice %1585 {offsets = [0, 12], sizes = [2, 4], strides = [1, 1]} : vector<2x16xf32> to vector<2x4xf32>
    %1603 = arith.negf %1602 : vector<2x4xf32>
    %1604 = math.exp %1603 : vector<2x4xf32>
    %cst_275 = arith.constant 1.000000e+00 : f32
    %1605 = vector.broadcast %cst_275 : f32 to vector<2x4xf32>
    %1606 = arith.addf %1605, %1604 : vector<2x4xf32>
    %1607 = arith.divf %1605, %1606 : vector<2x4xf32>
    %1608 = arith.mulf %1599, %1554 : vector<2x4xf32>
    %1609 = arith.mulf %1593, %1601 : vector<2x4xf32>
    %1610 = arith.addf %1608, %1609 : vector<2x4xf32>
    %1611 = math.tanh %1610 : vector<2x4xf32>
    %1612 = arith.mulf %1607, %1611 : vector<2x4xf32>
    %1613 = vector.extract_strided_slice %1587 {offsets = [0, 0], sizes = [2, 4], strides = [1, 1]} : vector<2x16xf32> to vector<2x4xf32>
    %1614 = arith.negf %1613 : vector<2x4xf32>
    %1615 = math.exp %1614 : vector<2x4xf32>
    %cst_276 = arith.constant 1.000000e+00 : f32
    %1616 = vector.broadcast %cst_276 : f32 to vector<2x4xf32>
    %1617 = arith.addf %1616, %1615 : vector<2x4xf32>
    %1618 = arith.divf %1616, %1617 : vector<2x4xf32>
    %1619 = vector.extract_strided_slice %1587 {offsets = [0, 4], sizes = [2, 4], strides = [1, 1]} : vector<2x16xf32> to vector<2x4xf32>
    %1620 = arith.negf %1619 : vector<2x4xf32>
    %1621 = math.exp %1620 : vector<2x4xf32>
    %cst_277 = arith.constant 1.000000e+00 : f32
    %1622 = vector.broadcast %cst_277 : f32 to vector<2x4xf32>
    %1623 = arith.addf %1622, %1621 : vector<2x4xf32>
    %1624 = arith.divf %1622, %1623 : vector<2x4xf32>
    %1625 = vector.extract_strided_slice %1587 {offsets = [0, 8], sizes = [2, 4], strides = [1, 1]} : vector<2x16xf32> to vector<2x4xf32>
    %1626 = math.tanh %1625 : vector<2x4xf32>
    %1627 = vector.extract_strided_slice %1587 {offsets = [0, 12], sizes = [2, 4], strides = [1, 1]} : vector<2x16xf32> to vector<2x4xf32>
    %1628 = arith.negf %1627 : vector<2x4xf32>
    %1629 = math.exp %1628 : vector<2x4xf32>
    %cst_278 = arith.constant 1.000000e+00 : f32
    %1630 = vector.broadcast %cst_278 : f32 to vector<2x4xf32>
    %1631 = arith.addf %1630, %1629 : vector<2x4xf32>
    %1632 = arith.divf %1630, %1631 : vector<2x4xf32>
    %1633 = arith.mulf %1624, %1579 : vector<2x4xf32>
    %1634 = arith.mulf %1618, %1626 : vector<2x4xf32>
    %1635 = arith.addf %1633, %1634 : vector<2x4xf32>
    %1636 = math.tanh %1635 : vector<2x4xf32>
    %1637 = arith.mulf %1632, %1636 : vector<2x4xf32>
    %1638 = vector.extract_strided_slice %1415 {offsets = [8, 0], sizes = [2, 16], strides = [1, 1]} : vector<16x32xf32> to vector<2x16xf32>
    %1639 = vector.extract_strided_slice %1415 {offsets = [6, 16], sizes = [2, 16], strides = [1, 1]} : vector<16x32xf32> to vector<2x16xf32>
    %cst_279 = arith.constant dense<0.000000e+00> : vector<2x16xf32>
    %1640 = tpu.matmul %1612, %1409, %cst_279 {dimension_numbers = #tpu.dot_dimension_numbers<[1], [0], [0], [1], [0, 0, 1, 1], [], []>} : vector<2x4xf32>, vector<4x16xf32>, vector<2x16xf32> -> vector<2x16xf32>
    %1641 = arith.addf %1638, %1640 : vector<2x16xf32>
    %cst_280 = arith.constant dense<0.000000e+00> : vector<2x16xf32>
    %1642 = tpu.matmul %1637, %1410, %cst_280 {dimension_numbers = #tpu.dot_dimension_numbers<[1], [0], [0], [1], [0, 0, 1, 1], [], []>} : vector<2x4xf32>, vector<4x16xf32>, vector<2x16xf32> -> vector<2x16xf32>
    %1643 = arith.addf %1639, %1642 : vector<2x16xf32>
    %1644 = vector.extract_strided_slice %1641 {offsets = [0, 0], sizes = [2, 4], strides = [1, 1]} : vector<2x16xf32> to vector<2x4xf32>
    %1645 = arith.negf %1644 : vector<2x4xf32>
    %1646 = math.exp %1645 : vector<2x4xf32>
    %cst_281 = arith.constant 1.000000e+00 : f32
    %1647 = vector.broadcast %cst_281 : f32 to vector<2x4xf32>
    %1648 = arith.addf %1647, %1646 : vector<2x4xf32>
    %1649 = arith.divf %1647, %1648 : vector<2x4xf32>
    %1650 = vector.extract_strided_slice %1641 {offsets = [0, 4], sizes = [2, 4], strides = [1, 1]} : vector<2x16xf32> to vector<2x4xf32>
    %1651 = arith.negf %1650 : vector<2x4xf32>
    %1652 = math.exp %1651 : vector<2x4xf32>
    %cst_282 = arith.constant 1.000000e+00 : f32
    %1653 = vector.broadcast %cst_282 : f32 to vector<2x4xf32>
    %1654 = arith.addf %1653, %1652 : vector<2x4xf32>
    %1655 = arith.divf %1653, %1654 : vector<2x4xf32>
    %1656 = vector.extract_strided_slice %1641 {offsets = [0, 8], sizes = [2, 4], strides = [1, 1]} : vector<2x16xf32> to vector<2x4xf32>
    %1657 = math.tanh %1656 : vector<2x4xf32>
    %1658 = vector.extract_strided_slice %1641 {offsets = [0, 12], sizes = [2, 4], strides = [1, 1]} : vector<2x16xf32> to vector<2x4xf32>
    %1659 = arith.negf %1658 : vector<2x4xf32>
    %1660 = math.exp %1659 : vector<2x4xf32>
    %cst_283 = arith.constant 1.000000e+00 : f32
    %1661 = vector.broadcast %cst_283 : f32 to vector<2x4xf32>
    %1662 = arith.addf %1661, %1660 : vector<2x4xf32>
    %1663 = arith.divf %1661, %1662 : vector<2x4xf32>
    %1664 = arith.mulf %1655, %1610 : vector<2x4xf32>
    %1665 = arith.mulf %1649, %1657 : vector<2x4xf32>
    %1666 = arith.addf %1664, %1665 : vector<2x4xf32>
    %1667 = math.tanh %1666 : vector<2x4xf32>
    %1668 = arith.mulf %1663, %1667 : vector<2x4xf32>
    %1669 = vector.extract_strided_slice %1643 {offsets = [0, 0], sizes = [2, 4], strides = [1, 1]} : vector<2x16xf32> to vector<2x4xf32>
    %1670 = arith.negf %1669 : vector<2x4xf32>
    %1671 = math.exp %1670 : vector<2x4xf32>
    %cst_284 = arith.constant 1.000000e+00 : f32
    %1672 = vector.broadcast %cst_284 : f32 to vector<2x4xf32>
    %1673 = arith.addf %1672, %1671 : vector<2x4xf32>
    %1674 = arith.divf %1672, %1673 : vector<2x4xf32>
    %1675 = vector.extract_strided_slice %1643 {offsets = [0, 4], sizes = [2, 4], strides = [1, 1]} : vector<2x16xf32> to vector<2x4xf32>
    %1676 = arith.negf %1675 : vector<2x4xf32>
    %1677 = math.exp %1676 : vector<2x4xf32>
    %cst_285 = arith.constant 1.000000e+00 : f32
    %1678 = vector.broadcast %cst_285 : f32 to vector<2x4xf32>
    %1679 = arith.addf %1678, %1677 : vector<2x4xf32>
    %1680 = arith.divf %1678, %1679 : vector<2x4xf32>
    %1681 = vector.extract_strided_slice %1643 {offsets = [0, 8], sizes = [2, 4], strides = [1, 1]} : vector<2x16xf32> to vector<2x4xf32>
    %1682 = math.tanh %1681 : vector<2x4xf32>
    %1683 = vector.extract_strided_slice %1643 {offsets = [0, 12], sizes = [2, 4], strides = [1, 1]} : vector<2x16xf32> to vector<2x4xf32>
    %1684 = arith.negf %1683 : vector<2x4xf32>
    %1685 = math.exp %1684 : vector<2x4xf32>
    %cst_286 = arith.constant 1.000000e+00 : f32
    %1686 = vector.broadcast %cst_286 : f32 to vector<2x4xf32>
    %1687 = arith.addf %1686, %1685 : vector<2x4xf32>
    %1688 = arith.divf %1686, %1687 : vector<2x4xf32>
    %1689 = arith.mulf %1680, %1635 : vector<2x4xf32>
    %1690 = arith.mulf %1674, %1682 : vector<2x4xf32>
    %1691 = arith.addf %1689, %1690 : vector<2x4xf32>
    %1692 = math.tanh %1691 : vector<2x4xf32>
    %1693 = arith.mulf %1688, %1692 : vector<2x4xf32>
    %1694 = vector.extract_strided_slice %1415 {offsets = [10, 0], sizes = [2, 16], strides = [1, 1]} : vector<16x32xf32> to vector<2x16xf32>
    %1695 = vector.extract_strided_slice %1415 {offsets = [4, 16], sizes = [2, 16], strides = [1, 1]} : vector<16x32xf32> to vector<2x16xf32>
    %cst_287 = arith.constant dense<0.000000e+00> : vector<2x16xf32>
    %1696 = tpu.matmul %1668, %1409, %cst_287 {dimension_numbers = #tpu.dot_dimension_numbers<[1], [0], [0], [1], [0, 0, 1, 1], [], []>} : vector<2x4xf32>, vector<4x16xf32>, vector<2x16xf32> -> vector<2x16xf32>
    %1697 = arith.addf %1694, %1696 : vector<2x16xf32>
    %cst_288 = arith.constant dense<0.000000e+00> : vector<2x16xf32>
    %1698 = tpu.matmul %1693, %1410, %cst_288 {dimension_numbers = #tpu.dot_dimension_numbers<[1], [0], [0], [1], [0, 0, 1, 1], [], []>} : vector<2x4xf32>, vector<4x16xf32>, vector<2x16xf32> -> vector<2x16xf32>
    %1699 = arith.addf %1695, %1698 : vector<2x16xf32>
    %1700 = vector.extract_strided_slice %1697 {offsets = [0, 0], sizes = [2, 4], strides = [1, 1]} : vector<2x16xf32> to vector<2x4xf32>
    %1701 = arith.negf %1700 : vector<2x4xf32>
    %1702 = math.exp %1701 : vector<2x4xf32>
    %cst_289 = arith.constant 1.000000e+00 : f32
    %1703 = vector.broadcast %cst_289 : f32 to vector<2x4xf32>
    %1704 = arith.addf %1703, %1702 : vector<2x4xf32>
    %1705 = arith.divf %1703, %1704 : vector<2x4xf32>
    %1706 = vector.extract_strided_slice %1697 {offsets = [0, 4], sizes = [2, 4], strides = [1, 1]} : vector<2x16xf32> to vector<2x4xf32>
    %1707 = arith.negf %1706 : vector<2x4xf32>
    %1708 = math.exp %1707 : vector<2x4xf32>
    %cst_290 = arith.constant 1.000000e+00 : f32
    %1709 = vector.broadcast %cst_290 : f32 to vector<2x4xf32>
    %1710 = arith.addf %1709, %1708 : vector<2x4xf32>
    %1711 = arith.divf %1709, %1710 : vector<2x4xf32>
    %1712 = vector.extract_strided_slice %1697 {offsets = [0, 8], sizes = [2, 4], strides = [1, 1]} : vector<2x16xf32> to vector<2x4xf32>
    %1713 = math.tanh %1712 : vector<2x4xf32>
    %1714 = vector.extract_strided_slice %1697 {offsets = [0, 12], sizes = [2, 4], strides = [1, 1]} : vector<2x16xf32> to vector<2x4xf32>
    %1715 = arith.negf %1714 : vector<2x4xf32>
    %1716 = math.exp %1715 : vector<2x4xf32>
    %cst_291 = arith.constant 1.000000e+00 : f32
    %1717 = vector.broadcast %cst_291 : f32 to vector<2x4xf32>
    %1718 = arith.addf %1717, %1716 : vector<2x4xf32>
    %1719 = arith.divf %1717, %1718 : vector<2x4xf32>
    %1720 = arith.mulf %1711, %1666 : vector<2x4xf32>
    %1721 = arith.mulf %1705, %1713 : vector<2x4xf32>
    %1722 = arith.addf %1720, %1721 : vector<2x4xf32>
    %1723 = math.tanh %1722 : vector<2x4xf32>
    %1724 = arith.mulf %1719, %1723 : vector<2x4xf32>
    %1725 = vector.extract_strided_slice %1699 {offsets = [0, 0], sizes = [2, 4], strides = [1, 1]} : vector<2x16xf32> to vector<2x4xf32>
    %1726 = arith.negf %1725 : vector<2x4xf32>
    %1727 = math.exp %1726 : vector<2x4xf32>
    %cst_292 = arith.constant 1.000000e+00 : f32
    %1728 = vector.broadcast %cst_292 : f32 to vector<2x4xf32>
    %1729 = arith.addf %1728, %1727 : vector<2x4xf32>
    %1730 = arith.divf %1728, %1729 : vector<2x4xf32>
    %1731 = vector.extract_strided_slice %1699 {offsets = [0, 4], sizes = [2, 4], strides = [1, 1]} : vector<2x16xf32> to vector<2x4xf32>
    %1732 = arith.negf %1731 : vector<2x4xf32>
    %1733 = math.exp %1732 : vector<2x4xf32>
    %cst_293 = arith.constant 1.000000e+00 : f32
    %1734 = vector.broadcast %cst_293 : f32 to vector<2x4xf32>
    %1735 = arith.addf %1734, %1733 : vector<2x4xf32>
    %1736 = arith.divf %1734, %1735 : vector<2x4xf32>
    %1737 = vector.extract_strided_slice %1699 {offsets = [0, 8], sizes = [2, 4], strides = [1, 1]} : vector<2x16xf32> to vector<2x4xf32>
    %1738 = math.tanh %1737 : vector<2x4xf32>
    %1739 = vector.extract_strided_slice %1699 {offsets = [0, 12], sizes = [2, 4], strides = [1, 1]} : vector<2x16xf32> to vector<2x4xf32>
    %1740 = arith.negf %1739 : vector<2x4xf32>
    %1741 = math.exp %1740 : vector<2x4xf32>
    %cst_294 = arith.constant 1.000000e+00 : f32
    %1742 = vector.broadcast %cst_294 : f32 to vector<2x4xf32>
    %1743 = arith.addf %1742, %1741 : vector<2x4xf32>
    %1744 = arith.divf %1742, %1743 : vector<2x4xf32>
    %1745 = arith.mulf %1736, %1691 : vector<2x4xf32>
    %1746 = arith.mulf %1730, %1738 : vector<2x4xf32>
    %1747 = arith.addf %1745, %1746 : vector<2x4xf32>
    %1748 = math.tanh %1747 : vector<2x4xf32>
    %1749 = arith.mulf %1744, %1748 : vector<2x4xf32>
    %1750 = vector.extract_strided_slice %1415 {offsets = [12, 0], sizes = [2, 16], strides = [1, 1]} : vector<16x32xf32> to vector<2x16xf32>
    %1751 = vector.extract_strided_slice %1415 {offsets = [2, 16], sizes = [2, 16], strides = [1, 1]} : vector<16x32xf32> to vector<2x16xf32>
    %cst_295 = arith.constant dense<0.000000e+00> : vector<2x16xf32>
    %1752 = tpu.matmul %1724, %1409, %cst_295 {dimension_numbers = #tpu.dot_dimension_numbers<[1], [0], [0], [1], [0, 0, 1, 1], [], []>} : vector<2x4xf32>, vector<4x16xf32>, vector<2x16xf32> -> vector<2x16xf32>
    %1753 = arith.addf %1750, %1752 : vector<2x16xf32>
    %cst_296 = arith.constant dense<0.000000e+00> : vector<2x16xf32>
    %1754 = tpu.matmul %1749, %1410, %cst_296 {dimension_numbers = #tpu.dot_dimension_numbers<[1], [0], [0], [1], [0, 0, 1, 1], [], []>} : vector<2x4xf32>, vector<4x16xf32>, vector<2x16xf32> -> vector<2x16xf32>
    %1755 = arith.addf %1751, %1754 : vector<2x16xf32>
    %1756 = vector.extract_strided_slice %1753 {offsets = [0, 0], sizes = [2, 4], strides = [1, 1]} : vector<2x16xf32> to vector<2x4xf32>
    %1757 = arith.negf %1756 : vector<2x4xf32>
    %1758 = math.exp %1757 : vector<2x4xf32>
    %cst_297 = arith.constant 1.000000e+00 : f32
    %1759 = vector.broadcast %cst_297 : f32 to vector<2x4xf32>
    %1760 = arith.addf %1759, %1758 : vector<2x4xf32>
    %1761 = arith.divf %1759, %1760 : vector<2x4xf32>
    %1762 = vector.extract_strided_slice %1753 {offsets = [0, 4], sizes = [2, 4], strides = [1, 1]} : vector<2x16xf32> to vector<2x4xf32>
    %1763 = arith.negf %1762 : vector<2x4xf32>
    %1764 = math.exp %1763 : vector<2x4xf32>
    %cst_298 = arith.constant 1.000000e+00 : f32
    %1765 = vector.broadcast %cst_298 : f32 to vector<2x4xf32>
    %1766 = arith.addf %1765, %1764 : vector<2x4xf32>
    %1767 = arith.divf %1765, %1766 : vector<2x4xf32>
    %1768 = vector.extract_strided_slice %1753 {offsets = [0, 8], sizes = [2, 4], strides = [1, 1]} : vector<2x16xf32> to vector<2x4xf32>
    %1769 = math.tanh %1768 : vector<2x4xf32>
    %1770 = vector.extract_strided_slice %1753 {offsets = [0, 12], sizes = [2, 4], strides = [1, 1]} : vector<2x16xf32> to vector<2x4xf32>
    %1771 = arith.negf %1770 : vector<2x4xf32>
    %1772 = math.exp %1771 : vector<2x4xf32>
    %cst_299 = arith.constant 1.000000e+00 : f32
    %1773 = vector.broadcast %cst_299 : f32 to vector<2x4xf32>
    %1774 = arith.addf %1773, %1772 : vector<2x4xf32>
    %1775 = arith.divf %1773, %1774 : vector<2x4xf32>
    %1776 = arith.mulf %1767, %1722 : vector<2x4xf32>
    %1777 = arith.mulf %1761, %1769 : vector<2x4xf32>
    %1778 = arith.addf %1776, %1777 : vector<2x4xf32>
    %1779 = math.tanh %1778 : vector<2x4xf32>
    %1780 = arith.mulf %1775, %1779 : vector<2x4xf32>
    %1781 = vector.extract_strided_slice %1755 {offsets = [0, 0], sizes = [2, 4], strides = [1, 1]} : vector<2x16xf32> to vector<2x4xf32>
    %1782 = arith.negf %1781 : vector<2x4xf32>
    %1783 = math.exp %1782 : vector<2x4xf32>
    %cst_300 = arith.constant 1.000000e+00 : f32
    %1784 = vector.broadcast %cst_300 : f32 to vector<2x4xf32>
    %1785 = arith.addf %1784, %1783 : vector<2x4xf32>
    %1786 = arith.divf %1784, %1785 : vector<2x4xf32>
    %1787 = vector.extract_strided_slice %1755 {offsets = [0, 4], sizes = [2, 4], strides = [1, 1]} : vector<2x16xf32> to vector<2x4xf32>
    %1788 = arith.negf %1787 : vector<2x4xf32>
    %1789 = math.exp %1788 : vector<2x4xf32>
    %cst_301 = arith.constant 1.000000e+00 : f32
    %1790 = vector.broadcast %cst_301 : f32 to vector<2x4xf32>
    %1791 = arith.addf %1790, %1789 : vector<2x4xf32>
    %1792 = arith.divf %1790, %1791 : vector<2x4xf32>
    %1793 = vector.extract_strided_slice %1755 {offsets = [0, 8], sizes = [2, 4], strides = [1, 1]} : vector<2x16xf32> to vector<2x4xf32>
    %1794 = math.tanh %1793 : vector<2x4xf32>
    %1795 = vector.extract_strided_slice %1755 {offsets = [0, 12], sizes = [2, 4], strides = [1, 1]} : vector<2x16xf32> to vector<2x4xf32>
    %1796 = arith.negf %1795 : vector<2x4xf32>
    %1797 = math.exp %1796 : vector<2x4xf32>
    %cst_302 = arith.constant 1.000000e+00 : f32
    %1798 = vector.broadcast %cst_302 : f32 to vector<2x4xf32>
    %1799 = arith.addf %1798, %1797 : vector<2x4xf32>
    %1800 = arith.divf %1798, %1799 : vector<2x4xf32>
    %1801 = arith.mulf %1792, %1747 : vector<2x4xf32>
    %1802 = arith.mulf %1786, %1794 : vector<2x4xf32>
    %1803 = arith.addf %1801, %1802 : vector<2x4xf32>
    %1804 = math.tanh %1803 : vector<2x4xf32>
    %1805 = arith.mulf %1800, %1804 : vector<2x4xf32>
    %1806 = vector.extract_strided_slice %1415 {offsets = [14, 0], sizes = [2, 16], strides = [1, 1]} : vector<16x32xf32> to vector<2x16xf32>
    %1807 = vector.extract_strided_slice %1415 {offsets = [0, 16], sizes = [2, 16], strides = [1, 1]} : vector<16x32xf32> to vector<2x16xf32>
    %cst_303 = arith.constant dense<0.000000e+00> : vector<2x16xf32>
    %1808 = tpu.matmul %1780, %1409, %cst_303 {dimension_numbers = #tpu.dot_dimension_numbers<[1], [0], [0], [1], [0, 0, 1, 1], [], []>} : vector<2x4xf32>, vector<4x16xf32>, vector<2x16xf32> -> vector<2x16xf32>
    %1809 = arith.addf %1806, %1808 : vector<2x16xf32>
    %cst_304 = arith.constant dense<0.000000e+00> : vector<2x16xf32>
    %1810 = tpu.matmul %1805, %1410, %cst_304 {dimension_numbers = #tpu.dot_dimension_numbers<[1], [0], [0], [1], [0, 0, 1, 1], [], []>} : vector<2x4xf32>, vector<4x16xf32>, vector<2x16xf32> -> vector<2x16xf32>
    %1811 = arith.addf %1807, %1810 : vector<2x16xf32>
    %1812 = vector.extract_strided_slice %1809 {offsets = [0, 0], sizes = [2, 4], strides = [1, 1]} : vector<2x16xf32> to vector<2x4xf32>
    %1813 = arith.negf %1812 : vector<2x4xf32>
    %1814 = math.exp %1813 : vector<2x4xf32>
    %cst_305 = arith.constant 1.000000e+00 : f32
    %1815 = vector.broadcast %cst_305 : f32 to vector<2x4xf32>
    %1816 = arith.addf %1815, %1814 : vector<2x4xf32>
    %1817 = arith.divf %1815, %1816 : vector<2x4xf32>
    %1818 = vector.extract_strided_slice %1809 {offsets = [0, 4], sizes = [2, 4], strides = [1, 1]} : vector<2x16xf32> to vector<2x4xf32>
    %1819 = arith.negf %1818 : vector<2x4xf32>
    %1820 = math.exp %1819 : vector<2x4xf32>
    %cst_306 = arith.constant 1.000000e+00 : f32
    %1821 = vector.broadcast %cst_306 : f32 to vector<2x4xf32>
    %1822 = arith.addf %1821, %1820 : vector<2x4xf32>
    %1823 = arith.divf %1821, %1822 : vector<2x4xf32>
    %1824 = vector.extract_strided_slice %1809 {offsets = [0, 8], sizes = [2, 4], strides = [1, 1]} : vector<2x16xf32> to vector<2x4xf32>
    %1825 = math.tanh %1824 : vector<2x4xf32>
    %1826 = vector.extract_strided_slice %1809 {offsets = [0, 12], sizes = [2, 4], strides = [1, 1]} : vector<2x16xf32> to vector<2x4xf32>
    %1827 = arith.negf %1826 : vector<2x4xf32>
    %1828 = math.exp %1827 : vector<2x4xf32>
    %cst_307 = arith.constant 1.000000e+00 : f32
    %1829 = vector.broadcast %cst_307 : f32 to vector<2x4xf32>
    %1830 = arith.addf %1829, %1828 : vector<2x4xf32>
    %1831 = arith.divf %1829, %1830 : vector<2x4xf32>
    %1832 = arith.mulf %1823, %1778 : vector<2x4xf32>
    %1833 = arith.mulf %1817, %1825 : vector<2x4xf32>
    %1834 = arith.addf %1832, %1833 : vector<2x4xf32>
    %1835 = math.tanh %1834 : vector<2x4xf32>
    %1836 = arith.mulf %1831, %1835 : vector<2x4xf32>
    %1837 = vector.extract_strided_slice %1811 {offsets = [0, 0], sizes = [2, 4], strides = [1, 1]} : vector<2x16xf32> to vector<2x4xf32>
    %1838 = arith.negf %1837 : vector<2x4xf32>
    %1839 = math.exp %1838 : vector<2x4xf32>
    %cst_308 = arith.constant 1.000000e+00 : f32
    %1840 = vector.broadcast %cst_308 : f32 to vector<2x4xf32>
    %1841 = arith.addf %1840, %1839 : vector<2x4xf32>
    %1842 = arith.divf %1840, %1841 : vector<2x4xf32>
    %1843 = vector.extract_strided_slice %1811 {offsets = [0, 4], sizes = [2, 4], strides = [1, 1]} : vector<2x16xf32> to vector<2x4xf32>
    %1844 = arith.negf %1843 : vector<2x4xf32>
    %1845 = math.exp %1844 : vector<2x4xf32>
    %cst_309 = arith.constant 1.000000e+00 : f32
    %1846 = vector.broadcast %cst_309 : f32 to vector<2x4xf32>
    %1847 = arith.addf %1846, %1845 : vector<2x4xf32>
    %1848 = arith.divf %1846, %1847 : vector<2x4xf32>
    %1849 = vector.extract_strided_slice %1811 {offsets = [0, 8], sizes = [2, 4], strides = [1, 1]} : vector<2x16xf32> to vector<2x4xf32>
    %1850 = math.tanh %1849 : vector<2x4xf32>
    %1851 = vector.extract_strided_slice %1811 {offsets = [0, 12], sizes = [2, 4], strides = [1, 1]} : vector<2x16xf32> to vector<2x4xf32>
    %1852 = arith.negf %1851 : vector<2x4xf32>
    %1853 = math.exp %1852 : vector<2x4xf32>
    %cst_310 = arith.constant 1.000000e+00 : f32
    %1854 = vector.broadcast %cst_310 : f32 to vector<2x4xf32>
    %1855 = arith.addf %1854, %1853 : vector<2x4xf32>
    %1856 = arith.divf %1854, %1855 : vector<2x4xf32>
    %1857 = arith.mulf %1848, %1803 : vector<2x4xf32>
    %1858 = arith.mulf %1842, %1850 : vector<2x4xf32>
    %1859 = arith.addf %1857, %1858 : vector<2x4xf32>
    %1860 = math.tanh %1859 : vector<2x4xf32>
    %1861 = arith.mulf %1856, %1860 : vector<2x4xf32>
    %1862 = tpu.concatenate %1444, %1861 in 1 : vector<2x4xf32>, vector<2x4xf32> -> vector<2x8xf32>
    %1863 = tpu.concatenate %1500, %1805 in 1 : vector<2x4xf32>, vector<2x4xf32> -> vector<2x8xf32>
    %1864 = tpu.concatenate %1556, %1749 in 1 : vector<2x4xf32>, vector<2x4xf32> -> vector<2x8xf32>
    %1865 = tpu.concatenate %1612, %1693 in 1 : vector<2x4xf32>, vector<2x4xf32> -> vector<2x8xf32>
    %1866 = tpu.concatenate %1668, %1637 in 1 : vector<2x4xf32>, vector<2x4xf32> -> vector<2x8xf32>
    %1867 = tpu.concatenate %1724, %1581 in 1 : vector<2x4xf32>, vector<2x4xf32> -> vector<2x8xf32>
    %1868 = tpu.concatenate %1780, %1525 in 1 : vector<2x4xf32>, vector<2x4xf32> -> vector<2x8xf32>
    %1869 = tpu.concatenate %1836, %1469 in 1 : vector<2x4xf32>, vector<2x4xf32> -> vector<2x8xf32>
    %c0_311 = arith.constant 0 : index
    %c0_312 = arith.constant 0 : index
    %1870 = vector.load %arg21[%c0_311, %c0_312] : memref<1x8xf32, #tpu.memory_space<vmem>>, vector<1x8xf32>
    %c0_313 = arith.constant 0 : index
    %c0_314 = arith.constant 0 : index
    %1871 = vector.load %arg22[%c0_313, %c0_314] : memref<1x8xf32, #tpu.memory_space<vmem>>, vector<1x8xf32>
    %c0_315 = arith.constant 0 : index
    %c0_316 = arith.constant 0 : index
    %1872 = vector.load %arg23[%c0_315, %c0_316] : memref<1x8xf32, #tpu.memory_space<vmem>>, vector<1x8xf32>
    %c0_317 = arith.constant 0 : index
    %c0_318 = arith.constant 0 : index
    %1873 = vector.load %arg24[%c0_317, %c0_318] : memref<1x1xf32, #tpu.memory_space<vmem>>, vector<1x1xf32>
    %cst_319 = arith.constant dense<0.000000e+00> : vector<2xf32>
    %1874 = vector.multi_reduction <add>, %1862, %cst_319 [1] : vector<2x8xf32> to vector<2xf32>
    %1875 = vector.shape_cast %1874 : vector<2xf32> to vector<2x1xf32>
    %cst_320 = arith.constant 8.000000e+00 : f32
    %1876 = vector.broadcast %cst_320 : f32 to vector<2x1xf32>
    %1877 = arith.divf %1875, %1876 : vector<2x1xf32>
    %1878 = vector.broadcast %1877 : vector<2x1xf32> to vector<2x8xf32>
    %1879 = arith.subf %1862, %1878 : vector<2x8xf32>
    %1880 = arith.mulf %1879, %1879 : vector<2x8xf32>
    %cst_321 = arith.constant dense<0.000000e+00> : vector<2xf32>
    %1881 = vector.multi_reduction <add>, %1880, %cst_321 [1] : vector<2x8xf32> to vector<2xf32>
    %1882 = vector.shape_cast %1881 : vector<2xf32> to vector<2x1xf32>
    %cst_322 = arith.constant 8.000000e+00 : f32
    %1883 = vector.broadcast %cst_322 : f32 to vector<2x1xf32>
    %1884 = arith.divf %1882, %1883 : vector<2x1xf32>
    %1885 = vector.broadcast %1877 : vector<2x1xf32> to vector<2x8xf32>
    %1886 = arith.subf %1862, %1885 : vector<2x8xf32>
    %cst_323 = arith.constant 9.99999974E-6 : f32
    %1887 = vector.broadcast %cst_323 : f32 to vector<2x1xf32>
    %1888 = arith.addf %1884, %1887 : vector<2x1xf32>
    %1889 = math.rsqrt %1888 : vector<2x1xf32>
    %1890 = vector.broadcast %1889 : vector<2x1xf32> to vector<2x8xf32>
    %1891 = arith.mulf %1886, %1890 : vector<2x8xf32>
    %1892 = vector.broadcast %1870 : vector<1x8xf32> to vector<2x8xf32>
    %1893 = arith.mulf %1891, %1892 : vector<2x8xf32>
    %1894 = vector.broadcast %1871 : vector<1x8xf32> to vector<2x8xf32>
    %1895 = arith.addf %1893, %1894 : vector<2x8xf32>
    %cst_324 = arith.constant 5.000000e-01 : f32
    %1896 = vector.broadcast %cst_324 : f32 to vector<2x8xf32>
    %1897 = arith.mulf %1896, %1895 : vector<2x8xf32>
    %cst_325 = arith.constant 0.707106769 : f32
    %1898 = vector.broadcast %cst_325 : f32 to vector<2x8xf32>
    %1899 = arith.mulf %1895, %1898 : vector<2x8xf32>
    %1900 = math.erf %1899 : vector<2x8xf32>
    %cst_326 = arith.constant 1.000000e+00 : f32
    %1901 = vector.broadcast %cst_326 : f32 to vector<2x8xf32>
    %1902 = arith.addf %1901, %1900 : vector<2x8xf32>
    %1903 = arith.mulf %1897, %1902 : vector<2x8xf32>
    %1904 = vector.broadcast %1872 : vector<1x8xf32> to vector<2x8xf32>
    %1905 = arith.mulf %1903, %1904 : vector<2x8xf32>
    %cst_327 = arith.constant dense<0.000000e+00> : vector<2xf32>
    %1906 = vector.multi_reduction <add>, %1905, %cst_327 [1] : vector<2x8xf32> to vector<2xf32>
    %1907 = vector.shape_cast %1906 : vector<2xf32> to vector<2x1xf32>
    %1908 = vector.broadcast %1873 : vector<1x1xf32> to vector<2x1xf32>
    %1909 = arith.addf %1907, %1908 : vector<2x1xf32>
    %cst_328 = arith.constant dense<0.000000e+00> : vector<2xf32>
    %1910 = vector.multi_reduction <add>, %1863, %cst_328 [1] : vector<2x8xf32> to vector<2xf32>
    %1911 = vector.shape_cast %1910 : vector<2xf32> to vector<2x1xf32>
    %cst_329 = arith.constant 8.000000e+00 : f32
    %1912 = vector.broadcast %cst_329 : f32 to vector<2x1xf32>
    %1913 = arith.divf %1911, %1912 : vector<2x1xf32>
    %1914 = vector.broadcast %1913 : vector<2x1xf32> to vector<2x8xf32>
    %1915 = arith.subf %1863, %1914 : vector<2x8xf32>
    %1916 = arith.mulf %1915, %1915 : vector<2x8xf32>
    %cst_330 = arith.constant dense<0.000000e+00> : vector<2xf32>
    %1917 = vector.multi_reduction <add>, %1916, %cst_330 [1] : vector<2x8xf32> to vector<2xf32>
    %1918 = vector.shape_cast %1917 : vector<2xf32> to vector<2x1xf32>
    %cst_331 = arith.constant 8.000000e+00 : f32
    %1919 = vector.broadcast %cst_331 : f32 to vector<2x1xf32>
    %1920 = arith.divf %1918, %1919 : vector<2x1xf32>
    %1921 = vector.broadcast %1913 : vector<2x1xf32> to vector<2x8xf32>
    %1922 = arith.subf %1863, %1921 : vector<2x8xf32>
    %cst_332 = arith.constant 9.99999974E-6 : f32
    %1923 = vector.broadcast %cst_332 : f32 to vector<2x1xf32>
    %1924 = arith.addf %1920, %1923 : vector<2x1xf32>
    %1925 = math.rsqrt %1924 : vector<2x1xf32>
    %1926 = vector.broadcast %1925 : vector<2x1xf32> to vector<2x8xf32>
    %1927 = arith.mulf %1922, %1926 : vector<2x8xf32>
    %1928 = vector.broadcast %1870 : vector<1x8xf32> to vector<2x8xf32>
    %1929 = arith.mulf %1927, %1928 : vector<2x8xf32>
    %1930 = vector.broadcast %1871 : vector<1x8xf32> to vector<2x8xf32>
    %1931 = arith.addf %1929, %1930 : vector<2x8xf32>
    %cst_333 = arith.constant 5.000000e-01 : f32
    %1932 = vector.broadcast %cst_333 : f32 to vector<2x8xf32>
    %1933 = arith.mulf %1932, %1931 : vector<2x8xf32>
    %cst_334 = arith.constant 0.707106769 : f32
    %1934 = vector.broadcast %cst_334 : f32 to vector<2x8xf32>
    %1935 = arith.mulf %1931, %1934 : vector<2x8xf32>
    %1936 = math.erf %1935 : vector<2x8xf32>
    %cst_335 = arith.constant 1.000000e+00 : f32
    %1937 = vector.broadcast %cst_335 : f32 to vector<2x8xf32>
    %1938 = arith.addf %1937, %1936 : vector<2x8xf32>
    %1939 = arith.mulf %1933, %1938 : vector<2x8xf32>
    %1940 = vector.broadcast %1872 : vector<1x8xf32> to vector<2x8xf32>
    %1941 = arith.mulf %1939, %1940 : vector<2x8xf32>
    %cst_336 = arith.constant dense<0.000000e+00> : vector<2xf32>
    %1942 = vector.multi_reduction <add>, %1941, %cst_336 [1] : vector<2x8xf32> to vector<2xf32>
    %1943 = vector.shape_cast %1942 : vector<2xf32> to vector<2x1xf32>
    %1944 = vector.broadcast %1873 : vector<1x1xf32> to vector<2x1xf32>
    %1945 = arith.addf %1943, %1944 : vector<2x1xf32>
    %cst_337 = arith.constant dense<0.000000e+00> : vector<2xf32>
    %1946 = vector.multi_reduction <add>, %1864, %cst_337 [1] : vector<2x8xf32> to vector<2xf32>
    %1947 = vector.shape_cast %1946 : vector<2xf32> to vector<2x1xf32>
    %cst_338 = arith.constant 8.000000e+00 : f32
    %1948 = vector.broadcast %cst_338 : f32 to vector<2x1xf32>
    %1949 = arith.divf %1947, %1948 : vector<2x1xf32>
    %1950 = vector.broadcast %1949 : vector<2x1xf32> to vector<2x8xf32>
    %1951 = arith.subf %1864, %1950 : vector<2x8xf32>
    %1952 = arith.mulf %1951, %1951 : vector<2x8xf32>
    %cst_339 = arith.constant dense<0.000000e+00> : vector<2xf32>
    %1953 = vector.multi_reduction <add>, %1952, %cst_339 [1] : vector<2x8xf32> to vector<2xf32>
    %1954 = vector.shape_cast %1953 : vector<2xf32> to vector<2x1xf32>
    %cst_340 = arith.constant 8.000000e+00 : f32
    %1955 = vector.broadcast %cst_340 : f32 to vector<2x1xf32>
    %1956 = arith.divf %1954, %1955 : vector<2x1xf32>
    %1957 = vector.broadcast %1949 : vector<2x1xf32> to vector<2x8xf32>
    %1958 = arith.subf %1864, %1957 : vector<2x8xf32>
    %cst_341 = arith.constant 9.99999974E-6 : f32
    %1959 = vector.broadcast %cst_341 : f32 to vector<2x1xf32>
    %1960 = arith.addf %1956, %1959 : vector<2x1xf32>
    %1961 = math.rsqrt %1960 : vector<2x1xf32>
    %1962 = vector.broadcast %1961 : vector<2x1xf32> to vector<2x8xf32>
    %1963 = arith.mulf %1958, %1962 : vector<2x8xf32>
    %1964 = vector.broadcast %1870 : vector<1x8xf32> to vector<2x8xf32>
    %1965 = arith.mulf %1963, %1964 : vector<2x8xf32>
    %1966 = vector.broadcast %1871 : vector<1x8xf32> to vector<2x8xf32>
    %1967 = arith.addf %1965, %1966 : vector<2x8xf32>
    %cst_342 = arith.constant 5.000000e-01 : f32
    %1968 = vector.broadcast %cst_342 : f32 to vector<2x8xf32>
    %1969 = arith.mulf %1968, %1967 : vector<2x8xf32>
    %cst_343 = arith.constant 0.707106769 : f32
    %1970 = vector.broadcast %cst_343 : f32 to vector<2x8xf32>
    %1971 = arith.mulf %1967, %1970 : vector<2x8xf32>
    %1972 = math.erf %1971 : vector<2x8xf32>
    %cst_344 = arith.constant 1.000000e+00 : f32
    %1973 = vector.broadcast %cst_344 : f32 to vector<2x8xf32>
    %1974 = arith.addf %1973, %1972 : vector<2x8xf32>
    %1975 = arith.mulf %1969, %1974 : vector<2x8xf32>
    %1976 = vector.broadcast %1872 : vector<1x8xf32> to vector<2x8xf32>
    %1977 = arith.mulf %1975, %1976 : vector<2x8xf32>
    %cst_345 = arith.constant dense<0.000000e+00> : vector<2xf32>
    %1978 = vector.multi_reduction <add>, %1977, %cst_345 [1] : vector<2x8xf32> to vector<2xf32>
    %1979 = vector.shape_cast %1978 : vector<2xf32> to vector<2x1xf32>
    %1980 = vector.broadcast %1873 : vector<1x1xf32> to vector<2x1xf32>
    %1981 = arith.addf %1979, %1980 : vector<2x1xf32>
    %cst_346 = arith.constant dense<0.000000e+00> : vector<2xf32>
    %1982 = vector.multi_reduction <add>, %1865, %cst_346 [1] : vector<2x8xf32> to vector<2xf32>
    %1983 = vector.shape_cast %1982 : vector<2xf32> to vector<2x1xf32>
    %cst_347 = arith.constant 8.000000e+00 : f32
    %1984 = vector.broadcast %cst_347 : f32 to vector<2x1xf32>
    %1985 = arith.divf %1983, %1984 : vector<2x1xf32>
    %1986 = vector.broadcast %1985 : vector<2x1xf32> to vector<2x8xf32>
    %1987 = arith.subf %1865, %1986 : vector<2x8xf32>
    %1988 = arith.mulf %1987, %1987 : vector<2x8xf32>
    %cst_348 = arith.constant dense<0.000000e+00> : vector<2xf32>
    %1989 = vector.multi_reduction <add>, %1988, %cst_348 [1] : vector<2x8xf32> to vector<2xf32>
    %1990 = vector.shape_cast %1989 : vector<2xf32> to vector<2x1xf32>
    %cst_349 = arith.constant 8.000000e+00 : f32
    %1991 = vector.broadcast %cst_349 : f32 to vector<2x1xf32>
    %1992 = arith.divf %1990, %1991 : vector<2x1xf32>
    %1993 = vector.broadcast %1985 : vector<2x1xf32> to vector<2x8xf32>
    %1994 = arith.subf %1865, %1993 : vector<2x8xf32>
    %cst_350 = arith.constant 9.99999974E-6 : f32
    %1995 = vector.broadcast %cst_350 : f32 to vector<2x1xf32>
    %1996 = arith.addf %1992, %1995 : vector<2x1xf32>
    %1997 = math.rsqrt %1996 : vector<2x1xf32>
    %1998 = vector.broadcast %1997 : vector<2x1xf32> to vector<2x8xf32>
    %1999 = arith.mulf %1994, %1998 : vector<2x8xf32>
    %2000 = vector.broadcast %1870 : vector<1x8xf32> to vector<2x8xf32>
    %2001 = arith.mulf %1999, %2000 : vector<2x8xf32>
    %2002 = vector.broadcast %1871 : vector<1x8xf32> to vector<2x8xf32>
    %2003 = arith.addf %2001, %2002 : vector<2x8xf32>
    %cst_351 = arith.constant 5.000000e-01 : f32
    %2004 = vector.broadcast %cst_351 : f32 to vector<2x8xf32>
    %2005 = arith.mulf %2004, %2003 : vector<2x8xf32>
    %cst_352 = arith.constant 0.707106769 : f32
    %2006 = vector.broadcast %cst_352 : f32 to vector<2x8xf32>
    %2007 = arith.mulf %2003, %2006 : vector<2x8xf32>
    %2008 = math.erf %2007 : vector<2x8xf32>
    %cst_353 = arith.constant 1.000000e+00 : f32
    %2009 = vector.broadcast %cst_353 : f32 to vector<2x8xf32>
    %2010 = arith.addf %2009, %2008 : vector<2x8xf32>
    %2011 = arith.mulf %2005, %2010 : vector<2x8xf32>
    %2012 = vector.broadcast %1872 : vector<1x8xf32> to vector<2x8xf32>
    %2013 = arith.mulf %2011, %2012 : vector<2x8xf32>
    %cst_354 = arith.constant dense<0.000000e+00> : vector<2xf32>
    %2014 = vector.multi_reduction <add>, %2013, %cst_354 [1] : vector<2x8xf32> to vector<2xf32>
    %2015 = vector.shape_cast %2014 : vector<2xf32> to vector<2x1xf32>
    %2016 = vector.broadcast %1873 : vector<1x1xf32> to vector<2x1xf32>
    %2017 = arith.addf %2015, %2016 : vector<2x1xf32>
    %cst_355 = arith.constant dense<0.000000e+00> : vector<2xf32>
    %2018 = vector.multi_reduction <add>, %1866, %cst_355 [1] : vector<2x8xf32> to vector<2xf32>
    %2019 = vector.shape_cast %2018 : vector<2xf32> to vector<2x1xf32>
    %cst_356 = arith.constant 8.000000e+00 : f32
    %2020 = vector.broadcast %cst_356 : f32 to vector<2x1xf32>
    %2021 = arith.divf %2019, %2020 : vector<2x1xf32>
    %2022 = vector.broadcast %2021 : vector<2x1xf32> to vector<2x8xf32>
    %2023 = arith.subf %1866, %2022 : vector<2x8xf32>
    %2024 = arith.mulf %2023, %2023 : vector<2x8xf32>
    %cst_357 = arith.constant dense<0.000000e+00> : vector<2xf32>
    %2025 = vector.multi_reduction <add>, %2024, %cst_357 [1] : vector<2x8xf32> to vector<2xf32>
    %2026 = vector.shape_cast %2025 : vector<2xf32> to vector<2x1xf32>
    %cst_358 = arith.constant 8.000000e+00 : f32
    %2027 = vector.broadcast %cst_358 : f32 to vector<2x1xf32>
    %2028 = arith.divf %2026, %2027 : vector<2x1xf32>
    %2029 = vector.broadcast %2021 : vector<2x1xf32> to vector<2x8xf32>
    %2030 = arith.subf %1866, %2029 : vector<2x8xf32>
    %cst_359 = arith.constant 9.99999974E-6 : f32
    %2031 = vector.broadcast %cst_359 : f32 to vector<2x1xf32>
    %2032 = arith.addf %2028, %2031 : vector<2x1xf32>
    %2033 = math.rsqrt %2032 : vector<2x1xf32>
    %2034 = vector.broadcast %2033 : vector<2x1xf32> to vector<2x8xf32>
    %2035 = arith.mulf %2030, %2034 : vector<2x8xf32>
    %2036 = vector.broadcast %1870 : vector<1x8xf32> to vector<2x8xf32>
    %2037 = arith.mulf %2035, %2036 : vector<2x8xf32>
    %2038 = vector.broadcast %1871 : vector<1x8xf32> to vector<2x8xf32>
    %2039 = arith.addf %2037, %2038 : vector<2x8xf32>
    %cst_360 = arith.constant 5.000000e-01 : f32
    %2040 = vector.broadcast %cst_360 : f32 to vector<2x8xf32>
    %2041 = arith.mulf %2040, %2039 : vector<2x8xf32>
    %cst_361 = arith.constant 0.707106769 : f32
    %2042 = vector.broadcast %cst_361 : f32 to vector<2x8xf32>
    %2043 = arith.mulf %2039, %2042 : vector<2x8xf32>
    %2044 = math.erf %2043 : vector<2x8xf32>
    %cst_362 = arith.constant 1.000000e+00 : f32
    %2045 = vector.broadcast %cst_362 : f32 to vector<2x8xf32>
    %2046 = arith.addf %2045, %2044 : vector<2x8xf32>
    %2047 = arith.mulf %2041, %2046 : vector<2x8xf32>
    %2048 = vector.broadcast %1872 : vector<1x8xf32> to vector<2x8xf32>
    %2049 = arith.mulf %2047, %2048 : vector<2x8xf32>
    %cst_363 = arith.constant dense<0.000000e+00> : vector<2xf32>
    %2050 = vector.multi_reduction <add>, %2049, %cst_363 [1] : vector<2x8xf32> to vector<2xf32>
    %2051 = vector.shape_cast %2050 : vector<2xf32> to vector<2x1xf32>
    %2052 = vector.broadcast %1873 : vector<1x1xf32> to vector<2x1xf32>
    %2053 = arith.addf %2051, %2052 : vector<2x1xf32>
    %cst_364 = arith.constant dense<0.000000e+00> : vector<2xf32>
    %2054 = vector.multi_reduction <add>, %1867, %cst_364 [1] : vector<2x8xf32> to vector<2xf32>
    %2055 = vector.shape_cast %2054 : vector<2xf32> to vector<2x1xf32>
    %cst_365 = arith.constant 8.000000e+00 : f32
    %2056 = vector.broadcast %cst_365 : f32 to vector<2x1xf32>
    %2057 = arith.divf %2055, %2056 : vector<2x1xf32>
    %2058 = vector.broadcast %2057 : vector<2x1xf32> to vector<2x8xf32>
    %2059 = arith.subf %1867, %2058 : vector<2x8xf32>
    %2060 = arith.mulf %2059, %2059 : vector<2x8xf32>
    %cst_366 = arith.constant dense<0.000000e+00> : vector<2xf32>
    %2061 = vector.multi_reduction <add>, %2060, %cst_366 [1] : vector<2x8xf32> to vector<2xf32>
    %2062 = vector.shape_cast %2061 : vector<2xf32> to vector<2x1xf32>
    %cst_367 = arith.constant 8.000000e+00 : f32
    %2063 = vector.broadcast %cst_367 : f32 to vector<2x1xf32>
    %2064 = arith.divf %2062, %2063 : vector<2x1xf32>
    %2065 = vector.broadcast %2057 : vector<2x1xf32> to vector<2x8xf32>
    %2066 = arith.subf %1867, %2065 : vector<2x8xf32>
    %cst_368 = arith.constant 9.99999974E-6 : f32
    %2067 = vector.broadcast %cst_368 : f32 to vector<2x1xf32>
    %2068 = arith.addf %2064, %2067 : vector<2x1xf32>
    %2069 = math.rsqrt %2068 : vector<2x1xf32>
    %2070 = vector.broadcast %2069 : vector<2x1xf32> to vector<2x8xf32>
    %2071 = arith.mulf %2066, %2070 : vector<2x8xf32>
    %2072 = vector.broadcast %1870 : vector<1x8xf32> to vector<2x8xf32>
    %2073 = arith.mulf %2071, %2072 : vector<2x8xf32>
    %2074 = vector.broadcast %1871 : vector<1x8xf32> to vector<2x8xf32>
    %2075 = arith.addf %2073, %2074 : vector<2x8xf32>
    %cst_369 = arith.constant 5.000000e-01 : f32
    %2076 = vector.broadcast %cst_369 : f32 to vector<2x8xf32>
    %2077 = arith.mulf %2076, %2075 : vector<2x8xf32>
    %cst_370 = arith.constant 0.707106769 : f32
    %2078 = vector.broadcast %cst_370 : f32 to vector<2x8xf32>
    %2079 = arith.mulf %2075, %2078 : vector<2x8xf32>
    %2080 = math.erf %2079 : vector<2x8xf32>
    %cst_371 = arith.constant 1.000000e+00 : f32
    %2081 = vector.broadcast %cst_371 : f32 to vector<2x8xf32>
    %2082 = arith.addf %2081, %2080 : vector<2x8xf32>
    %2083 = arith.mulf %2077, %2082 : vector<2x8xf32>
    %2084 = vector.broadcast %1872 : vector<1x8xf32> to vector<2x8xf32>
    %2085 = arith.mulf %2083, %2084 : vector<2x8xf32>
    %cst_372 = arith.constant dense<0.000000e+00> : vector<2xf32>
    %2086 = vector.multi_reduction <add>, %2085, %cst_372 [1] : vector<2x8xf32> to vector<2xf32>
    %2087 = vector.shape_cast %2086 : vector<2xf32> to vector<2x1xf32>
    %2088 = vector.broadcast %1873 : vector<1x1xf32> to vector<2x1xf32>
    %2089 = arith.addf %2087, %2088 : vector<2x1xf32>
    %cst_373 = arith.constant dense<0.000000e+00> : vector<2xf32>
    %2090 = vector.multi_reduction <add>, %1868, %cst_373 [1] : vector<2x8xf32> to vector<2xf32>
    %2091 = vector.shape_cast %2090 : vector<2xf32> to vector<2x1xf32>
    %cst_374 = arith.constant 8.000000e+00 : f32
    %2092 = vector.broadcast %cst_374 : f32 to vector<2x1xf32>
    %2093 = arith.divf %2091, %2092 : vector<2x1xf32>
    %2094 = vector.broadcast %2093 : vector<2x1xf32> to vector<2x8xf32>
    %2095 = arith.subf %1868, %2094 : vector<2x8xf32>
    %2096 = arith.mulf %2095, %2095 : vector<2x8xf32>
    %cst_375 = arith.constant dense<0.000000e+00> : vector<2xf32>
    %2097 = vector.multi_reduction <add>, %2096, %cst_375 [1] : vector<2x8xf32> to vector<2xf32>
    %2098 = vector.shape_cast %2097 : vector<2xf32> to vector<2x1xf32>
    %cst_376 = arith.constant 8.000000e+00 : f32
    %2099 = vector.broadcast %cst_376 : f32 to vector<2x1xf32>
    %2100 = arith.divf %2098, %2099 : vector<2x1xf32>
    %2101 = vector.broadcast %2093 : vector<2x1xf32> to vector<2x8xf32>
    %2102 = arith.subf %1868, %2101 : vector<2x8xf32>
    %cst_377 = arith.constant 9.99999974E-6 : f32
    %2103 = vector.broadcast %cst_377 : f32 to vector<2x1xf32>
    %2104 = arith.addf %2100, %2103 : vector<2x1xf32>
    %2105 = math.rsqrt %2104 : vector<2x1xf32>
    %2106 = vector.broadcast %2105 : vector<2x1xf32> to vector<2x8xf32>
    %2107 = arith.mulf %2102, %2106 : vector<2x8xf32>
    %2108 = vector.broadcast %1870 : vector<1x8xf32> to vector<2x8xf32>
    %2109 = arith.mulf %2107, %2108 : vector<2x8xf32>
    %2110 = vector.broadcast %1871 : vector<1x8xf32> to vector<2x8xf32>
    %2111 = arith.addf %2109, %2110 : vector<2x8xf32>
    %cst_378 = arith.constant 5.000000e-01 : f32
    %2112 = vector.broadcast %cst_378 : f32 to vector<2x8xf32>
    %2113 = arith.mulf %2112, %2111 : vector<2x8xf32>
    %cst_379 = arith.constant 0.707106769 : f32
    %2114 = vector.broadcast %cst_379 : f32 to vector<2x8xf32>
    %2115 = arith.mulf %2111, %2114 : vector<2x8xf32>
    %2116 = math.erf %2115 : vector<2x8xf32>
    %cst_380 = arith.constant 1.000000e+00 : f32
    %2117 = vector.broadcast %cst_380 : f32 to vector<2x8xf32>
    %2118 = arith.addf %2117, %2116 : vector<2x8xf32>
    %2119 = arith.mulf %2113, %2118 : vector<2x8xf32>
    %2120 = vector.broadcast %1872 : vector<1x8xf32> to vector<2x8xf32>
    %2121 = arith.mulf %2119, %2120 : vector<2x8xf32>
    %cst_381 = arith.constant dense<0.000000e+00> : vector<2xf32>
    %2122 = vector.multi_reduction <add>, %2121, %cst_381 [1] : vector<2x8xf32> to vector<2xf32>
    %2123 = vector.shape_cast %2122 : vector<2xf32> to vector<2x1xf32>
    %2124 = vector.broadcast %1873 : vector<1x1xf32> to vector<2x1xf32>
    %2125 = arith.addf %2123, %2124 : vector<2x1xf32>
    %cst_382 = arith.constant dense<0.000000e+00> : vector<2xf32>
    %2126 = vector.multi_reduction <add>, %1869, %cst_382 [1] : vector<2x8xf32> to vector<2xf32>
    %2127 = vector.shape_cast %2126 : vector<2xf32> to vector<2x1xf32>
    %cst_383 = arith.constant 8.000000e+00 : f32
    %2128 = vector.broadcast %cst_383 : f32 to vector<2x1xf32>
    %2129 = arith.divf %2127, %2128 : vector<2x1xf32>
    %2130 = vector.broadcast %2129 : vector<2x1xf32> to vector<2x8xf32>
    %2131 = arith.subf %1869, %2130 : vector<2x8xf32>
    %2132 = arith.mulf %2131, %2131 : vector<2x8xf32>
    %cst_384 = arith.constant dense<0.000000e+00> : vector<2xf32>
    %2133 = vector.multi_reduction <add>, %2132, %cst_384 [1] : vector<2x8xf32> to vector<2xf32>
    %2134 = vector.shape_cast %2133 : vector<2xf32> to vector<2x1xf32>
    %cst_385 = arith.constant 8.000000e+00 : f32
    %2135 = vector.broadcast %cst_385 : f32 to vector<2x1xf32>
    %2136 = arith.divf %2134, %2135 : vector<2x1xf32>
    %2137 = vector.broadcast %2129 : vector<2x1xf32> to vector<2x8xf32>
    %2138 = arith.subf %1869, %2137 : vector<2x8xf32>
    %cst_386 = arith.constant 9.99999974E-6 : f32
    %2139 = vector.broadcast %cst_386 : f32 to vector<2x1xf32>
    %2140 = arith.addf %2136, %2139 : vector<2x1xf32>
    %2141 = math.rsqrt %2140 : vector<2x1xf32>
    %2142 = vector.broadcast %2141 : vector<2x1xf32> to vector<2x8xf32>
    %2143 = arith.mulf %2138, %2142 : vector<2x8xf32>
    %2144 = vector.broadcast %1870 : vector<1x8xf32> to vector<2x8xf32>
    %2145 = arith.mulf %2143, %2144 : vector<2x8xf32>
    %2146 = vector.broadcast %1871 : vector<1x8xf32> to vector<2x8xf32>
    %2147 = arith.addf %2145, %2146 : vector<2x8xf32>
    %cst_387 = arith.constant 5.000000e-01 : f32
    %2148 = vector.broadcast %cst_387 : f32 to vector<2x8xf32>
    %2149 = arith.mulf %2148, %2147 : vector<2x8xf32>
    %cst_388 = arith.constant 0.707106769 : f32
    %2150 = vector.broadcast %cst_388 : f32 to vector<2x8xf32>
    %2151 = arith.mulf %2147, %2150 : vector<2x8xf32>
    %2152 = math.erf %2151 : vector<2x8xf32>
    %cst_389 = arith.constant 1.000000e+00 : f32
    %2153 = vector.broadcast %cst_389 : f32 to vector<2x8xf32>
    %2154 = arith.addf %2153, %2152 : vector<2x8xf32>
    %2155 = arith.mulf %2149, %2154 : vector<2x8xf32>
    %2156 = vector.broadcast %1872 : vector<1x8xf32> to vector<2x8xf32>
    %2157 = arith.mulf %2155, %2156 : vector<2x8xf32>
    %cst_390 = arith.constant dense<0.000000e+00> : vector<2xf32>
    %2158 = vector.multi_reduction <add>, %2157, %cst_390 [1] : vector<2x8xf32> to vector<2xf32>
    %2159 = vector.shape_cast %2158 : vector<2xf32> to vector<2x1xf32>
    %2160 = vector.broadcast %1873 : vector<1x1xf32> to vector<2x1xf32>
    %2161 = arith.addf %2159, %2160 : vector<2x1xf32>
    %2162 = tpu.concatenate %1909, %1945, %1981, %2017, %2053, %2089, %2125, %2161 in 1 : vector<2x1xf32>, vector<2x1xf32>, vector<2x1xf32>, vector<2x1xf32>, vector<2x1xf32>, vector<2x1xf32>, vector<2x1xf32>, vector<2x1xf32> -> vector<2x8xf32>
    %c0_391 = arith.constant 0 : index
    %c0_392 = arith.constant 0 : index
    %2163 = vector.load %arg25[%c0_391, %c0_392] : memref<2x8xf32, #tpu.memory_space<vmem>>, vector<2x8xf32>
    tpu.vector_store %arg25[%c0_391, %c0_392], %2162 {strides = array<i32>} : memref<2x8xf32, #tpu.memory_space<vmem>>, vector<2x8xf32>,
    return
  }
}

</mosaic_0001>

<llo_original>
// kernel: forward.1
$region0: #{forward.1}
  #allocation0 [shape = 'u32[]', space=smem, size = 0x4, offset = 0x4, fixed_abs, tag = 'smem constant byte address 0x4 - core index']
  #allocation1 [shape = 'u32[144,128]{1,0:T(1,128)}', space=vmem, size = 0x12000, scoped, tag = 'internal scratch']
  #allocation2 [shape = 'f32[1,1]{1,0:T(1,128)S(1)}', space=vmem, size = 0x200, scoped, tag = 'scoped memory for forward.1']
  %s0 = inlined_call_operand.vmem [shape: f32[16,8], index: 0, kind: input, shape index: {}]
  %s1 = inlined_call_operand.hbm [shape: f32[8,16], index: 1, kind: input, shape index: {}]
  %s2 = inlined_call_operand.hbm [shape: f32[1,16], index: 2, kind: input, shape index: {}]
  %s3 = inlined_call_operand.hbm [shape: f32[16,32], index: 3, kind: input, shape index: {}]
  %s4 = inlined_call_operand.hbm [shape: f32[1,32], index: 4, kind: input, shape index: {}]
  %s5 = inlined_call_operand.hbm [shape: f32[32,256], index: 5, kind: input, shape index: {}]
  %s6 = inlined_call_operand.hbm [shape: f32[1,256], index: 6, kind: input, shape index: {}]
  %s7 = inlined_call_operand.hbm [shape: f32[32,128], index: 7, kind: input, shape index: {}]
  %s8 = inlined_call_operand.vmem [shape: f32[32,128], index: 8, kind: input, shape index: {}]
  %s9 = inlined_call_operand.hbm [shape: f32[64,128], index: 9, kind: input, shape index: {}]
  %s10 = inlined_call_operand.hbm [shape: f32[1,128], index: 10, kind: input, shape index: {}]
  %s11 = inlined_call_operand.hbm [shape: f32[16,64], index: 11, kind: input, shape index: {}]
  %s12 = inlined_call_operand.hbm [shape: f32[16,64], index: 12, kind: input, shape index: {}]
  %s13 = inlined_call_operand.hbm [shape: f32[32,64], index: 13, kind: input, shape index: {}]
  %s14 = inlined_call_operand.hbm [shape: f32[1,64], index: 14, kind: input, shape index: {}]
  %s15 = inlined_call_operand.hbm [shape: f32[8,32], index: 15, kind: input, shape index: {}]
  %s16 = inlined_call_operand.hbm [shape: f32[8,32], index: 16, kind: input, shape index: {}]
  %s17 = inlined_call_operand.vmem [shape: f32[16,32], index: 17, kind: input, shape index: {}]
  %s18 = inlined_call_operand.vmem [shape: f32[1,32], index: 18, kind: input, shape index: {}]
  %s19 = inlined_call_operand.vmem [shape: f32[4,16], index: 19, kind: input, shape index: {}]
  %s20 = inlined_call_operand.vmem [shape: f32[4,16], index: 20, kind: input, shape index: {}]
  %s21 = inlined_call_operand.vmem [shape: f32[1,8], index: 21, kind: input, shape index: {}]
  %s22 = inlined_call_operand.vmem [shape: f32[1,8], index: 22, kind: input, shape index: {}]
  %s23 = inlined_call_operand.vmem [shape: f32[1,8], index: 23, kind: input, shape index: {}]
  %s24 = inlined_call_operand.<no memory space> [shape: f32[1,1], index: 24, kind: input, shape index: {}]
  %s25 = inlined_call_operand.hbm [shape: f32[2,8], index: 25, kind: output, shape index: {}]
  %s26 = sld [smem:[#allocation0]]
  $region170: #{forward.1} parent=0
    _
  %s28 = ssub.s32 1, %s26
  %s29 = scalar_select 0, %s28, %s26
  %v30 = vstv %s24
  %31 = vst [vmem:[#allocation2] sm:$0x1] %v30
  $region1: #{forward.1} parent=0
    #allocation3 [shape = 'u8[4096]{0}', space=vmem, size = 0x1000, scoped, tag = 'input window, operand 1, single buffered']
    #allocation4 [shape = 's32[1]{0}', space=sflag, size = 0x4, scoped, tag = 'scoped memory for forward.1']
    #allocation5 [shape = 's32[1]{0}', space=sflag, size = 0x4, scoped, tag = 'scoped memory for forward.1']
    #allocation6 [shape = 'u8[512]{0}', space=vmem, size = 0x400, scoped, tag = 'input window, operand 2, single buffered']
    #allocation7 [shape = 's32[1]{0}', space=sflag, size = 0x4, scoped, tag = 'scoped memory for forward.1']
    #allocation8 [shape = 'u8[8192]{0}', space=vmem, size = 0x2000, scoped, tag = 'input window, operand 3, single buffered']
    #allocation9 [shape = 'u8[512]{0}', space=vmem, size = 0x400, scoped, tag = 'input window, operand 4, single buffered']
    #allocation10 [shape = 's32[1]{0}', space=sflag, size = 0x4, scoped, tag = 'scoped memory for forward.1']
    #allocation11 [shape = 'u8[32768]{0}', space=vmem, size = 0x8000, scoped, tag = 'input window, operand 5, single buffered']
    #allocation12 [shape = 'u8[1024]{0}', space=vmem, size = 0x400, scoped, tag = 'input window, operand 6, single buffered']
    #allocation13 [shape = 's32[1]{0}', space=sflag, size = 0x4, scoped, tag = 'scoped memory for forward.1']
    #allocation14 [shape = 'u8[16384]{0}', space=vmem, size = 0x4000, scoped, tag = 'input window, operand 7, single buffered']
    #allocation15 [shape = 'u8[32768]{0}', space=vmem, size = 0x8000, scoped, tag = 'input window, operand 9, single buffered']
    #allocation16 [shape = 's32[1]{0}', space=sflag, size = 0x4, scoped, tag = 'scoped memory for forward.1']
    #allocation17 [shape = 'u8[512]{0}', space=vmem, size = 0x400, scoped, tag = 'input window, operand 10, single buffered']
    #allocation18 [shape = 'u8[8192]{0}', space=vmem, size = 0x2000, scoped, tag = 'input window, operand 11, single buffered']
    #allocation19 [shape = 's32[1]{0}', space=sflag, size = 0x4, scoped, tag = 'scoped memory for forward.1']
    #allocation20 [shape = 'u8[8192]{0}', space=vmem, size = 0x2000, scoped, tag = 'input window, operand 12, single buffered']
    #allocation21 [shape = 'u8[16384]{0}', space=vmem, size = 0x4000, scoped, tag = 'input window, operand 13, single buffered']
    #allocation22 [shape = 's32[1]{0}', space=sflag, size = 0x4, scoped, tag = 'scoped memory for forward.1']
    #allocation23 [shape = 'u8[512]{0}', space=vmem, size = 0x400, scoped, tag = 'input window, operand 14, single buffered']
    #allocation24 [shape = 'u8[4096]{0}', space=vmem, size = 0x1000, scoped, tag = 'input window, operand 15, single buffered']
    #allocation25 [shape = 's32[1]{0}', space=sflag, size = 0x4, scoped, tag = 'scoped memory for forward.1']
    #allocation26 [shape = 'u8[4096]{0}', space=vmem, size = 0x1000, scoped, tag = 'input window, operand 16, single buffered']
    #allocation27 [shape = 'u8[1024]{0}', space=vmem, size = 0x400, scoped, tag = 'output window, operand 0, single buffered']
    %32 = vsyncpa [#allocation4], 0
    %33 = vsyncpa [#allocation7], 0
    %34 = vsyncpa [#allocation10], 0
    %35 = vsyncpa [#allocation13], 0
    %36 = vsyncpa [#allocation16], 0
    %37 = vsyncpa [#allocation19], 0
    %38 = vsyncpa [#allocation22], 0
    %39 = vsyncpa [#allocation25], 0
    %40 = vsyncpa [#allocation5], 0
    // Predicated region
    $region2: #{forward.1} parent=1 // pred_check
      _
    $region3: #{forward.1} parent=1 // pred_check_branch
      %42 = sbr.rel (0) target = $region5
    $region4: #{forward.1} parent=1 // pred_region
      _
    $region5: #{forward.1} parent=1 // pred_fallthru
      _
    // Predicated region
    $region6: #{forward.1} parent=1 // pred_check
      _
    $region7: #{forward.1} parent=1 // pred_check_branch
      %44 = sbr.rel (0) target = $region9
    $region8: #{forward.1} parent=1 // pred_region
      %s46 = ssub.s32 128, 128
      %47 = vsyncadd [#allocation4], %s46
      %s49 = sshll.u32 [#allocation3], 4
      %s50 = int_to_ptr.vmem [resolvable:$true] %s49
      %52 = dma.hbm_to_vmem [thread:$0]  %s1, 128, %s50, [#allocation4]
    $region9: #{forward.1} parent=1 // pred_fallthru
      _
    // Predicated region
    $region10: #{forward.1} parent=1 // pred_check
      _
    $region11: #{forward.1} parent=1 // pred_check_branch
      %54 = sbr.rel (0) target = $region13
    $region12: #{forward.1} parent=1 // pred_region
      %s56 = ssub.s32 16, 16
      %57 = vsyncadd [#allocation7], %s56
      %s59 = sshll.u32 [#allocation6], 4
      %s60 = int_to_ptr.vmem [resolvable:$true] %s59
      %62 = dma.hbm_to_vmem [thread:$0]  %s2, 16, %s60, [#allocation7]
    $region13: #{forward.1} parent=1 // pred_fallthru
      _
    // Predicated region
    $region14: #{forward.1} parent=1 // pred_check
      _
    $region15: #{forward.1} parent=1 // pred_check_branch
      %64 = sbr.rel (0) target = $region17
    $region16: #{forward.1} parent=1 // pred_region
      %s66 = ssub.s32 256, 256
      %67 = vsyncadd [#allocation7], %s66
      %s68 = sshll.u32 [#allocation8], 4
      %s69 = int_to_ptr.vmem [resolvable:$true] %s68
      %74 = dma.hbm_to_vmem [thread:$0]  %s3, 256, %s69, [#allocation7], 128, 128, 8
    $region17: #{forward.1} parent=1 // pred_fallthru
      _
    // Predicated region
    $region18: #{forward.1} parent=1 // pred_check
      _
    $region19: #{forward.1} parent=1 // pred_check_branch
      %76 = sbr.rel (0) target = $region21
    $region20: #{forward.1} parent=1 // pred_region
      %s78 = ssub.s32 16, 16
      %79 = vsyncadd [#allocation10], %s78
      %s81 = sshll.u32 [#allocation9], 4
      %s82 = int_to_ptr.vmem [resolvable:$true] %s81
      %84 = dma.hbm_to_vmem [thread:$0]  %s4, 16, %s82, [#allocation10]
    $region21: #{forward.1} parent=1 // pred_fallthru
      _
    // Predicated region
    $region22: #{forward.1} parent=1 // pred_check
      _
    $region23: #{forward.1} parent=1 // pred_check_branch
      %86 = sbr.rel (0) target = $region25
    $region24: #{forward.1} parent=1 // pred_region
      %s88 = ssub.s32 1024, 1024
      %89 = vsyncadd [#allocation10], %s88
      %s90 = sshll.u32 [#allocation11], 4
      %s91 = int_to_ptr.vmem [resolvable:$true] %s90
      %96 = dma.hbm_to_vmem [thread:$0]  %s5, 1024, %s91, [#allocation10], 256, 256, 16
    $region25: #{forward.1} parent=1 // pred_fallthru
      _
    // Predicated region
    $region26: #{forward.1} parent=1 // pred_check
      _
    $region27: #{forward.1} parent=1 // pred_check_branch
      %98 = sbr.rel (0) target = $region29
    $region28: #{forward.1} parent=1 // pred_region
      %s100 = ssub.s32 32, 32
      %101 = vsyncadd [#allocation13], %s100
      %s103 = sshll.u32 [#allocation12], 4
      %s104 = int_to_ptr.vmem [resolvable:$true] %s103
      %106 = dma.hbm_to_vmem [thread:$0]  %s6, 32, %s104, [#allocation13]
    $region29: #{forward.1} parent=1 // pred_fallthru
      _
    // Predicated region
    $region30: #{forward.1} parent=1 // pred_check
      _
    $region31: #{forward.1} parent=1 // pred_check_branch
      %108 = sbr.rel (0) target = $region33
    $region32: #{forward.1} parent=1 // pred_region
      %s110 = ssub.s32 512, 512
      %111 = vsyncadd [#allocation13], %s110
      %s112 = sshll.u32 [#allocation14], 4
      %s113 = int_to_ptr.vmem [resolvable:$true] %s112
      %118 = dma.hbm_to_vmem [thread:$0]  %s7, 512, %s113, [#allocation13], 128, 128, 8
    $region33: #{forward.1} parent=1 // pred_fallthru
      _
    // Predicated region
    $region34: #{forward.1} parent=1 // pred_check
      _
    $region35: #{forward.1} parent=1 // pred_check_branch
      %120 = sbr.rel (0) target = $region37
    $region36: #{forward.1} parent=1 // pred_region
      _
    $region37: #{forward.1} parent=1 // pred_fallthru
      _
    // Predicated region
    $region38: #{forward.1} parent=1 // pred_check
      _
    $region39: #{forward.1} parent=1 // pred_check_branch
      %122 = sbr.rel (0) target = $region41
    $region40: #{forward.1} parent=1 // pred_region
      %s124 = ssub.s32 1024, 1024
      %125 = vsyncadd [#allocation16], %s124
      %s126 = sshll.u32 [#allocation15], 4
      %s127 = int_to_ptr.vmem [resolvable:$true] %s126
      %132 = dma.hbm_to_vmem [thread:$0]  %s9, 1024, %s127, [#allocation16], 128, 128, 8
    $region41: #{forward.1} parent=1 // pred_fallthru
      _
    // Predicated region
    $region42: #{forward.1} parent=1 // pred_check
      _
    $region43: #{forward.1} parent=1 // pred_check_branch
      %134 = sbr.rel (0) target = $region45
    $region44: #{forward.1} parent=1 // pred_region
      %s136 = ssub.s32 16, 16
      %137 = vsyncadd [#allocation16], %s136
      %s139 = sshll.u32 [#allocation17], 4
      %s140 = int_to_ptr.vmem [resolvable:$true] %s139
      %142 = dma.hbm_to_vmem [thread:$0]  %s10, 16, %s140, [#allocation16]
    $region45: #{forward.1} parent=1 // pred_fallthru
      _
    // Predicated region
    $region46: #{forward.1} parent=1 // pred_check
      _
    $region47: #{forward.1} parent=1 // pred_check_branch
      %144 = sbr.rel (0) target = $region49
    $region48: #{forward.1} parent=1 // pred_region
      %s146 = ssub.s32 256, 256
      %147 = vsyncadd [#allocation19], %s146
      %s148 = sshll.u32 [#allocation18], 4
      %s149 = int_to_ptr.vmem [resolvable:$true] %s148
      %154 = dma.hbm_to_vmem [thread:$0]  %s11, 256, %s149, [#allocation19], 128, 128, 8
    $region49: #{forward.1} parent=1 // pred_fallthru
      _
    // Predicated region
    $region50: #{forward.1} parent=1 // pred_check
      _
    $region51: #{forward.1} parent=1 // pred_check_branch
      %156 = sbr.rel (0) target = $region53
    $region52: #{forward.1} parent=1 // pred_region
      %s158 = ssub.s32 256, 256
      %159 = vsyncadd [#allocation19], %s158
      %s160 = sshll.u32 [#allocation20], 4
      %s161 = int_to_ptr.vmem [resolvable:$true] %s160
      %166 = dma.hbm_to_vmem [thread:$0]  %s12, 256, %s161, [#allocation19], 128, 128, 8
    $region53: #{forward.1} parent=1 // pred_fallthru
      _
    // Predicated region
    $region54: #{forward.1} parent=1 // pred_check
      _
    $region55: #{forward.1} parent=1 // pred_check_branch
      %168 = sbr.rel (0) target = $region57
    $region56: #{forward.1} parent=1 // pred_region
      %s170 = ssub.s32 512, 512
      %171 = vsyncadd [#allocation22], %s170
      %s172 = sshll.u32 [#allocation21], 4
      %s173 = int_to_ptr.vmem [resolvable:$true] %s172
      %178 = dma.hbm_to_vmem [thread:$0]  %s13, 512, %s173, [#allocation22], 128, 128, 8
    $region57: #{forward.1} parent=1 // pred_fallthru
      _
    // Predicated region
    $region58: #{forward.1} parent=1 // pred_check
      _
    $region59: #{forward.1} parent=1 // pred_check_branch
      %180 = sbr.rel (0) target = $region61
    $region60: #{forward.1} parent=1 // pred_region
      %s182 = ssub.s32 16, 16
      %183 = vsyncadd [#allocation22], %s182
      %s185 = sshll.u32 [#allocation23], 4
      %s186 = int_to_ptr.vmem [resolvable:$true] %s185
      %188 = dma.hbm_to_vmem [thread:$0]  %s14, 16, %s186, [#allocation22]
    $region61: #{forward.1} parent=1 // pred_fallthru
      _
    // Predicated region
    $region62: #{forward.1} parent=1 // pred_check
      _
    $region63: #{forward.1} parent=1 // pred_check_branch
      %190 = sbr.rel (0) target = $region65
    $region64: #{forward.1} parent=1 // pred_region
      %s192 = ssub.s32 128, 128
      %193 = vsyncadd [#allocation25], %s192
      %s195 = sshll.u32 [#allocation24], 4
      %s196 = int_to_ptr.vmem [resolvable:$true] %s195
      %198 = dma.hbm_to_vmem [thread:$0]  %s15, 128, %s196, [#allocation25]
    $region65: #{forward.1} parent=1 // pred_fallthru
      _
    // Predicated region
    $region66: #{forward.1} parent=1 // pred_check
      _
    $region67: #{forward.1} parent=1 // pred_check_branch
      %200 = sbr.rel (0) target = $region69
    $region68: #{forward.1} parent=1 // pred_region
      %s202 = ssub.s32 128, 128
      %203 = vsyncadd [#allocation25], %s202
      %s205 = sshll.u32 [#allocation26], 4
      %s206 = int_to_ptr.vmem [resolvable:$true] %s205
      %208 = dma.hbm_to_vmem [thread:$0]  %s16, 128, %s206, [#allocation25]
    $region69: #{forward.1} parent=1 // pred_fallthru
      _
    // Predicated region
    $region70: #{forward.1} parent=1 // pred_check
      _
    $region71: #{forward.1} parent=1 // pred_check_branch
      %210 = sbr.rel (0) target = $region73
    $region72: #{forward.1} parent=1 // pred_region
      _
    $region73: #{forward.1} parent=1 // pred_fallthru
      _
    // Predicated region
    $region74: #{forward.1} parent=1 // pred_check
      _
    $region75: #{forward.1} parent=1 // pred_check_branch
      %212 = sbr.rel (0) target = $region77
    $region76: #{forward.1} parent=1 // pred_region
      _
    $region77: #{forward.1} parent=1 // pred_fallthru
      _
    // Predicated region
    $region78: #{forward.1} parent=1 // pred_check
      _
    $region79: #{forward.1} parent=1 // pred_check_branch
      %214 = sbr.rel (0) target = $region81
    $region80: #{forward.1} parent=1 // pred_region
      _
    $region81: #{forward.1} parent=1 // pred_fallthru
      _
    // Predicated region
    $region82: #{forward.1} parent=1 // pred_check
      _
    $region83: #{forward.1} parent=1 // pred_check_branch
      %216 = sbr.rel (0) target = $region85
    $region84: #{forward.1} parent=1 // pred_region
      _
    $region85: #{forward.1} parent=1 // pred_fallthru
      _
    // Predicated region
    $region86: #{forward.1} parent=1 // pred_check
      _
    $region87: #{forward.1} parent=1 // pred_check_branch
      %218 = sbr.rel (0) target = $region89
    $region88: #{forward.1} parent=1 // pred_region
      _
    $region89: #{forward.1} parent=1 // pred_fallthru
      _
    // Predicated region
    $region90: #{forward.1} parent=1 // pred_check
      _
    $region91: #{forward.1} parent=1 // pred_check_branch
      %220 = sbr.rel (0) target = $region93
    $region92: #{forward.1} parent=1 // pred_region
      _
    $region93: #{forward.1} parent=1 // pred_fallthru
      _
    // Predicated region
    $region94: #{forward.1} parent=1 // pred_check
      _
    $region95: #{forward.1} parent=1 // pred_check_branch
      %222 = sbr.rel (0) target = $region97
    $region96: #{forward.1} parent=1 // pred_region
      _
    $region97: #{forward.1} parent=1 // pred_fallthru
      _
    // Predicated region
    $region98: #{forward.1} parent=1 // pred_check
      _
    $region99: #{forward.1} parent=1 // pred_check_branch
      %224 = sbr.rel (0) target = $region101
    $region100: #{forward.1} parent=1 // pred_region
      _
    $region101: #{forward.1} parent=1 // pred_fallthru
      _
    // Predicated region
    $region102: #{forward.1} parent=1 // pred_check
      _
    $region103: #{forward.1} parent=1 // pred_check_branch
      %226 = sbr.rel (0) target = $region105
    $region104: #{forward.1} parent=1 // pred_region
      %227 = dma.done [#allocation4], 128
    $region105: #{forward.1} parent=1 // pred_fallthru
      _
    // Predicated region
    $region106: #{forward.1} parent=1 // pred_check
      _
    $region107: #{forward.1} parent=1 // pred_check_branch
      %229 = sbr.rel (0) target = $region109
    $region108: #{forward.1} parent=1 // pred_region
      %230 = dma.done [#allocation7], 16
    $region109: #{forward.1} parent=1 // pred_fallthru
      _
    // Predicated region
    $region110: #{forward.1} parent=1 // pred_check
      _
    $region111: #{forward.1} parent=1 // pred_check_branch
      %232 = sbr.rel (0) target = $region113
    $region112: #{forward.1} parent=1 // pred_region
      %233 = dma.done [#allocation7], 256
    $region113: #{forward.1} parent=1 // pred_fallthru
      _
    // Predicated region
    $region114: #{forward.1} parent=1 // pred_check
      _
    $region115: #{forward.1} parent=1 // pred_check_branch
      %235 = sbr.rel (0) target = $region117
    $region116: #{forward.1} parent=1 // pred_region
      %236 = dma.done [#allocation10], 16
    $region117: #{forward.1} parent=1 // pred_fallthru
      _
    // Predicated region
    $region118: #{forward.1} parent=1 // pred_check
      _
    $region119: #{forward.1} parent=1 // pred_check_branch
      %238 = sbr.rel (0) target = $region121
    $region120: #{forward.1} parent=1 // pred_region
      %239 = dma.done [#allocation10], 1024
    $region121: #{forward.1} parent=1 // pred_fallthru
      _
    // Predicated region
    $region122: #{forward.1} parent=1 // pred_check
      _
    $region123: #{forward.1} parent=1 // pred_check_branch
      %241 = sbr.rel (0) target = $region125
    $region124: #{forward.1} parent=1 // pred_region
      %242 = dma.done [#allocation13], 32
    $region125: #{forward.1} parent=1 // pred_fallthru
      _
    // Predicated region
    $region126: #{forward.1} parent=1 // pred_check
      _
    $region127: #{forward.1} parent=1 // pred_check_branch
      %244 = sbr.rel (0) target = $region129
    $region128: #{forward.1} parent=1 // pred_region
      %245 = dma.done [#allocation13], 512
    $region129: #{forward.1} parent=1 // pred_fallthru
      _
    // Predicated region
    $region130: #{forward.1} parent=1 // pred_check
      _
    $region131: #{forward.1} parent=1 // pred_check_branch
      %247 = sbr.rel (0) target = $region133
    $region132: #{forward.1} parent=1 // pred_region
      %248 = dma.done [#allocation16], 1024
    $region133: #{forward.1} parent=1 // pred_fallthru
      _
    // Predicated region
    $region134: #{forward.1} parent=1 // pred_check
      _
    $region135: #{forward.1} parent=1 // pred_check_branch
      %250 = sbr.rel (0) target = $region137
    $region136: #{forward.1} parent=1 // pred_region
      %251 = dma.done [#allocation16], 16
    $region137: #{forward.1} parent=1 // pred_fallthru
      _
    // Predicated region
    $region138: #{forward.1} parent=1 // pred_check
      _
    $region139: #{forward.1} parent=1 // pred_check_branch
      %253 = sbr.rel (0) target = $region141
    $region140: #{forward.1} parent=1 // pred_region
      %254 = dma.done [#allocation19], 256
    $region141: #{forward.1} parent=1 // pred_fallthru
      _
    // Predicated region
    $region142: #{forward.1} parent=1 // pred_check
      _
    $region143: #{forward.1} parent=1 // pred_check_branch
      %256 = sbr.rel (0) target = $region145
    $region144: #{forward.1} parent=1 // pred_region
      %257 = dma.done [#allocation19], 256
    $region145: #{forward.1} parent=1 // pred_fallthru
      _
    // Predicated region
    $region146: #{forward.1} parent=1 // pred_check
      _
    $region147: #{forward.1} parent=1 // pred_check_branch
      %259 = sbr.rel (0) target = $region149
    $region148: #{forward.1} parent=1 // pred_region
      %260 = dma.done [#allocation22], 512
    $region149: #{forward.1} parent=1 // pred_fallthru
      _
    // Predicated region
    $region150: #{forward.1} parent=1 // pred_check
      _
    $region151: #{forward.1} parent=1 // pred_check_branch
      %262 = sbr.rel (0) target = $region153
    $region152: #{forward.1} parent=1 // pred_region
      %263 = dma.done [#allocation22], 16
    $region153: #{forward.1} parent=1 // pred_fallthru
      _
    // Predicated region
    $region154: #{forward.1} parent=1 // pred_check
      _
    $region155: #{forward.1} parent=1 // pred_check_branch
      %265 = sbr.rel (0) target = $region157
    $region156: #{forward.1} parent=1 // pred_region
      %266 = dma.done [#allocation25], 128
    $region157: #{forward.1} parent=1 // pred_fallthru
      _
    // Predicated region
    $region158: #{forward.1} parent=1 // pred_check
      _
    $region159: #{forward.1} parent=1 // pred_check_branch
      %268 = sbr.rel (0) target = $region161
    $region160: #{forward.1} parent=1 // pred_region
      %269 = dma.done [#allocation25], 128
    $region161: #{forward.1} parent=1 // pred_fallthru
      _
    %v270 = vld [vmem:[%s0] ss:$8 sm:$0x3]
    %s271 = scalar_lea.vmem %s0, 1
    %v272 = vld [vmem:[%s271] ss:$8 sm:$0x3]
    %s273 = scalar_lea.vmem %s0, 2
    %v274 = vld [vmem:[%s273] ss:$8 sm:$0x3]
    %s275 = scalar_lea.vmem %s0, 3
    %v276 = vld [vmem:[%s275] ss:$8 sm:$0x3]
    %s277 = scalar_lea.vmem %s0, 4
    %v278 = vld [vmem:[%s277] ss:$8 sm:$0x3]
    %s279 = scalar_lea.vmem %s0, 5
    %v280 = vld [vmem:[%s279] ss:$8 sm:$0x3]
    %s281 = scalar_lea.vmem %s0, 6
    %v282 = vld [vmem:[%s281] ss:$8 sm:$0x3]
    %s283 = scalar_lea.vmem %s0, 7
    %v284 = vld [vmem:[%s283] ss:$8 sm:$0x3]
    %v286 = vrot.slane %v272, 6
    %v289 = vrot.slane %v274, 4
    %v292 = vrot.slane %v276, 2
    %v295 = vrot.slane %v280, 6
    %v298 = vrot.slane %v282, 4
    %v301 = vrot.slane %v284, 2
    %vm303 = vcmask 1041408
    %v304 = vsel %vm303, %v270, %v286
    %vm305 = vcmask 1043456
    %v306 = vsel %vm305, %v304, %v289
    %vm307 = vcmask 1045504
    %v308 = vsel %vm307, %v306, %v292
    %v309 = vsel %vm303, %v278, %v295
    %v310 = vsel %vm305, %v309, %v298
    %v311 = vsel %vm307, %v310, %v301
    %v312 = vld [vmem:[#allocation3] sm:$0xff]
    %v313 = vld [vmem:[#allocation6] sm:$0x1]
    %v315 = vlaneseq
    %v316 = vshrl.u32 %v315, 7
    %v317 = vsub.s32 0, %v316
    %v318 = vrot.slane %v313, %v317
    %vm320 = vcmask 64512
    %v322 = vsel %vm320, %v308, 0
    %v325 = vsel %vm320, %v311, 0
    %327 = vmatprep.subr.mxu0 0.0
    %328 = vmatpush1.msra.mxu0 %v312
    %329 = vmatprep.subr.mxu0 0.0
    %330 = vmatpush1.msra.mxu0 0.0
    %331 = vmatprep.subr.mxu0 0.0
    %332 = vmatpush1.msra.mxu0 0.0
    %333 = vmatprep.subr.mxu0 0.0
    %334 = vmatpush1.msra.mxu0 0.0
    %335 = vmatprep.subr.mxu0 0.0
    %336 = vmatpush1.msra.mxu0 0.0
    %337 = vmatprep.subr.mxu0 0.0
    %338 = vmatpush1.msra.mxu0 0.0
    %339 = vmatprep.subr.mxu0 0.0
    %340 = vmatpush1.msra.mxu0 0.0
    %341 = vmatprep.subr.mxu0 0.0
    %342 = vmatpush1.msra.mxu0 0.0
    %343 = vmatprep.subr.mxu0 0.0
    %344 = vmatpush1.msra.mxu0 0.0
    %345 = vmatprep.subr.mxu0 0.0
    %346 = vmatpush1.msra.mxu0 0.0
    %347 = vmatprep.subr.mxu0 0.0
    %348 = vmatpush1.msra.mxu0 0.0
    %349 = vmatprep.subr.mxu0 0.0
    %350 = vmatpush1.msra.mxu0 0.0
    %351 = vmatprep.subr.mxu0 0.0
    %352 = vmatpush1.msra.mxu0 0.0
    %353 = vmatprep.subr.mxu0 0.0
    %354 = vmatpush1.msra.mxu0 0.0
    %355 = vmatprep.subr.mxu0 0.0
    %356 = vmatpush1.msra.mxu0 0.0
    %357 = vmatprep.subr.mxu0 0.0
    %358 = vmatpush1.msra.mxu0 0.0
    %359 = vmatprep.subr.mxu0 0.0
    %360 = vmatpush1.msra.mxu0 0.0
    %361 = vmatprep.subr.mxu0 0.0
    %362 = vmatpush1.msra.mxu0 0.0
    %363 = vmatprep.subr.mxu0 0.0
    %364 = vmatpush1.msra.mxu0 0.0
    %365 = vmatprep.subr.mxu0 0.0
    %366 = vmatpush1.msra.mxu0 0.0
    %367 = vmatprep.subr.mxu0 0.0
    %368 = vmatpush1.msra.mxu0 0.0
    %369 = vmatprep.subr.mxu0 0.0
    %370 = vmatpush1.msra.mxu0 0.0
    %371 = vmatprep.subr.mxu0 0.0
    %372 = vmatpush1.msra.mxu0 0.0
    %373 = vmatprep.subr.mxu0 0.0
    %374 = vmatpush1.msra.mxu0 0.0
    %375 = vmatprep.subr.mxu0 0.0
    %376 = vmatpush1.msra.mxu0 0.0
    %377 = vmatprep.subr.mxu0 0.0
    %378 = vmatpush1.msra.mxu0 0.0
    %379 = vmatprep.subr.mxu0 0.0
    %380 = vmatpush1.msra.mxu0 0.0
    %381 = vmatprep.subr.mxu0 0.0
    %382 = vmatpush1.msra.mxu0 0.0
    %383 = vmatprep.subr.mxu0 0.0
    %384 = vmatpush1.msra.mxu0 0.0
    %385 = vmatprep.subr.mxu0 0.0
    %386 = vmatpush1.msra.mxu0 0.0
    %387 = vmatprep.subr.mxu0 0.0
    %388 = vmatpush1.msra.mxu0 0.0
    %389 = vmatprep.subr.mxu0 0.0
    %390 = vmatpush1.msra.mxu0 0.0
    %391 = vmatprep.mubr.f32.mxu0 0.0
    %392 = vmatmul.mubr.f32.gmra.mrb[0].mxu0 %v322
    %v393 = vpop.f32.mrb[0].mxu0
    %v394 = vadd.f32 %v318, %v393
    %v395 = vpop.f32.mrb[0].mxu0
    %396 = vmatprep.mubr.f32.mxu0 0.0
    %397 = vmatmul.mubr.f32.gmra.mrb[0].mxu0 %v325
    %v398 = vpop.f32.mrb[0].mxu0
    %v399 = vadd.f32 %v318, %v398
    %v400 = vpop.f32.mrb[0].mxu0
    %401 = vdwg.mxu0
    %v402 = vmax.f32 %v394, 0.0
    %v403 = vmax.f32 %v399, 0.0
    %v404 = vld [vmem:[#allocation8] sm:$0xff]
    %v405 = vld [vmem:[#allocation8 + $0x8] sm:$0xff]
    %v406 = vld [vmem:[#allocation9] sm:$0x1]
    %v408 = vlaneseq
    %v409 = vshrl.u32 %v408, 7
    %v410 = vsub.s32 0, %v409
    %v411 = vrot.slane %v406, %v410
    %vm413 = vcmask 130048
    %v415 = vsel %vm413, %v402, 0
    %v418 = vsel %vm413, %v403, 0
    %420 = vmatprep.subr.mxu0 0.0
    %421 = vmatpush1.msra.mxu0 %v404
    %422 = vmatprep.subr.mxu0 0.0
    %423 = vmatpush1.msra.mxu0 %v405
    %424 = vmatprep.subr.mxu0 0.0
    %425 = vmatpush1.msra.mxu0 0.0
    %426 = vmatprep.subr.mxu0 0.0
    %427 = vmatpush1.msra.mxu0 0.0
    %428 = vmatprep.subr.mxu0 0.0
    %429 = vmatpush1.msra.mxu0 0.0
    %430 = vmatprep.subr.mxu0 0.0
    %431 = vmatpush1.msra.mxu0 0.0
    %432 = vmatprep.subr.mxu0 0.0
    %433 = vmatpush1.msra.mxu0 0.0
    %434 = vmatprep.subr.mxu0 0.0
    %435 = vmatpush1.msra.mxu0 0.0
    %436 = vmatprep.subr.mxu0 0.0
    %437 = vmatpush1.msra.mxu0 0.0
    %438 = vmatprep.subr.mxu0 0.0
    %439 = vmatpush1.msra.mxu0 0.0
    %440 = vmatprep.subr.mxu0 0.0
    %441 = vmatpush1.msra.mxu0 0.0
    %442 = vmatprep.subr.mxu0 0.0
    %443 = vmatpush1.msra.mxu0 0.0
    %444 = vmatprep.subr.mxu0 0.0
    %445 = vmatpush1.msra.mxu0 0.0
    %446 = vmatprep.subr.mxu0 0.0
    %447 = vmatpush1.msra.mxu0 0.0
    %448 = vmatprep.subr.mxu0 0.0
    %449 = vmatpush1.msra.mxu0 0.0
    %450 = vmatprep.subr.mxu0 0.0
    %451 = vmatpush1.msra.mxu0 0.0
    %452 = vmatprep.subr.mxu0 0.0
    %453 = vmatpush1.msra.mxu0 0.0
    %454 = vmatprep.subr.mxu0 0.0
    %455 = vmatpush1.msra.mxu0 0.0
    %456 = vmatprep.subr.mxu0 0.0
    %457 = vmatpush1.msra.mxu0 0.0
    %458 = vmatprep.subr.mxu0 0.0
    %459 = vmatpush1.msra.mxu0 0.0
    %460 = vmatprep.subr.mxu0 0.0
    %461 = vmatpush1.msra.mxu0 0.0
    %462 = vmatprep.subr.mxu0 0.0
    %463 = vmatpush1.msra.mxu0 0.0
    %464 = vmatprep.subr.mxu0 0.0
    %465 = vmatpush1.msra.mxu0 0.0
    %466 = vmatprep.subr.mxu0 0.0
    %467 = vmatpush1.msra.mxu0 0.0
    %468 = vmatprep.subr.mxu0 0.0
    %469 = vmatpush1.msra.mxu0 0.0
    %470 = vmatprep.subr.mxu0 0.0
    %471 = vmatpush1.msra.mxu0 0.0
    %472 = vmatprep.subr.mxu0 0.0
    %473 = vmatpush1.msra.mxu0 0.0
    %474 = vmatprep.subr.mxu0 0.0
    %475 = vmatpush1.msra.mxu0 0.0
    %476 = vmatprep.subr.mxu0 0.0
    %477 = vmatpush1.msra.mxu0 0.0
    %478 = vmatprep.subr.mxu0 0.0
    %479 = vmatpush1.msra.mxu0 0.0
    %480 = vmatprep.subr.mxu0 0.0
    %481 = vmatpush1.msra.mxu0 0.0
    %482 = vmatprep.subr.mxu0 0.0
    %483 = vmatpush1.msra.mxu0 0.0
    %484 = vmatprep.mubr.f32.mxu0 0.0
    %485 = vmatmul.mubr.f32.gmra.mrb[0].mxu0 %v415
    %v486 = vpop.f32.mrb[0].mxu0
    %v487 = vadd.f32 %v411, %v486
    %v488 = vpop.f32.mrb[0].mxu0
    %489 = vmatprep.mubr.f32.mxu0 0.0
    %490 = vmatmul.mubr.f32.gmra.mrb[0].mxu0 %v418
    %v491 = vpop.f32.mrb[0].mxu0
    %v492 = vadd.f32 %v411, %v491
    %v493 = vpop.f32.mrb[0].mxu0
    %494 = vdwg.mxu0
    %v495 = vmax.f32 %v487, 0.0
    %v496 = vmax.f32 %v492, 0.0
    %v497 = vld [vmem:[#allocation14] sm:$0xff]
    %v498 = vld [vmem:[#allocation14 + $0x8] sm:$0xff]
    %v499 = vld [vmem:[#allocation14 + $0x10] sm:$0xff]
    %v500 = vld [vmem:[#allocation14 + $0x18] sm:$0xff]
    %v501 = vld [vmem:[%s8] sm:$0xff]
    %v502 = vld [vmem:[%s8 + $0x8] sm:$0xff]
    %v503 = vld [vmem:[%s8 + $0x10] sm:$0xff]
    %v504 = vld [vmem:[%s8 + $0x18] sm:$0xff]
    %v505 = vld [vmem:[#allocation11] sm:$0xff]
    %v506 = vld [vmem:[#allocation11 + $0x8] sm:$0xff]
    %v507 = vld [vmem:[#allocation11 + $0x10] sm:$0xff]
    %v508 = vld [vmem:[#allocation11 + $0x18] sm:$0xff]
    %v509 = vld [vmem:[#allocation11 + $0x20] sm:$0xff]
    %v510 = vld [vmem:[#allocation11 + $0x28] sm:$0xff]
    %v511 = vld [vmem:[#allocation11 + $0x30] sm:$0xff]
    %v512 = vld [vmem:[#allocation11 + $0x38] sm:$0xff]
    %v513 = vld [vmem:[#allocation12] sm:$0x3]
    %v515 = vlaneseq
    %v516 = vshrl.u32 %v515, 7
    %v517 = vsub.s32 0, %v516
    %v518 = vrot.slane %v513, %v517
    %v519 = vlaneseq
    %v520 = vshrl.u32 %v519, 7
    %v521 = vsub.s32 1, %v520
    %v522 = vrot.slane %v513, %v521
    %vm525 = vcmask 261120
    %v527 = vsel %vm525, %v495, 0
    %v530 = vsel %vm525, %v496, 0
    %532 = vmatprep.subr.mxu0 %v506
    %533 = vmatpush1.msra.mxu0 %v505
    %534 = vmatprep.subr.mxu0 %v508
    %535 = vmatpush1.msra.mxu0 %v507
    %536 = vmatprep.subr.mxu0 %v510
    %537 = vmatpush1.msra.mxu0 %v509
    %538 = vmatprep.subr.mxu0 %v512
    %539 = vmatpush1.msra.mxu0 %v511
    %540 = vmatprep.subr.mxu0 0.0
    %541 = vmatpush1.msra.mxu0 0.0
    %542 = vmatprep.subr.mxu0 0.0
    %543 = vmatpush1.msra.mxu0 0.0
    %544 = vmatprep.subr.mxu0 0.0
    %545 = vmatpush1.msra.mxu0 0.0
    %546 = vmatprep.subr.mxu0 0.0
    %547 = vmatpush1.msra.mxu0 0.0
    %548 = vmatprep.subr.mxu0 0.0
    %549 = vmatpush1.msra.mxu0 0.0
    %550 = vmatprep.subr.mxu0 0.0
    %551 = vmatpush1.msra.mxu0 0.0
    %552 = vmatprep.subr.mxu0 0.0
    %553 = vmatpush1.msra.mxu0 0.0
    %554 = vmatprep.subr.mxu0 0.0
    %555 = vmatpush1.msra.mxu0 0.0
    %556 = vmatprep.subr.mxu0 0.0
    %557 = vmatpush1.msra.mxu0 0.0
    %558 = vmatprep.subr.mxu0 0.0
    %559 = vmatpush1.msra.mxu0 0.0
    %560 = vmatprep.subr.mxu0 0.0
    %561 = vmatpush1.msra.mxu0 0.0
    %562 = vmatprep.subr.mxu0 0.0
    %563 = vmatpush1.msra.mxu0 0.0
    %564 = vmatprep.subr.mxu0 0.0
    %565 = vmatpush1.msra.mxu0 0.0
    %566 = vmatprep.subr.mxu0 0.0
    %567 = vmatpush1.msra.mxu0 0.0
    %568 = vmatprep.subr.mxu0 0.0
    %569 = vmatpush1.msra.mxu0 0.0
    %570 = vmatprep.subr.mxu0 0.0
    %571 = vmatpush1.msra.mxu0 0.0
    %572 = vmatprep.subr.mxu0 0.0
    %573 = vmatpush1.msra.mxu0 0.0
    %574 = vmatprep.subr.mxu0 0.0
    %575 = vmatpush1.msra.mxu0 0.0
    %576 = vmatprep.subr.mxu0 0.0
    %577 = vmatpush1.msra.mxu0 0.0
    %578 = vmatprep.subr.mxu0 0.0
    %579 = vmatpush1.msra.mxu0 0.0
    %580 = vmatprep.subr.mxu0 0.0
    %581 = vmatpush1.msra.mxu0 0.0
    %582 = vmatprep.subr.mxu0 0.0
    %583 = vmatpush1.msra.mxu0 0.0
    %584 = vmatprep.subr.mxu0 0.0
    %585 = vmatpush1.msra.mxu0 0.0
    %586 = vmatprep.subr.mxu0 0.0
    %587 = vmatpush1.msra.mxu0 0.0
    %588 = vmatprep.subr.mxu0 0.0
    %589 = vmatpush1.msra.mxu0 0.0
    %590 = vmatprep.subr.mxu0 0.0
    %591 = vmatpush1.msra.mxu0 0.0
    %592 = vmatprep.subr.mxu0 0.0
    %593 = vmatpush1.msra.mxu0 0.0
    %594 = vmatprep.subr.mxu0 0.0
    %595 = vmatpush1.msra.mxu0 0.0
    %596 = vmatprep.mubr.f32.mxu0 0.0
    %597 = vmatmul.mubr.f32.gmra.mrb[0].mxu0 %v527
    %v598 = vpop.f32.mrb[0].mxu0
    %v599 = vadd.f32 %v518, %v598
    %v600 = vpop.f32.mrb[0].mxu0
    %v601 = vadd.f32 %v522, %v600
    %602 = vmatprep.mubr.f32.mxu0 0.0
    %603 = vmatmul.mubr.f32.gmra.mrb[0].mxu0 %v530
    %v604 = vpop.f32.mrb[0].mxu0
    %v605 = vadd.f32 %v518, %v604
    %v606 = vpop.f32.mrb[0].mxu0
    %v607 = vadd.f32 %v522, %v606
    %608 = vdwg.mxu0
    %v609 = vxor.u32 %v599, 2147483648
    %v610 = vmul.f32 %v609, 1.442695
    %v611 = vpow.pop %v610
    %v612 = vadd.f32 %v611, 1.0
    %v613 = vrcp.pop %v612
    %v614 = vmul.f32 1.0, %v613
    %v615 = vtanh.pop %v599
    %v616 = vmul.f32 %v614, 0.0
    %618 = vrot.lane.b32.xlu0 %v615, 64
    %v619 = vpop.permute.xlu0 %618
    %v621 = vmul.f32 %v614, %v619
    %623 = vrot.lane.b32.xlu0 %v621, 32
    %v624 = vpop.permute.xlu0 %623
    %v626 = vadd.f32 %v616, %v624
    %v627 = vtanh.pop %v626
    %629 = vrot.lane.b32.xlu0 %v627, 64
    %v630 = vpop.permute.xlu0 %629
    %v632 = vmul.f32 %v614, %v630
    %v633 = vxor.u32 %v607, 2147483648
    %v634 = vmul.f32 %v633, 1.442695
    %v635 = vpow.pop %v634
    %v636 = vadd.f32 %v635, 1.0
    %v637 = vrcp.pop %v636
    %v638 = vmul.f32 1.0, %v637
    %v639 = vtanh.pop %v607
    %v640 = vmul.f32 %v638, 0.0
    %642 = vrot.lane.b32.xlu0 %v639, 64
    %v643 = vpop.permute.xlu0 %642
    %v645 = vmul.f32 %v638, %v643
    %647 = vrot.lane.b32.xlu0 %v645, 32
    %v648 = vpop.permute.xlu0 %647
    %v650 = vadd.f32 %v640, %v648
    %v651 = vtanh.pop %v650
    %653 = vrot.lane.b32.xlu0 %v651, 64
    %v654 = vpop.permute.xlu0 %653
    %v656 = vmul.f32 %v638, %v654
    %658 = vrot.lane.b32.xlu0 %v632, 32
    %v659 = vpop.permute.xlu0 %658
    %v660 = vsel %vm525, %v659, 0
    %662 = vmatprep.subr.mxu0 0.0
    %663 = vmatpush1.msra.mxu0 %v497
    %664 = vmatprep.subr.mxu0 0.0
    %665 = vmatpush1.msra.mxu0 %v498
    %666 = vmatprep.subr.mxu0 0.0
    %667 = vmatpush1.msra.mxu0 %v499
    %668 = vmatprep.subr.mxu0 0.0
    %669 = vmatpush1.msra.mxu0 %v500
    %670 = vmatprep.subr.mxu0 0.0
    %671 = vmatpush1.msra.mxu0 0.0
    %672 = vmatprep.subr.mxu0 0.0
    %673 = vmatpush1.msra.mxu0 0.0
    %674 = vmatprep.subr.mxu0 0.0
    %675 = vmatpush1.msra.mxu0 0.0
    %676 = vmatprep.subr.mxu0 0.0
    %677 = vmatpush1.msra.mxu0 0.0
    %678 = vmatprep.subr.mxu0 0.0
    %679 = vmatpush1.msra.mxu0 0.0
    %680 = vmatprep.subr.mxu0 0.0
    %681 = vmatpush1.msra.mxu0 0.0
    %682 = vmatprep.subr.mxu0 0.0
    %683 = vmatpush1.msra.mxu0 0.0
    %684 = vmatprep.subr.mxu0 0.0
    %685 = vmatpush1.msra.mxu0 0.0
    %686 = vmatprep.subr.mxu0 0.0
    %687 = vmatpush1.msra.mxu0 0.0
    %688 = vmatprep.subr.mxu0 0.0
    %689 = vmatpush1.msra.mxu0 0.0
    %690 = vmatprep.subr.mxu0 0.0
    %691 = vmatpush1.msra.mxu0 0.0
    %692 = vmatprep.subr.mxu0 0.0
    %693 = vmatpush1.msra.mxu0 0.0
    %694 = vmatprep.subr.mxu0 0.0
    %695 = vmatpush1.msra.mxu0 0.0
    %696 = vmatprep.subr.mxu0 0.0
    %697 = vmatpush1.msra.mxu0 0.0
    %698 = vmatprep.subr.mxu0 0.0
    %699 = vmatpush1.msra.mxu0 0.0
    %700 = vmatprep.subr.mxu0 0.0
    %701 = vmatpush1.msra.mxu0 0.0
    %702 = vmatprep.subr.mxu0 0.0
    %703 = vmatpush1.msra.mxu0 0.0
    %704 = vmatprep.subr.mxu0 0.0
    %705 = vmatpush1.msra.mxu0 0.0
    %706 = vmatprep.subr.mxu0 0.0
    %707 = vmatpush1.msra.mxu0 0.0
    %708 = vmatprep.subr.mxu0 0.0
    %709 = vmatpush1.msra.mxu0 0.0
    %710 = vmatprep.subr.mxu0 0.0
    %711 = vmatpush1.msra.mxu0 0.0
    %712 = vmatprep.subr.mxu0 0.0
    %713 = vmatpush1.msra.mxu0 0.0
    %714 = vmatprep.subr.mxu0 0.0
    %715 = vmatpush1.msra.mxu0 0.0
    %716 = vmatprep.subr.mxu0 0.0
    %717 = vmatpush1.msra.mxu0 0.0
    %718 = vmatprep.subr.mxu0 0.0
    %719 = vmatpush1.msra.mxu0 0.0
    %720 = vmatprep.subr.mxu0 0.0
    %721 = vmatpush1.msra.mxu0 0.0
    %722 = vmatprep.subr.mxu0 0.0
    %723 = vmatpush1.msra.mxu0 0.0
    %724 = vmatprep.subr.mxu0 0.0
    %725 = vmatpush1.msra.mxu0 0.0
    %726 = vmatprep.mubr.f32.mxu0 0.0
    %727 = vmatmul.mubr.f32.gmra.mrb[0].mxu0 %v660
    %v728 = vpop.f32.mrb[0].mxu0
    %v729 = vadd.f32 0.0, %v728
    %v730 = vpop.f32.mrb[0].mxu0
    %731 = vdwg.mxu0
    %v733 = vrot.slane %v729, 6
    %v735 = vadd.f32 %v599, %v733
    %v737 = vrot.slane %v656, 6
    %738 = vrot.lane.b32.xlu0 %v737, 32
    %v739 = vpop.permute.xlu0 %738
    %v740 = vsel %vm525, %v739, 0
    %742 = vmatprep.subr.mxu0 0.0
    %743 = vmatpush1.msra.mxu0 %v501
    %744 = vmatprep.subr.mxu0 0.0
    %745 = vmatpush1.msra.mxu0 %v502
    %746 = vmatprep.subr.mxu0 0.0
    %747 = vmatpush1.msra.mxu0 %v503
    %748 = vmatprep.subr.mxu0 0.0
    %749 = vmatpush1.msra.mxu0 %v504
    %750 = vmatprep.subr.mxu0 0.0
    %751 = vmatpush1.msra.mxu0 0.0
    %752 = vmatprep.subr.mxu0 0.0
    %753 = vmatpush1.msra.mxu0 0.0
    %754 = vmatprep.subr.mxu0 0.0
    %755 = vmatpush1.msra.mxu0 0.0
    %756 = vmatprep.subr.mxu0 0.0
    %757 = vmatpush1.msra.mxu0 0.0
    %758 = vmatprep.subr.mxu0 0.0
    %759 = vmatpush1.msra.mxu0 0.0
    %760 = vmatprep.subr.mxu0 0.0
    %761 = vmatpush1.msra.mxu0 0.0
    %762 = vmatprep.subr.mxu0 0.0
    %763 = vmatpush1.msra.mxu0 0.0
    %764 = vmatprep.subr.mxu0 0.0
    %765 = vmatpush1.msra.mxu0 0.0
    %766 = vmatprep.subr.mxu0 0.0
    %767 = vmatpush1.msra.mxu0 0.0
    %768 = vmatprep.subr.mxu0 0.0
    %769 = vmatpush1.msra.mxu0 0.0
    %770 = vmatprep.subr.mxu0 0.0
    %771 = vmatpush1.msra.mxu0 0.0
    %772 = vmatprep.subr.mxu0 0.0
    %773 = vmatpush1.msra.mxu0 0.0
    %774 = vmatprep.subr.mxu0 0.0
    %775 = vmatpush1.msra.mxu0 0.0
    %776 = vmatprep.subr.mxu0 0.0
    %777 = vmatpush1.msra.mxu0 0.0
    %778 = vmatprep.subr.mxu0 0.0
    %779 = vmatpush1.msra.mxu0 0.0
    %780 = vmatprep.subr.mxu0 0.0
    %781 = vmatpush1.msra.mxu0 0.0
    %782 = vmatprep.subr.mxu0 0.0
    %783 = vmatpush1.msra.mxu0 0.0
    %784 = vmatprep.subr.mxu0 0.0
    %785 = vmatpush1.msra.mxu0 0.0
    %786 = vmatprep.subr.mxu0 0.0
    %787 = vmatpush1.msra.mxu0 0.0
    %788 = vmatprep.subr.mxu0 0.0
    %789 = vmatpush1.msra.mxu0 0.0
    %790 = vmatprep.subr.mxu0 0.0
    %791 = vmatpush1.msra.mxu0 0.0
    %792 = vmatprep.subr.mxu0 0.0
    %793 = vmatpush1.msra.mxu0 0.0
    %794 = vmatprep.subr.mxu0 0.0
    %795 = vmatpush1.msra.mxu0 0.0
    %796 = vmatprep.subr.mxu0 0.0
    %797 = vmatpush1.msra.mxu0 0.0
    %798 = vmatprep.subr.mxu0 0.0
    %799 = vmatpush1.msra.mxu0 0.0
    %800 = vmatprep.subr.mxu0 0.0
    %801 = vmatpush1.msra.mxu0 0.0
    %802 = vmatprep.subr.mxu0 0.0
    %803 = vmatpush1.msra.mxu0 0.0
    %804 = vmatprep.subr.mxu0 0.0
    %805 = vmatpush1.msra.mxu0 0.0
    %806 = vmatprep.mubr.f32.mxu0 0.0
    %807 = vmatmul.mubr.f32.gmra.mrb[0].mxu0 %v740
    %v808 = vpop.f32.mrb[0].mxu0
    %v809 = vadd.f32 0.0, %v808
    %v810 = vpop.f32.mrb[0].mxu0
    %811 = vdwg.mxu0
    %v813 = vrot.slane %v809, 4
    %v815 = vadd.f32 %v607, %v813
    %v816 = vxor.u32 %v735, 2147483648
    %v817 = vmul.f32 %v816, 1.442695
    %v818 = vpow.pop %v817
    %v819 = vadd.f32 %v818, 1.0
    %v820 = vrcp.pop %v819
    %v821 = vmul.f32 1.0, %v820
    %v822 = vtanh.pop %v735
    %v824 = vrot.slane %v626, 6
    %v826 = vmul.f32 %v821, %v824
    %828 = vrot.lane.b32.xlu0 %v822, 64
    %v829 = vpop.permute.xlu0 %828
    %v831 = vmul.f32 %v821, %v829
    %833 = vrot.lane.b32.xlu0 %v831, 32
    %v834 = vpop.permute.xlu0 %833
    %v836 = vadd.f32 %v826, %v834
    %v837 = vtanh.pop %v836
    %839 = vrot.lane.b32.xlu0 %v837, 64
    %v840 = vpop.permute.xlu0 %839
    %v842 = vmul.f32 %v821, %v840
    %v843 = vxor.u32 %v815, 2147483648
    %v844 = vmul.f32 %v843, 1.442695
    %v845 = vpow.pop %v844
    %v846 = vadd.f32 %v845, 1.0
    %v847 = vrcp.pop %v846
    %v848 = vmul.f32 1.0, %v847
    %v849 = vtanh.pop %v815
    %v851 = vrot.slane %v650, 2
    %v853 = vmul.f32 %v848, %v851
    %855 = vrot.lane.b32.xlu0 %v849, 64
    %v856 = vpop.permute.xlu0 %855
    %v858 = vmul.f32 %v848, %v856
    %860 = vrot.lane.b32.xlu0 %v858, 32
    %v861 = vpop.permute.xlu0 %860
    %v863 = vadd.f32 %v853, %v861
    %v864 = vtanh.pop %v863
    %866 = vrot.lane.b32.xlu0 %v864, 64
    %v867 = vpop.permute.xlu0 %866
    %v869 = vmul.f32 %v848, %v867
    %v871 = vrot.slane %v842, 2
    %872 = vrot.lane.b32.xlu0 %v871, 32
    %v873 = vpop.permute.xlu0 %872
    %v874 = vsel %vm525, %v873, 0
    %876 = vmatprep.subr.mxu0 0.0
    %877 = vmatpush1.msra.mxu0 %v497
    %878 = vmatprep.subr.mxu0 0.0
    %879 = vmatpush1.msra.mxu0 %v498
    %880 = vmatprep.subr.mxu0 0.0
    %881 = vmatpush1.msra.mxu0 %v499
    %882 = vmatprep.subr.mxu0 0.0
    %883 = vmatpush1.msra.mxu0 %v500
    %884 = vmatprep.subr.mxu0 0.0
    %885 = vmatpush1.msra.mxu0 0.0
    %886 = vmatprep.subr.mxu0 0.0
    %887 = vmatpush1.msra.mxu0 0.0
    %888 = vmatprep.subr.mxu0 0.0
    %889 = vmatpush1.msra.mxu0 0.0
    %890 = vmatprep.subr.mxu0 0.0
    %891 = vmatpush1.msra.mxu0 0.0
    %892 = vmatprep.subr.mxu0 0.0
    %893 = vmatpush1.msra.mxu0 0.0
    %894 = vmatprep.subr.mxu0 0.0
    %895 = vmatpush1.msra.mxu0 0.0
    %896 = vmatprep.subr.mxu0 0.0
    %897 = vmatpush1.msra.mxu0 0.0
    %898 = vmatprep.subr.mxu0 0.0
    %899 = vmatpush1.msra.mxu0 0.0
    %900 = vmatprep.subr.mxu0 0.0
    %901 = vmatpush1.msra.mxu0 0.0
    %902 = vmatprep.subr.mxu0 0.0
    %903 = vmatpush1.msra.mxu0 0.0
    %904 = vmatprep.subr.mxu0 0.0
    %905 = vmatpush1.msra.mxu0 0.0
    %906 = vmatprep.subr.mxu0 0.0
    %907 = vmatpush1.msra.mxu0 0.0
    %908 = vmatprep.subr.mxu0 0.0
    %909 = vmatpush1.msra.mxu0 0.0
    %910 = vmatprep.subr.mxu0 0.0
    %911 = vmatpush1.msra.mxu0 0.0
    %912 = vmatprep.subr.mxu0 0.0
    %913 = vmatpush1.msra.mxu0 0.0
    %914 = vmatprep.subr.mxu0 0.0
    %915 = vmatpush1.msra.mxu0 0.0
    %916 = vmatprep.subr.mxu0 0.0
    %917 = vmatpush1.msra.mxu0 0.0
    %918 = vmatprep.subr.mxu0 0.0
    %919 = vmatpush1.msra.mxu0 0.0
    %920 = vmatprep.subr.mxu0 0.0
    %921 = vmatpush1.msra.mxu0 0.0
    %922 = vmatprep.subr.mxu0 0.0
    %923 = vmatpush1.msra.mxu0 0.0
    %924 = vmatprep.subr.mxu0 0.0
    %925 = vmatpush1.msra.mxu0 0.0
    %926 = vmatprep.subr.mxu0 0.0
    %927 = vmatpush1.msra.mxu0 0.0
    %928 = vmatprep.subr.mxu0 0.0
    %929 = vmatpush1.msra.mxu0 0.0
    %930 = vmatprep.subr.mxu0 0.0
    %931 = vmatpush1.msra.mxu0 0.0
    %932 = vmatprep.subr.mxu0 0.0
    %933 = vmatpush1.msra.mxu0 0.0
    %934 = vmatprep.subr.mxu0 0.0
    %935 = vmatpush1.msra.mxu0 0.0
    %936 = vmatprep.subr.mxu0 0.0
    %937 = vmatpush1.msra.mxu0 0.0
    %938 = vmatprep.subr.mxu0 0.0
    %939 = vmatpush1.msra.mxu0 0.0
    %940 = vmatprep.mubr.f32.mxu0 0.0
    %941 = vmatmul.mubr.f32.gmra.mrb[0].mxu0 %v874
    %v942 = vpop.f32.mrb[0].mxu0
    %v943 = vadd.f32 0.0, %v942
    %v944 = vpop.f32.mrb[0].mxu0
    %945 = vdwg.mxu0
    %v947 = vrot.slane %v943, 4
    %v949 = vadd.f32 %v599, %v947
    %v951 = vrot.slane %v869, 4
    %952 = vrot.lane.b32.xlu0 %v951, 32
    %v953 = vpop.permute.xlu0 %952
    %v954 = vsel %vm525, %v953, 0
    %956 = vmatprep.subr.mxu0 0.0
    %957 = vmatpush1.msra.mxu0 %v501
    %958 = vmatprep.subr.mxu0 0.0
    %959 = vmatpush1.msra.mxu0 %v502
    %960 = vmatprep.subr.mxu0 0.0
    %961 = vmatpush1.msra.mxu0 %v503
    %962 = vmatprep.subr.mxu0 0.0
    %963 = vmatpush1.msra.mxu0 %v504
    %964 = vmatprep.subr.mxu0 0.0
    %965 = vmatpush1.msra.mxu0 0.0
    %966 = vmatprep.subr.mxu0 0.0
    %967 = vmatpush1.msra.mxu0 0.0
    %968 = vmatprep.subr.mxu0 0.0
    %969 = vmatpush1.msra.mxu0 0.0
    %970 = vmatprep.subr.mxu0 0.0
    %971 = vmatpush1.msra.mxu0 0.0
    %972 = vmatprep.subr.mxu0 0.0
    %973 = vmatpush1.msra.mxu0 0.0
    %974 = vmatprep.subr.mxu0 0.0
    %975 = vmatpush1.msra.mxu0 0.0
    %976 = vmatprep.subr.mxu0 0.0
    %977 = vmatpush1.msra.mxu0 0.0
    %978 = vmatprep.subr.mxu0 0.0
    %979 = vmatpush1.msra.mxu0 0.0
    %980 = vmatprep.subr.mxu0 0.0
    %981 = vmatpush1.msra.mxu0 0.0
    %982 = vmatprep.subr.mxu0 0.0
    %983 = vmatpush1.msra.mxu0 0.0
    %984 = vmatprep.subr.mxu0 0.0
    %985 = vmatpush1.msra.mxu0 0.0
    %986 = vmatprep.subr.mxu0 0.0
    %987 = vmatpush1.msra.mxu0 0.0
    %988 = vmatprep.subr.mxu0 0.0
    %989 = vmatpush1.msra.mxu0 0.0
    %990 = vmatprep.subr.mxu0 0.0
    %991 = vmatpush1.msra.mxu0 0.0
    %992 = vmatprep.subr.mxu0 0.0
    %993 = vmatpush1.msra.mxu0 0.0
    %994 = vmatprep.subr.mxu0 0.0
    %995 = vmatpush1.msra.mxu0 0.0
    %996 = vmatprep.subr.mxu0 0.0
    %997 = vmatpush1.msra.mxu0 0.0
    %998 = vmatprep.subr.mxu0 0.0
    %999 = vmatpush1.msra.mxu0 0.0
    %1000 = vmatprep.subr.mxu0 0.0
    %1001 = vmatpush1.msra.mxu0 0.0
    %1002 = vmatprep.subr.mxu0 0.0
    %1003 = vmatpush1.msra.mxu0 0.0
    %1004 = vmatprep.subr.mxu0 0.0
    %1005 = vmatpush1.msra.mxu0 0.0
    %1006 = vmatprep.subr.mxu0 0.0
    %1007 = vmatpush1.msra.mxu0 0.0
    %1008 = vmatprep.subr.mxu0 0.0
    %1009 = vmatpush1.msra.mxu0 0.0
    %1010 = vmatprep.subr.mxu0 0.0
    %1011 = vmatpush1.msra.mxu0 0.0
    %1012 = vmatprep.subr.mxu0 0.0
    %1013 = vmatpush1.msra.mxu0 0.0
    %1014 = vmatprep.subr.mxu0 0.0
    %1015 = vmatpush1.msra.mxu0 0.0
    %1016 = vmatprep.subr.mxu0 0.0
    %1017 = vmatpush1.msra.mxu0 0.0
    %1018 = vmatprep.subr.mxu0 0.0
    %1019 = vmatpush1.msra.mxu0 0.0
    %1020 = vmatprep.mubr.f32.mxu0 0.0
    %1021 = vmatmul.mubr.f32.gmra.mrb[0].mxu0 %v954
    %v1022 = vpop.f32.mrb[0].mxu0
    %v1023 = vadd.f32 0.0, %v1022
    %v1024 = vpop.f32.mrb[0].mxu0
    %1025 = vdwg.mxu0
    %v1027 = vrot.slane %v1023, 6
    %v1029 = vadd.f32 %v607, %v1027
    %v1030 = vxor.u32 %v949, 2147483648
    %v1031 = vmul.f32 %v1030, 1.442695
    %v1032 = vpow.pop %v1031
    %v1033 = vadd.f32 %v1032, 1.0
    %v1034 = vrcp.pop %v1033
    %v1035 = vmul.f32 1.0, %v1034
    %v1036 = vtanh.pop %v949
    %v1038 = vrot.slane %v836, 6
    %v1040 = vmul.f32 %v1035, %v1038
    %1042 = vrot.lane.b32.xlu0 %v1036, 64
    %v1043 = vpop.permute.xlu0 %1042
    %v1045 = vmul.f32 %v1035, %v1043
    %1047 = vrot.lane.b32.xlu0 %v1045, 32
    %v1048 = vpop.permute.xlu0 %1047
    %v1050 = vadd.f32 %v1040, %v1048
    %v1051 = vtanh.pop %v1050
    %1053 = vrot.lane.b32.xlu0 %v1051, 64
    %v1054 = vpop.permute.xlu0 %1053
    %v1056 = vmul.f32 %v1035, %v1054
    %v1057 = vxor.u32 %v1029, 2147483648
    %v1058 = vmul.f32 %v1057, 1.442695
    %v1059 = vpow.pop %v1058
    %v1060 = vadd.f32 %v1059, 1.0
    %v1061 = vrcp.pop %v1060
    %v1062 = vmul.f32 1.0, %v1061
    %v1063 = vtanh.pop %v1029
    %v1065 = vrot.slane %v863, 2
    %v1067 = vmul.f32 %v1062, %v1065
    %1069 = vrot.lane.b32.xlu0 %v1063, 64
    %v1070 = vpop.permute.xlu0 %1069
    %v1072 = vmul.f32 %v1062, %v1070
    %1074 = vrot.lane.b32.xlu0 %v1072, 32
    %v1075 = vpop.permute.xlu0 %1074
    %v1077 = vadd.f32 %v1067, %v1075
    %v1078 = vtanh.pop %v1077
    %1080 = vrot.lane.b32.xlu0 %v1078, 64
    %v1081 = vpop.permute.xlu0 %1080
    %v1083 = vmul.f32 %v1062, %v1081
    %v1085 = vrot.slane %v1056, 4
    %1086 = vrot.lane.b32.xlu0 %v1085, 32
    %v1087 = vpop.permute.xlu0 %1086
    %v1088 = vsel %vm525, %v1087, 0
    %1090 = vmatprep.subr.mxu0 0.0
    %1091 = vmatpush1.msra.mxu0 %v497
    %1092 = vmatprep.subr.mxu0 0.0
    %1093 = vmatpush1.msra.mxu0 %v498
    %1094 = vmatprep.subr.mxu0 0.0
    %1095 = vmatpush1.msra.mxu0 %v499
    %1096 = vmatprep.subr.mxu0 0.0
    %1097 = vmatpush1.msra.mxu0 %v500
    %1098 = vmatprep.subr.mxu0 0.0
    %1099 = vmatpush1.msra.mxu0 0.0
    %1100 = vmatprep.subr.mxu0 0.0
    %1101 = vmatpush1.msra.mxu0 0.0
    %1102 = vmatprep.subr.mxu0 0.0
    %1103 = vmatpush1.msra.mxu0 0.0
    %1104 = vmatprep.subr.mxu0 0.0
    %1105 = vmatpush1.msra.mxu0 0.0
    %1106 = vmatprep.subr.mxu0 0.0
    %1107 = vmatpush1.msra.mxu0 0.0
    %1108 = vmatprep.subr.mxu0 0.0
    %1109 = vmatpush1.msra.mxu0 0.0
    %1110 = vmatprep.subr.mxu0 0.0
    %1111 = vmatpush1.msra.mxu0 0.0
    %1112 = vmatprep.subr.mxu0 0.0
    %1113 = vmatpush1.msra.mxu0 0.0
    %1114 = vmatprep.subr.mxu0 0.0
    %1115 = vmatpush1.msra.mxu0 0.0
    %1116 = vmatprep.subr.mxu0 0.0
    %1117 = vmatpush1.msra.mxu0 0.0
    %1118 = vmatprep.subr.mxu0 0.0
    %1119 = vmatpush1.msra.mxu0 0.0
    %1120 = vmatprep.subr.mxu0 0.0
    %1121 = vmatpush1.msra.mxu0 0.0
    %1122 = vmatprep.subr.mxu0 0.0
    %1123 = vmatpush1.msra.mxu0 0.0
    %1124 = vmatprep.subr.mxu0 0.0
    %1125 = vmatpush1.msra.mxu0 0.0
    %1126 = vmatprep.subr.mxu0 0.0
    %1127 = vmatpush1.msra.mxu0 0.0
    %1128 = vmatprep.subr.mxu0 0.0
    %1129 = vmatpush1.msra.mxu0 0.0
    %1130 = vmatprep.subr.mxu0 0.0
    %1131 = vmatpush1.msra.mxu0 0.0
    %1132 = vmatprep.subr.mxu0 0.0
    %1133 = vmatpush1.msra.mxu0 0.0
    %1134 = vmatprep.subr.mxu0 0.0
    %1135 = vmatpush1.msra.mxu0 0.0
    %1136 = vmatprep.subr.mxu0 0.0
    %1137 = vmatpush1.msra.mxu0 0.0
    %1138 = vmatprep.subr.mxu0 0.0
    %1139 = vmatpush1.msra.mxu0 0.0
    %1140 = vmatprep.subr.mxu0 0.0
    %1141 = vmatpush1.msra.mxu0 0.0
    %1142 = vmatprep.subr.mxu0 0.0
    %1143 = vmatpush1.msra.mxu0 0.0
    %1144 = vmatprep.subr.mxu0 0.0
    %1145 = vmatpush1.msra.mxu0 0.0
    %1146 = vmatprep.subr.mxu0 0.0
    %1147 = vmatpush1.msra.mxu0 0.0
    %1148 = vmatprep.subr.mxu0 0.0
    %1149 = vmatpush1.msra.mxu0 0.0
    %1150 = vmatprep.subr.mxu0 0.0
    %1151 = vmatpush1.msra.mxu0 0.0
    %1152 = vmatprep.subr.mxu0 0.0
    %1153 = vmatpush1.msra.mxu0 0.0
    %1154 = vmatprep.mubr.f32.mxu0 0.0
    %1155 = vmatmul.mubr.f32.gmra.mrb[0].mxu0 %v1088
    %v1156 = vpop.f32.mrb[0].mxu0
    %v1157 = vadd.f32 0.0, %v1156
    %v1158 = vpop.f32.mrb[0].mxu0
    %1159 = vdwg.mxu0
    %v1161 = vrot.slane %v1157, 2
    %v1163 = vadd.f32 %v599, %v1161
    %v1165 = vrot.slane %v1083, 2
    %1166 = vrot.lane.b32.xlu0 %v1165, 32
    %v1167 = vpop.permute.xlu0 %1166
    %v1168 = vsel %vm525, %v1167, 0
    %1170 = vmatprep.subr.mxu0 0.0
    %1171 = vmatpush1.msra.mxu0 %v501
    %1172 = vmatprep.subr.mxu0 0.0
    %1173 = vmatpush1.msra.mxu0 %v502
    %1174 = vmatprep.subr.mxu0 0.0
    %1175 = vmatpush1.msra.mxu0 %v503
    %1176 = vmatprep.subr.mxu0 0.0
    %1177 = vmatpush1.msra.mxu0 %v504
    %1178 = vmatprep.subr.mxu0 0.0
    %1179 = vmatpush1.msra.mxu0 0.0
    %1180 = vmatprep.subr.mxu0 0.0
    %1181 = vmatpush1.msra.mxu0 0.0
    %1182 = vmatprep.subr.mxu0 0.0
    %1183 = vmatpush1.msra.mxu0 0.0
    %1184 = vmatprep.subr.mxu0 0.0
    %1185 = vmatpush1.msra.mxu0 0.0
    %1186 = vmatprep.subr.mxu0 0.0
    %1187 = vmatpush1.msra.mxu0 0.0
    %1188 = vmatprep.subr.mxu0 0.0
    %1189 = vmatpush1.msra.mxu0 0.0
    %1190 = vmatprep.subr.mxu0 0.0
    %1191 = vmatpush1.msra.mxu0 0.0
    %1192 = vmatprep.subr.mxu0 0.0
    %1193 = vmatpush1.msra.mxu0 0.0
    %1194 = vmatprep.subr.mxu0 0.0
    %1195 = vmatpush1.msra.mxu0 0.0
    %1196 = vmatprep.subr.mxu0 0.0
    %1197 = vmatpush1.msra.mxu0 0.0
    %1198 = vmatprep.subr.mxu0 0.0
    %1199 = vmatpush1.msra.mxu0 0.0
    %1200 = vmatprep.subr.mxu0 0.0
    %1201 = vmatpush1.msra.mxu0 0.0
    %1202 = vmatprep.subr.mxu0 0.0
    %1203 = vmatpush1.msra.mxu0 0.0
    %1204 = vmatprep.subr.mxu0 0.0
    %1205 = vmatpush1.msra.mxu0 0.0
    %1206 = vmatprep.subr.mxu0 0.0
    %1207 = vmatpush1.msra.mxu0 0.0
    %1208 = vmatprep.subr.mxu0 0.0
    %1209 = vmatpush1.msra.mxu0 0.0
    %1210 = vmatprep.subr.mxu0 0.0
    %1211 = vmatpush1.msra.mxu0 0.0
    %1212 = vmatprep.subr.mxu0 0.0
    %1213 = vmatpush1.msra.mxu0 0.0
    %1214 = vmatprep.subr.mxu0 0.0
    %1215 = vmatpush1.msra.mxu0 0.0
    %1216 = vmatprep.subr.mxu0 0.0
    %1217 = vmatpush1.msra.mxu0 0.0
    %1218 = vmatprep.subr.mxu0 0.0
    %1219 = vmatpush1.msra.mxu0 0.0
    %1220 = vmatprep.subr.mxu0 0.0
    %1221 = vmatpush1.msra.mxu0 0.0
    %1222 = vmatprep.subr.mxu0 0.0
    %1223 = vmatpush1.msra.mxu0 0.0
    %1224 = vmatprep.subr.mxu0 0.0
    %1225 = vmatpush1.msra.mxu0 0.0
    %1226 = vmatprep.subr.mxu0 0.0
    %1227 = vmatpush1.msra.mxu0 0.0
    %1228 = vmatprep.subr.mxu0 0.0
    %1229 = vmatpush1.msra.mxu0 0.0
    %1230 = vmatprep.subr.mxu0 0.0
    %1231 = vmatpush1.msra.mxu0 0.0
    %1232 = vmatprep.subr.mxu0 0.0
    %1233 = vmatpush1.msra.mxu0 0.0
    %1234 = vmatprep.mubr.f32.mxu0 0.0
    %1235 = vmatmul.mubr.f32.gmra.mrb[0].mxu0 %v1168
    %v1236 = vpop.f32.mrb[0].mxu0
    %v1237 = vadd.f32 0.0, %v1236
    %v1238 = vpop.f32.mrb[0].mxu0
    %1239 = vdwg.mxu0
    %v1240 = vadd.f32 %v607, %v1237
    %v1241 = vxor.u32 %v1163, 2147483648
    %v1242 = vmul.f32 %v1241, 1.442695
    %v1243 = vpow.pop %v1242
    %v1244 = vadd.f32 %v1243, 1.0
    %v1245 = vrcp.pop %v1244
    %v1246 = vmul.f32 1.0, %v1245
    %v1247 = vtanh.pop %v1163
    %v1249 = vrot.slane %v1050, 6
    %v1251 = vmul.f32 %v1246, %v1249
    %1253 = vrot.lane.b32.xlu0 %v1247, 64
    %v1254 = vpop.permute.xlu0 %1253
    %v1256 = vmul.f32 %v1246, %v1254
    %1258 = vrot.lane.b32.xlu0 %v1256, 32
    %v1259 = vpop.permute.xlu0 %1258
    %v1261 = vadd.f32 %v1251, %v1259
    %v1262 = vtanh.pop %v1261
    %1264 = vrot.lane.b32.xlu0 %v1262, 64
    %v1265 = vpop.permute.xlu0 %1264
    %v1267 = vmul.f32 %v1246, %v1265
    %v1268 = vxor.u32 %v1240, 2147483648
    %v1269 = vmul.f32 %v1268, 1.442695
    %v1270 = vpow.pop %v1269
    %v1271 = vadd.f32 %v1270, 1.0
    %v1272 = vrcp.pop %v1271
    %v1273 = vmul.f32 1.0, %v1272
    %v1274 = vtanh.pop %v1240
    %v1276 = vrot.slane %v1077, 2
    %v1278 = vmul.f32 %v1273, %v1276
    %1280 = vrot.lane.b32.xlu0 %v1274, 64
    %v1281 = vpop.permute.xlu0 %1280
    %v1283 = vmul.f32 %v1273, %v1281
    %1285 = vrot.lane.b32.xlu0 %v1283, 32
    %v1286 = vpop.permute.xlu0 %1285
    %v1288 = vadd.f32 %v1278, %v1286
    %v1289 = vtanh.pop %v1288
    %1291 = vrot.lane.b32.xlu0 %v1289, 64
    %v1292 = vpop.permute.xlu0 %1291
    %v1294 = vmul.f32 %v1273, %v1292
    %v1296 = vrot.slane %v1267, 6
    %1297 = vrot.lane.b32.xlu0 %v1296, 32
    %v1298 = vpop.permute.xlu0 %1297
    %v1299 = vsel %vm525, %v1298, 0
    %1301 = vmatprep.subr.mxu0 0.0
    %1302 = vmatpush1.msra.mxu0 %v497
    %1303 = vmatprep.subr.mxu0 0.0
    %1304 = vmatpush1.msra.mxu0 %v498
    %1305 = vmatprep.subr.mxu0 0.0
    %1306 = vmatpush1.msra.mxu0 %v499
    %1307 = vmatprep.subr.mxu0 0.0
    %1308 = vmatpush1.msra.mxu0 %v500
    %1309 = vmatprep.subr.mxu0 0.0
    %1310 = vmatpush1.msra.mxu0 0.0
    %1311 = vmatprep.subr.mxu0 0.0
    %1312 = vmatpush1.msra.mxu0 0.0
    %1313 = vmatprep.subr.mxu0 0.0
    %1314 = vmatpush1.msra.mxu0 0.0
    %1315 = vmatprep.subr.mxu0 0.0
    %1316 = vmatpush1.msra.mxu0 0.0
    %1317 = vmatprep.subr.mxu0 0.0
    %1318 = vmatpush1.msra.mxu0 0.0
    %1319 = vmatprep.subr.mxu0 0.0
    %1320 = vmatpush1.msra.mxu0 0.0
    %1321 = vmatprep.subr.mxu0 0.0
    %1322 = vmatpush1.msra.mxu0 0.0
    %1323 = vmatprep.subr.mxu0 0.0
    %1324 = vmatpush1.msra.mxu0 0.0
    %1325 = vmatprep.subr.mxu0 0.0
    %1326 = vmatpush1.msra.mxu0 0.0
    %1327 = vmatprep.subr.mxu0 0.0
    %1328 = vmatpush1.msra.mxu0 0.0
    %1329 = vmatprep.subr.mxu0 0.0
    %1330 = vmatpush1.msra.mxu0 0.0
    %1331 = vmatprep.subr.mxu0 0.0
    %1332 = vmatpush1.msra.mxu0 0.0
    %1333 = vmatprep.subr.mxu0 0.0
    %1334 = vmatpush1.msra.mxu0 0.0
    %1335 = vmatprep.subr.mxu0 0.0
    %1336 = vmatpush1.msra.mxu0 0.0
    %1337 = vmatprep.subr.mxu0 0.0
    %1338 = vmatpush1.msra.mxu0 0.0
    %1339 = vmatprep.subr.mxu0 0.0
    %1340 = vmatpush1.msra.mxu0 0.0
    %1341 = vmatprep.subr.mxu0 0.0
    %1342 = vmatpush1.msra.mxu0 0.0
    %1343 = vmatprep.subr.mxu0 0.0
    %1344 = vmatpush1.msra.mxu0 0.0
    %1345 = vmatprep.subr.mxu0 0.0
    %1346 = vmatpush1.msra.mxu0 0.0
    %1347 = vmatprep.subr.mxu0 0.0
    %1348 = vmatpush1.msra.mxu0 0.0
    %1349 = vmatprep.subr.mxu0 0.0
    %1350 = vmatpush1.msra.mxu0 0.0
    %1351 = vmatprep.subr.mxu0 0.0
    %1352 = vmatpush1.msra.mxu0 0.0
    %1353 = vmatprep.subr.mxu0 0.0
    %1354 = vmatpush1.msra.mxu0 0.0
    %1355 = vmatprep.subr.mxu0 0.0
    %1356 = vmatpush1.msra.mxu0 0.0
    %1357 = vmatprep.subr.mxu0 0.0
    %1358 = vmatpush1.msra.mxu0 0.0
    %1359 = vmatprep.subr.mxu0 0.0
    %1360 = vmatpush1.msra.mxu0 0.0
    %1361 = vmatprep.subr.mxu0 0.0
    %1362 = vmatpush1.msra.mxu0 0.0
    %1363 = vmatprep.subr.mxu0 0.0
    %1364 = vmatpush1.msra.mxu0 0.0
    %1365 = vmatprep.mubr.f32.mxu0 0.0
    %1366 = vmatmul.mubr.f32.gmra.mrb[0].mxu0 %v1299
    %v1367 = vpop.f32.mrb[0].mxu0
    %v1368 = vadd.f32 0.0, %v1367
    %v1369 = vpop.f32.mrb[0].mxu0
    %1370 = vdwg.mxu0
    %v1371 = vadd.f32 %v605, %v1368
    %1373 = vrot.lane.b32.xlu0 %v1294, 32
    %v1374 = vpop.permute.xlu0 %1373
    %v1375 = vsel %vm525, %v1374, 0
    %1377 = vmatprep.subr.mxu0 0.0
    %1378 = vmatpush1.msra.mxu0 %v501
    %1379 = vmatprep.subr.mxu0 0.0
    %1380 = vmatpush1.msra.mxu0 %v502
    %1381 = vmatprep.subr.mxu0 0.0
    %1382 = vmatpush1.msra.mxu0 %v503
    %1383 = vmatprep.subr.mxu0 0.0
    %1384 = vmatpush1.msra.mxu0 %v504
    %1385 = vmatprep.subr.mxu0 0.0
    %1386 = vmatpush1.msra.mxu0 0.0
    %1387 = vmatprep.subr.mxu0 0.0
    %1388 = vmatpush1.msra.mxu0 0.0
    %1389 = vmatprep.subr.mxu0 0.0
    %1390 = vmatpush1.msra.mxu0 0.0
    %1391 = vmatprep.subr.mxu0 0.0
    %1392 = vmatpush1.msra.mxu0 0.0
    %1393 = vmatprep.subr.mxu0 0.0
    %1394 = vmatpush1.msra.mxu0 0.0
    %1395 = vmatprep.subr.mxu0 0.0
    %1396 = vmatpush1.msra.mxu0 0.0
    %1397 = vmatprep.subr.mxu0 0.0
    %1398 = vmatpush1.msra.mxu0 0.0
    %1399 = vmatprep.subr.mxu0 0.0
    %1400 = vmatpush1.msra.mxu0 0.0
    %1401 = vmatprep.subr.mxu0 0.0
    %1402 = vmatpush1.msra.mxu0 0.0
    %1403 = vmatprep.subr.mxu0 0.0
    %1404 = vmatpush1.msra.mxu0 0.0
    %1405 = vmatprep.subr.mxu0 0.0
    %1406 = vmatpush1.msra.mxu0 0.0
    %1407 = vmatprep.subr.mxu0 0.0
    %1408 = vmatpush1.msra.mxu0 0.0
    %1409 = vmatprep.subr.mxu0 0.0
    %1410 = vmatpush1.msra.mxu0 0.0
    %1411 = vmatprep.subr.mxu0 0.0
    %1412 = vmatpush1.msra.mxu0 0.0
    %1413 = vmatprep.subr.mxu0 0.0
    %1414 = vmatpush1.msra.mxu0 0.0
    %1415 = vmatprep.subr.mxu0 0.0
    %1416 = vmatpush1.msra.mxu0 0.0
    %1417 = vmatprep.subr.mxu0 0.0
    %1418 = vmatpush1.msra.mxu0 0.0
    %1419 = vmatprep.subr.mxu0 0.0
    %1420 = vmatpush1.msra.mxu0 0.0
    %1421 = vmatprep.subr.mxu0 0.0
    %1422 = vmatpush1.msra.mxu0 0.0
    %1423 = vmatprep.subr.mxu0 0.0
    %1424 = vmatpush1.msra.mxu0 0.0
    %1425 = vmatprep.subr.mxu0 0.0
    %1426 = vmatpush1.msra.mxu0 0.0
    %1427 = vmatprep.subr.mxu0 0.0
    %1428 = vmatpush1.msra.mxu0 0.0
    %1429 = vmatprep.subr.mxu0 0.0
    %1430 = vmatpush1.msra.mxu0 0.0
    %1431 = vmatprep.subr.mxu0 0.0
    %1432 = vmatpush1.msra.mxu0 0.0
    %1433 = vmatprep.subr.mxu0 0.0
    %1434 = vmatpush1.msra.mxu0 0.0
    %1435 = vmatprep.subr.mxu0 0.0
    %1436 = vmatpush1.msra.mxu0 0.0
    %1437 = vmatprep.subr.mxu0 0.0
    %1438 = vmatpush1.msra.mxu0 0.0
    %1439 = vmatprep.subr.mxu0 0.0
    %1440 = vmatpush1.msra.mxu0 0.0
    %1441 = vmatprep.mubr.f32.mxu0 0.0
    %1442 = vmatmul.mubr.f32.gmra.mrb[0].mxu0 %v1375
    %v1443 = vpop.f32.mrb[0].mxu0
    %v1444 = vadd.f32 0.0, %v1443
    %v1445 = vpop.f32.mrb[0].mxu0
    %1446 = vdwg.mxu0
    %v1448 = vrot.slane %v1444, 2
    %v1450 = vadd.f32 %v601, %v1448
    %v1451 = vxor.u32 %v1371, 2147483648
    %v1452 = vmul.f32 %v1451, 1.442695
    %v1453 = vpow.pop %v1452
    %v1454 = vadd.f32 %v1453, 1.0
    %v1455 = vrcp.pop %v1454
    %v1456 = vmul.f32 1.0, %v1455
    %v1457 = vtanh.pop %v1371
    %v1459 = vrot.slane %v1261, 6
    %v1461 = vmul.f32 %v1456, %v1459
    %1463 = vrot.lane.b32.xlu0 %v1457, 64
    %v1464 = vpop.permute.xlu0 %1463
    %v1466 = vmul.f32 %v1456, %v1464
    %1468 = vrot.lane.b32.xlu0 %v1466, 32
    %v1469 = vpop.permute.xlu0 %1468
    %v1471 = vadd.f32 %v1461, %v1469
    %v1472 = vtanh.pop %v1471
    %1474 = vrot.lane.b32.xlu0 %v1472, 64
    %v1475 = vpop.permute.xlu0 %1474
    %v1477 = vmul.f32 %v1456, %v1475
    %v1478 = vxor.u32 %v1450, 2147483648
    %v1479 = vmul.f32 %v1478, 1.442695
    %v1480 = vpow.pop %v1479
    %v1481 = vadd.f32 %v1480, 1.0
    %v1482 = vrcp.pop %v1481
    %v1483 = vmul.f32 1.0, %v1482
    %v1484 = vtanh.pop %v1450
    %v1486 = vrot.slane %v1288, 2
    %v1488 = vmul.f32 %v1483, %v1486
    %1490 = vrot.lane.b32.xlu0 %v1484, 64
    %v1491 = vpop.permute.xlu0 %1490
    %v1493 = vmul.f32 %v1483, %v1491
    %1495 = vrot.lane.b32.xlu0 %v1493, 32
    %v1496 = vpop.permute.xlu0 %1495
    %v1498 = vadd.f32 %v1488, %v1496
    %v1499 = vtanh.pop %v1498
    %1501 = vrot.lane.b32.xlu0 %v1499, 64
    %v1502 = vpop.permute.xlu0 %1501
    %v1504 = vmul.f32 %v1483, %v1502
    %1506 = vrot.lane.b32.xlu0 %v1477, 32
    %v1507 = vpop.permute.xlu0 %1506
    %v1508 = vsel %vm525, %v1507, 0
    %1510 = vmatprep.subr.mxu0 0.0
    %1511 = vmatpush1.msra.mxu0 %v497
    %1512 = vmatprep.subr.mxu0 0.0
    %1513 = vmatpush1.msra.mxu0 %v498
    %1514 = vmatprep.subr.mxu0 0.0
    %1515 = vmatpush1.msra.mxu0 %v499
    %1516 = vmatprep.subr.mxu0 0.0
    %1517 = vmatpush1.msra.mxu0 %v500
    %1518 = vmatprep.subr.mxu0 0.0
    %1519 = vmatpush1.msra.mxu0 0.0
    %1520 = vmatprep.subr.mxu0 0.0
    %1521 = vmatpush1.msra.mxu0 0.0
    %1522 = vmatprep.subr.mxu0 0.0
    %1523 = vmatpush1.msra.mxu0 0.0
    %1524 = vmatprep.subr.mxu0 0.0
    %1525 = vmatpush1.msra.mxu0 0.0
    %1526 = vmatprep.subr.mxu0 0.0
    %1527 = vmatpush1.msra.mxu0 0.0
    %1528 = vmatprep.subr.mxu0 0.0
    %1529 = vmatpush1.msra.mxu0 0.0
    %1530 = vmatprep.subr.mxu0 0.0
    %1531 = vmatpush1.msra.mxu0 0.0
    %1532 = vmatprep.subr.mxu0 0.0
    %1533 = vmatpush1.msra.mxu0 0.0
    %1534 = vmatprep.subr.mxu0 0.0
    %1535 = vmatpush1.msra.mxu0 0.0
    %1536 = vmatprep.subr.mxu0 0.0
    %1537 = vmatpush1.msra.mxu0 0.0
    %1538 = vmatprep.subr.mxu0 0.0
    %1539 = vmatpush1.msra.mxu0 0.0
    %1540 = vmatprep.subr.mxu0 0.0
    %1541 = vmatpush1.msra.mxu0 0.0
    %1542 = vmatprep.subr.mxu0 0.0
    %1543 = vmatpush1.msra.mxu0 0.0
    %1544 = vmatprep.subr.mxu0 0.0
    %1545 = vmatpush1.msra.mxu0 0.0
    %1546 = vmatprep.subr.mxu0 0.0
    %1547 = vmatpush1.msra.mxu0 0.0
    %1548 = vmatprep.subr.mxu0 0.0
    %1549 = vmatpush1.msra.mxu0 0.0
    %1550 = vmatprep.subr.mxu0 0.0
    %1551 = vmatpush1.msra.mxu0 0.0
    %1552 = vmatprep.subr.mxu0 0.0
    %1553 = vmatpush1.msra.mxu0 0.0
    %1554 = vmatprep.subr.mxu0 0.0
    %1555 = vmatpush1.msra.mxu0 0.0
    %1556 = vmatprep.subr.mxu0 0.0
    %1557 = vmatpush1.msra.mxu0 0.0
    %1558 = vmatprep.subr.mxu0 0.0
    %1559 = vmatpush1.msra.mxu0 0.0
    %1560 = vmatprep.subr.mxu0 0.0
    %1561 = vmatpush1.msra.mxu0 0.0
    %1562 = vmatprep.subr.mxu0 0.0
    %1563 = vmatpush1.msra.mxu0 0.0
    %1564 = vmatprep.subr.mxu0 0.0
    %1565 = vmatpush1.msra.mxu0 0.0
    %1566 = vmatprep.subr.mxu0 0.0
    %1567 = vmatpush1.msra.mxu0 0.0
    %1568 = vmatprep.subr.mxu0 0.0
    %1569 = vmatpush1.msra.mxu0 0.0
    %1570 = vmatprep.subr.mxu0 0.0
    %1571 = vmatpush1.msra.mxu0 0.0
    %1572 = vmatprep.subr.mxu0 0.0
    %1573 = vmatpush1.msra.mxu0 0.0
    %1574 = vmatprep.mubr.f32.mxu0 0.0
    %1575 = vmatmul.mubr.f32.gmra.mrb[0].mxu0 %v1508
    %v1576 = vpop.f32.mrb[0].mxu0
    %v1577 = vadd.f32 0.0, %v1576
    %v1578 = vpop.f32.mrb[0].mxu0
    %1579 = vdwg.mxu0
    %v1581 = vrot.slane %v1577, 6
    %v1583 = vadd.f32 %v605, %v1581
    %v1585 = vrot.slane %v1504, 6
    %1586 = vrot.lane.b32.xlu0 %v1585, 32
    %v1587 = vpop.permute.xlu0 %1586
    %v1588 = vsel %vm525, %v1587, 0
    %1590 = vmatprep.subr.mxu0 0.0
    %1591 = vmatpush1.msra.mxu0 %v501
    %1592 = vmatprep.subr.mxu0 0.0
    %1593 = vmatpush1.msra.mxu0 %v502
    %1594 = vmatprep.subr.mxu0 0.0
    %1595 = vmatpush1.msra.mxu0 %v503
    %1596 = vmatprep.subr.mxu0 0.0
    %1597 = vmatpush1.msra.mxu0 %v504
    %1598 = vmatprep.subr.mxu0 0.0
    %1599 = vmatpush1.msra.mxu0 0.0
    %1600 = vmatprep.subr.mxu0 0.0
    %1601 = vmatpush1.msra.mxu0 0.0
    %1602 = vmatprep.subr.mxu0 0.0
    %1603 = vmatpush1.msra.mxu0 0.0
    %1604 = vmatprep.subr.mxu0 0.0
    %1605 = vmatpush1.msra.mxu0 0.0
    %1606 = vmatprep.subr.mxu0 0.0
    %1607 = vmatpush1.msra.mxu0 0.0
    %1608 = vmatprep.subr.mxu0 0.0
    %1609 = vmatpush1.msra.mxu0 0.0
    %1610 = vmatprep.subr.mxu0 0.0
    %1611 = vmatpush1.msra.mxu0 0.0
    %1612 = vmatprep.subr.mxu0 0.0
    %1613 = vmatpush1.msra.mxu0 0.0
    %1614 = vmatprep.subr.mxu0 0.0
    %1615 = vmatpush1.msra.mxu0 0.0
    %1616 = vmatprep.subr.mxu0 0.0
    %1617 = vmatpush1.msra.mxu0 0.0
    %1618 = vmatprep.subr.mxu0 0.0
    %1619 = vmatpush1.msra.mxu0 0.0
    %1620 = vmatprep.subr.mxu0 0.0
    %1621 = vmatpush1.msra.mxu0 0.0
    %1622 = vmatprep.subr.mxu0 0.0
    %1623 = vmatpush1.msra.mxu0 0.0
    %1624 = vmatprep.subr.mxu0 0.0
    %1625 = vmatpush1.msra.mxu0 0.0
    %1626 = vmatprep.subr.mxu0 0.0
    %1627 = vmatpush1.msra.mxu0 0.0
    %1628 = vmatprep.subr.mxu0 0.0
    %1629 = vmatpush1.msra.mxu0 0.0
    %1630 = vmatprep.subr.mxu0 0.0
    %1631 = vmatpush1.msra.mxu0 0.0
    %1632 = vmatprep.subr.mxu0 0.0
    %1633 = vmatpush1.msra.mxu0 0.0
    %1634 = vmatprep.subr.mxu0 0.0
    %1635 = vmatpush1.msra.mxu0 0.0
    %1636 = vmatprep.subr.mxu0 0.0
    %1637 = vmatpush1.msra.mxu0 0.0
    %1638 = vmatprep.subr.mxu0 0.0
    %1639 = vmatpush1.msra.mxu0 0.0
    %1640 = vmatprep.subr.mxu0 0.0
    %1641 = vmatpush1.msra.mxu0 0.0
    %1642 = vmatprep.subr.mxu0 0.0
    %1643 = vmatpush1.msra.mxu0 0.0
    %1644 = vmatprep.subr.mxu0 0.0
    %1645 = vmatpush1.msra.mxu0 0.0
    %1646 = vmatprep.subr.mxu0 0.0
    %1647 = vmatpush1.msra.mxu0 0.0
    %1648 = vmatprep.subr.mxu0 0.0
    %1649 = vmatpush1.msra.mxu0 0.0
    %1650 = vmatprep.subr.mxu0 0.0
    %1651 = vmatpush1.msra.mxu0 0.0
    %1652 = vmatprep.subr.mxu0 0.0
    %1653 = vmatpush1.msra.mxu0 0.0
    %1654 = vmatprep.mubr.f32.mxu0 0.0
    %1655 = vmatmul.mubr.f32.gmra.mrb[0].mxu0 %v1588
    %v1656 = vpop.f32.mrb[0].mxu0
    %v1657 = vadd.f32 0.0, %v1656
    %v1658 = vpop.f32.mrb[0].mxu0
    %1659 = vdwg.mxu0
    %v1661 = vrot.slane %v1657, 4
    %v1663 = vadd.f32 %v601, %v1661
    %v1664 = vxor.u32 %v1583, 2147483648
    %v1665 = vmul.f32 %v1664, 1.442695
    %v1666 = vpow.pop %v1665
    %v1667 = vadd.f32 %v1666, 1.0
    %v1668 = vrcp.pop %v1667
    %v1669 = vmul.f32 1.0, %v1668
    %v1670 = vtanh.pop %v1583
    %v1672 = vrot.slane %v1471, 6
    %v1674 = vmul.f32 %v1669, %v1672
    %1676 = vrot.lane.b32.xlu0 %v1670, 64
    %v1677 = vpop.permute.xlu0 %1676
    %v1679 = vmul.f32 %v1669, %v1677
    %1681 = vrot.lane.b32.xlu0 %v1679, 32
    %v1682 = vpop.permute.xlu0 %1681
    %v1684 = vadd.f32 %v1674, %v1682
    %v1685 = vtanh.pop %v1684
    %1687 = vrot.lane.b32.xlu0 %v1685, 64
    %v1688 = vpop.permute.xlu0 %1687
    %v1690 = vmul.f32 %v1669, %v1688
    %v1691 = vxor.u32 %v1663, 2147483648
    %v1692 = vmul.f32 %v1691, 1.442695
    %v1693 = vpow.pop %v1692
    %v1694 = vadd.f32 %v1693, 1.0
    %v1695 = vrcp.pop %v1694
    %v1696 = vmul.f32 1.0, %v1695
    %v1697 = vtanh.pop %v1663
    %v1699 = vrot.slane %v1498, 2
    %v1701 = vmul.f32 %v1696, %v1699
    %1703 = vrot.lane.b32.xlu0 %v1697, 64
    %v1704 = vpop.permute.xlu0 %1703
    %v1706 = vmul.f32 %v1696, %v1704
    %1708 = vrot.lane.b32.xlu0 %v1706, 32
    %v1709 = vpop.permute.xlu0 %1708
    %v1711 = vadd.f32 %v1701, %v1709
    %v1712 = vtanh.pop %v1711
    %1714 = vrot.lane.b32.xlu0 %v1712, 64
    %v1715 = vpop.permute.xlu0 %1714
    %v1717 = vmul.f32 %v1696, %v1715
    %v1719 = vrot.slane %v1690, 2
    %1720 = vrot.lane.b32.xlu0 %v1719, 32
    %v1721 = vpop.permute.xlu0 %1720
    %v1722 = vsel %vm525, %v1721, 0
    %1724 = vmatprep.subr.mxu0 0.0
    %1725 = vmatpush1.msra.mxu0 %v497
    %1726 = vmatprep.subr.mxu0 0.0
    %1727 = vmatpush1.msra.mxu0 %v498
    %1728 = vmatprep.subr.mxu0 0.0
    %1729 = vmatpush1.msra.mxu0 %v499
    %1730 = vmatprep.subr.mxu0 0.0
    %1731 = vmatpush1.msra.mxu0 %v500
    %1732 = vmatprep.subr.mxu0 0.0
    %1733 = vmatpush1.msra.mxu0 0.0
    %1734 = vmatprep.subr.mxu0 0.0
    %1735 = vmatpush1.msra.mxu0 0.0
    %1736 = vmatprep.subr.mxu0 0.0
    %1737 = vmatpush1.msra.mxu0 0.0
    %1738 = vmatprep.subr.mxu0 0.0
    %1739 = vmatpush1.msra.mxu0 0.0
    %1740 = vmatprep.subr.mxu0 0.0
    %1741 = vmatpush1.msra.mxu0 0.0
    %1742 = vmatprep.subr.mxu0 0.0
    %1743 = vmatpush1.msra.mxu0 0.0
    %1744 = vmatprep.subr.mxu0 0.0
    %1745 = vmatpush1.msra.mxu0 0.0
    %1746 = vmatprep.subr.mxu0 0.0
    %1747 = vmatpush1.msra.mxu0 0.0
    %1748 = vmatprep.subr.mxu0 0.0
    %1749 = vmatpush1.msra.mxu0 0.0
    %1750 = vmatprep.subr.mxu0 0.0
    %1751 = vmatpush1.msra.mxu0 0.0
    %1752 = vmatprep.subr.mxu0 0.0
    %1753 = vmatpush1.msra.mxu0 0.0
    %1754 = vmatprep.subr.mxu0 0.0
    %1755 = vmatpush1.msra.mxu0 0.0
    %1756 = vmatprep.subr.mxu0 0.0
    %1757 = vmatpush1.msra.mxu0 0.0
    %1758 = vmatprep.subr.mxu0 0.0
    %1759 = vmatpush1.msra.mxu0 0.0
    %1760 = vmatprep.subr.mxu0 0.0
    %1761 = vmatpush1.msra.mxu0 0.0
    %1762 = vmatprep.subr.mxu0 0.0
    %1763 = vmatpush1.msra.mxu0 0.0
    %1764 = vmatprep.subr.mxu0 0.0
    %1765 = vmatpush1.msra.mxu0 0.0
    %1766 = vmatprep.subr.mxu0 0.0
    %1767 = vmatpush1.msra.mxu0 0.0
    %1768 = vmatprep.subr.mxu0 0.0
    %1769 = vmatpush1.msra.mxu0 0.0
    %1770 = vmatprep.subr.mxu0 0.0
    %1771 = vmatpush1.msra.mxu0 0.0
    %1772 = vmatprep.subr.mxu0 0.0
    %1773 = vmatpush1.msra.mxu0 0.0
    %1774 = vmatprep.subr.mxu0 0.0
    %1775 = vmatpush1.msra.mxu0 0.0
    %1776 = vmatprep.subr.mxu0 0.0
    %1777 = vmatpush1.msra.mxu0 0.0
    %1778 = vmatprep.subr.mxu0 0.0
    %1779 = vmatpush1.msra.mxu0 0.0
    %1780 = vmatprep.subr.mxu0 0.0
    %1781 = vmatpush1.msra.mxu0 0.0
    %1782 = vmatprep.subr.mxu0 0.0
    %1783 = vmatpush1.msra.mxu0 0.0
    %1784 = vmatprep.subr.mxu0 0.0
    %1785 = vmatpush1.msra.mxu0 0.0
    %1786 = vmatprep.subr.mxu0 0.0
    %1787 = vmatpush1.msra.mxu0 0.0
    %1788 = vmatprep.mubr.f32.mxu0 0.0
    %1789 = vmatmul.mubr.f32.gmra.mrb[0].mxu0 %v1722
    %v1790 = vpop.f32.mrb[0].mxu0
    %v1791 = vadd.f32 0.0, %v1790
    %v1792 = vpop.f32.mrb[0].mxu0
    %1793 = vdwg.mxu0
    %v1795 = vrot.slane %v1791, 4
    %v1797 = vadd.f32 %v605, %v1795
    %v1799 = vrot.slane %v1717, 4
    %1800 = vrot.lane.b32.xlu0 %v1799, 32
    %v1801 = vpop.permute.xlu0 %1800
    %v1802 = vsel %vm525, %v1801, 0
    %1804 = vmatprep.subr.mxu0 0.0
    %1805 = vmatpush1.msra.mxu0 %v501
    %1806 = vmatprep.subr.mxu0 0.0
    %1807 = vmatpush1.msra.mxu0 %v502
    %1808 = vmatprep.subr.mxu0 0.0
    %1809 = vmatpush1.msra.mxu0 %v503
    %1810 = vmatprep.subr.mxu0 0.0
    %1811 = vmatpush1.msra.mxu0 %v504
    %1812 = vmatprep.subr.mxu0 0.0
    %1813 = vmatpush1.msra.mxu0 0.0
    %1814 = vmatprep.subr.mxu0 0.0
    %1815 = vmatpush1.msra.mxu0 0.0
    %1816 = vmatprep.subr.mxu0 0.0
    %1817 = vmatpush1.msra.mxu0 0.0
    %1818 = vmatprep.subr.mxu0 0.0
    %1819 = vmatpush1.msra.mxu0 0.0
    %1820 = vmatprep.subr.mxu0 0.0
    %1821 = vmatpush1.msra.mxu0 0.0
    %1822 = vmatprep.subr.mxu0 0.0
    %1823 = vmatpush1.msra.mxu0 0.0
    %1824 = vmatprep.subr.mxu0 0.0
    %1825 = vmatpush1.msra.mxu0 0.0
    %1826 = vmatprep.subr.mxu0 0.0
    %1827 = vmatpush1.msra.mxu0 0.0
    %1828 = vmatprep.subr.mxu0 0.0
    %1829 = vmatpush1.msra.mxu0 0.0
    %1830 = vmatprep.subr.mxu0 0.0
    %1831 = vmatpush1.msra.mxu0 0.0
    %1832 = vmatprep.subr.mxu0 0.0
    %1833 = vmatpush1.msra.mxu0 0.0
    %1834 = vmatprep.subr.mxu0 0.0
    %1835 = vmatpush1.msra.mxu0 0.0
    %1836 = vmatprep.subr.mxu0 0.0
    %1837 = vmatpush1.msra.mxu0 0.0
    %1838 = vmatprep.subr.mxu0 0.0
    %1839 = vmatpush1.msra.mxu0 0.0
    %1840 = vmatprep.subr.mxu0 0.0
    %1841 = vmatpush1.msra.mxu0 0.0
    %1842 = vmatprep.subr.mxu0 0.0
    %1843 = vmatpush1.msra.mxu0 0.0
    %1844 = vmatprep.subr.mxu0 0.0
    %1845 = vmatpush1.msra.mxu0 0.0
    %1846 = vmatprep.subr.mxu0 0.0
    %1847 = vmatpush1.msra.mxu0 0.0
    %1848 = vmatprep.subr.mxu0 0.0
    %1849 = vmatpush1.msra.mxu0 0.0
    %1850 = vmatprep.subr.mxu0 0.0
    %1851 = vmatpush1.msra.mxu0 0.0
    %1852 = vmatprep.subr.mxu0 0.0
    %1853 = vmatpush1.msra.mxu0 0.0
    %1854 = vmatprep.subr.mxu0 0.0
    %1855 = vmatpush1.msra.mxu0 0.0
    %1856 = vmatprep.subr.mxu0 0.0
    %1857 = vmatpush1.msra.mxu0 0.0
    %1858 = vmatprep.subr.mxu0 0.0
    %1859 = vmatpush1.msra.mxu0 0.0
    %1860 = vmatprep.subr.mxu0 0.0
    %1861 = vmatpush1.msra.mxu0 0.0
    %1862 = vmatprep.subr.mxu0 0.0
    %1863 = vmatpush1.msra.mxu0 0.0
    %1864 = vmatprep.subr.mxu0 0.0
    %1865 = vmatpush1.msra.mxu0 0.0
    %1866 = vmatprep.subr.mxu0 0.0
    %1867 = vmatpush1.msra.mxu0 0.0
    %1868 = vmatprep.mubr.f32.mxu0 0.0
    %1869 = vmatmul.mubr.f32.gmra.mrb[0].mxu0 %v1802
    %v1870 = vpop.f32.mrb[0].mxu0
    %v1871 = vadd.f32 0.0, %v1870
    %v1872 = vpop.f32.mrb[0].mxu0
    %1873 = vdwg.mxu0
    %v1875 = vrot.slane %v1871, 6
    %v1877 = vadd.f32 %v601, %v1875
    %v1878 = vxor.u32 %v1797, 2147483648
    %v1879 = vmul.f32 %v1878, 1.442695
    %v1880 = vpow.pop %v1879
    %v1881 = vadd.f32 %v1880, 1.0
    %v1882 = vrcp.pop %v1881
    %v1883 = vmul.f32 1.0, %v1882
    %v1884 = vtanh.pop %v1797
    %v1886 = vrot.slane %v1684, 6
    %v1888 = vmul.f32 %v1883, %v1886
    %1890 = vrot.lane.b32.xlu0 %v1884, 64
    %v1891 = vpop.permute.xlu0 %1890
    %v1893 = vmul.f32 %v1883, %v1891
    %1895 = vrot.lane.b32.xlu0 %v1893, 32
    %v1896 = vpop.permute.xlu0 %1895
    %v1898 = vadd.f32 %v1888, %v1896
    %v1899 = vtanh.pop %v1898
    %1901 = vrot.lane.b32.xlu0 %v1899, 64
    %v1902 = vpop.permute.xlu0 %1901
    %v1904 = vmul.f32 %v1883, %v1902
    %v1905 = vxor.u32 %v1877, 2147483648
    %v1906 = vmul.f32 %v1905, 1.442695
    %v1907 = vpow.pop %v1906
    %v1908 = vadd.f32 %v1907, 1.0
    %v1909 = vrcp.pop %v1908
    %v1910 = vmul.f32 1.0, %v1909
    %v1911 = vtanh.pop %v1877
    %v1913 = vrot.slane %v1711, 2
    %v1915 = vmul.f32 %v1910, %v1913
    %1917 = vrot.lane.b32.xlu0 %v1911, 64
    %v1918 = vpop.permute.xlu0 %1917
    %v1920 = vmul.f32 %v1910, %v1918
    %1922 = vrot.lane.b32.xlu0 %v1920, 32
    %v1923 = vpop.permute.xlu0 %1922
    %v1925 = vadd.f32 %v1915, %v1923
    %v1926 = vtanh.pop %v1925
    %1928 = vrot.lane.b32.xlu0 %v1926, 64
    %v1929 = vpop.permute.xlu0 %1928
    %v1931 = vmul.f32 %v1910, %v1929
    %v1933 = vrot.slane %v1904, 4
    %1934 = vrot.lane.b32.xlu0 %v1933, 32
    %v1935 = vpop.permute.xlu0 %1934
    %v1936 = vsel %vm525, %v1935, 0
    %1938 = vmatprep.subr.mxu0 0.0
    %1939 = vmatpush1.msra.mxu0 %v497
    %1940 = vmatprep.subr.mxu0 0.0
    %1941 = vmatpush1.msra.mxu0 %v498
    %1942 = vmatprep.subr.mxu0 0.0
    %1943 = vmatpush1.msra.mxu0 %v499
    %1944 = vmatprep.subr.mxu0 0.0
    %1945 = vmatpush1.msra.mxu0 %v500
    %1946 = vmatprep.subr.mxu0 0.0
    %1947 = vmatpush1.msra.mxu0 0.0
    %1948 = vmatprep.subr.mxu0 0.0
    %1949 = vmatpush1.msra.mxu0 0.0
    %1950 = vmatprep.subr.mxu0 0.0
    %1951 = vmatpush1.msra.mxu0 0.0
    %1952 = vmatprep.subr.mxu0 0.0
    %1953 = vmatpush1.msra.mxu0 0.0
    %1954 = vmatprep.subr.mxu0 0.0
    %1955 = vmatpush1.msra.mxu0 0.0
    %1956 = vmatprep.subr.mxu0 0.0
    %1957 = vmatpush1.msra.mxu0 0.0
    %1958 = vmatprep.subr.mxu0 0.0
    %1959 = vmatpush1.msra.mxu0 0.0
    %1960 = vmatprep.subr.mxu0 0.0
    %1961 = vmatpush1.msra.mxu0 0.0
    %1962 = vmatprep.subr.mxu0 0.0
    %1963 = vmatpush1.msra.mxu0 0.0
    %1964 = vmatprep.subr.mxu0 0.0
    %1965 = vmatpush1.msra.mxu0 0.0
    %1966 = vmatprep.subr.mxu0 0.0
    %1967 = vmatpush1.msra.mxu0 0.0
    %1968 = vmatprep.subr.mxu0 0.0
    %1969 = vmatpush1.msra.mxu0 0.0
    %1970 = vmatprep.subr.mxu0 0.0
    %1971 = vmatpush1.msra.mxu0 0.0
    %1972 = vmatprep.subr.mxu0 0.0
    %1973 = vmatpush1.msra.mxu0 0.0
    %1974 = vmatprep.subr.mxu0 0.0
    %1975 = vmatpush1.msra.mxu0 0.0
    %1976 = vmatprep.subr.mxu0 0.0
    %1977 = vmatpush1.msra.mxu0 0.0
    %1978 = vmatprep.subr.mxu0 0.0
    %1979 = vmatpush1.msra.mxu0 0.0
    %1980 = vmatprep.subr.mxu0 0.0
    %1981 = vmatpush1.msra.mxu0 0.0
    %1982 = vmatprep.subr.mxu0 0.0
    %1983 = vmatpush1.msra.mxu0 0.0
    %1984 = vmatprep.subr.mxu0 0.0
    %1985 = vmatpush1.msra.mxu0 0.0
    %1986 = vmatprep.subr.mxu0 0.0
    %1987 = vmatpush1.msra.mxu0 0.0
    %1988 = vmatprep.subr.mxu0 0.0
    %1989 = vmatpush1.msra.mxu0 0.0
    %1990 = vmatprep.subr.mxu0 0.0
    %1991 = vmatpush1.msra.mxu0 0.0
    %1992 = vmatprep.subr.mxu0 0.0
    %1993 = vmatpush1.msra.mxu0 0.0
    %1994 = vmatprep.subr.mxu0 0.0
    %1995 = vmatpush1.msra.mxu0 0.0
    %1996 = vmatprep.subr.mxu0 0.0
    %1997 = vmatpush1.msra.mxu0 0.0
    %1998 = vmatprep.subr.mxu0 0.0
    %1999 = vmatpush1.msra.mxu0 0.0
    %2000 = vmatprep.subr.mxu0 0.0
    %2001 = vmatpush1.msra.mxu0 0.0
    %2002 = vmatprep.mubr.f32.mxu0 0.0
    %2003 = vmatmul.mubr.f32.gmra.mrb[0].mxu0 %v1936
    %v2004 = vpop.f32.mrb[0].mxu0
    %v2005 = vadd.f32 0.0, %v2004
    %v2006 = vpop.f32.mrb[0].mxu0
    %2007 = vdwg.mxu0
    %v2009 = vrot.slane %v2005, 2
    %v2011 = vadd.f32 %v605, %v2009
    %v2013 = vrot.slane %v1931, 2
    %2014 = vrot.lane.b32.xlu0 %v2013, 32
    %v2015 = vpop.permute.xlu0 %2014
    %v2016 = vsel %vm525, %v2015, 0
    %2018 = vmatprep.subr.mxu0 0.0
    %2019 = vmatpush1.msra.mxu0 %v501
    %2020 = vmatprep.subr.mxu0 0.0
    %2021 = vmatpush1.msra.mxu0 %v502
    %2022 = vmatprep.subr.mxu0 0.0
    %2023 = vmatpush1.msra.mxu0 %v503
    %2024 = vmatprep.subr.mxu0 0.0
    %2025 = vmatpush1.msra.mxu0 %v504
    %2026 = vmatprep.subr.mxu0 0.0
    %2027 = vmatpush1.msra.mxu0 0.0
    %2028 = vmatprep.subr.mxu0 0.0
    %2029 = vmatpush1.msra.mxu0 0.0
    %2030 = vmatprep.subr.mxu0 0.0
    %2031 = vmatpush1.msra.mxu0 0.0
    %2032 = vmatprep.subr.mxu0 0.0
    %2033 = vmatpush1.msra.mxu0 0.0
    %2034 = vmatprep.subr.mxu0 0.0
    %2035 = vmatpush1.msra.mxu0 0.0
    %2036 = vmatprep.subr.mxu0 0.0
    %2037 = vmatpush1.msra.mxu0 0.0
    %2038 = vmatprep.subr.mxu0 0.0
    %2039 = vmatpush1.msra.mxu0 0.0
    %2040 = vmatprep.subr.mxu0 0.0
    %2041 = vmatpush1.msra.mxu0 0.0
    %2042 = vmatprep.subr.mxu0 0.0
    %2043 = vmatpush1.msra.mxu0 0.0
    %2044 = vmatprep.subr.mxu0 0.0
    %2045 = vmatpush1.msra.mxu0 0.0
    %2046 = vmatprep.subr.mxu0 0.0
    %2047 = vmatpush1.msra.mxu0 0.0
    %2048 = vmatprep.subr.mxu0 0.0
    %2049 = vmatpush1.msra.mxu0 0.0
    %2050 = vmatprep.subr.mxu0 0.0
    %2051 = vmatpush1.msra.mxu0 0.0
    %2052 = vmatprep.subr.mxu0 0.0
    %2053 = vmatpush1.msra.mxu0 0.0
    %2054 = vmatprep.subr.mxu0 0.0
    %2055 = vmatpush1.msra.mxu0 0.0
    %2056 = vmatprep.subr.mxu0 0.0
    %2057 = vmatpush1.msra.mxu0 0.0
    %2058 = vmatprep.subr.mxu0 0.0
    %2059 = vmatpush1.msra.mxu0 0.0
    %2060 = vmatprep.subr.mxu0 0.0
    %2061 = vmatpush1.msra.mxu0 0.0
    %2062 = vmatprep.subr.mxu0 0.0
    %2063 = vmatpush1.msra.mxu0 0.0
    %2064 = vmatprep.subr.mxu0 0.0
    %2065 = vmatpush1.msra.mxu0 0.0
    %2066 = vmatprep.subr.mxu0 0.0
    %2067 = vmatpush1.msra.mxu0 0.0
    %2068 = vmatprep.subr.mxu0 0.0
    %2069 = vmatpush1.msra.mxu0 0.0
    %2070 = vmatprep.subr.mxu0 0.0
    %2071 = vmatpush1.msra.mxu0 0.0
    %2072 = vmatprep.subr.mxu0 0.0
    %2073 = vmatpush1.msra.mxu0 0.0
    %2074 = vmatprep.subr.mxu0 0.0
    %2075 = vmatpush1.msra.mxu0 0.0
    %2076 = vmatprep.subr.mxu0 0.0
    %2077 = vmatpush1.msra.mxu0 0.0
    %2078 = vmatprep.subr.mxu0 0.0
    %2079 = vmatpush1.msra.mxu0 0.0
    %2080 = vmatprep.subr.mxu0 0.0
    %2081 = vmatpush1.msra.mxu0 0.0
    %2082 = vmatprep.mubr.f32.mxu0 0.0
    %2083 = vmatmul.mubr.f32.gmra.mrb[0].mxu0 %v2016
    %v2084 = vpop.f32.mrb[0].mxu0
    %v2085 = vadd.f32 0.0, %v2084
    %v2086 = vpop.f32.mrb[0].mxu0
    %2087 = vdwg.mxu0
    %v2088 = vadd.f32 %v601, %v2085
    %v2089 = vxor.u32 %v2011, 2147483648
    %v2090 = vmul.f32 %v2089, 1.442695
    %v2091 = vpow.pop %v2090
    %v2092 = vadd.f32 %v2091, 1.0
    %v2093 = vrcp.pop %v2092
    %v2094 = vmul.f32 1.0, %v2093
    %v2095 = vtanh.pop %v2011
    %v2097 = vrot.slane %v1898, 6
    %v2099 = vmul.f32 %v2094, %v2097
    %2101 = vrot.lane.b32.xlu0 %v2095, 64
    %v2102 = vpop.permute.xlu0 %2101
    %v2104 = vmul.f32 %v2094, %v2102
    %2106 = vrot.lane.b32.xlu0 %v2104, 32
    %v2107 = vpop.permute.xlu0 %2106
    %v2109 = vadd.f32 %v2099, %v2107
    %v2110 = vtanh.pop %v2109
    %2112 = vrot.lane.b32.xlu0 %v2110, 64
    %v2113 = vpop.permute.xlu0 %2112
    %v2115 = vmul.f32 %v2094, %v2113
    %v2116 = vxor.u32 %v2088, 2147483648
    %v2117 = vmul.f32 %v2116, 1.442695
    %v2118 = vpow.pop %v2117
    %v2119 = vadd.f32 %v2118, 1.0
    %v2120 = vrcp.pop %v2119
    %v2121 = vmul.f32 1.0, %v2120
    %v2122 = vtanh.pop %v2088
    %v2124 = vrot.slane %v1925, 2
    %v2126 = vmul.f32 %v2121, %v2124
    %2128 = vrot.lane.b32.xlu0 %v2122, 64
    %v2129 = vpop.permute.xlu0 %2128
    %v2131 = vmul.f32 %v2121, %v2129
    %2133 = vrot.lane.b32.xlu0 %v2131, 32
    %v2134 = vpop.permute.xlu0 %2133
    %v2136 = vadd.f32 %v2126, %v2134
    %v2137 = vtanh.pop %v2136
    %2139 = vrot.lane.b32.xlu0 %v2137, 64
    %v2140 = vpop.permute.xlu0 %2139
    %v2142 = vmul.f32 %v2121, %v2140
    %2145 = vrot.lane.b32.xlu0 %v2142, 64
    %v2146 = vpop.permute.xlu0 %2145
    %v2148 = vsel %vm525, %v659, %v2146
    %2149 = vrot.lane.b32.xlu0 %v842, 32
    %v2150 = vpop.permute.xlu0 %2149
    %2152 = vrot.lane.b32.xlu0 %v1931, 64
    %v2153 = vpop.permute.xlu0 %2152
    %v2155 = vsel %vm525, %v2150, %v2153
    %2156 = vrot.lane.b32.xlu0 %v1056, 32
    %v2157 = vpop.permute.xlu0 %2156
    %2159 = vrot.lane.b32.xlu0 %v1717, 64
    %v2160 = vpop.permute.xlu0 %2159
    %v2162 = vsel %vm525, %v2157, %v2160
    %2163 = vrot.lane.b32.xlu0 %v1267, 32
    %v2164 = vpop.permute.xlu0 %2163
    %2166 = vrot.lane.b32.xlu0 %v1504, 64
    %v2167 = vpop.permute.xlu0 %2166
    %v2169 = vsel %vm525, %v2164, %v2167
    %2171 = vrot.lane.b32.xlu0 %v1294, 64
    %v2172 = vpop.permute.xlu0 %2171
    %v2174 = vsel %vm525, %v1507, %v2172
    %2175 = vrot.lane.b32.xlu0 %v1690, 32
    %v2176 = vpop.permute.xlu0 %2175
    %2178 = vrot.lane.b32.xlu0 %v1083, 64
    %v2179 = vpop.permute.xlu0 %2178
    %v2181 = vsel %vm525, %v2176, %v2179
    %2182 = vrot.lane.b32.xlu0 %v1904, 32
    %v2183 = vpop.permute.xlu0 %2182
    %2185 = vrot.lane.b32.xlu0 %v869, 64
    %v2186 = vpop.permute.xlu0 %2185
    %v2188 = vsel %vm525, %v2183, %v2186
    %2190 = vrot.lane.b32.xlu0 %v2115, 32
    %v2191 = vpop.permute.xlu0 %2190
    %2193 = vrot.lane.b32.xlu0 %v656, 64
    %v2194 = vpop.permute.xlu0 %2193
    %v2196 = vsel %vm525, %v2191, %v2194
    %v2197 = vsel %vm303, %v2148, %v2155
    %v2198 = vsel %vm305, %v2197, %v2162
    %v2199 = vsel %vm307, %v2198, %v2169
    %v2200 = vsel %vm303, %v2174, %v2181
    %v2201 = vsel %vm305, %v2200, %v2188
    %v2202 = vsel %vm307, %v2201, %v2196
    %v2203 = vld [vmem:[#allocation18] sm:$0xff]
    %v2204 = vld [vmem:[#allocation18 + $0x8] sm:$0xff]
    %v2205 = vld [vmem:[#allocation20] sm:$0xff]
    %v2206 = vld [vmem:[#allocation20 + $0x8] sm:$0xff]
    %v2207 = vld [vmem:[#allocation15] sm:$0xff]
    %v2208 = vld [vmem:[#allocation15 + $0x8] sm:$0xff]
    %v2209 = vld [vmem:[#allocation15 + $0x10] sm:$0xff]
    %v2210 = vld [vmem:[#allocation15 + $0x18] sm:$0xff]
    %v2211 = vld [vmem:[#allocation15 + $0x20] sm:$0xff]
    %v2212 = vld [vmem:[#allocation15 + $0x28] sm:$0xff]
    %v2213 = vld [vmem:[#allocation15 + $0x30] sm:$0xff]
    %v2214 = vld [vmem:[#allocation15 + $0x38] sm:$0xff]
    %v2215 = vld [vmem:[#allocation17] sm:$0x1]
    %v2217 = vlaneseq
    %v2218 = vshrl.u32 %v2217, 7
    %v2219 = vsub.s32 0, %v2218
    %v2220 = vrot.slane %v2215, %v2219
    %vm2222 = vcmask 523264
    %v2224 = vsel %vm2222, %v2199, 0
    %v2227 = vsel %vm2222, %v2202, 0
    %2229 = vmatprep.subr.mxu0 0.0
    %2230 = vmatpush1.msra.mxu0 %v2207
    %2231 = vmatprep.subr.mxu0 0.0
    %2232 = vmatpush1.msra.mxu0 %v2208
    %2233 = vmatprep.subr.mxu0 0.0
    %2234 = vmatpush1.msra.mxu0 %v2209
    %2235 = vmatprep.subr.mxu0 0.0
    %2236 = vmatpush1.msra.mxu0 %v2210
    %2237 = vmatprep.subr.mxu0 0.0
    %2238 = vmatpush1.msra.mxu0 %v2211
    %2239 = vmatprep.subr.mxu0 0.0
    %2240 = vmatpush1.msra.mxu0 %v2212
    %2241 = vmatprep.subr.mxu0 0.0
    %2242 = vmatpush1.msra.mxu0 %v2213
    %2243 = vmatprep.subr.mxu0 0.0
    %2244 = vmatpush1.msra.mxu0 %v2214
    %2245 = vmatprep.subr.mxu0 0.0
    %2246 = vmatpush1.msra.mxu0 0.0
    %2247 = vmatprep.subr.mxu0 0.0
    %2248 = vmatpush1.msra.mxu0 0.0
    %2249 = vmatprep.subr.mxu0 0.0
    %2250 = vmatpush1.msra.mxu0 0.0
    %2251 = vmatprep.subr.mxu0 0.0
    %2252 = vmatpush1.msra.mxu0 0.0
    %2253 = vmatprep.subr.mxu0 0.0
    %2254 = vmatpush1.msra.mxu0 0.0
    %2255 = vmatprep.subr.mxu0 0.0
    %2256 = vmatpush1.msra.mxu0 0.0
    %2257 = vmatprep.subr.mxu0 0.0
    %2258 = vmatpush1.msra.mxu0 0.0
    %2259 = vmatprep.subr.mxu0 0.0
    %2260 = vmatpush1.msra.mxu0 0.0
    %2261 = vmatprep.subr.mxu0 0.0
    %2262 = vmatpush1.msra.mxu0 0.0
    %2263 = vmatprep.subr.mxu0 0.0
    %2264 = vmatpush1.msra.mxu0 0.0
    %2265 = vmatprep.subr.mxu0 0.0
    %2266 = vmatpush1.msra.mxu0 0.0
    %2267 = vmatprep.subr.mxu0 0.0
    %2268 = vmatpush1.msra.mxu0 0.0
    %2269 = vmatprep.subr.mxu0 0.0
    %2270 = vmatpush1.msra.mxu0 0.0
    %2271 = vmatprep.subr.mxu0 0.0
    %2272 = vmatpush1.msra.mxu0 0.0
    %2273 = vmatprep.subr.mxu0 0.0
    %2274 = vmatpush1.msra.mxu0 0.0
    %2275 = vmatprep.subr.mxu0 0.0
    %2276 = vmatpush1.msra.mxu0 0.0
    %2277 = vmatprep.subr.mxu0 0.0
    %2278 = vmatpush1.msra.mxu0 0.0
    %2279 = vmatprep.subr.mxu0 0.0
    %2280 = vmatpush1.msra.mxu0 0.0
    %2281 = vmatprep.subr.mxu0 0.0
    %2282 = vmatpush1.msra.mxu0 0.0
    %2283 = vmatprep.subr.mxu0 0.0
    %2284 = vmatpush1.msra.mxu0 0.0
    %2285 = vmatprep.subr.mxu0 0.0
    %2286 = vmatpush1.msra.mxu0 0.0
    %2287 = vmatprep.subr.mxu0 0.0
    %2288 = vmatpush1.msra.mxu0 0.0
    %2289 = vmatprep.subr.mxu0 0.0
    %2290 = vmatpush1.msra.mxu0 0.0
    %2291 = vmatprep.subr.mxu0 0.0
    %2292 = vmatpush1.msra.mxu0 0.0
    %2293 = vmatprep.mubr.f32.mxu0 0.0
    %2294 = vmatmul.mubr.f32.gmra.mrb[0].mxu0 %v2224
    %v2295 = vpop.f32.mrb[0].mxu0
    %v2296 = vadd.f32 %v2220, %v2295
    %v2297 = vpop.f32.mrb[0].mxu0
    %2298 = vmatprep.mubr.f32.mxu0 0.0
    %2299 = vmatmul.mubr.f32.gmra.mrb[0].mxu0 %v2227
    %v2300 = vpop.f32.mrb[0].mxu0
    %v2301 = vadd.f32 %v2220, %v2300
    %v2302 = vpop.f32.mrb[0].mxu0
    %2303 = vdwg.mxu0
    %v2304 = vxor.u32 %v2296, 2147483648
    %v2305 = vmul.f32 %v2304, 1.442695
    %v2306 = vpow.pop %v2305
    %v2307 = vadd.f32 %v2306, 1.0
    %v2308 = vrcp.pop %v2307
    %v2309 = vmul.f32 1.0, %v2308
    %v2310 = vtanh.pop %v2296
    %v2311 = vmul.f32 %v2309, 0.0
    %2313 = vrot.lane.b32.xlu0 %v2310, 96
    %v2314 = vpop.permute.xlu0 %2313
    %v2316 = vmul.f32 %v2309, %v2314
    %2318 = vrot.lane.b32.xlu0 %v2316, 16
    %v2319 = vpop.permute.xlu0 %2318
    %v2321 = vadd.f32 %v2311, %v2319
    %v2322 = vtanh.pop %v2321
    %2324 = vrot.lane.b32.xlu0 %v2322, 32
    %v2325 = vpop.permute.xlu0 %2324
    %v2327 = vmul.f32 %v2309, %v2325
    %v2328 = vxor.u32 %v2301, 2147483648
    %v2329 = vmul.f32 %v2328, 1.442695
    %v2330 = vpow.pop %v2329
    %v2331 = vadd.f32 %v2330, 1.0
    %v2332 = vrcp.pop %v2331
    %v2333 = vmul.f32 1.0, %v2332
    %v2334 = vtanh.pop %v2301
    %v2335 = vmul.f32 %v2333, 0.0
    %2337 = vrot.lane.b32.xlu0 %v2334, 96
    %v2338 = vpop.permute.xlu0 %2337
    %v2340 = vmul.f32 %v2333, %v2338
    %2342 = vrot.lane.b32.xlu0 %v2340, 16
    %v2343 = vpop.permute.xlu0 %2342
    %v2345 = vadd.f32 %v2335, %v2343
    %v2346 = vtanh.pop %v2345
    %2348 = vrot.lane.b32.xlu0 %v2346, 32
    %v2349 = vpop.permute.xlu0 %2348
    %v2351 = vmul.f32 %v2333, %v2349
    %2353 = vrot.lane.b32.xlu0 %v2327, 80
    %v2354 = vpop.permute.xlu0 %2353
    %v2355 = vsel %vm413, %v2354, 0
    %2357 = vmatprep.subr.mxu0 0.0
    %2358 = vmatpush1.msra.mxu0 %v2203
    %2359 = vmatprep.subr.mxu0 0.0
    %2360 = vmatpush1.msra.mxu0 %v2204
    %2361 = vmatprep.subr.mxu0 0.0
    %2362 = vmatpush1.msra.mxu0 0.0
    %2363 = vmatprep.subr.mxu0 0.0
    %2364 = vmatpush1.msra.mxu0 0.0
    %2365 = vmatprep.subr.mxu0 0.0
    %2366 = vmatpush1.msra.mxu0 0.0
    %2367 = vmatprep.subr.mxu0 0.0
    %2368 = vmatpush1.msra.mxu0 0.0
    %2369 = vmatprep.subr.mxu0 0.0
    %2370 = vmatpush1.msra.mxu0 0.0
    %2371 = vmatprep.subr.mxu0 0.0
    %2372 = vmatpush1.msra.mxu0 0.0
    %2373 = vmatprep.subr.mxu0 0.0
    %2374 = vmatpush1.msra.mxu0 0.0
    %2375 = vmatprep.subr.mxu0 0.0
    %2376 = vmatpush1.msra.mxu0 0.0
    %2377 = vmatprep.subr.mxu0 0.0
    %2378 = vmatpush1.msra.mxu0 0.0
    %2379 = vmatprep.subr.mxu0 0.0
    %2380 = vmatpush1.msra.mxu0 0.0
    %2381 = vmatprep.subr.mxu0 0.0
    %2382 = vmatpush1.msra.mxu0 0.0
    %2383 = vmatprep.subr.mxu0 0.0
    %2384 = vmatpush1.msra.mxu0 0.0
    %2385 = vmatprep.subr.mxu0 0.0
    %2386 = vmatpush1.msra.mxu0 0.0
    %2387 = vmatprep.subr.mxu0 0.0
    %2388 = vmatpush1.msra.mxu0 0.0
    %2389 = vmatprep.subr.mxu0 0.0
    %2390 = vmatpush1.msra.mxu0 0.0
    %2391 = vmatprep.subr.mxu0 0.0
    %2392 = vmatpush1.msra.mxu0 0.0
    %2393 = vmatprep.subr.mxu0 0.0
    %2394 = vmatpush1.msra.mxu0 0.0
    %2395 = vmatprep.subr.mxu0 0.0
    %2396 = vmatpush1.msra.mxu0 0.0
    %2397 = vmatprep.subr.mxu0 0.0
    %2398 = vmatpush1.msra.mxu0 0.0
    %2399 = vmatprep.subr.mxu0 0.0
    %2400 = vmatpush1.msra.mxu0 0.0
    %2401 = vmatprep.subr.mxu0 0.0
    %2402 = vmatpush1.msra.mxu0 0.0
    %2403 = vmatprep.subr.mxu0 0.0
    %2404 = vmatpush1.msra.mxu0 0.0
    %2405 = vmatprep.subr.mxu0 0.0
    %2406 = vmatpush1.msra.mxu0 0.0
    %2407 = vmatprep.subr.mxu0 0.0
    %2408 = vmatpush1.msra.mxu0 0.0
    %2409 = vmatprep.subr.mxu0 0.0
    %2410 = vmatpush1.msra.mxu0 0.0
    %2411 = vmatprep.subr.mxu0 0.0
    %2412 = vmatpush1.msra.mxu0 0.0
    %2413 = vmatprep.subr.mxu0 0.0
    %2414 = vmatpush1.msra.mxu0 0.0
    %2415 = vmatprep.subr.mxu0 0.0
    %2416 = vmatpush1.msra.mxu0 0.0
    %2417 = vmatprep.subr.mxu0 0.0
    %2418 = vmatpush1.msra.mxu0 0.0
    %2419 = vmatprep.subr.mxu0 0.0
    %2420 = vmatpush1.msra.mxu0 0.0
    %2421 = vmatprep.mubr.f32.mxu0 0.0
    %2422 = vmatmul.mubr.f32.gmra.mrb[0].mxu0 %v2355
    %v2423 = vpop.f32.mrb[0].mxu0
    %v2424 = vadd.f32 0.0, %v2423
    %v2425 = vpop.f32.mrb[0].mxu0
    %2426 = vdwg.mxu0
    %v2428 = vrot.slane %v2424, 6
    %v2430 = vadd.f32 %v2296, %v2428
    %v2432 = vrot.slane %v2351, 6
    %2433 = vrot.lane.b32.xlu0 %v2432, 16
    %v2434 = vpop.permute.xlu0 %2433
    %v2435 = vsel %vm413, %v2434, 0
    %2437 = vmatprep.subr.mxu0 0.0
    %2438 = vmatpush1.msra.mxu0 %v2205
    %2439 = vmatprep.subr.mxu0 0.0
    %2440 = vmatpush1.msra.mxu0 %v2206
    %2441 = vmatprep.subr.mxu0 0.0
    %2442 = vmatpush1.msra.mxu0 0.0
    %2443 = vmatprep.subr.mxu0 0.0
    %2444 = vmatpush1.msra.mxu0 0.0
    %2445 = vmatprep.subr.mxu0 0.0
    %2446 = vmatpush1.msra.mxu0 0.0
    %2447 = vmatprep.subr.mxu0 0.0
    %2448 = vmatpush1.msra.mxu0 0.0
    %2449 = vmatprep.subr.mxu0 0.0
    %2450 = vmatpush1.msra.mxu0 0.0
    %2451 = vmatprep.subr.mxu0 0.0
    %2452 = vmatpush1.msra.mxu0 0.0
    %2453 = vmatprep.subr.mxu0 0.0
    %2454 = vmatpush1.msra.mxu0 0.0
    %2455 = vmatprep.subr.mxu0 0.0
    %2456 = vmatpush1.msra.mxu0 0.0
    %2457 = vmatprep.subr.mxu0 0.0
    %2458 = vmatpush1.msra.mxu0 0.0
    %2459 = vmatprep.subr.mxu0 0.0
    %2460 = vmatpush1.msra.mxu0 0.0
    %2461 = vmatprep.subr.mxu0 0.0
    %2462 = vmatpush1.msra.mxu0 0.0
    %2463 = vmatprep.subr.mxu0 0.0
    %2464 = vmatpush1.msra.mxu0 0.0
    %2465 = vmatprep.subr.mxu0 0.0
    %2466 = vmatpush1.msra.mxu0 0.0
    %2467 = vmatprep.subr.mxu0 0.0
    %2468 = vmatpush1.msra.mxu0 0.0
    %2469 = vmatprep.subr.mxu0 0.0
    %2470 = vmatpush1.msra.mxu0 0.0
    %2471 = vmatprep.subr.mxu0 0.0
    %2472 = vmatpush1.msra.mxu0 0.0
    %2473 = vmatprep.subr.mxu0 0.0
    %2474 = vmatpush1.msra.mxu0 0.0
    %2475 = vmatprep.subr.mxu0 0.0
    %2476 = vmatpush1.msra.mxu0 0.0
    %2477 = vmatprep.subr.mxu0 0.0
    %2478 = vmatpush1.msra.mxu0 0.0
    %2479 = vmatprep.subr.mxu0 0.0
    %2480 = vmatpush1.msra.mxu0 0.0
    %2481 = vmatprep.subr.mxu0 0.0
    %2482 = vmatpush1.msra.mxu0 0.0
    %2483 = vmatprep.subr.mxu0 0.0
    %2484 = vmatpush1.msra.mxu0 0.0
    %2485 = vmatprep.subr.mxu0 0.0
    %2486 = vmatpush1.msra.mxu0 0.0
    %2487 = vmatprep.subr.mxu0 0.0
    %2488 = vmatpush1.msra.mxu0 0.0
    %2489 = vmatprep.subr.mxu0 0.0
    %2490 = vmatpush1.msra.mxu0 0.0
    %2491 = vmatprep.subr.mxu0 0.0
    %2492 = vmatpush1.msra.mxu0 0.0
    %2493 = vmatprep.subr.mxu0 0.0
    %2494 = vmatpush1.msra.mxu0 0.0
    %2495 = vmatprep.subr.mxu0 0.0
    %2496 = vmatpush1.msra.mxu0 0.0
    %2497 = vmatprep.subr.mxu0 0.0
    %2498 = vmatpush1.msra.mxu0 0.0
    %2499 = vmatprep.subr.mxu0 0.0
    %2500 = vmatpush1.msra.mxu0 0.0
    %2501 = vmatprep.mubr.f32.mxu0 0.0
    %2502 = vmatmul.mubr.f32.gmra.mrb[0].mxu0 %v2435
    %v2503 = vpop.f32.mrb[0].mxu0
    %v2504 = vadd.f32 0.0, %v2503
    %v2505 = vpop.f32.mrb[0].mxu0
    %2506 = vdwg.mxu0
    %v2508 = vrot.slane %v2504, 4
    %2509 = vrot.lane.b32.xlu0 %v2508, 64
    %v2510 = vpop.permute.xlu0 %2509
    %v2512 = vadd.f32 %v2301, %v2510
    %v2513 = vxor.u32 %v2430, 2147483648
    %v2514 = vmul.f32 %v2513, 1.442695
    %v2515 = vpow.pop %v2514
    %v2516 = vadd.f32 %v2515, 1.0
    %v2517 = vrcp.pop %v2516
    %v2518 = vmul.f32 1.0, %v2517
    %v2519 = vtanh.pop %v2430
    %v2521 = vrot.slane %v2321, 6
    %v2523 = vmul.f32 %v2518, %v2521
    %2525 = vrot.lane.b32.xlu0 %v2519, 96
    %v2526 = vpop.permute.xlu0 %2525
    %v2528 = vmul.f32 %v2518, %v2526
    %2530 = vrot.lane.b32.xlu0 %v2528, 16
    %v2531 = vpop.permute.xlu0 %2530
    %v2533 = vadd.f32 %v2523, %v2531
    %v2534 = vtanh.pop %v2533
    %2536 = vrot.lane.b32.xlu0 %v2534, 32
    %v2537 = vpop.permute.xlu0 %2536
    %v2539 = vmul.f32 %v2518, %v2537
    %v2540 = vxor.u32 %v2512, 2147483648
    %v2541 = vmul.f32 %v2540, 1.442695
    %v2542 = vpow.pop %v2541
    %v2543 = vadd.f32 %v2542, 1.0
    %v2544 = vrcp.pop %v2543
    %v2545 = vmul.f32 1.0, %v2544
    %v2546 = vtanh.pop %v2512
    %v2548 = vrot.slane %v2345, 2
    %v2550 = vmul.f32 %v2545, %v2548
    %2552 = vrot.lane.b32.xlu0 %v2546, 96
    %v2553 = vpop.permute.xlu0 %2552
    %v2555 = vmul.f32 %v2545, %v2553
    %2557 = vrot.lane.b32.xlu0 %v2555, 16
    %v2558 = vpop.permute.xlu0 %2557
    %v2560 = vadd.f32 %v2550, %v2558
    %v2561 = vtanh.pop %v2560
    %2563 = vrot.lane.b32.xlu0 %v2561, 32
    %v2564 = vpop.permute.xlu0 %2563
    %v2566 = vmul.f32 %v2545, %v2564
    %v2568 = vrot.slane %v2539, 2
    %2569 = vrot.lane.b32.xlu0 %v2568, 80
    %v2570 = vpop.permute.xlu0 %2569
    %v2571 = vsel %vm413, %v2570, 0
    %2573 = vmatprep.subr.mxu0 0.0
    %2574 = vmatpush1.msra.mxu0 %v2203
    %2575 = vmatprep.subr.mxu0 0.0
    %2576 = vmatpush1.msra.mxu0 %v2204
    %2577 = vmatprep.subr.mxu0 0.0
    %2578 = vmatpush1.msra.mxu0 0.0
    %2579 = vmatprep.subr.mxu0 0.0
    %2580 = vmatpush1.msra.mxu0 0.0
    %2581 = vmatprep.subr.mxu0 0.0
    %2582 = vmatpush1.msra.mxu0 0.0
    %2583 = vmatprep.subr.mxu0 0.0
    %2584 = vmatpush1.msra.mxu0 0.0
    %2585 = vmatprep.subr.mxu0 0.0
    %2586 = vmatpush1.msra.mxu0 0.0
    %2587 = vmatprep.subr.mxu0 0.0
    %2588 = vmatpush1.msra.mxu0 0.0
    %2589 = vmatprep.subr.mxu0 0.0
    %2590 = vmatpush1.msra.mxu0 0.0
    %2591 = vmatprep.subr.mxu0 0.0
    %2592 = vmatpush1.msra.mxu0 0.0
    %2593 = vmatprep.subr.mxu0 0.0
    %2594 = vmatpush1.msra.mxu0 0.0
    %2595 = vmatprep.subr.mxu0 0.0
    %2596 = vmatpush1.msra.mxu0 0.0
    %2597 = vmatprep.subr.mxu0 0.0
    %2598 = vmatpush1.msra.mxu0 0.0
    %2599 = vmatprep.subr.mxu0 0.0
    %2600 = vmatpush1.msra.mxu0 0.0
    %2601 = vmatprep.subr.mxu0 0.0
    %2602 = vmatpush1.msra.mxu0 0.0
    %2603 = vmatprep.subr.mxu0 0.0
    %2604 = vmatpush1.msra.mxu0 0.0
    %2605 = vmatprep.subr.mxu0 0.0
    %2606 = vmatpush1.msra.mxu0 0.0
    %2607 = vmatprep.subr.mxu0 0.0
    %2608 = vmatpush1.msra.mxu0 0.0
    %2609 = vmatprep.subr.mxu0 0.0
    %2610 = vmatpush1.msra.mxu0 0.0
    %2611 = vmatprep.subr.mxu0 0.0
    %2612 = vmatpush1.msra.mxu0 0.0
    %2613 = vmatprep.subr.mxu0 0.0
    %2614 = vmatpush1.msra.mxu0 0.0
    %2615 = vmatprep.subr.mxu0 0.0
    %2616 = vmatpush1.msra.mxu0 0.0
    %2617 = vmatprep.subr.mxu0 0.0
    %2618 = vmatpush1.msra.mxu0 0.0
    %2619 = vmatprep.subr.mxu0 0.0
    %2620 = vmatpush1.msra.mxu0 0.0
    %2621 = vmatprep.subr.mxu0 0.0
    %2622 = vmatpush1.msra.mxu0 0.0
    %2623 = vmatprep.subr.mxu0 0.0
    %2624 = vmatpush1.msra.mxu0 0.0
    %2625 = vmatprep.subr.mxu0 0.0
    %2626 = vmatpush1.msra.mxu0 0.0
    %2627 = vmatprep.subr.mxu0 0.0
    %2628 = vmatpush1.msra.mxu0 0.0
    %2629 = vmatprep.subr.mxu0 0.0
    %2630 = vmatpush1.msra.mxu0 0.0
    %2631 = vmatprep.subr.mxu0 0.0
    %2632 = vmatpush1.msra.mxu0 0.0
    %2633 = vmatprep.subr.mxu0 0.0
    %2634 = vmatpush1.msra.mxu0 0.0
    %2635 = vmatprep.subr.mxu0 0.0
    %2636 = vmatpush1.msra.mxu0 0.0
    %2637 = vmatprep.mubr.f32.mxu0 0.0
    %2638 = vmatmul.mubr.f32.gmra.mrb[0].mxu0 %v2571
    %v2639 = vpop.f32.mrb[0].mxu0
    %v2640 = vadd.f32 0.0, %v2639
    %v2641 = vpop.f32.mrb[0].mxu0
    %2642 = vdwg.mxu0
    %v2644 = vrot.slane %v2640, 4
    %v2646 = vadd.f32 %v2296, %v2644
    %v2648 = vrot.slane %v2566, 4
    %2649 = vrot.lane.b32.xlu0 %v2648, 16
    %v2650 = vpop.permute.xlu0 %2649
    %v2651 = vsel %vm413, %v2650, 0
    %2653 = vmatprep.subr.mxu0 0.0
    %2654 = vmatpush1.msra.mxu0 %v2205
    %2655 = vmatprep.subr.mxu0 0.0
    %2656 = vmatpush1.msra.mxu0 %v2206
    %2657 = vmatprep.subr.mxu0 0.0
    %2658 = vmatpush1.msra.mxu0 0.0
    %2659 = vmatprep.subr.mxu0 0.0
    %2660 = vmatpush1.msra.mxu0 0.0
    %2661 = vmatprep.subr.mxu0 0.0
    %2662 = vmatpush1.msra.mxu0 0.0
    %2663 = vmatprep.subr.mxu0 0.0
    %2664 = vmatpush1.msra.mxu0 0.0
    %2665 = vmatprep.subr.mxu0 0.0
    %2666 = vmatpush1.msra.mxu0 0.0
    %2667 = vmatprep.subr.mxu0 0.0
    %2668 = vmatpush1.msra.mxu0 0.0
    %2669 = vmatprep.subr.mxu0 0.0
    %2670 = vmatpush1.msra.mxu0 0.0
    %2671 = vmatprep.subr.mxu0 0.0
    %2672 = vmatpush1.msra.mxu0 0.0
    %2673 = vmatprep.subr.mxu0 0.0
    %2674 = vmatpush1.msra.mxu0 0.0
    %2675 = vmatprep.subr.mxu0 0.0
    %2676 = vmatpush1.msra.mxu0 0.0
    %2677 = vmatprep.subr.mxu0 0.0
    %2678 = vmatpush1.msra.mxu0 0.0
    %2679 = vmatprep.subr.mxu0 0.0
    %2680 = vmatpush1.msra.mxu0 0.0
    %2681 = vmatprep.subr.mxu0 0.0
    %2682 = vmatpush1.msra.mxu0 0.0
    %2683 = vmatprep.subr.mxu0 0.0
    %2684 = vmatpush1.msra.mxu0 0.0
    %2685 = vmatprep.subr.mxu0 0.0
    %2686 = vmatpush1.msra.mxu0 0.0
    %2687 = vmatprep.subr.mxu0 0.0
    %2688 = vmatpush1.msra.mxu0 0.0
    %2689 = vmatprep.subr.mxu0 0.0
    %2690 = vmatpush1.msra.mxu0 0.0
    %2691 = vmatprep.subr.mxu0 0.0
    %2692 = vmatpush1.msra.mxu0 0.0
    %2693 = vmatprep.subr.mxu0 0.0
    %2694 = vmatpush1.msra.mxu0 0.0
    %2695 = vmatprep.subr.mxu0 0.0
    %2696 = vmatpush1.msra.mxu0 0.0
    %2697 = vmatprep.subr.mxu0 0.0
    %2698 = vmatpush1.msra.mxu0 0.0
    %2699 = vmatprep.subr.mxu0 0.0
    %2700 = vmatpush1.msra.mxu0 0.0
    %2701 = vmatprep.subr.mxu0 0.0
    %2702 = vmatpush1.msra.mxu0 0.0
    %2703 = vmatprep.subr.mxu0 0.0
    %2704 = vmatpush1.msra.mxu0 0.0
    %2705 = vmatprep.subr.mxu0 0.0
    %2706 = vmatpush1.msra.mxu0 0.0
    %2707 = vmatprep.subr.mxu0 0.0
    %2708 = vmatpush1.msra.mxu0 0.0
    %2709 = vmatprep.subr.mxu0 0.0
    %2710 = vmatpush1.msra.mxu0 0.0
    %2711 = vmatprep.subr.mxu0 0.0
    %2712 = vmatpush1.msra.mxu0 0.0
    %2713 = vmatprep.subr.mxu0 0.0
    %2714 = vmatpush1.msra.mxu0 0.0
    %2715 = vmatprep.subr.mxu0 0.0
    %2716 = vmatpush1.msra.mxu0 0.0
    %2717 = vmatprep.mubr.f32.mxu0 0.0
    %2718 = vmatmul.mubr.f32.gmra.mrb[0].mxu0 %v2651
    %v2719 = vpop.f32.mrb[0].mxu0
    %v2720 = vadd.f32 0.0, %v2719
    %v2721 = vpop.f32.mrb[0].mxu0
    %2722 = vdwg.mxu0
    %v2724 = vrot.slane %v2720, 6
    %2725 = vrot.lane.b32.xlu0 %v2724, 64
    %v2726 = vpop.permute.xlu0 %2725
    %v2728 = vadd.f32 %v2301, %v2726
    %v2729 = vxor.u32 %v2646, 2147483648
    %v2730 = vmul.f32 %v2729, 1.442695
    %v2731 = vpow.pop %v2730
    %v2732 = vadd.f32 %v2731, 1.0
    %v2733 = vrcp.pop %v2732
    %v2734 = vmul.f32 1.0, %v2733
    %v2735 = vtanh.pop %v2646
    %v2737 = vrot.slane %v2533, 6
    %v2739 = vmul.f32 %v2734, %v2737
    %2741 = vrot.lane.b32.xlu0 %v2735, 96
    %v2742 = vpop.permute.xlu0 %2741
    %v2744 = vmul.f32 %v2734, %v2742
    %2746 = vrot.lane.b32.xlu0 %v2744, 16
    %v2747 = vpop.permute.xlu0 %2746
    %v2749 = vadd.f32 %v2739, %v2747
    %v2750 = vtanh.pop %v2749
    %2752 = vrot.lane.b32.xlu0 %v2750, 32
    %v2753 = vpop.permute.xlu0 %2752
    %v2755 = vmul.f32 %v2734, %v2753
    %v2756 = vxor.u32 %v2728, 2147483648
    %v2757 = vmul.f32 %v2756, 1.442695
    %v2758 = vpow.pop %v2757
    %v2759 = vadd.f32 %v2758, 1.0
    %v2760 = vrcp.pop %v2759
    %v2761 = vmul.f32 1.0, %v2760
    %v2762 = vtanh.pop %v2728
    %v2764 = vrot.slane %v2560, 2
    %v2766 = vmul.f32 %v2761, %v2764
    %2768 = vrot.lane.b32.xlu0 %v2762, 96
    %v2769 = vpop.permute.xlu0 %2768
    %v2771 = vmul.f32 %v2761, %v2769
    %2773 = vrot.lane.b32.xlu0 %v2771, 16
    %v2774 = vpop.permute.xlu0 %2773
    %v2776 = vadd.f32 %v2766, %v2774
    %v2777 = vtanh.pop %v2776
    %2779 = vrot.lane.b32.xlu0 %v2777, 32
    %v2780 = vpop.permute.xlu0 %2779
    %v2782 = vmul.f32 %v2761, %v2780
    %v2784 = vrot.slane %v2755, 4
    %2785 = vrot.lane.b32.xlu0 %v2784, 80
    %v2786 = vpop.permute.xlu0 %2785
    %v2787 = vsel %vm413, %v2786, 0
    %2789 = vmatprep.subr.mxu0 0.0
    %2790 = vmatpush1.msra.mxu0 %v2203
    %2791 = vmatprep.subr.mxu0 0.0
    %2792 = vmatpush1.msra.mxu0 %v2204
    %2793 = vmatprep.subr.mxu0 0.0
    %2794 = vmatpush1.msra.mxu0 0.0
    %2795 = vmatprep.subr.mxu0 0.0
    %2796 = vmatpush1.msra.mxu0 0.0
    %2797 = vmatprep.subr.mxu0 0.0
    %2798 = vmatpush1.msra.mxu0 0.0
    %2799 = vmatprep.subr.mxu0 0.0
    %2800 = vmatpush1.msra.mxu0 0.0
    %2801 = vmatprep.subr.mxu0 0.0
    %2802 = vmatpush1.msra.mxu0 0.0
    %2803 = vmatprep.subr.mxu0 0.0
    %2804 = vmatpush1.msra.mxu0 0.0
    %2805 = vmatprep.subr.mxu0 0.0
    %2806 = vmatpush1.msra.mxu0 0.0
    %2807 = vmatprep.subr.mxu0 0.0
    %2808 = vmatpush1.msra.mxu0 0.0
    %2809 = vmatprep.subr.mxu0 0.0
    %2810 = vmatpush1.msra.mxu0 0.0
    %2811 = vmatprep.subr.mxu0 0.0
    %2812 = vmatpush1.msra.mxu0 0.0
    %2813 = vmatprep.subr.mxu0 0.0
    %2814 = vmatpush1.msra.mxu0 0.0
    %2815 = vmatprep.subr.mxu0 0.0
    %2816 = vmatpush1.msra.mxu0 0.0
    %2817 = vmatprep.subr.mxu0 0.0
    %2818 = vmatpush1.msra.mxu0 0.0
    %2819 = vmatprep.subr.mxu0 0.0
    %2820 = vmatpush1.msra.mxu0 0.0
    %2821 = vmatprep.subr.mxu0 0.0
    %2822 = vmatpush1.msra.mxu0 0.0
    %2823 = vmatprep.subr.mxu0 0.0
    %2824 = vmatpush1.msra.mxu0 0.0
    %2825 = vmatprep.subr.mxu0 0.0
    %2826 = vmatpush1.msra.mxu0 0.0
    %2827 = vmatprep.subr.mxu0 0.0
    %2828 = vmatpush1.msra.mxu0 0.0
    %2829 = vmatprep.subr.mxu0 0.0
    %2830 = vmatpush1.msra.mxu0 0.0
    %2831 = vmatprep.subr.mxu0 0.0
    %2832 = vmatpush1.msra.mxu0 0.0
    %2833 = vmatprep.subr.mxu0 0.0
    %2834 = vmatpush1.msra.mxu0 0.0
    %2835 = vmatprep.subr.mxu0 0.0
    %2836 = vmatpush1.msra.mxu0 0.0
    %2837 = vmatprep.subr.mxu0 0.0
    %2838 = vmatpush1.msra.mxu0 0.0
    %2839 = vmatprep.subr.mxu0 0.0
    %2840 = vmatpush1.msra.mxu0 0.0
    %2841 = vmatprep.subr.mxu0 0.0
    %2842 = vmatpush1.msra.mxu0 0.0
    %2843 = vmatprep.subr.mxu0 0.0
    %2844 = vmatpush1.msra.mxu0 0.0
    %2845 = vmatprep.subr.mxu0 0.0
    %2846 = vmatpush1.msra.mxu0 0.0
    %2847 = vmatprep.subr.mxu0 0.0
    %2848 = vmatpush1.msra.mxu0 0.0
    %2849 = vmatprep.subr.mxu0 0.0
    %2850 = vmatpush1.msra.mxu0 0.0
    %2851 = vmatprep.subr.mxu0 0.0
    %2852 = vmatpush1.msra.mxu0 0.0
    %2853 = vmatprep.mubr.f32.mxu0 0.0
    %2854 = vmatmul.mubr.f32.gmra.mrb[0].mxu0 %v2787
    %v2855 = vpop.f32.mrb[0].mxu0
    %v2856 = vadd.f32 0.0, %v2855
    %v2857 = vpop.f32.mrb[0].mxu0
    %2858 = vdwg.mxu0
    %v2860 = vrot.slane %v2856, 2
    %v2862 = vadd.f32 %v2296, %v2860
    %v2864 = vrot.slane %v2782, 2
    %2865 = vrot.lane.b32.xlu0 %v2864, 16
    %v2866 = vpop.permute.xlu0 %2865
    %v2867 = vsel %vm413, %v2866, 0
    %2869 = vmatprep.subr.mxu0 0.0
    %2870 = vmatpush1.msra.mxu0 %v2205
    %2871 = vmatprep.subr.mxu0 0.0
    %2872 = vmatpush1.msra.mxu0 %v2206
    %2873 = vmatprep.subr.mxu0 0.0
    %2874 = vmatpush1.msra.mxu0 0.0
    %2875 = vmatprep.subr.mxu0 0.0
    %2876 = vmatpush1.msra.mxu0 0.0
    %2877 = vmatprep.subr.mxu0 0.0
    %2878 = vmatpush1.msra.mxu0 0.0
    %2879 = vmatprep.subr.mxu0 0.0
    %2880 = vmatpush1.msra.mxu0 0.0
    %2881 = vmatprep.subr.mxu0 0.0
    %2882 = vmatpush1.msra.mxu0 0.0
    %2883 = vmatprep.subr.mxu0 0.0
    %2884 = vmatpush1.msra.mxu0 0.0
    %2885 = vmatprep.subr.mxu0 0.0
    %2886 = vmatpush1.msra.mxu0 0.0
    %2887 = vmatprep.subr.mxu0 0.0
    %2888 = vmatpush1.msra.mxu0 0.0
    %2889 = vmatprep.subr.mxu0 0.0
    %2890 = vmatpush1.msra.mxu0 0.0
    %2891 = vmatprep.subr.mxu0 0.0
    %2892 = vmatpush1.msra.mxu0 0.0
    %2893 = vmatprep.subr.mxu0 0.0
    %2894 = vmatpush1.msra.mxu0 0.0
    %2895 = vmatprep.subr.mxu0 0.0
    %2896 = vmatpush1.msra.mxu0 0.0
    %2897 = vmatprep.subr.mxu0 0.0
    %2898 = vmatpush1.msra.mxu0 0.0
    %2899 = vmatprep.subr.mxu0 0.0
    %2900 = vmatpush1.msra.mxu0 0.0
    %2901 = vmatprep.subr.mxu0 0.0
    %2902 = vmatpush1.msra.mxu0 0.0
    %2903 = vmatprep.subr.mxu0 0.0
    %2904 = vmatpush1.msra.mxu0 0.0
    %2905 = vmatprep.subr.mxu0 0.0
    %2906 = vmatpush1.msra.mxu0 0.0
    %2907 = vmatprep.subr.mxu0 0.0
    %2908 = vmatpush1.msra.mxu0 0.0
    %2909 = vmatprep.subr.mxu0 0.0
    %2910 = vmatpush1.msra.mxu0 0.0
    %2911 = vmatprep.subr.mxu0 0.0
    %2912 = vmatpush1.msra.mxu0 0.0
    %2913 = vmatprep.subr.mxu0 0.0
    %2914 = vmatpush1.msra.mxu0 0.0
    %2915 = vmatprep.subr.mxu0 0.0
    %2916 = vmatpush1.msra.mxu0 0.0
    %2917 = vmatprep.subr.mxu0 0.0
    %2918 = vmatpush1.msra.mxu0 0.0
    %2919 = vmatprep.subr.mxu0 0.0
    %2920 = vmatpush1.msra.mxu0 0.0
    %2921 = vmatprep.subr.mxu0 0.0
    %2922 = vmatpush1.msra.mxu0 0.0
    %2923 = vmatprep.subr.mxu0 0.0
    %2924 = vmatpush1.msra.mxu0 0.0
    %2925 = vmatprep.subr.mxu0 0.0
    %2926 = vmatpush1.msra.mxu0 0.0
    %2927 = vmatprep.subr.mxu0 0.0
    %2928 = vmatpush1.msra.mxu0 0.0
    %2929 = vmatprep.subr.mxu0 0.0
    %2930 = vmatpush1.msra.mxu0 0.0
    %2931 = vmatprep.subr.mxu0 0.0
    %2932 = vmatpush1.msra.mxu0 0.0
    %2933 = vmatprep.mubr.f32.mxu0 0.0
    %2934 = vmatmul.mubr.f32.gmra.mrb[0].mxu0 %v2867
    %v2935 = vpop.f32.mrb[0].mxu0
    %v2936 = vadd.f32 0.0, %v2935
    %v2937 = vpop.f32.mrb[0].mxu0
    %2938 = vdwg.mxu0
    %2940 = vrot.lane.b32.xlu0 %v2936, 64
    %v2941 = vpop.permute.xlu0 %2940
    %v2943 = vadd.f32 %v2301, %v2941
    %v2944 = vxor.u32 %v2862, 2147483648
    %v2945 = vmul.f32 %v2944, 1.442695
    %v2946 = vpow.pop %v2945
    %v2947 = vadd.f32 %v2946, 1.0
    %v2948 = vrcp.pop %v2947
    %v2949 = vmul.f32 1.0, %v2948
    %v2950 = vtanh.pop %v2862
    %v2952 = vrot.slane %v2749, 6
    %v2954 = vmul.f32 %v2949, %v2952
    %2956 = vrot.lane.b32.xlu0 %v2950, 96
    %v2957 = vpop.permute.xlu0 %2956
    %v2959 = vmul.f32 %v2949, %v2957
    %2961 = vrot.lane.b32.xlu0 %v2959, 16
    %v2962 = vpop.permute.xlu0 %2961
    %v2964 = vadd.f32 %v2954, %v2962
    %v2965 = vtanh.pop %v2964
    %2967 = vrot.lane.b32.xlu0 %v2965, 32
    %v2968 = vpop.permute.xlu0 %2967
    %v2970 = vmul.f32 %v2949, %v2968
    %v2971 = vxor.u32 %v2943, 2147483648
    %v2972 = vmul.f32 %v2971, 1.442695
    %v2973 = vpow.pop %v2972
    %v2974 = vadd.f32 %v2973, 1.0
    %v2975 = vrcp.pop %v2974
    %v2976 = vmul.f32 1.0, %v2975
    %v2977 = vtanh.pop %v2943
    %v2979 = vrot.slane %v2776, 2
    %v2981 = vmul.f32 %v2976, %v2979
    %2983 = vrot.lane.b32.xlu0 %v2977, 96
    %v2984 = vpop.permute.xlu0 %2983
    %v2986 = vmul.f32 %v2976, %v2984
    %2988 = vrot.lane.b32.xlu0 %v2986, 16
    %v2989 = vpop.permute.xlu0 %2988
    %v2991 = vadd.f32 %v2981, %v2989
    %v2992 = vtanh.pop %v2991
    %2994 = vrot.lane.b32.xlu0 %v2992, 32
    %v2995 = vpop.permute.xlu0 %2994
    %v2997 = vmul.f32 %v2976, %v2995
    %v2999 = vrot.slane %v2970, 6
    %3000 = vrot.lane.b32.xlu0 %v2999, 80
    %v3001 = vpop.permute.xlu0 %3000
    %v3002 = vsel %vm413, %v3001, 0
    %3004 = vmatprep.subr.mxu0 0.0
    %3005 = vmatpush1.msra.mxu0 %v2203
    %3006 = vmatprep.subr.mxu0 0.0
    %3007 = vmatpush1.msra.mxu0 %v2204
    %3008 = vmatprep.subr.mxu0 0.0
    %3009 = vmatpush1.msra.mxu0 0.0
    %3010 = vmatprep.subr.mxu0 0.0
    %3011 = vmatpush1.msra.mxu0 0.0
    %3012 = vmatprep.subr.mxu0 0.0
    %3013 = vmatpush1.msra.mxu0 0.0
    %3014 = vmatprep.subr.mxu0 0.0
    %3015 = vmatpush1.msra.mxu0 0.0
    %3016 = vmatprep.subr.mxu0 0.0
    %3017 = vmatpush1.msra.mxu0 0.0
    %3018 = vmatprep.subr.mxu0 0.0
    %3019 = vmatpush1.msra.mxu0 0.0
    %3020 = vmatprep.subr.mxu0 0.0
    %3021 = vmatpush1.msra.mxu0 0.0
    %3022 = vmatprep.subr.mxu0 0.0
    %3023 = vmatpush1.msra.mxu0 0.0
    %3024 = vmatprep.subr.mxu0 0.0
    %3025 = vmatpush1.msra.mxu0 0.0
    %3026 = vmatprep.subr.mxu0 0.0
    %3027 = vmatpush1.msra.mxu0 0.0
    %3028 = vmatprep.subr.mxu0 0.0
    %3029 = vmatpush1.msra.mxu0 0.0
    %3030 = vmatprep.subr.mxu0 0.0
    %3031 = vmatpush1.msra.mxu0 0.0
    %3032 = vmatprep.subr.mxu0 0.0
    %3033 = vmatpush1.msra.mxu0 0.0
    %3034 = vmatprep.subr.mxu0 0.0
    %3035 = vmatpush1.msra.mxu0 0.0
    %3036 = vmatprep.subr.mxu0 0.0
    %3037 = vmatpush1.msra.mxu0 0.0
    %3038 = vmatprep.subr.mxu0 0.0
    %3039 = vmatpush1.msra.mxu0 0.0
    %3040 = vmatprep.subr.mxu0 0.0
    %3041 = vmatpush1.msra.mxu0 0.0
    %3042 = vmatprep.subr.mxu0 0.0
    %3043 = vmatpush1.msra.mxu0 0.0
    %3044 = vmatprep.subr.mxu0 0.0
    %3045 = vmatpush1.msra.mxu0 0.0
    %3046 = vmatprep.subr.mxu0 0.0
    %3047 = vmatpush1.msra.mxu0 0.0
    %3048 = vmatprep.subr.mxu0 0.0
    %3049 = vmatpush1.msra.mxu0 0.0
    %3050 = vmatprep.subr.mxu0 0.0
    %3051 = vmatpush1.msra.mxu0 0.0
    %3052 = vmatprep.subr.mxu0 0.0
    %3053 = vmatpush1.msra.mxu0 0.0
    %3054 = vmatprep.subr.mxu0 0.0
    %3055 = vmatpush1.msra.mxu0 0.0
    %3056 = vmatprep.subr.mxu0 0.0
    %3057 = vmatpush1.msra.mxu0 0.0
    %3058 = vmatprep.subr.mxu0 0.0
    %3059 = vmatpush1.msra.mxu0 0.0
    %3060 = vmatprep.subr.mxu0 0.0
    %3061 = vmatpush1.msra.mxu0 0.0
    %3062 = vmatprep.subr.mxu0 0.0
    %3063 = vmatpush1.msra.mxu0 0.0
    %3064 = vmatprep.subr.mxu0 0.0
    %3065 = vmatpush1.msra.mxu0 0.0
    %3066 = vmatprep.subr.mxu0 0.0
    %3067 = vmatpush1.msra.mxu0 0.0
    %3068 = vmatprep.mubr.f32.mxu0 0.0
    %3069 = vmatmul.mubr.f32.gmra.mrb[0].mxu0 %v3002
    %v3070 = vpop.f32.mrb[0].mxu0
    %v3071 = vadd.f32 0.0, %v3070
    %v3072 = vpop.f32.mrb[0].mxu0
    %3073 = vdwg.mxu0
    %v3074 = vadd.f32 %v2301, %v3071
    %3076 = vrot.lane.b32.xlu0 %v2997, 16
    %v3077 = vpop.permute.xlu0 %3076
    %v3078 = vsel %vm413, %v3077, 0
    %3080 = vmatprep.subr.mxu0 0.0
    %3081 = vmatpush1.msra.mxu0 %v2205
    %3082 = vmatprep.subr.mxu0 0.0
    %3083 = vmatpush1.msra.mxu0 %v2206
    %3084 = vmatprep.subr.mxu0 0.0
    %3085 = vmatpush1.msra.mxu0 0.0
    %3086 = vmatprep.subr.mxu0 0.0
    %3087 = vmatpush1.msra.mxu0 0.0
    %3088 = vmatprep.subr.mxu0 0.0
    %3089 = vmatpush1.msra.mxu0 0.0
    %3090 = vmatprep.subr.mxu0 0.0
    %3091 = vmatpush1.msra.mxu0 0.0
    %3092 = vmatprep.subr.mxu0 0.0
    %3093 = vmatpush1.msra.mxu0 0.0
    %3094 = vmatprep.subr.mxu0 0.0
    %3095 = vmatpush1.msra.mxu0 0.0
    %3096 = vmatprep.subr.mxu0 0.0
    %3097 = vmatpush1.msra.mxu0 0.0
    %3098 = vmatprep.subr.mxu0 0.0
    %3099 = vmatpush1.msra.mxu0 0.0
    %3100 = vmatprep.subr.mxu0 0.0
    %3101 = vmatpush1.msra.mxu0 0.0
    %3102 = vmatprep.subr.mxu0 0.0
    %3103 = vmatpush1.msra.mxu0 0.0
    %3104 = vmatprep.subr.mxu0 0.0
    %3105 = vmatpush1.msra.mxu0 0.0
    %3106 = vmatprep.subr.mxu0 0.0
    %3107 = vmatpush1.msra.mxu0 0.0
    %3108 = vmatprep.subr.mxu0 0.0
    %3109 = vmatpush1.msra.mxu0 0.0
    %3110 = vmatprep.subr.mxu0 0.0
    %3111 = vmatpush1.msra.mxu0 0.0
    %3112 = vmatprep.subr.mxu0 0.0
    %3113 = vmatpush1.msra.mxu0 0.0
    %3114 = vmatprep.subr.mxu0 0.0
    %3115 = vmatpush1.msra.mxu0 0.0
    %3116 = vmatprep.subr.mxu0 0.0
    %3117 = vmatpush1.msra.mxu0 0.0
    %3118 = vmatprep.subr.mxu0 0.0
    %3119 = vmatpush1.msra.mxu0 0.0
    %3120 = vmatprep.subr.mxu0 0.0
    %3121 = vmatpush1.msra.mxu0 0.0
    %3122 = vmatprep.subr.mxu0 0.0
    %3123 = vmatpush1.msra.mxu0 0.0
    %3124 = vmatprep.subr.mxu0 0.0
    %3125 = vmatpush1.msra.mxu0 0.0
    %3126 = vmatprep.subr.mxu0 0.0
    %3127 = vmatpush1.msra.mxu0 0.0
    %3128 = vmatprep.subr.mxu0 0.0
    %3129 = vmatpush1.msra.mxu0 0.0
    %3130 = vmatprep.subr.mxu0 0.0
    %3131 = vmatpush1.msra.mxu0 0.0
    %3132 = vmatprep.subr.mxu0 0.0
    %3133 = vmatpush1.msra.mxu0 0.0
    %3134 = vmatprep.subr.mxu0 0.0
    %3135 = vmatpush1.msra.mxu0 0.0
    %3136 = vmatprep.subr.mxu0 0.0
    %3137 = vmatpush1.msra.mxu0 0.0
    %3138 = vmatprep.subr.mxu0 0.0
    %3139 = vmatpush1.msra.mxu0 0.0
    %3140 = vmatprep.subr.mxu0 0.0
    %3141 = vmatpush1.msra.mxu0 0.0
    %3142 = vmatprep.subr.mxu0 0.0
    %3143 = vmatpush1.msra.mxu0 0.0
    %3144 = vmatprep.mubr.f32.mxu0 0.0
    %3145 = vmatmul.mubr.f32.gmra.mrb[0].mxu0 %v3078
    %v3146 = vpop.f32.mrb[0].mxu0
    %v3147 = vadd.f32 0.0, %v3146
    %v3148 = vpop.f32.mrb[0].mxu0
    %3149 = vdwg.mxu0
    %v3151 = vrot.slane %v3147, 2
    %3152 = vrot.lane.b32.xlu0 %v3151, 64
    %v3153 = vpop.permute.xlu0 %3152
    %v3155 = vadd.f32 %v2296, %v3153
    %v3156 = vxor.u32 %v3074, 2147483648
    %v3157 = vmul.f32 %v3156, 1.442695
    %v3158 = vpow.pop %v3157
    %v3159 = vadd.f32 %v3158, 1.0
    %v3160 = vrcp.pop %v3159
    %v3161 = vmul.f32 1.0, %v3160
    %v3162 = vtanh.pop %v3074
    %v3164 = vrot.slane %v2964, 6
    %v3166 = vmul.f32 %v3161, %v3164
    %3168 = vrot.lane.b32.xlu0 %v3162, 96
    %v3169 = vpop.permute.xlu0 %3168
    %v3171 = vmul.f32 %v3161, %v3169
    %3173 = vrot.lane.b32.xlu0 %v3171, 16
    %v3174 = vpop.permute.xlu0 %3173
    %v3176 = vadd.f32 %v3166, %v3174
    %v3177 = vtanh.pop %v3176
    %3179 = vrot.lane.b32.xlu0 %v3177, 32
    %v3180 = vpop.permute.xlu0 %3179
    %v3182 = vmul.f32 %v3161, %v3180
    %v3183 = vxor.u32 %v3155, 2147483648
    %v3184 = vmul.f32 %v3183, 1.442695
    %v3185 = vpow.pop %v3184
    %v3186 = vadd.f32 %v3185, 1.0
    %v3187 = vrcp.pop %v3186
    %v3188 = vmul.f32 1.0, %v3187
    %v3189 = vtanh.pop %v3155
    %v3191 = vrot.slane %v2991, 2
    %v3193 = vmul.f32 %v3188, %v3191
    %3195 = vrot.lane.b32.xlu0 %v3189, 96
    %v3196 = vpop.permute.xlu0 %3195
    %v3198 = vmul.f32 %v3188, %v3196
    %3200 = vrot.lane.b32.xlu0 %v3198, 16
    %v3201 = vpop.permute.xlu0 %3200
    %v3203 = vadd.f32 %v3193, %v3201
    %v3204 = vtanh.pop %v3203
    %3206 = vrot.lane.b32.xlu0 %v3204, 32
    %v3207 = vpop.permute.xlu0 %3206
    %v3209 = vmul.f32 %v3188, %v3207
    %3211 = vrot.lane.b32.xlu0 %v3182, 80
    %v3212 = vpop.permute.xlu0 %3211
    %v3213 = vsel %vm413, %v3212, 0
    %3215 = vmatprep.subr.mxu0 0.0
    %3216 = vmatpush1.msra.mxu0 %v2203
    %3217 = vmatprep.subr.mxu0 0.0
    %3218 = vmatpush1.msra.mxu0 %v2204
    %3219 = vmatprep.subr.mxu0 0.0
    %3220 = vmatpush1.msra.mxu0 0.0
    %3221 = vmatprep.subr.mxu0 0.0
    %3222 = vmatpush1.msra.mxu0 0.0
    %3223 = vmatprep.subr.mxu0 0.0
    %3224 = vmatpush1.msra.mxu0 0.0
    %3225 = vmatprep.subr.mxu0 0.0
    %3226 = vmatpush1.msra.mxu0 0.0
    %3227 = vmatprep.subr.mxu0 0.0
    %3228 = vmatpush1.msra.mxu0 0.0
    %3229 = vmatprep.subr.mxu0 0.0
    %3230 = vmatpush1.msra.mxu0 0.0
    %3231 = vmatprep.subr.mxu0 0.0
    %3232 = vmatpush1.msra.mxu0 0.0
    %3233 = vmatprep.subr.mxu0 0.0
    %3234 = vmatpush1.msra.mxu0 0.0
    %3235 = vmatprep.subr.mxu0 0.0
    %3236 = vmatpush1.msra.mxu0 0.0
    %3237 = vmatprep.subr.mxu0 0.0
    %3238 = vmatpush1.msra.mxu0 0.0
    %3239 = vmatprep.subr.mxu0 0.0
    %3240 = vmatpush1.msra.mxu0 0.0
    %3241 = vmatprep.subr.mxu0 0.0
    %3242 = vmatpush1.msra.mxu0 0.0
    %3243 = vmatprep.subr.mxu0 0.0
    %3244 = vmatpush1.msra.mxu0 0.0
    %3245 = vmatprep.subr.mxu0 0.0
    %3246 = vmatpush1.msra.mxu0 0.0
    %3247 = vmatprep.subr.mxu0 0.0
    %3248 = vmatpush1.msra.mxu0 0.0
    %3249 = vmatprep.subr.mxu0 0.0
    %3250 = vmatpush1.msra.mxu0 0.0
    %3251 = vmatprep.subr.mxu0 0.0
    %3252 = vmatpush1.msra.mxu0 0.0
    %3253 = vmatprep.subr.mxu0 0.0
    %3254 = vmatpush1.msra.mxu0 0.0
    %3255 = vmatprep.subr.mxu0 0.0
    %3256 = vmatpush1.msra.mxu0 0.0
    %3257 = vmatprep.subr.mxu0 0.0
    %3258 = vmatpush1.msra.mxu0 0.0
    %3259 = vmatprep.subr.mxu0 0.0
    %3260 = vmatpush1.msra.mxu0 0.0
    %3261 = vmatprep.subr.mxu0 0.0
    %3262 = vmatpush1.msra.mxu0 0.0
    %3263 = vmatprep.subr.mxu0 0.0
    %3264 = vmatpush1.msra.mxu0 0.0
    %3265 = vmatprep.subr.mxu0 0.0
    %3266 = vmatpush1.msra.mxu0 0.0
    %3267 = vmatprep.subr.mxu0 0.0
    %3268 = vmatpush1.msra.mxu0 0.0
    %3269 = vmatprep.subr.mxu0 0.0
    %3270 = vmatpush1.msra.mxu0 0.0
    %3271 = vmatprep.subr.mxu0 0.0
    %3272 = vmatpush1.msra.mxu0 0.0
    %3273 = vmatprep.subr.mxu0 0.0
    %3274 = vmatpush1.msra.mxu0 0.0
    %3275 = vmatprep.subr.mxu0 0.0
    %3276 = vmatpush1.msra.mxu0 0.0
    %3277 = vmatprep.subr.mxu0 0.0
    %3278 = vmatpush1.msra.mxu0 0.0
    %3279 = vmatprep.mubr.f32.mxu0 0.0
    %3280 = vmatmul.mubr.f32.gmra.mrb[0].mxu0 %v3213
    %v3281 = vpop.f32.mrb[0].mxu0
    %v3282 = vadd.f32 0.0, %v3281
    %v3283 = vpop.f32.mrb[0].mxu0
    %3284 = vdwg.mxu0
    %v3286 = vrot.slane %v3282, 6
    %v3288 = vadd.f32 %v2301, %v3286
    %v3290 = vrot.slane %v3209, 6
    %3291 = vrot.lane.b32.xlu0 %v3290, 16
    %v3292 = vpop.permute.xlu0 %3291
    %v3293 = vsel %vm413, %v3292, 0
    %3295 = vmatprep.subr.mxu0 0.0
    %3296 = vmatpush1.msra.mxu0 %v2205
    %3297 = vmatprep.subr.mxu0 0.0
    %3298 = vmatpush1.msra.mxu0 %v2206
    %3299 = vmatprep.subr.mxu0 0.0
    %3300 = vmatpush1.msra.mxu0 0.0
    %3301 = vmatprep.subr.mxu0 0.0
    %3302 = vmatpush1.msra.mxu0 0.0
    %3303 = vmatprep.subr.mxu0 0.0
    %3304 = vmatpush1.msra.mxu0 0.0
    %3305 = vmatprep.subr.mxu0 0.0
    %3306 = vmatpush1.msra.mxu0 0.0
    %3307 = vmatprep.subr.mxu0 0.0
    %3308 = vmatpush1.msra.mxu0 0.0
    %3309 = vmatprep.subr.mxu0 0.0
    %3310 = vmatpush1.msra.mxu0 0.0
    %3311 = vmatprep.subr.mxu0 0.0
    %3312 = vmatpush1.msra.mxu0 0.0
    %3313 = vmatprep.subr.mxu0 0.0
    %3314 = vmatpush1.msra.mxu0 0.0
    %3315 = vmatprep.subr.mxu0 0.0
    %3316 = vmatpush1.msra.mxu0 0.0
    %3317 = vmatprep.subr.mxu0 0.0
    %3318 = vmatpush1.msra.mxu0 0.0
    %3319 = vmatprep.subr.mxu0 0.0
    %3320 = vmatpush1.msra.mxu0 0.0
    %3321 = vmatprep.subr.mxu0 0.0
    %3322 = vmatpush1.msra.mxu0 0.0
    %3323 = vmatprep.subr.mxu0 0.0
    %3324 = vmatpush1.msra.mxu0 0.0
    %3325 = vmatprep.subr.mxu0 0.0
    %3326 = vmatpush1.msra.mxu0 0.0
    %3327 = vmatprep.subr.mxu0 0.0
    %3328 = vmatpush1.msra.mxu0 0.0
    %3329 = vmatprep.subr.mxu0 0.0
    %3330 = vmatpush1.msra.mxu0 0.0
    %3331 = vmatprep.subr.mxu0 0.0
    %3332 = vmatpush1.msra.mxu0 0.0
    %3333 = vmatprep.subr.mxu0 0.0
    %3334 = vmatpush1.msra.mxu0 0.0
    %3335 = vmatprep.subr.mxu0 0.0
    %3336 = vmatpush1.msra.mxu0 0.0
    %3337 = vmatprep.subr.mxu0 0.0
    %3338 = vmatpush1.msra.mxu0 0.0
    %3339 = vmatprep.subr.mxu0 0.0
    %3340 = vmatpush1.msra.mxu0 0.0
    %3341 = vmatprep.subr.mxu0 0.0
    %3342 = vmatpush1.msra.mxu0 0.0
    %3343 = vmatprep.subr.mxu0 0.0
    %3344 = vmatpush1.msra.mxu0 0.0
    %3345 = vmatprep.subr.mxu0 0.0
    %3346 = vmatpush1.msra.mxu0 0.0
    %3347 = vmatprep.subr.mxu0 0.0
    %3348 = vmatpush1.msra.mxu0 0.0
    %3349 = vmatprep.subr.mxu0 0.0
    %3350 = vmatpush1.msra.mxu0 0.0
    %3351 = vmatprep.subr.mxu0 0.0
    %3352 = vmatpush1.msra.mxu0 0.0
    %3353 = vmatprep.subr.mxu0 0.0
    %3354 = vmatpush1.msra.mxu0 0.0
    %3355 = vmatprep.subr.mxu0 0.0
    %3356 = vmatpush1.msra.mxu0 0.0
    %3357 = vmatprep.subr.mxu0 0.0
    %3358 = vmatpush1.msra.mxu0 0.0
    %3359 = vmatprep.mubr.f32.mxu0 0.0
    %3360 = vmatmul.mubr.f32.gmra.mrb[0].mxu0 %v3293
    %v3361 = vpop.f32.mrb[0].mxu0
    %v3362 = vadd.f32 0.0, %v3361
    %v3363 = vpop.f32.mrb[0].mxu0
    %3364 = vdwg.mxu0
    %v3366 = vrot.slane %v3362, 4
    %3367 = vrot.lane.b32.xlu0 %v3366, 64
    %v3368 = vpop.permute.xlu0 %3367
    %v3370 = vadd.f32 %v2296, %v3368
    %v3371 = vxor.u32 %v3288, 2147483648
    %v3372 = vmul.f32 %v3371, 1.442695
    %v3373 = vpow.pop %v3372
    %v3374 = vadd.f32 %v3373, 1.0
    %v3375 = vrcp.pop %v3374
    %v3376 = vmul.f32 1.0, %v3375
    %v3377 = vtanh.pop %v3288
    %v3379 = vrot.slane %v3176, 6
    %v3381 = vmul.f32 %v3376, %v3379
    %3383 = vrot.lane.b32.xlu0 %v3377, 96
    %v3384 = vpop.permute.xlu0 %3383
    %v3386 = vmul.f32 %v3376, %v3384
    %3388 = vrot.lane.b32.xlu0 %v3386, 16
    %v3389 = vpop.permute.xlu0 %3388
    %v3391 = vadd.f32 %v3381, %v3389
    %v3392 = vtanh.pop %v3391
    %3394 = vrot.lane.b32.xlu0 %v3392, 32
    %v3395 = vpop.permute.xlu0 %3394
    %v3397 = vmul.f32 %v3376, %v3395
    %v3398 = vxor.u32 %v3370, 2147483648
    %v3399 = vmul.f32 %v3398, 1.442695
    %v3400 = vpow.pop %v3399
    %v3401 = vadd.f32 %v3400, 1.0
    %v3402 = vrcp.pop %v3401
    %v3403 = vmul.f32 1.0, %v3402
    %v3404 = vtanh.pop %v3370
    %v3406 = vrot.slane %v3203, 2
    %v3408 = vmul.f32 %v3403, %v3406
    %3410 = vrot.lane.b32.xlu0 %v3404, 96
    %v3411 = vpop.permute.xlu0 %3410
    %v3413 = vmul.f32 %v3403, %v3411
    %3415 = vrot.lane.b32.xlu0 %v3413, 16
    %v3416 = vpop.permute.xlu0 %3415
    %v3418 = vadd.f32 %v3408, %v3416
    %v3419 = vtanh.pop %v3418
    %3421 = vrot.lane.b32.xlu0 %v3419, 32
    %v3422 = vpop.permute.xlu0 %3421
    %v3424 = vmul.f32 %v3403, %v3422
    %v3426 = vrot.slane %v3397, 2
    %3427 = vrot.lane.b32.xlu0 %v3426, 80
    %v3428 = vpop.permute.xlu0 %3427
    %v3429 = vsel %vm413, %v3428, 0
    %3431 = vmatprep.subr.mxu0 0.0
    %3432 = vmatpush1.msra.mxu0 %v2203
    %3433 = vmatprep.subr.mxu0 0.0
    %3434 = vmatpush1.msra.mxu0 %v2204
    %3435 = vmatprep.subr.mxu0 0.0
    %3436 = vmatpush1.msra.mxu0 0.0
    %3437 = vmatprep.subr.mxu0 0.0
    %3438 = vmatpush1.msra.mxu0 0.0
    %3439 = vmatprep.subr.mxu0 0.0
    %3440 = vmatpush1.msra.mxu0 0.0
    %3441 = vmatprep.subr.mxu0 0.0
    %3442 = vmatpush1.msra.mxu0 0.0
    %3443 = vmatprep.subr.mxu0 0.0
    %3444 = vmatpush1.msra.mxu0 0.0
    %3445 = vmatprep.subr.mxu0 0.0
    %3446 = vmatpush1.msra.mxu0 0.0
    %3447 = vmatprep.subr.mxu0 0.0
    %3448 = vmatpush1.msra.mxu0 0.0
    %3449 = vmatprep.subr.mxu0 0.0
    %3450 = vmatpush1.msra.mxu0 0.0
    %3451 = vmatprep.subr.mxu0 0.0
    %3452 = vmatpush1.msra.mxu0 0.0
    %3453 = vmatprep.subr.mxu0 0.0
    %3454 = vmatpush1.msra.mxu0 0.0
    %3455 = vmatprep.subr.mxu0 0.0
    %3456 = vmatpush1.msra.mxu0 0.0
    %3457 = vmatprep.subr.mxu0 0.0
    %3458 = vmatpush1.msra.mxu0 0.0
    %3459 = vmatprep.subr.mxu0 0.0
    %3460 = vmatpush1.msra.mxu0 0.0
    %3461 = vmatprep.subr.mxu0 0.0
    %3462 = vmatpush1.msra.mxu0 0.0
    %3463 = vmatprep.subr.mxu0 0.0
    %3464 = vmatpush1.msra.mxu0 0.0
    %3465 = vmatprep.subr.mxu0 0.0
    %3466 = vmatpush1.msra.mxu0 0.0
    %3467 = vmatprep.subr.mxu0 0.0
    %3468 = vmatpush1.msra.mxu0 0.0
    %3469 = vmatprep.subr.mxu0 0.0
    %3470 = vmatpush1.msra.mxu0 0.0
    %3471 = vmatprep.subr.mxu0 0.0
    %3472 = vmatpush1.msra.mxu0 0.0
    %3473 = vmatprep.subr.mxu0 0.0
    %3474 = vmatpush1.msra.mxu0 0.0
    %3475 = vmatprep.subr.mxu0 0.0
    %3476 = vmatpush1.msra.mxu0 0.0
    %3477 = vmatprep.subr.mxu0 0.0
    %3478 = vmatpush1.msra.mxu0 0.0
    %3479 = vmatprep.subr.mxu0 0.0
    %3480 = vmatpush1.msra.mxu0 0.0
    %3481 = vmatprep.subr.mxu0 0.0
    %3482 = vmatpush1.msra.mxu0 0.0
    %3483 = vmatprep.subr.mxu0 0.0
    %3484 = vmatpush1.msra.mxu0 0.0
    %3485 = vmatprep.subr.mxu0 0.0
    %3486 = vmatpush1.msra.mxu0 0.0
    %3487 = vmatprep.subr.mxu0 0.0
    %3488 = vmatpush1.msra.mxu0 0.0
    %3489 = vmatprep.subr.mxu0 0.0
    %3490 = vmatpush1.msra.mxu0 0.0
    %3491 = vmatprep.subr.mxu0 0.0
    %3492 = vmatpush1.msra.mxu0 0.0
    %3493 = vmatprep.subr.mxu0 0.0
    %3494 = vmatpush1.msra.mxu0 0.0
    %3495 = vmatprep.mubr.f32.mxu0 0.0
    %3496 = vmatmul.mubr.f32.gmra.mrb[0].mxu0 %v3429
    %v3497 = vpop.f32.mrb[0].mxu0
    %v3498 = vadd.f32 0.0, %v3497
    %v3499 = vpop.f32.mrb[0].mxu0
    %3500 = vdwg.mxu0
    %v3502 = vrot.slane %v3498, 4
    %v3504 = vadd.f32 %v2301, %v3502
    %v3506 = vrot.slane %v3424, 4
    %3507 = vrot.lane.b32.xlu0 %v3506, 16
    %v3508 = vpop.permute.xlu0 %3507
    %v3509 = vsel %vm413, %v3508, 0
    %3511 = vmatprep.subr.mxu0 0.0
    %3512 = vmatpush1.msra.mxu0 %v2205
    %3513 = vmatprep.subr.mxu0 0.0
    %3514 = vmatpush1.msra.mxu0 %v2206
    %3515 = vmatprep.subr.mxu0 0.0
    %3516 = vmatpush1.msra.mxu0 0.0
    %3517 = vmatprep.subr.mxu0 0.0
    %3518 = vmatpush1.msra.mxu0 0.0
    %3519 = vmatprep.subr.mxu0 0.0
    %3520 = vmatpush1.msra.mxu0 0.0
    %3521 = vmatprep.subr.mxu0 0.0
    %3522 = vmatpush1.msra.mxu0 0.0
    %3523 = vmatprep.subr.mxu0 0.0
    %3524 = vmatpush1.msra.mxu0 0.0
    %3525 = vmatprep.subr.mxu0 0.0
    %3526 = vmatpush1.msra.mxu0 0.0
    %3527 = vmatprep.subr.mxu0 0.0
    %3528 = vmatpush1.msra.mxu0 0.0
    %3529 = vmatprep.subr.mxu0 0.0
    %3530 = vmatpush1.msra.mxu0 0.0
    %3531 = vmatprep.subr.mxu0 0.0
    %3532 = vmatpush1.msra.mxu0 0.0
    %3533 = vmatprep.subr.mxu0 0.0
    %3534 = vmatpush1.msra.mxu0 0.0
    %3535 = vmatprep.subr.mxu0 0.0
    %3536 = vmatpush1.msra.mxu0 0.0
    %3537 = vmatprep.subr.mxu0 0.0
    %3538 = vmatpush1.msra.mxu0 0.0
    %3539 = vmatprep.subr.mxu0 0.0
    %3540 = vmatpush1.msra.mxu0 0.0
    %3541 = vmatprep.subr.mxu0 0.0
    %3542 = vmatpush1.msra.mxu0 0.0
    %3543 = vmatprep.subr.mxu0 0.0
    %3544 = vmatpush1.msra.mxu0 0.0
    %3545 = vmatprep.subr.mxu0 0.0
    %3546 = vmatpush1.msra.mxu0 0.0
    %3547 = vmatprep.subr.mxu0 0.0
    %3548 = vmatpush1.msra.mxu0 0.0
    %3549 = vmatprep.subr.mxu0 0.0
    %3550 = vmatpush1.msra.mxu0 0.0
    %3551 = vmatprep.subr.mxu0 0.0
    %3552 = vmatpush1.msra.mxu0 0.0
    %3553 = vmatprep.subr.mxu0 0.0
    %3554 = vmatpush1.msra.mxu0 0.0
    %3555 = vmatprep.subr.mxu0 0.0
    %3556 = vmatpush1.msra.mxu0 0.0
    %3557 = vmatprep.subr.mxu0 0.0
    %3558 = vmatpush1.msra.mxu0 0.0
    %3559 = vmatprep.subr.mxu0 0.0
    %3560 = vmatpush1.msra.mxu0 0.0
    %3561 = vmatprep.subr.mxu0 0.0
    %3562 = vmatpush1.msra.mxu0 0.0
    %3563 = vmatprep.subr.mxu0 0.0
    %3564 = vmatpush1.msra.mxu0 0.0
    %3565 = vmatprep.subr.mxu0 0.0
    %3566 = vmatpush1.msra.mxu0 0.0
    %3567 = vmatprep.subr.mxu0 0.0
    %3568 = vmatpush1.msra.mxu0 0.0
    %3569 = vmatprep.subr.mxu0 0.0
    %3570 = vmatpush1.msra.mxu0 0.0
    %3571 = vmatprep.subr.mxu0 0.0
    %3572 = vmatpush1.msra.mxu0 0.0
    %3573 = vmatprep.subr.mxu0 0.0
    %3574 = vmatpush1.msra.mxu0 0.0
    %3575 = vmatprep.mubr.f32.mxu0 0.0
    %3576 = vmatmul.mubr.f32.gmra.mrb[0].mxu0 %v3509
    %v3577 = vpop.f32.mrb[0].mxu0
    %v3578 = vadd.f32 0.0, %v3577
    %v3579 = vpop.f32.mrb[0].mxu0
    %3580 = vdwg.mxu0
    %v3582 = vrot.slane %v3578, 6
    %3583 = vrot.lane.b32.xlu0 %v3582, 64
    %v3584 = vpop.permute.xlu0 %3583
    %v3586 = vadd.f32 %v2296, %v3584
    %v3587 = vxor.u32 %v3504, 2147483648
    %v3588 = vmul.f32 %v3587, 1.442695
    %v3589 = vpow.pop %v3588
    %v3590 = vadd.f32 %v3589, 1.0
    %v3591 = vrcp.pop %v3590
    %v3592 = vmul.f32 1.0, %v3591
    %v3593 = vtanh.pop %v3504
    %v3595 = vrot.slane %v3391, 6
    %v3597 = vmul.f32 %v3592, %v3595
    %3599 = vrot.lane.b32.xlu0 %v3593, 96
    %v3600 = vpop.permute.xlu0 %3599
    %v3602 = vmul.f32 %v3592, %v3600
    %3604 = vrot.lane.b32.xlu0 %v3602, 16
    %v3605 = vpop.permute.xlu0 %3604
    %v3607 = vadd.f32 %v3597, %v3605
    %v3608 = vtanh.pop %v3607
    %3610 = vrot.lane.b32.xlu0 %v3608, 32
    %v3611 = vpop.permute.xlu0 %3610
    %v3613 = vmul.f32 %v3592, %v3611
    %v3614 = vxor.u32 %v3586, 2147483648
    %v3615 = vmul.f32 %v3614, 1.442695
    %v3616 = vpow.pop %v3615
    %v3617 = vadd.f32 %v3616, 1.0
    %v3618 = vrcp.pop %v3617
    %v3619 = vmul.f32 1.0, %v3618
    %v3620 = vtanh.pop %v3586
    %v3622 = vrot.slane %v3418, 2
    %v3624 = vmul.f32 %v3619, %v3622
    %3626 = vrot.lane.b32.xlu0 %v3620, 96
    %v3627 = vpop.permute.xlu0 %3626
    %v3629 = vmul.f32 %v3619, %v3627
    %3631 = vrot.lane.b32.xlu0 %v3629, 16
    %v3632 = vpop.permute.xlu0 %3631
    %v3634 = vadd.f32 %v3624, %v3632
    %v3635 = vtanh.pop %v3634
    %3637 = vrot.lane.b32.xlu0 %v3635, 32
    %v3638 = vpop.permute.xlu0 %3637
    %v3640 = vmul.f32 %v3619, %v3638
    %v3642 = vrot.slane %v3613, 4
    %3643 = vrot.lane.b32.xlu0 %v3642, 80
    %v3644 = vpop.permute.xlu0 %3643
    %v3645 = vsel %vm413, %v3644, 0
    %3647 = vmatprep.subr.mxu0 0.0
    %3648 = vmatpush1.msra.mxu0 %v2203
    %3649 = vmatprep.subr.mxu0 0.0
    %3650 = vmatpush1.msra.mxu0 %v2204
    %3651 = vmatprep.subr.mxu0 0.0
    %3652 = vmatpush1.msra.mxu0 0.0
    %3653 = vmatprep.subr.mxu0 0.0
    %3654 = vmatpush1.msra.mxu0 0.0
    %3655 = vmatprep.subr.mxu0 0.0
    %3656 = vmatpush1.msra.mxu0 0.0
    %3657 = vmatprep.subr.mxu0 0.0
    %3658 = vmatpush1.msra.mxu0 0.0
    %3659 = vmatprep.subr.mxu0 0.0
    %3660 = vmatpush1.msra.mxu0 0.0
    %3661 = vmatprep.subr.mxu0 0.0
    %3662 = vmatpush1.msra.mxu0 0.0
    %3663 = vmatprep.subr.mxu0 0.0
    %3664 = vmatpush1.msra.mxu0 0.0
    %3665 = vmatprep.subr.mxu0 0.0
    %3666 = vmatpush1.msra.mxu0 0.0
    %3667 = vmatprep.subr.mxu0 0.0
    %3668 = vmatpush1.msra.mxu0 0.0
    %3669 = vmatprep.subr.mxu0 0.0
    %3670 = vmatpush1.msra.mxu0 0.0
    %3671 = vmatprep.subr.mxu0 0.0
    %3672 = vmatpush1.msra.mxu0 0.0
    %3673 = vmatprep.subr.mxu0 0.0
    %3674 = vmatpush1.msra.mxu0 0.0
    %3675 = vmatprep.subr.mxu0 0.0
    %3676 = vmatpush1.msra.mxu0 0.0
    %3677 = vmatprep.subr.mxu0 0.0
    %3678 = vmatpush1.msra.mxu0 0.0
    %3679 = vmatprep.subr.mxu0 0.0
    %3680 = vmatpush1.msra.mxu0 0.0
    %3681 = vmatprep.subr.mxu0 0.0
    %3682 = vmatpush1.msra.mxu0 0.0
    %3683 = vmatprep.subr.mxu0 0.0
    %3684 = vmatpush1.msra.mxu0 0.0
    %3685 = vmatprep.subr.mxu0 0.0
    %3686 = vmatpush1.msra.mxu0 0.0
    %3687 = vmatprep.subr.mxu0 0.0
    %3688 = vmatpush1.msra.mxu0 0.0
    %3689 = vmatprep.subr.mxu0 0.0
    %3690 = vmatpush1.msra.mxu0 0.0
    %3691 = vmatprep.subr.mxu0 0.0
    %3692 = vmatpush1.msra.mxu0 0.0
    %3693 = vmatprep.subr.mxu0 0.0
    %3694 = vmatpush1.msra.mxu0 0.0
    %3695 = vmatprep.subr.mxu0 0.0
    %3696 = vmatpush1.msra.mxu0 0.0
    %3697 = vmatprep.subr.mxu0 0.0
    %3698 = vmatpush1.msra.mxu0 0.0
    %3699 = vmatprep.subr.mxu0 0.0
    %3700 = vmatpush1.msra.mxu0 0.0
    %3701 = vmatprep.subr.mxu0 0.0
    %3702 = vmatpush1.msra.mxu0 0.0
    %3703 = vmatprep.subr.mxu0 0.0
    %3704 = vmatpush1.msra.mxu0 0.0
    %3705 = vmatprep.subr.mxu0 0.0
    %3706 = vmatpush1.msra.mxu0 0.0
    %3707 = vmatprep.subr.mxu0 0.0
    %3708 = vmatpush1.msra.mxu0 0.0
    %3709 = vmatprep.subr.mxu0 0.0
    %3710 = vmatpush1.msra.mxu0 0.0
    %3711 = vmatprep.mubr.f32.mxu0 0.0
    %3712 = vmatmul.mubr.f32.gmra.mrb[0].mxu0 %v3645
    %v3713 = vpop.f32.mrb[0].mxu0
    %v3714 = vadd.f32 0.0, %v3713
    %v3715 = vpop.f32.mrb[0].mxu0
    %3716 = vdwg.mxu0
    %v3718 = vrot.slane %v3714, 2
    %v3720 = vadd.f32 %v2301, %v3718
    %v3722 = vrot.slane %v3640, 2
    %3723 = vrot.lane.b32.xlu0 %v3722, 16
    %v3724 = vpop.permute.xlu0 %3723
    %v3725 = vsel %vm413, %v3724, 0
    %3727 = vmatprep.subr.mxu0 0.0
    %3728 = vmatpush1.msra.mxu0 %v2205
    %3729 = vmatprep.subr.mxu0 0.0
    %3730 = vmatpush1.msra.mxu0 %v2206
    %3731 = vmatprep.subr.mxu0 0.0
    %3732 = vmatpush1.msra.mxu0 0.0
    %3733 = vmatprep.subr.mxu0 0.0
    %3734 = vmatpush1.msra.mxu0 0.0
    %3735 = vmatprep.subr.mxu0 0.0
    %3736 = vmatpush1.msra.mxu0 0.0
    %3737 = vmatprep.subr.mxu0 0.0
    %3738 = vmatpush1.msra.mxu0 0.0
    %3739 = vmatprep.subr.mxu0 0.0
    %3740 = vmatpush1.msra.mxu0 0.0
    %3741 = vmatprep.subr.mxu0 0.0
    %3742 = vmatpush1.msra.mxu0 0.0
    %3743 = vmatprep.subr.mxu0 0.0
    %3744 = vmatpush1.msra.mxu0 0.0
    %3745 = vmatprep.subr.mxu0 0.0
    %3746 = vmatpush1.msra.mxu0 0.0
    %3747 = vmatprep.subr.mxu0 0.0
    %3748 = vmatpush1.msra.mxu0 0.0
    %3749 = vmatprep.subr.mxu0 0.0
    %3750 = vmatpush1.msra.mxu0 0.0
    %3751 = vmatprep.subr.mxu0 0.0
    %3752 = vmatpush1.msra.mxu0 0.0
    %3753 = vmatprep.subr.mxu0 0.0
    %3754 = vmatpush1.msra.mxu0 0.0
    %3755 = vmatprep.subr.mxu0 0.0
    %3756 = vmatpush1.msra.mxu0 0.0
    %3757 = vmatprep.subr.mxu0 0.0
    %3758 = vmatpush1.msra.mxu0 0.0
    %3759 = vmatprep.subr.mxu0 0.0
    %3760 = vmatpush1.msra.mxu0 0.0
    %3761 = vmatprep.subr.mxu0 0.0
    %3762 = vmatpush1.msra.mxu0 0.0
    %3763 = vmatprep.subr.mxu0 0.0
    %3764 = vmatpush1.msra.mxu0 0.0
    %3765 = vmatprep.subr.mxu0 0.0
    %3766 = vmatpush1.msra.mxu0 0.0
    %3767 = vmatprep.subr.mxu0 0.0
    %3768 = vmatpush1.msra.mxu0 0.0
    %3769 = vmatprep.subr.mxu0 0.0
    %3770 = vmatpush1.msra.mxu0 0.0
    %3771 = vmatprep.subr.mxu0 0.0
    %3772 = vmatpush1.msra.mxu0 0.0
    %3773 = vmatprep.subr.mxu0 0.0
    %3774 = vmatpush1.msra.mxu0 0.0
    %3775 = vmatprep.subr.mxu0 0.0
    %3776 = vmatpush1.msra.mxu0 0.0
    %3777 = vmatprep.subr.mxu0 0.0
    %3778 = vmatpush1.msra.mxu0 0.0
    %3779 = vmatprep.subr.mxu0 0.0
    %3780 = vmatpush1.msra.mxu0 0.0
    %3781 = vmatprep.subr.mxu0 0.0
    %3782 = vmatpush1.msra.mxu0 0.0
    %3783 = vmatprep.subr.mxu0 0.0
    %3784 = vmatpush1.msra.mxu0 0.0
    %3785 = vmatprep.subr.mxu0 0.0
    %3786 = vmatpush1.msra.mxu0 0.0
    %3787 = vmatprep.subr.mxu0 0.0
    %3788 = vmatpush1.msra.mxu0 0.0
    %3789 = vmatprep.subr.mxu0 0.0
    %3790 = vmatpush1.msra.mxu0 0.0
    %3791 = vmatprep.mubr.f32.mxu0 0.0
    %3792 = vmatmul.mubr.f32.gmra.mrb[0].mxu0 %v3725
    %v3793 = vpop.f32.mrb[0].mxu0
    %v3794 = vadd.f32 0.0, %v3793
    %v3795 = vpop.f32.mrb[0].mxu0
    %3796 = vdwg.mxu0
    %3798 = vrot.lane.b32.xlu0 %v3794, 64
    %v3799 = vpop.permute.xlu0 %3798
    %v3801 = vadd.f32 %v2296, %v3799
    %v3802 = vxor.u32 %v3720, 2147483648
    %v3803 = vmul.f32 %v3802, 1.442695
    %v3804 = vpow.pop %v3803
    %v3805 = vadd.f32 %v3804, 1.0
    %v3806 = vrcp.pop %v3805
    %v3807 = vmul.f32 1.0, %v3806
    %v3808 = vtanh.pop %v3720
    %v3810 = vrot.slane %v3607, 6
    %v3812 = vmul.f32 %v3807, %v3810
    %3814 = vrot.lane.b32.xlu0 %v3808, 96
    %v3815 = vpop.permute.xlu0 %3814
    %v3817 = vmul.f32 %v3807, %v3815
    %3819 = vrot.lane.b32.xlu0 %v3817, 16
    %v3820 = vpop.permute.xlu0 %3819
    %v3822 = vadd.f32 %v3812, %v3820
    %v3823 = vtanh.pop %v3822
    %3825 = vrot.lane.b32.xlu0 %v3823, 32
    %v3826 = vpop.permute.xlu0 %3825
    %v3828 = vmul.f32 %v3807, %v3826
    %v3829 = vxor.u32 %v3801, 2147483648
    %v3830 = vmul.f32 %v3829, 1.442695
    %v3831 = vpow.pop %v3830
    %v3832 = vadd.f32 %v3831, 1.0
    %v3833 = vrcp.pop %v3832
    %v3834 = vmul.f32 1.0, %v3833
    %v3835 = vtanh.pop %v3801
    %v3837 = vrot.slane %v3634, 2
    %v3839 = vmul.f32 %v3834, %v3837
    %3841 = vrot.lane.b32.xlu0 %v3835, 96
    %v3842 = vpop.permute.xlu0 %3841
    %v3844 = vmul.f32 %v3834, %v3842
    %3846 = vrot.lane.b32.xlu0 %v3844, 16
    %v3847 = vpop.permute.xlu0 %3846
    %v3849 = vadd.f32 %v3839, %v3847
    %v3850 = vtanh.pop %v3849
    %3852 = vrot.lane.b32.xlu0 %v3850, 32
    %v3853 = vpop.permute.xlu0 %3852
    %v3855 = vmul.f32 %v3834, %v3853
    %3858 = vrot.lane.b32.xlu0 %v3855, 32
    %v3859 = vpop.permute.xlu0 %3858
    %v3861 = vsel %vm413, %v2354, %v3859
    %3862 = vrot.lane.b32.xlu0 %v2539, 80
    %v3863 = vpop.permute.xlu0 %3862
    %3865 = vrot.lane.b32.xlu0 %v3640, 32
    %v3866 = vpop.permute.xlu0 %3865
    %v3868 = vsel %vm413, %v3863, %v3866
    %3869 = vrot.lane.b32.xlu0 %v2755, 80
    %v3870 = vpop.permute.xlu0 %3869
    %3872 = vrot.lane.b32.xlu0 %v3424, 32
    %v3873 = vpop.permute.xlu0 %3872
    %v3875 = vsel %vm413, %v3870, %v3873
    %3876 = vrot.lane.b32.xlu0 %v2970, 80
    %v3877 = vpop.permute.xlu0 %3876
    %3879 = vrot.lane.b32.xlu0 %v3209, 32
    %v3880 = vpop.permute.xlu0 %3879
    %v3882 = vsel %vm413, %v3877, %v3880
    %3884 = vrot.lane.b32.xlu0 %v2997, 32
    %v3885 = vpop.permute.xlu0 %3884
    %v3887 = vsel %vm413, %v3212, %v3885
    %3888 = vrot.lane.b32.xlu0 %v3397, 80
    %v3889 = vpop.permute.xlu0 %3888
    %3891 = vrot.lane.b32.xlu0 %v2782, 32
    %v3892 = vpop.permute.xlu0 %3891
    %v3894 = vsel %vm413, %v3889, %v3892
    %3895 = vrot.lane.b32.xlu0 %v3613, 80
    %v3896 = vpop.permute.xlu0 %3895
    %3898 = vrot.lane.b32.xlu0 %v2566, 32
    %v3899 = vpop.permute.xlu0 %3898
    %v3901 = vsel %vm413, %v3896, %v3899
    %3903 = vrot.lane.b32.xlu0 %v3828, 80
    %v3904 = vpop.permute.xlu0 %3903
    %3906 = vrot.lane.b32.xlu0 %v2351, 32
    %v3907 = vpop.permute.xlu0 %3906
    %v3909 = vsel %vm413, %v3904, %v3907
    %v3910 = vsel %vm303, %v3861, %v3868
    %v3911 = vsel %vm305, %v3910, %v3875
    %v3912 = vsel %vm307, %v3911, %v3882
    %v3913 = vsel %vm303, %v3887, %v3894
    %v3914 = vsel %vm305, %v3913, %v3901
    %v3915 = vsel %vm307, %v3914, %v3909
    %v3916 = vld [vmem:[#allocation24] sm:$0xff]
    %v3917 = vld [vmem:[#allocation26] sm:$0xff]
    %v3918 = vld [vmem:[#allocation21] sm:$0xff]
    %v3919 = vld [vmem:[#allocation21 + $0x8] sm:$0xff]
    %v3920 = vld [vmem:[#allocation21 + $0x10] sm:$0xff]
    %v3921 = vld [vmem:[#allocation21 + $0x18] sm:$0xff]
    %v3922 = vld [vmem:[#allocation23] sm:$0x1]
    %v3924 = vlaneseq
    %v3925 = vshrl.u32 %v3924, 7
    %v3926 = vsub.s32 0, %v3925
    %v3927 = vrot.slane %v3922, %v3926
    %v3930 = vsel %vm525, %v3912, 0
    %v3933 = vsel %vm525, %v3915, 0
    %3935 = vmatprep.subr.mxu0 0.0
    %3936 = vmatpush1.msra.mxu0 %v3918
    %3937 = vmatprep.subr.mxu0 0.0
    %3938 = vmatpush1.msra.mxu0 %v3919
    %3939 = vmatprep.subr.mxu0 0.0
    %3940 = vmatpush1.msra.mxu0 %v3920
    %3941 = vmatprep.subr.mxu0 0.0
    %3942 = vmatpush1.msra.mxu0 %v3921
    %3943 = vmatprep.subr.mxu0 0.0
    %3944 = vmatpush1.msra.mxu0 0.0
    %3945 = vmatprep.subr.mxu0 0.0
    %3946 = vmatpush1.msra.mxu0 0.0
    %3947 = vmatprep.subr.mxu0 0.0
    %3948 = vmatpush1.msra.mxu0 0.0
    %3949 = vmatprep.subr.mxu0 0.0
    %3950 = vmatpush1.msra.mxu0 0.0
    %3951 = vmatprep.subr.mxu0 0.0
    %3952 = vmatpush1.msra.mxu0 0.0
    %3953 = vmatprep.subr.mxu0 0.0
    %3954 = vmatpush1.msra.mxu0 0.0
    %3955 = vmatprep.subr.mxu0 0.0
    %3956 = vmatpush1.msra.mxu0 0.0
    %3957 = vmatprep.subr.mxu0 0.0
    %3958 = vmatpush1.msra.mxu0 0.0
    %3959 = vmatprep.subr.mxu0 0.0
    %3960 = vmatpush1.msra.mxu0 0.0
    %3961 = vmatprep.subr.mxu0 0.0
    %3962 = vmatpush1.msra.mxu0 0.0
    %3963 = vmatprep.subr.mxu0 0.0
    %3964 = vmatpush1.msra.mxu0 0.0
    %3965 = vmatprep.subr.mxu0 0.0
    %3966 = vmatpush1.msra.mxu0 0.0
    %3967 = vmatprep.subr.mxu0 0.0
    %3968 = vmatpush1.msra.mxu0 0.0
    %3969 = vmatprep.subr.mxu0 0.0
    %3970 = vmatpush1.msra.mxu0 0.0
    %3971 = vmatprep.subr.mxu0 0.0
    %3972 = vmatpush1.msra.mxu0 0.0
    %3973 = vmatprep.subr.mxu0 0.0
    %3974 = vmatpush1.msra.mxu0 0.0
    %3975 = vmatprep.subr.mxu0 0.0
    %3976 = vmatpush1.msra.mxu0 0.0
    %3977 = vmatprep.subr.mxu0 0.0
    %3978 = vmatpush1.msra.mxu0 0.0
    %3979 = vmatprep.subr.mxu0 0.0
    %3980 = vmatpush1.msra.mxu0 0.0
    %3981 = vmatprep.subr.mxu0 0.0
    %3982 = vmatpush1.msra.mxu0 0.0
    %3983 = vmatprep.subr.mxu0 0.0
    %3984 = vmatpush1.msra.mxu0 0.0
    %3985 = vmatprep.subr.mxu0 0.0
    %3986 = vmatpush1.msra.mxu0 0.0
    %3987 = vmatprep.subr.mxu0 0.0
    %3988 = vmatpush1.msra.mxu0 0.0
    %3989 = vmatprep.subr.mxu0 0.0
    %3990 = vmatpush1.msra.mxu0 0.0
    %3991 = vmatprep.subr.mxu0 0.0
    %3992 = vmatpush1.msra.mxu0 0.0
    %3993 = vmatprep.subr.mxu0 0.0
    %3994 = vmatpush1.msra.mxu0 0.0
    %3995 = vmatprep.subr.mxu0 0.0
    %3996 = vmatpush1.msra.mxu0 0.0
    %3997 = vmatprep.subr.mxu0 0.0
    %3998 = vmatpush1.msra.mxu0 0.0
    %3999 = vmatprep.mubr.f32.mxu0 0.0
    %4000 = vmatmul.mubr.f32.gmra.mrb[0].mxu0 %v3930
    %v4001 = vpop.f32.mrb[0].mxu0
    %v4002 = vadd.f32 %v3927, %v4001
    %v4003 = vpop.f32.mrb[0].mxu0
    %4004 = vmatprep.mubr.f32.mxu0 0.0
    %4005 = vmatmul.mubr.f32.gmra.mrb[0].mxu0 %v3933
    %v4006 = vpop.f32.mrb[0].mxu0
    %v4007 = vadd.f32 %v3927, %v4006
    %v4008 = vpop.f32.mrb[0].mxu0
    %4009 = vdwg.mxu0
    %v4010 = vxor.u32 %v4002, 2147483648
    %v4011 = vmul.f32 %v4010, 1.442695
    %v4012 = vpow.pop %v4011
    %v4013 = vadd.f32 %v4012, 1.0
    %v4014 = vrcp.pop %v4013
    %v4015 = vmul.f32 1.0, %v4014
    %v4016 = vtanh.pop %v4002
    %v4017 = vmul.f32 %v4015, 0.0
    %4019 = vrot.lane.b32.xlu0 %v4016, 112
    %v4020 = vpop.permute.xlu0 %4019
    %v4022 = vmul.f32 %v4015, %v4020
    %4024 = vrot.lane.b32.xlu0 %v4022, 8
    %v4025 = vpop.permute.xlu0 %4024
    %v4027 = vadd.f32 %v4017, %v4025
    %v4028 = vtanh.pop %v4027
    %4030 = vrot.lane.b32.xlu0 %v4028, 16
    %v4031 = vpop.permute.xlu0 %4030
    %v4033 = vmul.f32 %v4015, %v4031
    %v4034 = vxor.u32 %v4007, 2147483648
    %v4035 = vmul.f32 %v4034, 1.442695
    %v4036 = vpow.pop %v4035
    %v4037 = vadd.f32 %v4036, 1.0
    %v4038 = vrcp.pop %v4037
    %v4039 = vmul.f32 1.0, %v4038
    %v4040 = vtanh.pop %v4007
    %v4041 = vmul.f32 %v4039, 0.0
    %4043 = vrot.lane.b32.xlu0 %v4040, 112
    %v4044 = vpop.permute.xlu0 %4043
    %v4046 = vmul.f32 %v4039, %v4044
    %4048 = vrot.lane.b32.xlu0 %v4046, 8
    %v4049 = vpop.permute.xlu0 %4048
    %v4051 = vadd.f32 %v4041, %v4049
    %v4052 = vtanh.pop %v4051
    %4054 = vrot.lane.b32.xlu0 %v4052, 16
    %v4055 = vpop.permute.xlu0 %4054
    %v4057 = vmul.f32 %v4039, %v4055
    %4059 = vrot.lane.b32.xlu0 %v4033, 104
    %v4060 = vpop.permute.xlu0 %4059
    %v4061 = vsel %vm320, %v4060, 0
    %4063 = vmatprep.subr.mxu0 0.0
    %4064 = vmatpush1.msra.mxu0 %v3916
    %4065 = vmatprep.subr.mxu0 0.0
    %4066 = vmatpush1.msra.mxu0 0.0
    %4067 = vmatprep.subr.mxu0 0.0
    %4068 = vmatpush1.msra.mxu0 0.0
    %4069 = vmatprep.subr.mxu0 0.0
    %4070 = vmatpush1.msra.mxu0 0.0
    %4071 = vmatprep.subr.mxu0 0.0
    %4072 = vmatpush1.msra.mxu0 0.0
    %4073 = vmatprep.subr.mxu0 0.0
    %4074 = vmatpush1.msra.mxu0 0.0
    %4075 = vmatprep.subr.mxu0 0.0
    %4076 = vmatpush1.msra.mxu0 0.0
    %4077 = vmatprep.subr.mxu0 0.0
    %4078 = vmatpush1.msra.mxu0 0.0
    %4079 = vmatprep.subr.mxu0 0.0
    %4080 = vmatpush1.msra.mxu0 0.0
    %4081 = vmatprep.subr.mxu0 0.0
    %4082 = vmatpush1.msra.mxu0 0.0
    %4083 = vmatprep.subr.mxu0 0.0
    %4084 = vmatpush1.msra.mxu0 0.0
    %4085 = vmatprep.subr.mxu0 0.0
    %4086 = vmatpush1.msra.mxu0 0.0
    %4087 = vmatprep.subr.mxu0 0.0
    %4088 = vmatpush1.msra.mxu0 0.0
    %4089 = vmatprep.subr.mxu0 0.0
    %4090 = vmatpush1.msra.mxu0 0.0
    %4091 = vmatprep.subr.mxu0 0.0
    %4092 = vmatpush1.msra.mxu0 0.0
    %4093 = vmatprep.subr.mxu0 0.0
    %4094 = vmatpush1.msra.mxu0 0.0
    %4095 = vmatprep.subr.mxu0 0.0
    %4096 = vmatpush1.msra.mxu0 0.0
    %4097 = vmatprep.subr.mxu0 0.0
    %4098 = vmatpush1.msra.mxu0 0.0
    %4099 = vmatprep.subr.mxu0 0.0
    %4100 = vmatpush1.msra.mxu0 0.0
    %4101 = vmatprep.subr.mxu0 0.0
    %4102 = vmatpush1.msra.mxu0 0.0
    %4103 = vmatprep.subr.mxu0 0.0
    %4104 = vmatpush1.msra.mxu0 0.0
    %4105 = vmatprep.subr.mxu0 0.0
    %4106 = vmatpush1.msra.mxu0 0.0
    %4107 = vmatprep.subr.mxu0 0.0
    %4108 = vmatpush1.msra.mxu0 0.0
    %4109 = vmatprep.subr.mxu0 0.0
    %4110 = vmatpush1.msra.mxu0 0.0
    %4111 = vmatprep.subr.mxu0 0.0
    %4112 = vmatpush1.msra.mxu0 0.0
    %4113 = vmatprep.subr.mxu0 0.0
    %4114 = vmatpush1.msra.mxu0 0.0
    %4115 = vmatprep.subr.mxu0 0.0
    %4116 = vmatpush1.msra.mxu0 0.0
    %4117 = vmatprep.subr.mxu0 0.0
    %4118 = vmatpush1.msra.mxu0 0.0
    %4119 = vmatprep.subr.mxu0 0.0
    %4120 = vmatpush1.msra.mxu0 0.0
    %4121 = vmatprep.subr.mxu0 0.0
    %4122 = vmatpush1.msra.mxu0 0.0
    %4123 = vmatprep.subr.mxu0 0.0
    %4124 = vmatpush1.msra.mxu0 0.0
    %4125 = vmatprep.subr.mxu0 0.0
    %4126 = vmatpush1.msra.mxu0 0.0
    %4127 = vmatprep.mubr.f32.mxu0 0.0
    %4128 = vmatmul.mubr.f32.gmra.mrb[0].mxu0 %v4061
    %v4129 = vpop.f32.mrb[0].mxu0
    %v4130 = vadd.f32 0.0, %v4129
    %v4131 = vpop.f32.mrb[0].mxu0
    %4132 = vdwg.mxu0
    %v4134 = vrot.slane %v4130, 6
    %v4136 = vadd.f32 %v4002, %v4134
    %v4138 = vrot.slane %v4057, 6
    %4139 = vrot.lane.b32.xlu0 %v4138, 72
    %v4140 = vpop.permute.xlu0 %4139
    %v4141 = vsel %vm320, %v4140, 0
    %4143 = vmatprep.subr.mxu0 0.0
    %4144 = vmatpush1.msra.mxu0 %v3917
    %4145 = vmatprep.subr.mxu0 0.0
    %4146 = vmatpush1.msra.mxu0 0.0
    %4147 = vmatprep.subr.mxu0 0.0
    %4148 = vmatpush1.msra.mxu0 0.0
    %4149 = vmatprep.subr.mxu0 0.0
    %4150 = vmatpush1.msra.mxu0 0.0
    %4151 = vmatprep.subr.mxu0 0.0
    %4152 = vmatpush1.msra.mxu0 0.0
    %4153 = vmatprep.subr.mxu0 0.0
    %4154 = vmatpush1.msra.mxu0 0.0
    %4155 = vmatprep.subr.mxu0 0.0
    %4156 = vmatpush1.msra.mxu0 0.0
    %4157 = vmatprep.subr.mxu0 0.0
    %4158 = vmatpush1.msra.mxu0 0.0
    %4159 = vmatprep.subr.mxu0 0.0
    %4160 = vmatpush1.msra.mxu0 0.0
    %4161 = vmatprep.subr.mxu0 0.0
    %4162 = vmatpush1.msra.mxu0 0.0
    %4163 = vmatprep.subr.mxu0 0.0
    %4164 = vmatpush1.msra.mxu0 0.0
    %4165 = vmatprep.subr.mxu0 0.0
    %4166 = vmatpush1.msra.mxu0 0.0
    %4167 = vmatprep.subr.mxu0 0.0
    %4168 = vmatpush1.msra.mxu0 0.0
    %4169 = vmatprep.subr.mxu0 0.0
    %4170 = vmatpush1.msra.mxu0 0.0
    %4171 = vmatprep.subr.mxu0 0.0
    %4172 = vmatpush1.msra.mxu0 0.0
    %4173 = vmatprep.subr.mxu0 0.0
    %4174 = vmatpush1.msra.mxu0 0.0
    %4175 = vmatprep.subr.mxu0 0.0
    %4176 = vmatpush1.msra.mxu0 0.0
    %4177 = vmatprep.subr.mxu0 0.0
    %4178 = vmatpush1.msra.mxu0 0.0
    %4179 = vmatprep.subr.mxu0 0.0
    %4180 = vmatpush1.msra.mxu0 0.0
    %4181 = vmatprep.subr.mxu0 0.0
    %4182 = vmatpush1.msra.mxu0 0.0
    %4183 = vmatprep.subr.mxu0 0.0
    %4184 = vmatpush1.msra.mxu0 0.0
    %4185 = vmatprep.subr.mxu0 0.0
    %4186 = vmatpush1.msra.mxu0 0.0
    %4187 = vmatprep.subr.mxu0 0.0
    %4188 = vmatpush1.msra.mxu0 0.0
    %4189 = vmatprep.subr.mxu0 0.0
    %4190 = vmatpush1.msra.mxu0 0.0
    %4191 = vmatprep.subr.mxu0 0.0
    %4192 = vmatpush1.msra.mxu0 0.0
    %4193 = vmatprep.subr.mxu0 0.0
    %4194 = vmatpush1.msra.mxu0 0.0
    %4195 = vmatprep.subr.mxu0 0.0
    %4196 = vmatpush1.msra.mxu0 0.0
    %4197 = vmatprep.subr.mxu0 0.0
    %4198 = vmatpush1.msra.mxu0 0.0
    %4199 = vmatprep.subr.mxu0 0.0
    %4200 = vmatpush1.msra.mxu0 0.0
    %4201 = vmatprep.subr.mxu0 0.0
    %4202 = vmatpush1.msra.mxu0 0.0
    %4203 = vmatprep.subr.mxu0 0.0
    %4204 = vmatpush1.msra.mxu0 0.0
    %4205 = vmatprep.subr.mxu0 0.0
    %4206 = vmatpush1.msra.mxu0 0.0
    %4207 = vmatprep.mubr.f32.mxu0 0.0
    %4208 = vmatmul.mubr.f32.gmra.mrb[0].mxu0 %v4141
    %v4209 = vpop.f32.mrb[0].mxu0
    %v4210 = vadd.f32 0.0, %v4209
    %v4211 = vpop.f32.mrb[0].mxu0
    %4212 = vdwg.mxu0
    %v4214 = vrot.slane %v4210, 4
    %4215 = vrot.lane.b32.xlu0 %v4214, 32
    %v4216 = vpop.permute.xlu0 %4215
    %v4218 = vadd.f32 %v4007, %v4216
    %v4219 = vxor.u32 %v4136, 2147483648
    %v4220 = vmul.f32 %v4219, 1.442695
    %v4221 = vpow.pop %v4220
    %v4222 = vadd.f32 %v4221, 1.0
    %v4223 = vrcp.pop %v4222
    %v4224 = vmul.f32 1.0, %v4223
    %v4225 = vtanh.pop %v4136
    %v4227 = vrot.slane %v4027, 6
    %v4229 = vmul.f32 %v4224, %v4227
    %4231 = vrot.lane.b32.xlu0 %v4225, 112
    %v4232 = vpop.permute.xlu0 %4231
    %v4234 = vmul.f32 %v4224, %v4232
    %4236 = vrot.lane.b32.xlu0 %v4234, 8
    %v4237 = vpop.permute.xlu0 %4236
    %v4239 = vadd.f32 %v4229, %v4237
    %v4240 = vtanh.pop %v4239
    %4242 = vrot.lane.b32.xlu0 %v4240, 16
    %v4243 = vpop.permute.xlu0 %4242
    %v4245 = vmul.f32 %v4224, %v4243
    %v4246 = vxor.u32 %v4218, 2147483648
    %v4247 = vmul.f32 %v4246, 1.442695
    %v4248 = vpow.pop %v4247
    %v4249 = vadd.f32 %v4248, 1.0
    %v4250 = vrcp.pop %v4249
    %v4251 = vmul.f32 1.0, %v4250
    %v4252 = vtanh.pop %v4218
    %v4254 = vrot.slane %v4051, 2
    %v4256 = vmul.f32 %v4251, %v4254
    %4258 = vrot.lane.b32.xlu0 %v4252, 112
    %v4259 = vpop.permute.xlu0 %4258
    %v4261 = vmul.f32 %v4251, %v4259
    %4263 = vrot.lane.b32.xlu0 %v4261, 8
    %v4264 = vpop.permute.xlu0 %4263
    %v4266 = vadd.f32 %v4256, %v4264
    %v4267 = vtanh.pop %v4266
    %4269 = vrot.lane.b32.xlu0 %v4267, 16
    %v4270 = vpop.permute.xlu0 %4269
    %v4272 = vmul.f32 %v4251, %v4270
    %v4274 = vrot.slane %v4245, 2
    %4275 = vrot.lane.b32.xlu0 %v4274, 104
    %v4276 = vpop.permute.xlu0 %4275
    %v4277 = vsel %vm320, %v4276, 0
    %4279 = vmatprep.subr.mxu0 0.0
    %4280 = vmatpush1.msra.mxu0 %v3916
    %4281 = vmatprep.subr.mxu0 0.0
    %4282 = vmatpush1.msra.mxu0 0.0
    %4283 = vmatprep.subr.mxu0 0.0
    %4284 = vmatpush1.msra.mxu0 0.0
    %4285 = vmatprep.subr.mxu0 0.0
    %4286 = vmatpush1.msra.mxu0 0.0
    %4287 = vmatprep.subr.mxu0 0.0
    %4288 = vmatpush1.msra.mxu0 0.0
    %4289 = vmatprep.subr.mxu0 0.0
    %4290 = vmatpush1.msra.mxu0 0.0
    %4291 = vmatprep.subr.mxu0 0.0
    %4292 = vmatpush1.msra.mxu0 0.0
    %4293 = vmatprep.subr.mxu0 0.0
    %4294 = vmatpush1.msra.mxu0 0.0
    %4295 = vmatprep.subr.mxu0 0.0
    %4296 = vmatpush1.msra.mxu0 0.0
    %4297 = vmatprep.subr.mxu0 0.0
    %4298 = vmatpush1.msra.mxu0 0.0
    %4299 = vmatprep.subr.mxu0 0.0
    %4300 = vmatpush1.msra.mxu0 0.0
    %4301 = vmatprep.subr.mxu0 0.0
    %4302 = vmatpush1.msra.mxu0 0.0
    %4303 = vmatprep.subr.mxu0 0.0
    %4304 = vmatpush1.msra.mxu0 0.0
    %4305 = vmatprep.subr.mxu0 0.0
    %4306 = vmatpush1.msra.mxu0 0.0
    %4307 = vmatprep.subr.mxu0 0.0
    %4308 = vmatpush1.msra.mxu0 0.0
    %4309 = vmatprep.subr.mxu0 0.0
    %4310 = vmatpush1.msra.mxu0 0.0
    %4311 = vmatprep.subr.mxu0 0.0
    %4312 = vmatpush1.msra.mxu0 0.0
    %4313 = vmatprep.subr.mxu0 0.0
    %4314 = vmatpush1.msra.mxu0 0.0
    %4315 = vmatprep.subr.mxu0 0.0
    %4316 = vmatpush1.msra.mxu0 0.0
    %4317 = vmatprep.subr.mxu0 0.0
    %4318 = vmatpush1.msra.mxu0 0.0
    %4319 = vmatprep.subr.mxu0 0.0
    %4320 = vmatpush1.msra.mxu0 0.0
    %4321 = vmatprep.subr.mxu0 0.0
    %4322 = vmatpush1.msra.mxu0 0.0
    %4323 = vmatprep.subr.mxu0 0.0
    %4324 = vmatpush1.msra.mxu0 0.0
    %4325 = vmatprep.subr.mxu0 0.0
    %4326 = vmatpush1.msra.mxu0 0.0
    %4327 = vmatprep.subr.mxu0 0.0
    %4328 = vmatpush1.msra.mxu0 0.0
    %4329 = vmatprep.subr.mxu0 0.0
    %4330 = vmatpush1.msra.mxu0 0.0
    %4331 = vmatprep.subr.mxu0 0.0
    %4332 = vmatpush1.msra.mxu0 0.0
    %4333 = vmatprep.subr.mxu0 0.0
    %4334 = vmatpush1.msra.mxu0 0.0
    %4335 = vmatprep.subr.mxu0 0.0
    %4336 = vmatpush1.msra.mxu0 0.0
    %4337 = vmatprep.subr.mxu0 0.0
    %4338 = vmatpush1.msra.mxu0 0.0
    %4339 = vmatprep.subr.mxu0 0.0
    %4340 = vmatpush1.msra.mxu0 0.0
    %4341 = vmatprep.subr.mxu0 0.0
    %4342 = vmatpush1.msra.mxu0 0.0
    %4343 = vmatprep.mubr.f32.mxu0 0.0
    %4344 = vmatmul.mubr.f32.gmra.mrb[0].mxu0 %v4277
    %v4345 = vpop.f32.mrb[0].mxu0
    %v4346 = vadd.f32 0.0, %v4345
    %v4347 = vpop.f32.mrb[0].mxu0
    %4348 = vdwg.mxu0
    %v4350 = vrot.slane %v4346, 4
    %v4352 = vadd.f32 %v4002, %v4350
    %v4354 = vrot.slane %v4272, 4
    %4355 = vrot.lane.b32.xlu0 %v4354, 72
    %v4356 = vpop.permute.xlu0 %4355
    %v4357 = vsel %vm320, %v4356, 0
    %4359 = vmatprep.subr.mxu0 0.0
    %4360 = vmatpush1.msra.mxu0 %v3917
    %4361 = vmatprep.subr.mxu0 0.0
    %4362 = vmatpush1.msra.mxu0 0.0
    %4363 = vmatprep.subr.mxu0 0.0
    %4364 = vmatpush1.msra.mxu0 0.0
    %4365 = vmatprep.subr.mxu0 0.0
    %4366 = vmatpush1.msra.mxu0 0.0
    %4367 = vmatprep.subr.mxu0 0.0
    %4368 = vmatpush1.msra.mxu0 0.0
    %4369 = vmatprep.subr.mxu0 0.0
    %4370 = vmatpush1.msra.mxu0 0.0
    %4371 = vmatprep.subr.mxu0 0.0
    %4372 = vmatpush1.msra.mxu0 0.0
    %4373 = vmatprep.subr.mxu0 0.0
    %4374 = vmatpush1.msra.mxu0 0.0
    %4375 = vmatprep.subr.mxu0 0.0
    %4376 = vmatpush1.msra.mxu0 0.0
    %4377 = vmatprep.subr.mxu0 0.0
    %4378 = vmatpush1.msra.mxu0 0.0
    %4379 = vmatprep.subr.mxu0 0.0
    %4380 = vmatpush1.msra.mxu0 0.0
    %4381 = vmatprep.subr.mxu0 0.0
    %4382 = vmatpush1.msra.mxu0 0.0
    %4383 = vmatprep.subr.mxu0 0.0
    %4384 = vmatpush1.msra.mxu0 0.0
    %4385 = vmatprep.subr.mxu0 0.0
    %4386 = vmatpush1.msra.mxu0 0.0
    %4387 = vmatprep.subr.mxu0 0.0
    %4388 = vmatpush1.msra.mxu0 0.0
    %4389 = vmatprep.subr.mxu0 0.0
    %4390 = vmatpush1.msra.mxu0 0.0
    %4391 = vmatprep.subr.mxu0 0.0
    %4392 = vmatpush1.msra.mxu0 0.0
    %4393 = vmatprep.subr.mxu0 0.0
    %4394 = vmatpush1.msra.mxu0 0.0
    %4395 = vmatprep.subr.mxu0 0.0
    %4396 = vmatpush1.msra.mxu0 0.0
    %4397 = vmatprep.subr.mxu0 0.0
    %4398 = vmatpush1.msra.mxu0 0.0
    %4399 = vmatprep.subr.mxu0 0.0
    %4400 = vmatpush1.msra.mxu0 0.0
    %4401 = vmatprep.subr.mxu0 0.0
    %4402 = vmatpush1.msra.mxu0 0.0
    %4403 = vmatprep.subr.mxu0 0.0
    %4404 = vmatpush1.msra.mxu0 0.0
    %4405 = vmatprep.subr.mxu0 0.0
    %4406 = vmatpush1.msra.mxu0 0.0
    %4407 = vmatprep.subr.mxu0 0.0
    %4408 = vmatpush1.msra.mxu0 0.0
    %4409 = vmatprep.subr.mxu0 0.0
    %4410 = vmatpush1.msra.mxu0 0.0
    %4411 = vmatprep.subr.mxu0 0.0
    %4412 = vmatpush1.msra.mxu0 0.0
    %4413 = vmatprep.subr.mxu0 0.0
    %4414 = vmatpush1.msra.mxu0 0.0
    %4415 = vmatprep.subr.mxu0 0.0
    %4416 = vmatpush1.msra.mxu0 0.0
    %4417 = vmatprep.subr.mxu0 0.0
    %4418 = vmatpush1.msra.mxu0 0.0
    %4419 = vmatprep.subr.mxu0 0.0
    %4420 = vmatpush1.msra.mxu0 0.0
    %4421 = vmatprep.subr.mxu0 0.0
    %4422 = vmatpush1.msra.mxu0 0.0
    %4423 = vmatprep.mubr.f32.mxu0 0.0
    %4424 = vmatmul.mubr.f32.gmra.mrb[0].mxu0 %v4357
    %v4425 = vpop.f32.mrb[0].mxu0
    %v4426 = vadd.f32 0.0, %v4425
    %v4427 = vpop.f32.mrb[0].mxu0
    %4428 = vdwg.mxu0
    %v4430 = vrot.slane %v4426, 6
    %4431 = vrot.lane.b32.xlu0 %v4430, 32
    %v4432 = vpop.permute.xlu0 %4431
    %v4434 = vadd.f32 %v4007, %v4432
    %v4435 = vxor.u32 %v4352, 2147483648
    %v4436 = vmul.f32 %v4435, 1.442695
    %v4437 = vpow.pop %v4436
    %v4438 = vadd.f32 %v4437, 1.0
    %v4439 = vrcp.pop %v4438
    %v4440 = vmul.f32 1.0, %v4439
    %v4441 = vtanh.pop %v4352
    %v4443 = vrot.slane %v4239, 6
    %v4445 = vmul.f32 %v4440, %v4443
    %4447 = vrot.lane.b32.xlu0 %v4441, 112
    %v4448 = vpop.permute.xlu0 %4447
    %v4450 = vmul.f32 %v4440, %v4448
    %4452 = vrot.lane.b32.xlu0 %v4450, 8
    %v4453 = vpop.permute.xlu0 %4452
    %v4455 = vadd.f32 %v4445, %v4453
    %v4456 = vtanh.pop %v4455
    %4458 = vrot.lane.b32.xlu0 %v4456, 16
    %v4459 = vpop.permute.xlu0 %4458
    %v4461 = vmul.f32 %v4440, %v4459
    %v4462 = vxor.u32 %v4434, 2147483648
    %v4463 = vmul.f32 %v4462, 1.442695
    %v4464 = vpow.pop %v4463
    %v4465 = vadd.f32 %v4464, 1.0
    %v4466 = vrcp.pop %v4465
    %v4467 = vmul.f32 1.0, %v4466
    %v4468 = vtanh.pop %v4434
    %v4470 = vrot.slane %v4266, 2
    %v4472 = vmul.f32 %v4467, %v4470
    %4474 = vrot.lane.b32.xlu0 %v4468, 112
    %v4475 = vpop.permute.xlu0 %4474
    %v4477 = vmul.f32 %v4467, %v4475
    %4479 = vrot.lane.b32.xlu0 %v4477, 8
    %v4480 = vpop.permute.xlu0 %4479
    %v4482 = vadd.f32 %v4472, %v4480
    %v4483 = vtanh.pop %v4482
    %4485 = vrot.lane.b32.xlu0 %v4483, 16
    %v4486 = vpop.permute.xlu0 %4485
    %v4488 = vmul.f32 %v4467, %v4486
    %v4490 = vrot.slane %v4461, 4
    %4491 = vrot.lane.b32.xlu0 %v4490, 104
    %v4492 = vpop.permute.xlu0 %4491
    %v4493 = vsel %vm320, %v4492, 0
    %4495 = vmatprep.subr.mxu0 0.0
    %4496 = vmatpush1.msra.mxu0 %v3916
    %4497 = vmatprep.subr.mxu0 0.0
    %4498 = vmatpush1.msra.mxu0 0.0
    %4499 = vmatprep.subr.mxu0 0.0
    %4500 = vmatpush1.msra.mxu0 0.0
    %4501 = vmatprep.subr.mxu0 0.0
    %4502 = vmatpush1.msra.mxu0 0.0
    %4503 = vmatprep.subr.mxu0 0.0
    %4504 = vmatpush1.msra.mxu0 0.0
    %4505 = vmatprep.subr.mxu0 0.0
    %4506 = vmatpush1.msra.mxu0 0.0
    %4507 = vmatprep.subr.mxu0 0.0
    %4508 = vmatpush1.msra.mxu0 0.0
    %4509 = vmatprep.subr.mxu0 0.0
    %4510 = vmatpush1.msra.mxu0 0.0
    %4511 = vmatprep.subr.mxu0 0.0
    %4512 = vmatpush1.msra.mxu0 0.0
    %4513 = vmatprep.subr.mxu0 0.0
    %4514 = vmatpush1.msra.mxu0 0.0
    %4515 = vmatprep.subr.mxu0 0.0
    %4516 = vmatpush1.msra.mxu0 0.0
    %4517 = vmatprep.subr.mxu0 0.0
    %4518 = vmatpush1.msra.mxu0 0.0
    %4519 = vmatprep.subr.mxu0 0.0
    %4520 = vmatpush1.msra.mxu0 0.0
    %4521 = vmatprep.subr.mxu0 0.0
    %4522 = vmatpush1.msra.mxu0 0.0
    %4523 = vmatprep.subr.mxu0 0.0
    %4524 = vmatpush1.msra.mxu0 0.0
    %4525 = vmatprep.subr.mxu0 0.0
    %4526 = vmatpush1.msra.mxu0 0.0
    %4527 = vmatprep.subr.mxu0 0.0
    %4528 = vmatpush1.msra.mxu0 0.0
    %4529 = vmatprep.subr.mxu0 0.0
    %4530 = vmatpush1.msra.mxu0 0.0
    %4531 = vmatprep.subr.mxu0 0.0
    %4532 = vmatpush1.msra.mxu0 0.0
    %4533 = vmatprep.subr.mxu0 0.0
    %4534 = vmatpush1.msra.mxu0 0.0
    %4535 = vmatprep.subr.mxu0 0.0
    %4536 = vmatpush1.msra.mxu0 0.0
    %4537 = vmatprep.subr.mxu0 0.0
    %4538 = vmatpush1.msra.mxu0 0.0
    %4539 = vmatprep.subr.mxu0 0.0
    %4540 = vmatpush1.msra.mxu0 0.0
    %4541 = vmatprep.subr.mxu0 0.0
    %4542 = vmatpush1.msra.mxu0 0.0
    %4543 = vmatprep.subr.mxu0 0.0
    %4544 = vmatpush1.msra.mxu0 0.0
    %4545 = vmatprep.subr.mxu0 0.0
    %4546 = vmatpush1.msra.mxu0 0.0
    %4547 = vmatprep.subr.mxu0 0.0
    %4548 = vmatpush1.msra.mxu0 0.0
    %4549 = vmatprep.subr.mxu0 0.0
    %4550 = vmatpush1.msra.mxu0 0.0
    %4551 = vmatprep.subr.mxu0 0.0
    %4552 = vmatpush1.msra.mxu0 0.0
    %4553 = vmatprep.subr.mxu0 0.0
    %4554 = vmatpush1.msra.mxu0 0.0
    %4555 = vmatprep.subr.mxu0 0.0
    %4556 = vmatpush1.msra.mxu0 0.0
    %4557 = vmatprep.subr.mxu0 0.0
    %4558 = vmatpush1.msra.mxu0 0.0
    %4559 = vmatprep.mubr.f32.mxu0 0.0
    %4560 = vmatmul.mubr.f32.gmra.mrb[0].mxu0 %v4493
    %v4561 = vpop.f32.mrb[0].mxu0
    %v4562 = vadd.f32 0.0, %v4561
    %v4563 = vpop.f32.mrb[0].mxu0
    %4564 = vdwg.mxu0
    %v4566 = vrot.slane %v4562, 2
    %v4568 = vadd.f32 %v4002, %v4566
    %v4570 = vrot.slane %v4488, 2
    %4571 = vrot.lane.b32.xlu0 %v4570, 72
    %v4572 = vpop.permute.xlu0 %4571
    %v4573 = vsel %vm320, %v4572, 0
    %4575 = vmatprep.subr.mxu0 0.0
    %4576 = vmatpush1.msra.mxu0 %v3917
    %4577 = vmatprep.subr.mxu0 0.0
    %4578 = vmatpush1.msra.mxu0 0.0
    %4579 = vmatprep.subr.mxu0 0.0
    %4580 = vmatpush1.msra.mxu0 0.0
    %4581 = vmatprep.subr.mxu0 0.0
    %4582 = vmatpush1.msra.mxu0 0.0
    %4583 = vmatprep.subr.mxu0 0.0
    %4584 = vmatpush1.msra.mxu0 0.0
    %4585 = vmatprep.subr.mxu0 0.0
    %4586 = vmatpush1.msra.mxu0 0.0
    %4587 = vmatprep.subr.mxu0 0.0
    %4588 = vmatpush1.msra.mxu0 0.0
    %4589 = vmatprep.subr.mxu0 0.0
    %4590 = vmatpush1.msra.mxu0 0.0
    %4591 = vmatprep.subr.mxu0 0.0
    %4592 = vmatpush1.msra.mxu0 0.0
    %4593 = vmatprep.subr.mxu0 0.0
    %4594 = vmatpush1.msra.mxu0 0.0
    %4595 = vmatprep.subr.mxu0 0.0
    %4596 = vmatpush1.msra.mxu0 0.0
    %4597 = vmatprep.subr.mxu0 0.0
    %4598 = vmatpush1.msra.mxu0 0.0
    %4599 = vmatprep.subr.mxu0 0.0
    %4600 = vmatpush1.msra.mxu0 0.0
    %4601 = vmatprep.subr.mxu0 0.0
    %4602 = vmatpush1.msra.mxu0 0.0
    %4603 = vmatprep.subr.mxu0 0.0
    %4604 = vmatpush1.msra.mxu0 0.0
    %4605 = vmatprep.subr.mxu0 0.0
    %4606 = vmatpush1.msra.mxu0 0.0
    %4607 = vmatprep.subr.mxu0 0.0
    %4608 = vmatpush1.msra.mxu0 0.0
    %4609 = vmatprep.subr.mxu0 0.0
    %4610 = vmatpush1.msra.mxu0 0.0
    %4611 = vmatprep.subr.mxu0 0.0
    %4612 = vmatpush1.msra.mxu0 0.0
    %4613 = vmatprep.subr.mxu0 0.0
    %4614 = vmatpush1.msra.mxu0 0.0
    %4615 = vmatprep.subr.mxu0 0.0
    %4616 = vmatpush1.msra.mxu0 0.0
    %4617 = vmatprep.subr.mxu0 0.0
    %4618 = vmatpush1.msra.mxu0 0.0
    %4619 = vmatprep.subr.mxu0 0.0
    %4620 = vmatpush1.msra.mxu0 0.0
    %4621 = vmatprep.subr.mxu0 0.0
    %4622 = vmatpush1.msra.mxu0 0.0
    %4623 = vmatprep.subr.mxu0 0.0
    %4624 = vmatpush1.msra.mxu0 0.0
    %4625 = vmatprep.subr.mxu0 0.0
    %4626 = vmatpush1.msra.mxu0 0.0
    %4627 = vmatprep.subr.mxu0 0.0
    %4628 = vmatpush1.msra.mxu0 0.0
    %4629 = vmatprep.subr.mxu0 0.0
    %4630 = vmatpush1.msra.mxu0 0.0
    %4631 = vmatprep.subr.mxu0 0.0
    %4632 = vmatpush1.msra.mxu0 0.0
    %4633 = vmatprep.subr.mxu0 0.0
    %4634 = vmatpush1.msra.mxu0 0.0
    %4635 = vmatprep.subr.mxu0 0.0
    %4636 = vmatpush1.msra.mxu0 0.0
    %4637 = vmatprep.subr.mxu0 0.0
    %4638 = vmatpush1.msra.mxu0 0.0
    %4639 = vmatprep.mubr.f32.mxu0 0.0
    %4640 = vmatmul.mubr.f32.gmra.mrb[0].mxu0 %v4573
    %v4641 = vpop.f32.mrb[0].mxu0
    %v4642 = vadd.f32 0.0, %v4641
    %v4643 = vpop.f32.mrb[0].mxu0
    %4644 = vdwg.mxu0
    %4646 = vrot.lane.b32.xlu0 %v4642, 32
    %v4647 = vpop.permute.xlu0 %4646
    %v4649 = vadd.f32 %v4007, %v4647
    %v4650 = vxor.u32 %v4568, 2147483648
    %v4651 = vmul.f32 %v4650, 1.442695
    %v4652 = vpow.pop %v4651
    %v4653 = vadd.f32 %v4652, 1.0
    %v4654 = vrcp.pop %v4653
    %v4655 = vmul.f32 1.0, %v4654
    %v4656 = vtanh.pop %v4568
    %v4658 = vrot.slane %v4455, 6
    %v4660 = vmul.f32 %v4655, %v4658
    %4662 = vrot.lane.b32.xlu0 %v4656, 112
    %v4663 = vpop.permute.xlu0 %4662
    %v4665 = vmul.f32 %v4655, %v4663
    %4667 = vrot.lane.b32.xlu0 %v4665, 8
    %v4668 = vpop.permute.xlu0 %4667
    %v4670 = vadd.f32 %v4660, %v4668
    %v4671 = vtanh.pop %v4670
    %4673 = vrot.lane.b32.xlu0 %v4671, 16
    %v4674 = vpop.permute.xlu0 %4673
    %v4676 = vmul.f32 %v4655, %v4674
    %v4677 = vxor.u32 %v4649, 2147483648
    %v4678 = vmul.f32 %v4677, 1.442695
    %v4679 = vpow.pop %v4678
    %v4680 = vadd.f32 %v4679, 1.0
    %v4681 = vrcp.pop %v4680
    %v4682 = vmul.f32 1.0, %v4681
    %v4683 = vtanh.pop %v4649
    %v4685 = vrot.slane %v4482, 2
    %v4687 = vmul.f32 %v4682, %v4685
    %4689 = vrot.lane.b32.xlu0 %v4683, 112
    %v4690 = vpop.permute.xlu0 %4689
    %v4692 = vmul.f32 %v4682, %v4690
    %4694 = vrot.lane.b32.xlu0 %v4692, 8
    %v4695 = vpop.permute.xlu0 %4694
    %v4697 = vadd.f32 %v4687, %v4695
    %v4698 = vtanh.pop %v4697
    %4700 = vrot.lane.b32.xlu0 %v4698, 16
    %v4701 = vpop.permute.xlu0 %4700
    %v4703 = vmul.f32 %v4682, %v4701
    %v4705 = vrot.slane %v4676, 6
    %4706 = vrot.lane.b32.xlu0 %v4705, 104
    %v4707 = vpop.permute.xlu0 %4706
    %v4708 = vsel %vm320, %v4707, 0
    %4710 = vmatprep.subr.mxu0 0.0
    %4711 = vmatpush1.msra.mxu0 %v3916
    %4712 = vmatprep.subr.mxu0 0.0
    %4713 = vmatpush1.msra.mxu0 0.0
    %4714 = vmatprep.subr.mxu0 0.0
    %4715 = vmatpush1.msra.mxu0 0.0
    %4716 = vmatprep.subr.mxu0 0.0
    %4717 = vmatpush1.msra.mxu0 0.0
    %4718 = vmatprep.subr.mxu0 0.0
    %4719 = vmatpush1.msra.mxu0 0.0
    %4720 = vmatprep.subr.mxu0 0.0
    %4721 = vmatpush1.msra.mxu0 0.0
    %4722 = vmatprep.subr.mxu0 0.0
    %4723 = vmatpush1.msra.mxu0 0.0
    %4724 = vmatprep.subr.mxu0 0.0
    %4725 = vmatpush1.msra.mxu0 0.0
    %4726 = vmatprep.subr.mxu0 0.0
    %4727 = vmatpush1.msra.mxu0 0.0
    %4728 = vmatprep.subr.mxu0 0.0
    %4729 = vmatpush1.msra.mxu0 0.0
    %4730 = vmatprep.subr.mxu0 0.0
    %4731 = vmatpush1.msra.mxu0 0.0
    %4732 = vmatprep.subr.mxu0 0.0
    %4733 = vmatpush1.msra.mxu0 0.0
    %4734 = vmatprep.subr.mxu0 0.0
    %4735 = vmatpush1.msra.mxu0 0.0
    %4736 = vmatprep.subr.mxu0 0.0
    %4737 = vmatpush1.msra.mxu0 0.0
    %4738 = vmatprep.subr.mxu0 0.0
    %4739 = vmatpush1.msra.mxu0 0.0
    %4740 = vmatprep.subr.mxu0 0.0
    %4741 = vmatpush1.msra.mxu0 0.0
    %4742 = vmatprep.subr.mxu0 0.0
    %4743 = vmatpush1.msra.mxu0 0.0
    %4744 = vmatprep.subr.mxu0 0.0
    %4745 = vmatpush1.msra.mxu0 0.0
    %4746 = vmatprep.subr.mxu0 0.0
    %4747 = vmatpush1.msra.mxu0 0.0
    %4748 = vmatprep.subr.mxu0 0.0
    %4749 = vmatpush1.msra.mxu0 0.0
    %4750 = vmatprep.subr.mxu0 0.0
    %4751 = vmatpush1.msra.mxu0 0.0
    %4752 = vmatprep.subr.mxu0 0.0
    %4753 = vmatpush1.msra.mxu0 0.0
    %4754 = vmatprep.subr.mxu0 0.0
    %4755 = vmatpush1.msra.mxu0 0.0
    %4756 = vmatprep.subr.mxu0 0.0
    %4757 = vmatpush1.msra.mxu0 0.0
    %4758 = vmatprep.subr.mxu0 0.0
    %4759 = vmatpush1.msra.mxu0 0.0
    %4760 = vmatprep.subr.mxu0 0.0
    %4761 = vmatpush1.msra.mxu0 0.0
    %4762 = vmatprep.subr.mxu0 0.0
    %4763 = vmatpush1.msra.mxu0 0.0
    %4764 = vmatprep.subr.mxu0 0.0
    %4765 = vmatpush1.msra.mxu0 0.0
    %4766 = vmatprep.subr.mxu0 0.0
    %4767 = vmatpush1.msra.mxu0 0.0
    %4768 = vmatprep.subr.mxu0 0.0
    %4769 = vmatpush1.msra.mxu0 0.0
    %4770 = vmatprep.subr.mxu0 0.0
    %4771 = vmatpush1.msra.mxu0 0.0
    %4772 = vmatprep.subr.mxu0 0.0
    %4773 = vmatpush1.msra.mxu0 0.0
    %4774 = vmatprep.mubr.f32.mxu0 0.0
    %4775 = vmatmul.mubr.f32.gmra.mrb[0].mxu0 %v4708
    %v4776 = vpop.f32.mrb[0].mxu0
    %v4777 = vadd.f32 0.0, %v4776
    %v4778 = vpop.f32.mrb[0].mxu0
    %4779 = vdwg.mxu0
    %v4780 = vadd.f32 %v4007, %v4777
    %4782 = vrot.lane.b32.xlu0 %v4703, 72
    %v4783 = vpop.permute.xlu0 %4782
    %v4784 = vsel %vm320, %v4783, 0
    %4786 = vmatprep.subr.mxu0 0.0
    %4787 = vmatpush1.msra.mxu0 %v3917
    %4788 = vmatprep.subr.mxu0 0.0
    %4789 = vmatpush1.msra.mxu0 0.0
    %4790 = vmatprep.subr.mxu0 0.0
    %4791 = vmatpush1.msra.mxu0 0.0
    %4792 = vmatprep.subr.mxu0 0.0
    %4793 = vmatpush1.msra.mxu0 0.0
    %4794 = vmatprep.subr.mxu0 0.0
    %4795 = vmatpush1.msra.mxu0 0.0
    %4796 = vmatprep.subr.mxu0 0.0
    %4797 = vmatpush1.msra.mxu0 0.0
    %4798 = vmatprep.subr.mxu0 0.0
    %4799 = vmatpush1.msra.mxu0 0.0
    %4800 = vmatprep.subr.mxu0 0.0
    %4801 = vmatpush1.msra.mxu0 0.0
    %4802 = vmatprep.subr.mxu0 0.0
    %4803 = vmatpush1.msra.mxu0 0.0
    %4804 = vmatprep.subr.mxu0 0.0
    %4805 = vmatpush1.msra.mxu0 0.0
    %4806 = vmatprep.subr.mxu0 0.0
    %4807 = vmatpush1.msra.mxu0 0.0
    %4808 = vmatprep.subr.mxu0 0.0
    %4809 = vmatpush1.msra.mxu0 0.0
    %4810 = vmatprep.subr.mxu0 0.0
    %4811 = vmatpush1.msra.mxu0 0.0
    %4812 = vmatprep.subr.mxu0 0.0
    %4813 = vmatpush1.msra.mxu0 0.0
    %4814 = vmatprep.subr.mxu0 0.0
    %4815 = vmatpush1.msra.mxu0 0.0
    %4816 = vmatprep.subr.mxu0 0.0
    %4817 = vmatpush1.msra.mxu0 0.0
    %4818 = vmatprep.subr.mxu0 0.0
    %4819 = vmatpush1.msra.mxu0 0.0
    %4820 = vmatprep.subr.mxu0 0.0
    %4821 = vmatpush1.msra.mxu0 0.0
    %4822 = vmatprep.subr.mxu0 0.0
    %4823 = vmatpush1.msra.mxu0 0.0
    %4824 = vmatprep.subr.mxu0 0.0
    %4825 = vmatpush1.msra.mxu0 0.0
    %4826 = vmatprep.subr.mxu0 0.0
    %4827 = vmatpush1.msra.mxu0 0.0
    %4828 = vmatprep.subr.mxu0 0.0
    %4829 = vmatpush1.msra.mxu0 0.0
    %4830 = vmatprep.subr.mxu0 0.0
    %4831 = vmatpush1.msra.mxu0 0.0
    %4832 = vmatprep.subr.mxu0 0.0
    %4833 = vmatpush1.msra.mxu0 0.0
    %4834 = vmatprep.subr.mxu0 0.0
    %4835 = vmatpush1.msra.mxu0 0.0
    %4836 = vmatprep.subr.mxu0 0.0
    %4837 = vmatpush1.msra.mxu0 0.0
    %4838 = vmatprep.subr.mxu0 0.0
    %4839 = vmatpush1.msra.mxu0 0.0
    %4840 = vmatprep.subr.mxu0 0.0
    %4841 = vmatpush1.msra.mxu0 0.0
    %4842 = vmatprep.subr.mxu0 0.0
    %4843 = vmatpush1.msra.mxu0 0.0
    %4844 = vmatprep.subr.mxu0 0.0
    %4845 = vmatpush1.msra.mxu0 0.0
    %4846 = vmatprep.subr.mxu0 0.0
    %4847 = vmatpush1.msra.mxu0 0.0
    %4848 = vmatprep.subr.mxu0 0.0
    %4849 = vmatpush1.msra.mxu0 0.0
    %4850 = vmatprep.mubr.f32.mxu0 0.0
    %4851 = vmatmul.mubr.f32.gmra.mrb[0].mxu0 %v4784
    %v4852 = vpop.f32.mrb[0].mxu0
    %v4853 = vadd.f32 0.0, %v4852
    %v4854 = vpop.f32.mrb[0].mxu0
    %4855 = vdwg.mxu0
    %v4857 = vrot.slane %v4853, 2
    %4858 = vrot.lane.b32.xlu0 %v4857, 32
    %v4859 = vpop.permute.xlu0 %4858
    %v4861 = vadd.f32 %v4002, %v4859
    %v4862 = vxor.u32 %v4780, 2147483648
    %v4863 = vmul.f32 %v4862, 1.442695
    %v4864 = vpow.pop %v4863
    %v4865 = vadd.f32 %v4864, 1.0
    %v4866 = vrcp.pop %v4865
    %v4867 = vmul.f32 1.0, %v4866
    %v4868 = vtanh.pop %v4780
    %v4870 = vrot.slane %v4670, 6
    %v4872 = vmul.f32 %v4867, %v4870
    %4874 = vrot.lane.b32.xlu0 %v4868, 112
    %v4875 = vpop.permute.xlu0 %4874
    %v4877 = vmul.f32 %v4867, %v4875
    %4879 = vrot.lane.b32.xlu0 %v4877, 8
    %v4880 = vpop.permute.xlu0 %4879
    %v4882 = vadd.f32 %v4872, %v4880
    %v4883 = vtanh.pop %v4882
    %4885 = vrot.lane.b32.xlu0 %v4883, 16
    %v4886 = vpop.permute.xlu0 %4885
    %v4888 = vmul.f32 %v4867, %v4886
    %v4889 = vxor.u32 %v4861, 2147483648
    %v4890 = vmul.f32 %v4889, 1.442695
    %v4891 = vpow.pop %v4890
    %v4892 = vadd.f32 %v4891, 1.0
    %v4893 = vrcp.pop %v4892
    %v4894 = vmul.f32 1.0, %v4893
    %v4895 = vtanh.pop %v4861
    %v4897 = vrot.slane %v4697, 2
    %v4899 = vmul.f32 %v4894, %v4897
    %4901 = vrot.lane.b32.xlu0 %v4895, 112
    %v4902 = vpop.permute.xlu0 %4901
    %v4904 = vmul.f32 %v4894, %v4902
    %4906 = vrot.lane.b32.xlu0 %v4904, 8
    %v4907 = vpop.permute.xlu0 %4906
    %v4909 = vadd.f32 %v4899, %v4907
    %v4910 = vtanh.pop %v4909
    %4912 = vrot.lane.b32.xlu0 %v4910, 16
    %v4913 = vpop.permute.xlu0 %4912
    %v4915 = vmul.f32 %v4894, %v4913
    %4917 = vrot.lane.b32.xlu0 %v4888, 104
    %v4918 = vpop.permute.xlu0 %4917
    %v4919 = vsel %vm320, %v4918, 0
    %4921 = vmatprep.subr.mxu0 0.0
    %4922 = vmatpush1.msra.mxu0 %v3916
    %4923 = vmatprep.subr.mxu0 0.0
    %4924 = vmatpush1.msra.mxu0 0.0
    %4925 = vmatprep.subr.mxu0 0.0
    %4926 = vmatpush1.msra.mxu0 0.0
    %4927 = vmatprep.subr.mxu0 0.0
    %4928 = vmatpush1.msra.mxu0 0.0
    %4929 = vmatprep.subr.mxu0 0.0
    %4930 = vmatpush1.msra.mxu0 0.0
    %4931 = vmatprep.subr.mxu0 0.0
    %4932 = vmatpush1.msra.mxu0 0.0
    %4933 = vmatprep.subr.mxu0 0.0
    %4934 = vmatpush1.msra.mxu0 0.0
    %4935 = vmatprep.subr.mxu0 0.0
    %4936 = vmatpush1.msra.mxu0 0.0
    %4937 = vmatprep.subr.mxu0 0.0
    %4938 = vmatpush1.msra.mxu0 0.0
    %4939 = vmatprep.subr.mxu0 0.0
    %4940 = vmatpush1.msra.mxu0 0.0
    %4941 = vmatprep.subr.mxu0 0.0
    %4942 = vmatpush1.msra.mxu0 0.0
    %4943 = vmatprep.subr.mxu0 0.0
    %4944 = vmatpush1.msra.mxu0 0.0
    %4945 = vmatprep.subr.mxu0 0.0
    %4946 = vmatpush1.msra.mxu0 0.0
    %4947 = vmatprep.subr.mxu0 0.0
    %4948 = vmatpush1.msra.mxu0 0.0
    %4949 = vmatprep.subr.mxu0 0.0
    %4950 = vmatpush1.msra.mxu0 0.0
    %4951 = vmatprep.subr.mxu0 0.0
    %4952 = vmatpush1.msra.mxu0 0.0
    %4953 = vmatprep.subr.mxu0 0.0
    %4954 = vmatpush1.msra.mxu0 0.0
    %4955 = vmatprep.subr.mxu0 0.0
    %4956 = vmatpush1.msra.mxu0 0.0
    %4957 = vmatprep.subr.mxu0 0.0
    %4958 = vmatpush1.msra.mxu0 0.0
    %4959 = vmatprep.subr.mxu0 0.0
    %4960 = vmatpush1.msra.mxu0 0.0
    %4961 = vmatprep.subr.mxu0 0.0
    %4962 = vmatpush1.msra.mxu0 0.0
    %4963 = vmatprep.subr.mxu0 0.0
    %4964 = vmatpush1.msra.mxu0 0.0
    %4965 = vmatprep.subr.mxu0 0.0
    %4966 = vmatpush1.msra.mxu0 0.0
    %4967 = vmatprep.subr.mxu0 0.0
    %4968 = vmatpush1.msra.mxu0 0.0
    %4969 = vmatprep.subr.mxu0 0.0
    %4970 = vmatpush1.msra.mxu0 0.0
    %4971 = vmatprep.subr.mxu0 0.0
    %4972 = vmatpush1.msra.mxu0 0.0
    %4973 = vmatprep.subr.mxu0 0.0
    %4974 = vmatpush1.msra.mxu0 0.0
    %4975 = vmatprep.subr.mxu0 0.0
    %4976 = vmatpush1.msra.mxu0 0.0
    %4977 = vmatprep.subr.mxu0 0.0
    %4978 = vmatpush1.msra.mxu0 0.0
    %4979 = vmatprep.subr.mxu0 0.0
    %4980 = vmatpush1.msra.mxu0 0.0
    %4981 = vmatprep.subr.mxu0 0.0
    %4982 = vmatpush1.msra.mxu0 0.0
    %4983 = vmatprep.subr.mxu0 0.0
    %4984 = vmatpush1.msra.mxu0 0.0
    %4985 = vmatprep.mubr.f32.mxu0 0.0
    %4986 = vmatmul.mubr.f32.gmra.mrb[0].mxu0 %v4919
    %v4987 = vpop.f32.mrb[0].mxu0
    %v4988 = vadd.f32 0.0, %v4987
    %v4989 = vpop.f32.mrb[0].mxu0
    %4990 = vdwg.mxu0
    %v4992 = vrot.slane %v4988, 6
    %v4994 = vadd.f32 %v4007, %v4992
    %v4996 = vrot.slane %v4915, 6
    %4997 = vrot.lane.b32.xlu0 %v4996, 72
    %v4998 = vpop.permute.xlu0 %4997
    %v4999 = vsel %vm320, %v4998, 0
    %5001 = vmatprep.subr.mxu0 0.0
    %5002 = vmatpush1.msra.mxu0 %v3917
    %5003 = vmatprep.subr.mxu0 0.0
    %5004 = vmatpush1.msra.mxu0 0.0
    %5005 = vmatprep.subr.mxu0 0.0
    %5006 = vmatpush1.msra.mxu0 0.0
    %5007 = vmatprep.subr.mxu0 0.0
    %5008 = vmatpush1.msra.mxu0 0.0
    %5009 = vmatprep.subr.mxu0 0.0
    %5010 = vmatpush1.msra.mxu0 0.0
    %5011 = vmatprep.subr.mxu0 0.0
    %5012 = vmatpush1.msra.mxu0 0.0
    %5013 = vmatprep.subr.mxu0 0.0
    %5014 = vmatpush1.msra.mxu0 0.0
    %5015 = vmatprep.subr.mxu0 0.0
    %5016 = vmatpush1.msra.mxu0 0.0
    %5017 = vmatprep.subr.mxu0 0.0
    %5018 = vmatpush1.msra.mxu0 0.0
    %5019 = vmatprep.subr.mxu0 0.0
    %5020 = vmatpush1.msra.mxu0 0.0
    %5021 = vmatprep.subr.mxu0 0.0
    %5022 = vmatpush1.msra.mxu0 0.0
    %5023 = vmatprep.subr.mxu0 0.0
    %5024 = vmatpush1.msra.mxu0 0.0
    %5025 = vmatprep.subr.mxu0 0.0
    %5026 = vmatpush1.msra.mxu0 0.0
    %5027 = vmatprep.subr.mxu0 0.0
    %5028 = vmatpush1.msra.mxu0 0.0
    %5029 = vmatprep.subr.mxu0 0.0
    %5030 = vmatpush1.msra.mxu0 0.0
    %5031 = vmatprep.subr.mxu0 0.0
    %5032 = vmatpush1.msra.mxu0 0.0
    %5033 = vmatprep.subr.mxu0 0.0
    %5034 = vmatpush1.msra.mxu0 0.0
    %5035 = vmatprep.subr.mxu0 0.0
    %5036 = vmatpush1.msra.mxu0 0.0
    %5037 = vmatprep.subr.mxu0 0.0
    %5038 = vmatpush1.msra.mxu0 0.0
    %5039 = vmatprep.subr.mxu0 0.0
    %5040 = vmatpush1.msra.mxu0 0.0
    %5041 = vmatprep.subr.mxu0 0.0
    %5042 = vmatpush1.msra.mxu0 0.0
    %5043 = vmatprep.subr.mxu0 0.0
    %5044 = vmatpush1.msra.mxu0 0.0
    %5045 = vmatprep.subr.mxu0 0.0
    %5046 = vmatpush1.msra.mxu0 0.0
    %5047 = vmatprep.subr.mxu0 0.0
    %5048 = vmatpush1.msra.mxu0 0.0
    %5049 = vmatprep.subr.mxu0 0.0
    %5050 = vmatpush1.msra.mxu0 0.0
    %5051 = vmatprep.subr.mxu0 0.0
    %5052 = vmatpush1.msra.mxu0 0.0
    %5053 = vmatprep.subr.mxu0 0.0
    %5054 = vmatpush1.msra.mxu0 0.0
    %5055 = vmatprep.subr.mxu0 0.0
    %5056 = vmatpush1.msra.mxu0 0.0
    %5057 = vmatprep.subr.mxu0 0.0
    %5058 = vmatpush1.msra.mxu0 0.0
    %5059 = vmatprep.subr.mxu0 0.0
    %5060 = vmatpush1.msra.mxu0 0.0
    %5061 = vmatprep.subr.mxu0 0.0
    %5062 = vmatpush1.msra.mxu0 0.0
    %5063 = vmatprep.subr.mxu0 0.0
    %5064 = vmatpush1.msra.mxu0 0.0
    %5065 = vmatprep.mubr.f32.mxu0 0.0
    %5066 = vmatmul.mubr.f32.gmra.mrb[0].mxu0 %v4999
    %v5067 = vpop.f32.mrb[0].mxu0
    %v5068 = vadd.f32 0.0, %v5067
    %v5069 = vpop.f32.mrb[0].mxu0
    %5070 = vdwg.mxu0
    %v5072 = vrot.slane %v5068, 4
    %5073 = vrot.lane.b32.xlu0 %v5072, 32
    %v5074 = vpop.permute.xlu0 %5073
    %v5076 = vadd.f32 %v4002, %v5074
    %v5077 = vxor.u32 %v4994, 2147483648
    %v5078 = vmul.f32 %v5077, 1.442695
    %v5079 = vpow.pop %v5078
    %v5080 = vadd.f32 %v5079, 1.0
    %v5081 = vrcp.pop %v5080
    %v5082 = vmul.f32 1.0, %v5081
    %v5083 = vtanh.pop %v4994
    %v5085 = vrot.slane %v4882, 6
    %v5087 = vmul.f32 %v5082, %v5085
    %5089 = vrot.lane.b32.xlu0 %v5083, 112
    %v5090 = vpop.permute.xlu0 %5089
    %v5092 = vmul.f32 %v5082, %v5090
    %5094 = vrot.lane.b32.xlu0 %v5092, 8
    %v5095 = vpop.permute.xlu0 %5094
    %v5097 = vadd.f32 %v5087, %v5095
    %v5098 = vtanh.pop %v5097
    %5100 = vrot.lane.b32.xlu0 %v5098, 16
    %v5101 = vpop.permute.xlu0 %5100
    %v5103 = vmul.f32 %v5082, %v5101
    %v5104 = vxor.u32 %v5076, 2147483648
    %v5105 = vmul.f32 %v5104, 1.442695
    %v5106 = vpow.pop %v5105
    %v5107 = vadd.f32 %v5106, 1.0
    %v5108 = vrcp.pop %v5107
    %v5109 = vmul.f32 1.0, %v5108
    %v5110 = vtanh.pop %v5076
    %v5112 = vrot.slane %v4909, 2
    %v5114 = vmul.f32 %v5109, %v5112
    %5116 = vrot.lane.b32.xlu0 %v5110, 112
    %v5117 = vpop.permute.xlu0 %5116
    %v5119 = vmul.f32 %v5109, %v5117
    %5121 = vrot.lane.b32.xlu0 %v5119, 8
    %v5122 = vpop.permute.xlu0 %5121
    %v5124 = vadd.f32 %v5114, %v5122
    %v5125 = vtanh.pop %v5124
    %5127 = vrot.lane.b32.xlu0 %v5125, 16
    %v5128 = vpop.permute.xlu0 %5127
    %v5130 = vmul.f32 %v5109, %v5128
    %v5132 = vrot.slane %v5103, 2
    %5133 = vrot.lane.b32.xlu0 %v5132, 104
    %v5134 = vpop.permute.xlu0 %5133
    %v5135 = vsel %vm320, %v5134, 0
    %5137 = vmatprep.subr.mxu0 0.0
    %5138 = vmatpush1.msra.mxu0 %v3916
    %5139 = vmatprep.subr.mxu0 0.0
    %5140 = vmatpush1.msra.mxu0 0.0
    %5141 = vmatprep.subr.mxu0 0.0
    %5142 = vmatpush1.msra.mxu0 0.0
    %5143 = vmatprep.subr.mxu0 0.0
    %5144 = vmatpush1.msra.mxu0 0.0
    %5145 = vmatprep.subr.mxu0 0.0
    %5146 = vmatpush1.msra.mxu0 0.0
    %5147 = vmatprep.subr.mxu0 0.0
    %5148 = vmatpush1.msra.mxu0 0.0
    %5149 = vmatprep.subr.mxu0 0.0
    %5150 = vmatpush1.msra.mxu0 0.0
    %5151 = vmatprep.subr.mxu0 0.0
    %5152 = vmatpush1.msra.mxu0 0.0
    %5153 = vmatprep.subr.mxu0 0.0
    %5154 = vmatpush1.msra.mxu0 0.0
    %5155 = vmatprep.subr.mxu0 0.0
    %5156 = vmatpush1.msra.mxu0 0.0
    %5157 = vmatprep.subr.mxu0 0.0
    %5158 = vmatpush1.msra.mxu0 0.0
    %5159 = vmatprep.subr.mxu0 0.0
    %5160 = vmatpush1.msra.mxu0 0.0
    %5161 = vmatprep.subr.mxu0 0.0
    %5162 = vmatpush1.msra.mxu0 0.0
    %5163 = vmatprep.subr.mxu0 0.0
    %5164 = vmatpush1.msra.mxu0 0.0
    %5165 = vmatprep.subr.mxu0 0.0
    %5166 = vmatpush1.msra.mxu0 0.0
    %5167 = vmatprep.subr.mxu0 0.0
    %5168 = vmatpush1.msra.mxu0 0.0
    %5169 = vmatprep.subr.mxu0 0.0
    %5170 = vmatpush1.msra.mxu0 0.0
    %5171 = vmatprep.subr.mxu0 0.0
    %5172 = vmatpush1.msra.mxu0 0.0
    %5173 = vmatprep.subr.mxu0 0.0
    %5174 = vmatpush1.msra.mxu0 0.0
    %5175 = vmatprep.subr.mxu0 0.0
    %5176 = vmatpush1.msra.mxu0 0.0
    %5177 = vmatprep.subr.mxu0 0.0
    %5178 = vmatpush1.msra.mxu0 0.0
    %5179 = vmatprep.subr.mxu0 0.0
    %5180 = vmatpush1.msra.mxu0 0.0
    %5181 = vmatprep.subr.mxu0 0.0
    %5182 = vmatpush1.msra.mxu0 0.0
    %5183 = vmatprep.subr.mxu0 0.0
    %5184 = vmatpush1.msra.mxu0 0.0
    %5185 = vmatprep.subr.mxu0 0.0
    %5186 = vmatpush1.msra.mxu0 0.0
    %5187 = vmatprep.subr.mxu0 0.0
    %5188 = vmatpush1.msra.mxu0 0.0
    %5189 = vmatprep.subr.mxu0 0.0
    %5190 = vmatpush1.msra.mxu0 0.0
    %5191 = vmatprep.subr.mxu0 0.0
    %5192 = vmatpush1.msra.mxu0 0.0
    %5193 = vmatprep.subr.mxu0 0.0
    %5194 = vmatpush1.msra.mxu0 0.0
    %5195 = vmatprep.subr.mxu0 0.0
    %5196 = vmatpush1.msra.mxu0 0.0
    %5197 = vmatprep.subr.mxu0 0.0
    %5198 = vmatpush1.msra.mxu0 0.0
    %5199 = vmatprep.subr.mxu0 0.0
    %5200 = vmatpush1.msra.mxu0 0.0
    %5201 = vmatprep.mubr.f32.mxu0 0.0
    %5202 = vmatmul.mubr.f32.gmra.mrb[0].mxu0 %v5135
    %v5203 = vpop.f32.mrb[0].mxu0
    %v5204 = vadd.f32 0.0, %v5203
    %v5205 = vpop.f32.mrb[0].mxu0
    %5206 = vdwg.mxu0
    %v5208 = vrot.slane %v5204, 4
    %v5210 = vadd.f32 %v4007, %v5208
    %v5212 = vrot.slane %v5130, 4
    %5213 = vrot.lane.b32.xlu0 %v5212, 72
    %v5214 = vpop.permute.xlu0 %5213
    %v5215 = vsel %vm320, %v5214, 0
    %5217 = vmatprep.subr.mxu0 0.0
    %5218 = vmatpush1.msra.mxu0 %v3917
    %5219 = vmatprep.subr.mxu0 0.0
    %5220 = vmatpush1.msra.mxu0 0.0
    %5221 = vmatprep.subr.mxu0 0.0
    %5222 = vmatpush1.msra.mxu0 0.0
    %5223 = vmatprep.subr.mxu0 0.0
    %5224 = vmatpush1.msra.mxu0 0.0
    %5225 = vmatprep.subr.mxu0 0.0
    %5226 = vmatpush1.msra.mxu0 0.0
    %5227 = vmatprep.subr.mxu0 0.0
    %5228 = vmatpush1.msra.mxu0 0.0
    %5229 = vmatprep.subr.mxu0 0.0
    %5230 = vmatpush1.msra.mxu0 0.0
    %5231 = vmatprep.subr.mxu0 0.0
    %5232 = vmatpush1.msra.mxu0 0.0
    %5233 = vmatprep.subr.mxu0 0.0
    %5234 = vmatpush1.msra.mxu0 0.0
    %5235 = vmatprep.subr.mxu0 0.0
    %5236 = vmatpush1.msra.mxu0 0.0
    %5237 = vmatprep.subr.mxu0 0.0
    %5238 = vmatpush1.msra.mxu0 0.0
    %5239 = vmatprep.subr.mxu0 0.0
    %5240 = vmatpush1.msra.mxu0 0.0
    %5241 = vmatprep.subr.mxu0 0.0
    %5242 = vmatpush1.msra.mxu0 0.0
    %5243 = vmatprep.subr.mxu0 0.0
    %5244 = vmatpush1.msra.mxu0 0.0
    %5245 = vmatprep.subr.mxu0 0.0
    %5246 = vmatpush1.msra.mxu0 0.0
    %5247 = vmatprep.subr.mxu0 0.0
    %5248 = vmatpush1.msra.mxu0 0.0
    %5249 = vmatprep.subr.mxu0 0.0
    %5250 = vmatpush1.msra.mxu0 0.0
    %5251 = vmatprep.subr.mxu0 0.0
    %5252 = vmatpush1.msra.mxu0 0.0
    %5253 = vmatprep.subr.mxu0 0.0
    %5254 = vmatpush1.msra.mxu0 0.0
    %5255 = vmatprep.subr.mxu0 0.0
    %5256 = vmatpush1.msra.mxu0 0.0
    %5257 = vmatprep.subr.mxu0 0.0
    %5258 = vmatpush1.msra.mxu0 0.0
    %5259 = vmatprep.subr.mxu0 0.0
    %5260 = vmatpush1.msra.mxu0 0.0
    %5261 = vmatprep.subr.mxu0 0.0
    %5262 = vmatpush1.msra.mxu0 0.0
    %5263 = vmatprep.subr.mxu0 0.0
    %5264 = vmatpush1.msra.mxu0 0.0
    %5265 = vmatprep.subr.mxu0 0.0
    %5266 = vmatpush1.msra.mxu0 0.0
    %5267 = vmatprep.subr.mxu0 0.0
    %5268 = vmatpush1.msra.mxu0 0.0
    %5269 = vmatprep.subr.mxu0 0.0
    %5270 = vmatpush1.msra.mxu0 0.0
    %5271 = vmatprep.subr.mxu0 0.0
    %5272 = vmatpush1.msra.mxu0 0.0
    %5273 = vmatprep.subr.mxu0 0.0
    %5274 = vmatpush1.msra.mxu0 0.0
    %5275 = vmatprep.subr.mxu0 0.0
    %5276 = vmatpush1.msra.mxu0 0.0
    %5277 = vmatprep.subr.mxu0 0.0
    %5278 = vmatpush1.msra.mxu0 0.0
    %5279 = vmatprep.subr.mxu0 0.0
    %5280 = vmatpush1.msra.mxu0 0.0
    %5281 = vmatprep.mubr.f32.mxu0 0.0
    %5282 = vmatmul.mubr.f32.gmra.mrb[0].mxu0 %v5215
    %v5283 = vpop.f32.mrb[0].mxu0
    %v5284 = vadd.f32 0.0, %v5283
    %v5285 = vpop.f32.mrb[0].mxu0
    %5286 = vdwg.mxu0
    %v5288 = vrot.slane %v5284, 6
    %5289 = vrot.lane.b32.xlu0 %v5288, 32
    %v5290 = vpop.permute.xlu0 %5289
    %v5292 = vadd.f32 %v4002, %v5290
    %v5293 = vxor.u32 %v5210, 2147483648
    %v5294 = vmul.f32 %v5293, 1.442695
    %v5295 = vpow.pop %v5294
    %v5296 = vadd.f32 %v5295, 1.0
    %v5297 = vrcp.pop %v5296
    %v5298 = vmul.f32 1.0, %v5297
    %v5299 = vtanh.pop %v5210
    %v5301 = vrot.slane %v5097, 6
    %v5303 = vmul.f32 %v5298, %v5301
    %5305 = vrot.lane.b32.xlu0 %v5299, 112
    %v5306 = vpop.permute.xlu0 %5305
    %v5308 = vmul.f32 %v5298, %v5306
    %5310 = vrot.lane.b32.xlu0 %v5308, 8
    %v5311 = vpop.permute.xlu0 %5310
    %v5313 = vadd.f32 %v5303, %v5311
    %v5314 = vtanh.pop %v5313
    %5316 = vrot.lane.b32.xlu0 %v5314, 16
    %v5317 = vpop.permute.xlu0 %5316
    %v5319 = vmul.f32 %v5298, %v5317
    %v5320 = vxor.u32 %v5292, 2147483648
    %v5321 = vmul.f32 %v5320, 1.442695
    %v5322 = vpow.pop %v5321
    %v5323 = vadd.f32 %v5322, 1.0
    %v5324 = vrcp.pop %v5323
    %v5325 = vmul.f32 1.0, %v5324
    %v5326 = vtanh.pop %v5292
    %v5328 = vrot.slane %v5124, 2
    %v5330 = vmul.f32 %v5325, %v5328
    %5332 = vrot.lane.b32.xlu0 %v5326, 112
    %v5333 = vpop.permute.xlu0 %5332
    %v5335 = vmul.f32 %v5325, %v5333
    %5337 = vrot.lane.b32.xlu0 %v5335, 8
    %v5338 = vpop.permute.xlu0 %5337
    %v5340 = vadd.f32 %v5330, %v5338
    %v5341 = vtanh.pop %v5340
    %5343 = vrot.lane.b32.xlu0 %v5341, 16
    %v5344 = vpop.permute.xlu0 %5343
    %v5346 = vmul.f32 %v5325, %v5344
    %v5348 = vrot.slane %v5319, 4
    %5349 = vrot.lane.b32.xlu0 %v5348, 104
    %v5350 = vpop.permute.xlu0 %5349
    %v5351 = vsel %vm320, %v5350, 0
    %5353 = vmatprep.subr.mxu0 0.0
    %5354 = vmatpush1.msra.mxu0 %v3916
    %5355 = vmatprep.subr.mxu0 0.0
    %5356 = vmatpush1.msra.mxu0 0.0
    %5357 = vmatprep.subr.mxu0 0.0
    %5358 = vmatpush1.msra.mxu0 0.0
    %5359 = vmatprep.subr.mxu0 0.0
    %5360 = vmatpush1.msra.mxu0 0.0
    %5361 = vmatprep.subr.mxu0 0.0
    %5362 = vmatpush1.msra.mxu0 0.0
    %5363 = vmatprep.subr.mxu0 0.0
    %5364 = vmatpush1.msra.mxu0 0.0
    %5365 = vmatprep.subr.mxu0 0.0
    %5366 = vmatpush1.msra.mxu0 0.0
    %5367 = vmatprep.subr.mxu0 0.0
    %5368 = vmatpush1.msra.mxu0 0.0
    %5369 = vmatprep.subr.mxu0 0.0
    %5370 = vmatpush1.msra.mxu0 0.0
    %5371 = vmatprep.subr.mxu0 0.0
    %5372 = vmatpush1.msra.mxu0 0.0
    %5373 = vmatprep.subr.mxu0 0.0
    %5374 = vmatpush1.msra.mxu0 0.0
    %5375 = vmatprep.subr.mxu0 0.0
    %5376 = vmatpush1.msra.mxu0 0.0
    %5377 = vmatprep.subr.mxu0 0.0
    %5378 = vmatpush1.msra.mxu0 0.0
    %5379 = vmatprep.subr.mxu0 0.0
    %5380 = vmatpush1.msra.mxu0 0.0
    %5381 = vmatprep.subr.mxu0 0.0
    %5382 = vmatpush1.msra.mxu0 0.0
    %5383 = vmatprep.subr.mxu0 0.0
    %5384 = vmatpush1.msra.mxu0 0.0
    %5385 = vmatprep.subr.mxu0 0.0
    %5386 = vmatpush1.msra.mxu0 0.0
    %5387 = vmatprep.subr.mxu0 0.0
    %5388 = vmatpush1.msra.mxu0 0.0
    %5389 = vmatprep.subr.mxu0 0.0
    %5390 = vmatpush1.msra.mxu0 0.0
    %5391 = vmatprep.subr.mxu0 0.0
    %5392 = vmatpush1.msra.mxu0 0.0
    %5393 = vmatprep.subr.mxu0 0.0
    %5394 = vmatpush1.msra.mxu0 0.0
    %5395 = vmatprep.subr.mxu0 0.0
    %5396 = vmatpush1.msra.mxu0 0.0
    %5397 = vmatprep.subr.mxu0 0.0
    %5398 = vmatpush1.msra.mxu0 0.0
    %5399 = vmatprep.subr.mxu0 0.0
    %5400 = vmatpush1.msra.mxu0 0.0
    %5401 = vmatprep.subr.mxu0 0.0
    %5402 = vmatpush1.msra.mxu0 0.0
    %5403 = vmatprep.subr.mxu0 0.0
    %5404 = vmatpush1.msra.mxu0 0.0
    %5405 = vmatprep.subr.mxu0 0.0
    %5406 = vmatpush1.msra.mxu0 0.0
    %5407 = vmatprep.subr.mxu0 0.0
    %5408 = vmatpush1.msra.mxu0 0.0
    %5409 = vmatprep.subr.mxu0 0.0
    %5410 = vmatpush1.msra.mxu0 0.0
    %5411 = vmatprep.subr.mxu0 0.0
    %5412 = vmatpush1.msra.mxu0 0.0
    %5413 = vmatprep.subr.mxu0 0.0
    %5414 = vmatpush1.msra.mxu0 0.0
    %5415 = vmatprep.subr.mxu0 0.0
    %5416 = vmatpush1.msra.mxu0 0.0
    %5417 = vmatprep.mubr.f32.mxu0 0.0
    %5418 = vmatmul.mubr.f32.gmra.mrb[0].mxu0 %v5351
    %v5419 = vpop.f32.mrb[0].mxu0
    %v5420 = vadd.f32 0.0, %v5419
    %v5421 = vpop.f32.mrb[0].mxu0
    %5422 = vdwg.mxu0
    %v5424 = vrot.slane %v5420, 2
    %v5426 = vadd.f32 %v4007, %v5424
    %v5428 = vrot.slane %v5346, 2
    %5429 = vrot.lane.b32.xlu0 %v5428, 72
    %v5430 = vpop.permute.xlu0 %5429
    %v5431 = vsel %vm320, %v5430, 0
    %5433 = vmatprep.subr.mxu0 0.0
    %5434 = vmatpush1.msra.mxu0 %v3917
    %5435 = vmatprep.subr.mxu0 0.0
    %5436 = vmatpush1.msra.mxu0 0.0
    %5437 = vmatprep.subr.mxu0 0.0
    %5438 = vmatpush1.msra.mxu0 0.0
    %5439 = vmatprep.subr.mxu0 0.0
    %5440 = vmatpush1.msra.mxu0 0.0
    %5441 = vmatprep.subr.mxu0 0.0
    %5442 = vmatpush1.msra.mxu0 0.0
    %5443 = vmatprep.subr.mxu0 0.0
    %5444 = vmatpush1.msra.mxu0 0.0
    %5445 = vmatprep.subr.mxu0 0.0
    %5446 = vmatpush1.msra.mxu0 0.0
    %5447 = vmatprep.subr.mxu0 0.0
    %5448 = vmatpush1.msra.mxu0 0.0
    %5449 = vmatprep.subr.mxu0 0.0
    %5450 = vmatpush1.msra.mxu0 0.0
    %5451 = vmatprep.subr.mxu0 0.0
    %5452 = vmatpush1.msra.mxu0 0.0
    %5453 = vmatprep.subr.mxu0 0.0
    %5454 = vmatpush1.msra.mxu0 0.0
    %5455 = vmatprep.subr.mxu0 0.0
    %5456 = vmatpush1.msra.mxu0 0.0
    %5457 = vmatprep.subr.mxu0 0.0
    %5458 = vmatpush1.msra.mxu0 0.0
    %5459 = vmatprep.subr.mxu0 0.0
    %5460 = vmatpush1.msra.mxu0 0.0
    %5461 = vmatprep.subr.mxu0 0.0
    %5462 = vmatpush1.msra.mxu0 0.0
    %5463 = vmatprep.subr.mxu0 0.0
    %5464 = vmatpush1.msra.mxu0 0.0
    %5465 = vmatprep.subr.mxu0 0.0
    %5466 = vmatpush1.msra.mxu0 0.0
    %5467 = vmatprep.subr.mxu0 0.0
    %5468 = vmatpush1.msra.mxu0 0.0
    %5469 = vmatprep.subr.mxu0 0.0
    %5470 = vmatpush1.msra.mxu0 0.0
    %5471 = vmatprep.subr.mxu0 0.0
    %5472 = vmatpush1.msra.mxu0 0.0
    %5473 = vmatprep.subr.mxu0 0.0
    %5474 = vmatpush1.msra.mxu0 0.0
    %5475 = vmatprep.subr.mxu0 0.0
    %5476 = vmatpush1.msra.mxu0 0.0
    %5477 = vmatprep.subr.mxu0 0.0
    %5478 = vmatpush1.msra.mxu0 0.0
    %5479 = vmatprep.subr.mxu0 0.0
    %5480 = vmatpush1.msra.mxu0 0.0
    %5481 = vmatprep.subr.mxu0 0.0
    %5482 = vmatpush1.msra.mxu0 0.0
    %5483 = vmatprep.subr.mxu0 0.0
    %5484 = vmatpush1.msra.mxu0 0.0
    %5485 = vmatprep.subr.mxu0 0.0
    %5486 = vmatpush1.msra.mxu0 0.0
    %5487 = vmatprep.subr.mxu0 0.0
    %5488 = vmatpush1.msra.mxu0 0.0
    %5489 = vmatprep.subr.mxu0 0.0
    %5490 = vmatpush1.msra.mxu0 0.0
    %5491 = vmatprep.subr.mxu0 0.0
    %5492 = vmatpush1.msra.mxu0 0.0
    %5493 = vmatprep.subr.mxu0 0.0
    %5494 = vmatpush1.msra.mxu0 0.0
    %5495 = vmatprep.subr.mxu0 0.0
    %5496 = vmatpush1.msra.mxu0 0.0
    %5497 = vmatprep.mubr.f32.mxu0 0.0
    %5498 = vmatmul.mubr.f32.gmra.mrb[0].mxu0 %v5431
    %v5499 = vpop.f32.mrb[0].mxu0
    %v5500 = vadd.f32 0.0, %v5499
    %v5501 = vpop.f32.mrb[0].mxu0
    %5502 = vdwg.mxu0
    %5504 = vrot.lane.b32.xlu0 %v5500, 32
    %v5505 = vpop.permute.xlu0 %5504
    %v5507 = vadd.f32 %v4002, %v5505
    %v5508 = vxor.u32 %v5426, 2147483648
    %v5509 = vmul.f32 %v5508, 1.442695
    %v5510 = vpow.pop %v5509
    %v5511 = vadd.f32 %v5510, 1.0
    %v5512 = vrcp.pop %v5511
    %v5513 = vmul.f32 1.0, %v5512
    %v5514 = vtanh.pop %v5426
    %v5516 = vrot.slane %v5313, 6
    %v5518 = vmul.f32 %v5513, %v5516
    %5520 = vrot.lane.b32.xlu0 %v5514, 112
    %v5521 = vpop.permute.xlu0 %5520
    %v5523 = vmul.f32 %v5513, %v5521
    %5525 = vrot.lane.b32.xlu0 %v5523, 8
    %v5526 = vpop.permute.xlu0 %5525
    %v5528 = vadd.f32 %v5518, %v5526
    %v5529 = vtanh.pop %v5528
    %5531 = vrot.lane.b32.xlu0 %v5529, 16
    %v5532 = vpop.permute.xlu0 %5531
    %v5534 = vmul.f32 %v5513, %v5532
    %v5535 = vxor.u32 %v5507, 2147483648
    %v5536 = vmul.f32 %v5535, 1.442695
    %v5537 = vpow.pop %v5536
    %v5538 = vadd.f32 %v5537, 1.0
    %v5539 = vrcp.pop %v5538
    %v5540 = vmul.f32 1.0, %v5539
    %v5541 = vtanh.pop %v5507
    %v5543 = vrot.slane %v5340, 2
    %v5545 = vmul.f32 %v5540, %v5543
    %5547 = vrot.lane.b32.xlu0 %v5541, 112
    %v5548 = vpop.permute.xlu0 %5547
    %v5550 = vmul.f32 %v5540, %v5548
    %5552 = vrot.lane.b32.xlu0 %v5550, 8
    %v5553 = vpop.permute.xlu0 %5552
    %v5555 = vadd.f32 %v5545, %v5553
    %v5556 = vtanh.pop %v5555
    %5558 = vrot.lane.b32.xlu0 %v5556, 16
    %v5559 = vpop.permute.xlu0 %5558
    %v5561 = vmul.f32 %v5540, %v5559
    %5564 = vrot.lane.b32.xlu0 %v5561, 80
    %v5565 = vpop.permute.xlu0 %5564
    %v5567 = vsel %vm320, %v4060, %v5565
    %5568 = vrot.lane.b32.xlu0 %v4245, 104
    %v5569 = vpop.permute.xlu0 %5568
    %5571 = vrot.lane.b32.xlu0 %v5346, 80
    %v5572 = vpop.permute.xlu0 %5571
    %v5574 = vsel %vm320, %v5569, %v5572
    %5575 = vrot.lane.b32.xlu0 %v4461, 104
    %v5576 = vpop.permute.xlu0 %5575
    %5578 = vrot.lane.b32.xlu0 %v5130, 80
    %v5579 = vpop.permute.xlu0 %5578
    %v5581 = vsel %vm320, %v5576, %v5579
    %5582 = vrot.lane.b32.xlu0 %v4676, 104
    %v5583 = vpop.permute.xlu0 %5582
    %5585 = vrot.lane.b32.xlu0 %v4915, 80
    %v5586 = vpop.permute.xlu0 %5585
    %v5588 = vsel %vm320, %v5583, %v5586
    %5590 = vrot.lane.b32.xlu0 %v4703, 80
    %v5591 = vpop.permute.xlu0 %5590
    %v5593 = vsel %vm320, %v4918, %v5591
    %5594 = vrot.lane.b32.xlu0 %v5103, 104
    %v5595 = vpop.permute.xlu0 %5594
    %5597 = vrot.lane.b32.xlu0 %v4488, 80
    %v5598 = vpop.permute.xlu0 %5597
    %v5600 = vsel %vm320, %v5595, %v5598
    %5601 = vrot.lane.b32.xlu0 %v5319, 104
    %v5602 = vpop.permute.xlu0 %5601
    %5604 = vrot.lane.b32.xlu0 %v4272, 80
    %v5605 = vpop.permute.xlu0 %5604
    %v5607 = vsel %vm320, %v5602, %v5605
    %5609 = vrot.lane.b32.xlu0 %v5534, 104
    %v5610 = vpop.permute.xlu0 %5609
    %5612 = vrot.lane.b32.xlu0 %v4057, 80
    %v5613 = vpop.permute.xlu0 %5612
    %v5615 = vsel %vm320, %v5610, %v5613
    %v5616 = vsel %vm303, %v5567, %v5574
    %v5617 = vsel %vm305, %v5616, %v5581
    %v5618 = vsel %vm307, %v5617, %v5588
    %v5619 = vsel %vm303, %v5593, %v5600
    %v5620 = vsel %vm305, %v5619, %v5607
    %v5621 = vsel %vm307, %v5620, %v5615
    %v5622 = vld [vmem:[%s19] sm:$0xf]
    %v5623 = vld [vmem:[%s20] sm:$0xf]
    %v5624 = vld [vmem:[%s17] sm:$0xff]
    %v5625 = vld [vmem:[%s17 + $0x8] sm:$0xff]
    %v5626 = vld [vmem:[%s18] sm:$0x1]
    %v5628 = vlaneseq
    %v5629 = vshrl.u32 %v5628, 7
    %v5630 = vsub.s32 0, %v5629
    %v5631 = vrot.slane %v5626, %v5630
    %v5634 = vsel %vm413, %v5618, 0
    %v5637 = vsel %vm413, %v5621, 0
    %5639 = vmatprep.subr.mxu0 0.0
    %5640 = vmatpush1.msra.mxu0 %v5624
    %5641 = vmatprep.subr.mxu0 0.0
    %5642 = vmatpush1.msra.mxu0 %v5625
    %5643 = vmatprep.subr.mxu0 0.0
    %5644 = vmatpush1.msra.mxu0 0.0
    %5645 = vmatprep.subr.mxu0 0.0
    %5646 = vmatpush1.msra.mxu0 0.0
    %5647 = vmatprep.subr.mxu0 0.0
    %5648 = vmatpush1.msra.mxu0 0.0
    %5649 = vmatprep.subr.mxu0 0.0
    %5650 = vmatpush1.msra.mxu0 0.0
    %5651 = vmatprep.subr.mxu0 0.0
    %5652 = vmatpush1.msra.mxu0 0.0
    %5653 = vmatprep.subr.mxu0 0.0
    %5654 = vmatpush1.msra.mxu0 0.0
    %5655 = vmatprep.subr.mxu0 0.0
    %5656 = vmatpush1.msra.mxu0 0.0
    %5657 = vmatprep.subr.mxu0 0.0
    %5658 = vmatpush1.msra.mxu0 0.0
    %5659 = vmatprep.subr.mxu0 0.0
    %5660 = vmatpush1.msra.mxu0 0.0
    %5661 = vmatprep.subr.mxu0 0.0
    %5662 = vmatpush1.msra.mxu0 0.0
    %5663 = vmatprep.subr.mxu0 0.0
    %5664 = vmatpush1.msra.mxu0 0.0
    %5665 = vmatprep.subr.mxu0 0.0
    %5666 = vmatpush1.msra.mxu0 0.0
    %5667 = vmatprep.subr.mxu0 0.0
    %5668 = vmatpush1.msra.mxu0 0.0
    %5669 = vmatprep.subr.mxu0 0.0
    %5670 = vmatpush1.msra.mxu0 0.0
    %5671 = vmatprep.subr.mxu0 0.0
    %5672 = vmatpush1.msra.mxu0 0.0
    %5673 = vmatprep.subr.mxu0 0.0
    %5674 = vmatpush1.msra.mxu0 0.0
    %5675 = vmatprep.subr.mxu0 0.0
    %5676 = vmatpush1.msra.mxu0 0.0
    %5677 = vmatprep.subr.mxu0 0.0
    %5678 = vmatpush1.msra.mxu0 0.0
    %5679 = vmatprep.subr.mxu0 0.0
    %5680 = vmatpush1.msra.mxu0 0.0
    %5681 = vmatprep.subr.mxu0 0.0
    %5682 = vmatpush1.msra.mxu0 0.0
    %5683 = vmatprep.subr.mxu0 0.0
    %5684 = vmatpush1.msra.mxu0 0.0
    %5685 = vmatprep.subr.mxu0 0.0
    %5686 = vmatpush1.msra.mxu0 0.0
    %5687 = vmatprep.subr.mxu0 0.0
    %5688 = vmatpush1.msra.mxu0 0.0
    %5689 = vmatprep.subr.mxu0 0.0
    %5690 = vmatpush1.msra.mxu0 0.0
    %5691 = vmatprep.subr.mxu0 0.0
    %5692 = vmatpush1.msra.mxu0 0.0
    %5693 = vmatprep.subr.mxu0 0.0
    %5694 = vmatpush1.msra.mxu0 0.0
    %5695 = vmatprep.subr.mxu0 0.0
    %5696 = vmatpush1.msra.mxu0 0.0
    %5697 = vmatprep.subr.mxu0 0.0
    %5698 = vmatpush1.msra.mxu0 0.0
    %5699 = vmatprep.subr.mxu0 0.0
    %5700 = vmatpush1.msra.mxu0 0.0
    %5701 = vmatprep.subr.mxu0 0.0
    %5702 = vmatpush1.msra.mxu0 0.0
    %5703 = vmatprep.mubr.f32.mxu0 0.0
    %5704 = vmatmul.mubr.f32.gmra.mrb[0].mxu0 %v5634
    %v5705 = vpop.f32.mrb[0].mxu0
    %v5706 = vadd.f32 %v5631, %v5705
    %v5707 = vpop.f32.mrb[0].mxu0
    %5708 = vmatprep.mubr.f32.mxu0 0.0
    %5709 = vmatmul.mubr.f32.gmra.mrb[0].mxu0 %v5637
    %v5710 = vpop.f32.mrb[0].mxu0
    %v5711 = vadd.f32 %v5631, %v5710
    %v5712 = vpop.f32.mrb[0].mxu0
    %5713 = vdwg.mxu0
    %v5714 = vxor.u32 %v5706, 2147483648
    %v5715 = vmul.f32 %v5714, 1.442695
    %v5716 = vpow.pop %v5715
    %v5717 = vadd.f32 %v5716, 1.0
    %v5718 = vrcp.pop %v5717
    %v5719 = vmul.f32 1.0, %v5718
    %v5720 = vtanh.pop %v5706
    %v5721 = vmul.f32 %v5719, 0.0
    %5723 = vrot.lane.b32.xlu0 %v5720, 120
    %v5724 = vpop.permute.xlu0 %5723
    %v5726 = vmul.f32 %v5719, %v5724
    %5728 = vrot.lane.b32.xlu0 %v5726, 4
    %v5729 = vpop.permute.xlu0 %5728
    %v5731 = vadd.f32 %v5721, %v5729
    %v5732 = vtanh.pop %v5731
    %5734 = vrot.lane.b32.xlu0 %v5732, 8
    %v5735 = vpop.permute.xlu0 %5734
    %v5737 = vmul.f32 %v5719, %v5735
    %v5738 = vxor.u32 %v5711, 2147483648
    %v5739 = vmul.f32 %v5738, 1.442695
    %v5740 = vpow.pop %v5739
    %v5741 = vadd.f32 %v5740, 1.0
    %v5742 = vrcp.pop %v5741
    %v5743 = vmul.f32 1.0, %v5742
    %v5744 = vtanh.pop %v5711
    %v5745 = vmul.f32 %v5743, 0.0
    %5747 = vrot.lane.b32.xlu0 %v5744, 120
    %v5748 = vpop.permute.xlu0 %5747
    %v5750 = vmul.f32 %v5743, %v5748
    %5752 = vrot.lane.b32.xlu0 %v5750, 4
    %v5753 = vpop.permute.xlu0 %5752
    %v5755 = vadd.f32 %v5745, %v5753
    %v5756 = vtanh.pop %v5755
    %5758 = vrot.lane.b32.xlu0 %v5756, 8
    %v5759 = vpop.permute.xlu0 %5758
    %v5761 = vmul.f32 %v5743, %v5759
    %5763 = vrot.lane.b32.xlu0 %v5737, 116
    %v5764 = vpop.permute.xlu0 %5763
    %vm5765 = vcmask 31744
    %v5766 = vsel %vm5765, %v5764, 0
    %v5769 = vsel %vm305, %v5622, 0
    %5771 = vmatprep.subr.mxu0 0.0
    %5772 = vmatpush1.msra.mxu0 %v5769
    %5773 = vmatprep.subr.mxu0 0.0
    %5774 = vmatpush1.msra.mxu0 0.0
    %5775 = vmatprep.subr.mxu0 0.0
    %5776 = vmatpush1.msra.mxu0 0.0
    %5777 = vmatprep.subr.mxu0 0.0
    %5778 = vmatpush1.msra.mxu0 0.0
    %5779 = vmatprep.subr.mxu0 0.0
    %5780 = vmatpush1.msra.mxu0 0.0
    %5781 = vmatprep.subr.mxu0 0.0
    %5782 = vmatpush1.msra.mxu0 0.0
    %5783 = vmatprep.subr.mxu0 0.0
    %5784 = vmatpush1.msra.mxu0 0.0
    %5785 = vmatprep.subr.mxu0 0.0
    %5786 = vmatpush1.msra.mxu0 0.0
    %5787 = vmatprep.subr.mxu0 0.0
    %5788 = vmatpush1.msra.mxu0 0.0
    %5789 = vmatprep.subr.mxu0 0.0
    %5790 = vmatpush1.msra.mxu0 0.0
    %5791 = vmatprep.subr.mxu0 0.0
    %5792 = vmatpush1.msra.mxu0 0.0
    %5793 = vmatprep.subr.mxu0 0.0
    %5794 = vmatpush1.msra.mxu0 0.0
    %5795 = vmatprep.subr.mxu0 0.0
    %5796 = vmatpush1.msra.mxu0 0.0
    %5797 = vmatprep.subr.mxu0 0.0
    %5798 = vmatpush1.msra.mxu0 0.0
    %5799 = vmatprep.subr.mxu0 0.0
    %5800 = vmatpush1.msra.mxu0 0.0
    %5801 = vmatprep.subr.mxu0 0.0
    %5802 = vmatpush1.msra.mxu0 0.0
    %5803 = vmatprep.subr.mxu0 0.0
    %5804 = vmatpush1.msra.mxu0 0.0
    %5805 = vmatprep.subr.mxu0 0.0
    %5806 = vmatpush1.msra.mxu0 0.0
    %5807 = vmatprep.subr.mxu0 0.0
    %5808 = vmatpush1.msra.mxu0 0.0
    %5809 = vmatprep.subr.mxu0 0.0
    %5810 = vmatpush1.msra.mxu0 0.0
    %5811 = vmatprep.subr.mxu0 0.0
    %5812 = vmatpush1.msra.mxu0 0.0
    %5813 = vmatprep.subr.mxu0 0.0
    %5814 = vmatpush1.msra.mxu0 0.0
    %5815 = vmatprep.subr.mxu0 0.0
    %5816 = vmatpush1.msra.mxu0 0.0
    %5817 = vmatprep.subr.mxu0 0.0
    %5818 = vmatpush1.msra.mxu0 0.0
    %5819 = vmatprep.subr.mxu0 0.0
    %5820 = vmatpush1.msra.mxu0 0.0
    %5821 = vmatprep.subr.mxu0 0.0
    %5822 = vmatpush1.msra.mxu0 0.0
    %5823 = vmatprep.subr.mxu0 0.0
    %5824 = vmatpush1.msra.mxu0 0.0
    %5825 = vmatprep.subr.mxu0 0.0
    %5826 = vmatpush1.msra.mxu0 0.0
    %5827 = vmatprep.subr.mxu0 0.0
    %5828 = vmatpush1.msra.mxu0 0.0
    %5829 = vmatprep.subr.mxu0 0.0
    %5830 = vmatpush1.msra.mxu0 0.0
    %5831 = vmatprep.subr.mxu0 0.0
    %5832 = vmatpush1.msra.mxu0 0.0
    %5833 = vmatprep.subr.mxu0 0.0
    %5834 = vmatpush1.msra.mxu0 0.0
    %5835 = vmatprep.mubr.f32.mxu0 0.0
    %5836 = vmatmul.mubr.f32.gmra.mrb[0].mxu0 %v5766
    %v5837 = vpop.f32.mrb[0].mxu0
    %v5838 = vadd.f32 0.0, %v5837
    %v5839 = vpop.f32.mrb[0].mxu0
    %5840 = vdwg.mxu0
    %v5842 = vrot.slane %v5838, 6
    %v5844 = vadd.f32 %v5706, %v5842
    %v5846 = vrot.slane %v5761, 6
    %5847 = vrot.lane.b32.xlu0 %v5846, 100
    %v5848 = vpop.permute.xlu0 %5847
    %v5849 = vsel %vm5765, %v5848, 0
    %v5852 = vsel %vm305, %v5623, 0
    %5854 = vmatprep.subr.mxu0 0.0
    %5855 = vmatpush1.msra.mxu0 %v5852
    %5856 = vmatprep.subr.mxu0 0.0
    %5857 = vmatpush1.msra.mxu0 0.0
    %5858 = vmatprep.subr.mxu0 0.0
    %5859 = vmatpush1.msra.mxu0 0.0
    %5860 = vmatprep.subr.mxu0 0.0
    %5861 = vmatpush1.msra.mxu0 0.0
    %5862 = vmatprep.subr.mxu0 0.0
    %5863 = vmatpush1.msra.mxu0 0.0
    %5864 = vmatprep.subr.mxu0 0.0
    %5865 = vmatpush1.msra.mxu0 0.0
    %5866 = vmatprep.subr.mxu0 0.0
    %5867 = vmatpush1.msra.mxu0 0.0
    %5868 = vmatprep.subr.mxu0 0.0
    %5869 = vmatpush1.msra.mxu0 0.0
    %5870 = vmatprep.subr.mxu0 0.0
    %5871 = vmatpush1.msra.mxu0 0.0
    %5872 = vmatprep.subr.mxu0 0.0
    %5873 = vmatpush1.msra.mxu0 0.0
    %5874 = vmatprep.subr.mxu0 0.0
    %5875 = vmatpush1.msra.mxu0 0.0
    %5876 = vmatprep.subr.mxu0 0.0
    %5877 = vmatpush1.msra.mxu0 0.0
    %5878 = vmatprep.subr.mxu0 0.0
    %5879 = vmatpush1.msra.mxu0 0.0
    %5880 = vmatprep.subr.mxu0 0.0
    %5881 = vmatpush1.msra.mxu0 0.0
    %5882 = vmatprep.subr.mxu0 0.0
    %5883 = vmatpush1.msra.mxu0 0.0
    %5884 = vmatprep.subr.mxu0 0.0
    %5885 = vmatpush1.msra.mxu0 0.0
    %5886 = vmatprep.subr.mxu0 0.0
    %5887 = vmatpush1.msra.mxu0 0.0
    %5888 = vmatprep.subr.mxu0 0.0
    %5889 = vmatpush1.msra.mxu0 0.0
    %5890 = vmatprep.subr.mxu0 0.0
    %5891 = vmatpush1.msra.mxu0 0.0
    %5892 = vmatprep.subr.mxu0 0.0
    %5893 = vmatpush1.msra.mxu0 0.0
    %5894 = vmatprep.subr.mxu0 0.0
    %5895 = vmatpush1.msra.mxu0 0.0
    %5896 = vmatprep.subr.mxu0 0.0
    %5897 = vmatpush1.msra.mxu0 0.0
    %5898 = vmatprep.subr.mxu0 0.0
    %5899 = vmatpush1.msra.mxu0 0.0
    %5900 = vmatprep.subr.mxu0 0.0
    %5901 = vmatpush1.msra.mxu0 0.0
    %5902 = vmatprep.subr.mxu0 0.0
    %5903 = vmatpush1.msra.mxu0 0.0
    %5904 = vmatprep.subr.mxu0 0.0
    %5905 = vmatpush1.msra.mxu0 0.0
    %5906 = vmatprep.subr.mxu0 0.0
    %5907 = vmatpush1.msra.mxu0 0.0
    %5908 = vmatprep.subr.mxu0 0.0
    %5909 = vmatpush1.msra.mxu0 0.0
    %5910 = vmatprep.subr.mxu0 0.0
    %5911 = vmatpush1.msra.mxu0 0.0
    %5912 = vmatprep.subr.mxu0 0.0
    %5913 = vmatpush1.msra.mxu0 0.0
    %5914 = vmatprep.subr.mxu0 0.0
    %5915 = vmatpush1.msra.mxu0 0.0
    %5916 = vmatprep.subr.mxu0 0.0
    %5917 = vmatpush1.msra.mxu0 0.0
    %5918 = vmatprep.mubr.f32.mxu0 0.0
    %5919 = vmatmul.mubr.f32.gmra.mrb[0].mxu0 %v5849
    %v5920 = vpop.f32.mrb[0].mxu0
    %v5921 = vadd.f32 0.0, %v5920
    %v5922 = vpop.f32.mrb[0].mxu0
    %5923 = vdwg.mxu0
    %v5925 = vrot.slane %v5921, 4
    %5926 = vrot.lane.b32.xlu0 %v5925, 16
    %v5927 = vpop.permute.xlu0 %5926
    %v5929 = vadd.f32 %v5711, %v5927
    %v5930 = vxor.u32 %v5844, 2147483648
    %v5931 = vmul.f32 %v5930, 1.442695
    %v5932 = vpow.pop %v5931
    %v5933 = vadd.f32 %v5932, 1.0
    %v5934 = vrcp.pop %v5933
    %v5935 = vmul.f32 1.0, %v5934
    %v5936 = vtanh.pop %v5844
    %v5938 = vrot.slane %v5731, 6
    %v5940 = vmul.f32 %v5935, %v5938
    %5942 = vrot.lane.b32.xlu0 %v5936, 120
    %v5943 = vpop.permute.xlu0 %5942
    %v5945 = vmul.f32 %v5935, %v5943
    %5947 = vrot.lane.b32.xlu0 %v5945, 4
    %v5948 = vpop.permute.xlu0 %5947
    %v5950 = vadd.f32 %v5940, %v5948
    %v5951 = vtanh.pop %v5950
    %5953 = vrot.lane.b32.xlu0 %v5951, 8
    %v5954 = vpop.permute.xlu0 %5953
    %v5956 = vmul.f32 %v5935, %v5954
    %v5957 = vxor.u32 %v5929, 2147483648
    %v5958 = vmul.f32 %v5957, 1.442695
    %v5959 = vpow.pop %v5958
    %v5960 = vadd.f32 %v5959, 1.0
    %v5961 = vrcp.pop %v5960
    %v5962 = vmul.f32 1.0, %v5961
    %v5963 = vtanh.pop %v5929
    %v5965 = vrot.slane %v5755, 2
    %v5967 = vmul.f32 %v5962, %v5965
    %5969 = vrot.lane.b32.xlu0 %v5963, 120
    %v5970 = vpop.permute.xlu0 %5969
    %v5972 = vmul.f32 %v5962, %v5970
    %5974 = vrot.lane.b32.xlu0 %v5972, 4
    %v5975 = vpop.permute.xlu0 %5974
    %v5977 = vadd.f32 %v5967, %v5975
    %v5978 = vtanh.pop %v5977
    %5980 = vrot.lane.b32.xlu0 %v5978, 8
    %v5981 = vpop.permute.xlu0 %5980
    %v5983 = vmul.f32 %v5962, %v5981
    %v5985 = vrot.slane %v5956, 2
    %5986 = vrot.lane.b32.xlu0 %v5985, 116
    %v5987 = vpop.permute.xlu0 %5986
    %v5988 = vsel %vm5765, %v5987, 0
    %5990 = vmatprep.subr.mxu0 0.0
    %5991 = vmatpush1.msra.mxu0 %v5769
    %5992 = vmatprep.subr.mxu0 0.0
    %5993 = vmatpush1.msra.mxu0 0.0
    %5994 = vmatprep.subr.mxu0 0.0
    %5995 = vmatpush1.msra.mxu0 0.0
    %5996 = vmatprep.subr.mxu0 0.0
    %5997 = vmatpush1.msra.mxu0 0.0
    %5998 = vmatprep.subr.mxu0 0.0
    %5999 = vmatpush1.msra.mxu0 0.0
    %6000 = vmatprep.subr.mxu0 0.0
    %6001 = vmatpush1.msra.mxu0 0.0
    %6002 = vmatprep.subr.mxu0 0.0
    %6003 = vmatpush1.msra.mxu0 0.0
    %6004 = vmatprep.subr.mxu0 0.0
    %6005 = vmatpush1.msra.mxu0 0.0
    %6006 = vmatprep.subr.mxu0 0.0
    %6007 = vmatpush1.msra.mxu0 0.0
    %6008 = vmatprep.subr.mxu0 0.0
    %6009 = vmatpush1.msra.mxu0 0.0
    %6010 = vmatprep.subr.mxu0 0.0
    %6011 = vmatpush1.msra.mxu0 0.0
    %6012 = vmatprep.subr.mxu0 0.0
    %6013 = vmatpush1.msra.mxu0 0.0
    %6014 = vmatprep.subr.mxu0 0.0
    %6015 = vmatpush1.msra.mxu0 0.0
    %6016 = vmatprep.subr.mxu0 0.0
    %6017 = vmatpush1.msra.mxu0 0.0
    %6018 = vmatprep.subr.mxu0 0.0
    %6019 = vmatpush1.msra.mxu0 0.0
    %6020 = vmatprep.subr.mxu0 0.0
    %6021 = vmatpush1.msra.mxu0 0.0
    %6022 = vmatprep.subr.mxu0 0.0
    %6023 = vmatpush1.msra.mxu0 0.0
    %6024 = vmatprep.subr.mxu0 0.0
    %6025 = vmatpush1.msra.mxu0 0.0
    %6026 = vmatprep.subr.mxu0 0.0
    %6027 = vmatpush1.msra.mxu0 0.0
    %6028 = vmatprep.subr.mxu0 0.0
    %6029 = vmatpush1.msra.mxu0 0.0
    %6030 = vmatprep.subr.mxu0 0.0
    %6031 = vmatpush1.msra.mxu0 0.0
    %6032 = vmatprep.subr.mxu0 0.0
    %6033 = vmatpush1.msra.mxu0 0.0
    %6034 = vmatprep.subr.mxu0 0.0
    %6035 = vmatpush1.msra.mxu0 0.0
    %6036 = vmatprep.subr.mxu0 0.0
    %6037 = vmatpush1.msra.mxu0 0.0
    %6038 = vmatprep.subr.mxu0 0.0
    %6039 = vmatpush1.msra.mxu0 0.0
    %6040 = vmatprep.subr.mxu0 0.0
    %6041 = vmatpush1.msra.mxu0 0.0
    %6042 = vmatprep.subr.mxu0 0.0
    %6043 = vmatpush1.msra.mxu0 0.0
    %6044 = vmatprep.subr.mxu0 0.0
    %6045 = vmatpush1.msra.mxu0 0.0
    %6046 = vmatprep.subr.mxu0 0.0
    %6047 = vmatpush1.msra.mxu0 0.0
    %6048 = vmatprep.subr.mxu0 0.0
    %6049 = vmatpush1.msra.mxu0 0.0
    %6050 = vmatprep.subr.mxu0 0.0
    %6051 = vmatpush1.msra.mxu0 0.0
    %6052 = vmatprep.subr.mxu0 0.0
    %6053 = vmatpush1.msra.mxu0 0.0
    %6054 = vmatprep.mubr.f32.mxu0 0.0
    %6055 = vmatmul.mubr.f32.gmra.mrb[0].mxu0 %v5988
    %v6056 = vpop.f32.mrb[0].mxu0
    %v6057 = vadd.f32 0.0, %v6056
    %v6058 = vpop.f32.mrb[0].mxu0
    %6059 = vdwg.mxu0
    %v6061 = vrot.slane %v6057, 4
    %v6063 = vadd.f32 %v5706, %v6061
    %v6065 = vrot.slane %v5983, 4
    %6066 = vrot.lane.b32.xlu0 %v6065, 100
    %v6067 = vpop.permute.xlu0 %6066
    %v6068 = vsel %vm5765, %v6067, 0
    %6070 = vmatprep.subr.mxu0 0.0
    %6071 = vmatpush1.msra.mxu0 %v5852
    %6072 = vmatprep.subr.mxu0 0.0
    %6073 = vmatpush1.msra.mxu0 0.0
    %6074 = vmatprep.subr.mxu0 0.0
    %6075 = vmatpush1.msra.mxu0 0.0
    %6076 = vmatprep.subr.mxu0 0.0
    %6077 = vmatpush1.msra.mxu0 0.0
    %6078 = vmatprep.subr.mxu0 0.0
    %6079 = vmatpush1.msra.mxu0 0.0
    %6080 = vmatprep.subr.mxu0 0.0
    %6081 = vmatpush1.msra.mxu0 0.0
    %6082 = vmatprep.subr.mxu0 0.0
    %6083 = vmatpush1.msra.mxu0 0.0
    %6084 = vmatprep.subr.mxu0 0.0
    %6085 = vmatpush1.msra.mxu0 0.0
    %6086 = vmatprep.subr.mxu0 0.0
    %6087 = vmatpush1.msra.mxu0 0.0
    %6088 = vmatprep.subr.mxu0 0.0
    %6089 = vmatpush1.msra.mxu0 0.0
    %6090 = vmatprep.subr.mxu0 0.0
    %6091 = vmatpush1.msra.mxu0 0.0
    %6092 = vmatprep.subr.mxu0 0.0
    %6093 = vmatpush1.msra.mxu0 0.0
    %6094 = vmatprep.subr.mxu0 0.0
    %6095 = vmatpush1.msra.mxu0 0.0
    %6096 = vmatprep.subr.mxu0 0.0
    %6097 = vmatpush1.msra.mxu0 0.0
    %6098 = vmatprep.subr.mxu0 0.0
    %6099 = vmatpush1.msra.mxu0 0.0
    %6100 = vmatprep.subr.mxu0 0.0
    %6101 = vmatpush1.msra.mxu0 0.0
    %6102 = vmatprep.subr.mxu0 0.0
    %6103 = vmatpush1.msra.mxu0 0.0
    %6104 = vmatprep.subr.mxu0 0.0
    %6105 = vmatpush1.msra.mxu0 0.0
    %6106 = vmatprep.subr.mxu0 0.0
    %6107 = vmatpush1.msra.mxu0 0.0
    %6108 = vmatprep.subr.mxu0 0.0
    %6109 = vmatpush1.msra.mxu0 0.0
    %6110 = vmatprep.subr.mxu0 0.0
    %6111 = vmatpush1.msra.mxu0 0.0
    %6112 = vmatprep.subr.mxu0 0.0
    %6113 = vmatpush1.msra.mxu0 0.0
    %6114 = vmatprep.subr.mxu0 0.0
    %6115 = vmatpush1.msra.mxu0 0.0
    %6116 = vmatprep.subr.mxu0 0.0
    %6117 = vmatpush1.msra.mxu0 0.0
    %6118 = vmatprep.subr.mxu0 0.0
    %6119 = vmatpush1.msra.mxu0 0.0
    %6120 = vmatprep.subr.mxu0 0.0
    %6121 = vmatpush1.msra.mxu0 0.0
    %6122 = vmatprep.subr.mxu0 0.0
    %6123 = vmatpush1.msra.mxu0 0.0
    %6124 = vmatprep.subr.mxu0 0.0
    %6125 = vmatpush1.msra.mxu0 0.0
    %6126 = vmatprep.subr.mxu0 0.0
    %6127 = vmatpush1.msra.mxu0 0.0
    %6128 = vmatprep.subr.mxu0 0.0
    %6129 = vmatpush1.msra.mxu0 0.0
    %6130 = vmatprep.subr.mxu0 0.0
    %6131 = vmatpush1.msra.mxu0 0.0
    %6132 = vmatprep.subr.mxu0 0.0
    %6133 = vmatpush1.msra.mxu0 0.0
    %6134 = vmatprep.mubr.f32.mxu0 0.0
    %6135 = vmatmul.mubr.f32.gmra.mrb[0].mxu0 %v6068
    %v6136 = vpop.f32.mrb[0].mxu0
    %v6137 = vadd.f32 0.0, %v6136
    %v6138 = vpop.f32.mrb[0].mxu0
    %6139 = vdwg.mxu0
    %v6141 = vrot.slane %v6137, 6
    %6142 = vrot.lane.b32.xlu0 %v6141, 16
    %v6143 = vpop.permute.xlu0 %6142
    %v6145 = vadd.f32 %v5711, %v6143
    %v6146 = vxor.u32 %v6063, 2147483648
    %v6147 = vmul.f32 %v6146, 1.442695
    %v6148 = vpow.pop %v6147
    %v6149 = vadd.f32 %v6148, 1.0
    %v6150 = vrcp.pop %v6149
    %v6151 = vmul.f32 1.0, %v6150
    %v6152 = vtanh.pop %v6063
    %v6154 = vrot.slane %v5950, 6
    %v6156 = vmul.f32 %v6151, %v6154
    %6158 = vrot.lane.b32.xlu0 %v6152, 120
    %v6159 = vpop.permute.xlu0 %6158
    %v6161 = vmul.f32 %v6151, %v6159
    %6163 = vrot.lane.b32.xlu0 %v6161, 4
    %v6164 = vpop.permute.xlu0 %6163
    %v6166 = vadd.f32 %v6156, %v6164
    %v6167 = vtanh.pop %v6166
    %6169 = vrot.lane.b32.xlu0 %v6167, 8
    %v6170 = vpop.permute.xlu0 %6169
    %v6172 = vmul.f32 %v6151, %v6170
    %v6173 = vxor.u32 %v6145, 2147483648
    %v6174 = vmul.f32 %v6173, 1.442695
    %v6175 = vpow.pop %v6174
    %v6176 = vadd.f32 %v6175, 1.0
    %v6177 = vrcp.pop %v6176
    %v6178 = vmul.f32 1.0, %v6177
    %v6179 = vtanh.pop %v6145
    %v6181 = vrot.slane %v5977, 2
    %v6183 = vmul.f32 %v6178, %v6181
    %6185 = vrot.lane.b32.xlu0 %v6179, 120
    %v6186 = vpop.permute.xlu0 %6185
    %v6188 = vmul.f32 %v6178, %v6186
    %6190 = vrot.lane.b32.xlu0 %v6188, 4
    %v6191 = vpop.permute.xlu0 %6190
    %v6193 = vadd.f32 %v6183, %v6191
    %v6194 = vtanh.pop %v6193
    %6196 = vrot.lane.b32.xlu0 %v6194, 8
    %v6197 = vpop.permute.xlu0 %6196
    %v6199 = vmul.f32 %v6178, %v6197
    %v6201 = vrot.slane %v6172, 4
    %6202 = vrot.lane.b32.xlu0 %v6201, 116
    %v6203 = vpop.permute.xlu0 %6202
    %v6204 = vsel %vm5765, %v6203, 0
    %6206 = vmatprep.subr.mxu0 0.0
    %6207 = vmatpush1.msra.mxu0 %v5769
    %6208 = vmatprep.subr.mxu0 0.0
    %6209 = vmatpush1.msra.mxu0 0.0
    %6210 = vmatprep.subr.mxu0 0.0
    %6211 = vmatpush1.msra.mxu0 0.0
    %6212 = vmatprep.subr.mxu0 0.0
    %6213 = vmatpush1.msra.mxu0 0.0
    %6214 = vmatprep.subr.mxu0 0.0
    %6215 = vmatpush1.msra.mxu0 0.0
    %6216 = vmatprep.subr.mxu0 0.0
    %6217 = vmatpush1.msra.mxu0 0.0
    %6218 = vmatprep.subr.mxu0 0.0
    %6219 = vmatpush1.msra.mxu0 0.0
    %6220 = vmatprep.subr.mxu0 0.0
    %6221 = vmatpush1.msra.mxu0 0.0
    %6222 = vmatprep.subr.mxu0 0.0
    %6223 = vmatpush1.msra.mxu0 0.0
    %6224 = vmatprep.subr.mxu0 0.0
    %6225 = vmatpush1.msra.mxu0 0.0
    %6226 = vmatprep.subr.mxu0 0.0
    %6227 = vmatpush1.msra.mxu0 0.0
    %6228 = vmatprep.subr.mxu0 0.0
    %6229 = vmatpush1.msra.mxu0 0.0
    %6230 = vmatprep.subr.mxu0 0.0
    %6231 = vmatpush1.msra.mxu0 0.0
    %6232 = vmatprep.subr.mxu0 0.0
    %6233 = vmatpush1.msra.mxu0 0.0
    %6234 = vmatprep.subr.mxu0 0.0
    %6235 = vmatpush1.msra.mxu0 0.0
    %6236 = vmatprep.subr.mxu0 0.0
    %6237 = vmatpush1.msra.mxu0 0.0
    %6238 = vmatprep.subr.mxu0 0.0
    %6239 = vmatpush1.msra.mxu0 0.0
    %6240 = vmatprep.subr.mxu0 0.0
    %6241 = vmatpush1.msra.mxu0 0.0
    %6242 = vmatprep.subr.mxu0 0.0
    %6243 = vmatpush1.msra.mxu0 0.0
    %6244 = vmatprep.subr.mxu0 0.0
    %6245 = vmatpush1.msra.mxu0 0.0
    %6246 = vmatprep.subr.mxu0 0.0
    %6247 = vmatpush1.msra.mxu0 0.0
    %6248 = vmatprep.subr.mxu0 0.0
    %6249 = vmatpush1.msra.mxu0 0.0
    %6250 = vmatprep.subr.mxu0 0.0
    %6251 = vmatpush1.msra.mxu0 0.0
    %6252 = vmatprep.subr.mxu0 0.0
    %6253 = vmatpush1.msra.mxu0 0.0
    %6254 = vmatprep.subr.mxu0 0.0
    %6255 = vmatpush1.msra.mxu0 0.0
    %6256 = vmatprep.subr.mxu0 0.0
    %6257 = vmatpush1.msra.mxu0 0.0
    %6258 = vmatprep.subr.mxu0 0.0
    %6259 = vmatpush1.msra.mxu0 0.0
    %6260 = vmatprep.subr.mxu0 0.0
    %6261 = vmatpush1.msra.mxu0 0.0
    %6262 = vmatprep.subr.mxu0 0.0
    %6263 = vmatpush1.msra.mxu0 0.0
    %6264 = vmatprep.subr.mxu0 0.0
    %6265 = vmatpush1.msra.mxu0 0.0
    %6266 = vmatprep.subr.mxu0 0.0
    %6267 = vmatpush1.msra.mxu0 0.0
    %6268 = vmatprep.subr.mxu0 0.0
    %6269 = vmatpush1.msra.mxu0 0.0
    %6270 = vmatprep.mubr.f32.mxu0 0.0
    %6271 = vmatmul.mubr.f32.gmra.mrb[0].mxu0 %v6204
    %v6272 = vpop.f32.mrb[0].mxu0
    %v6273 = vadd.f32 0.0, %v6272
    %v6274 = vpop.f32.mrb[0].mxu0
    %6275 = vdwg.mxu0
    %v6277 = vrot.slane %v6273, 2
    %v6279 = vadd.f32 %v5706, %v6277
    %v6281 = vrot.slane %v6199, 2
    %6282 = vrot.lane.b32.xlu0 %v6281, 100
    %v6283 = vpop.permute.xlu0 %6282
    %v6284 = vsel %vm5765, %v6283, 0
    %6286 = vmatprep.subr.mxu0 0.0
    %6287 = vmatpush1.msra.mxu0 %v5852
    %6288 = vmatprep.subr.mxu0 0.0
    %6289 = vmatpush1.msra.mxu0 0.0
    %6290 = vmatprep.subr.mxu0 0.0
    %6291 = vmatpush1.msra.mxu0 0.0
    %6292 = vmatprep.subr.mxu0 0.0
    %6293 = vmatpush1.msra.mxu0 0.0
    %6294 = vmatprep.subr.mxu0 0.0
    %6295 = vmatpush1.msra.mxu0 0.0
    %6296 = vmatprep.subr.mxu0 0.0
    %6297 = vmatpush1.msra.mxu0 0.0
    %6298 = vmatprep.subr.mxu0 0.0
    %6299 = vmatpush1.msra.mxu0 0.0
    %6300 = vmatprep.subr.mxu0 0.0
    %6301 = vmatpush1.msra.mxu0 0.0
    %6302 = vmatprep.subr.mxu0 0.0
    %6303 = vmatpush1.msra.mxu0 0.0
    %6304 = vmatprep.subr.mxu0 0.0
    %6305 = vmatpush1.msra.mxu0 0.0
    %6306 = vmatprep.subr.mxu0 0.0
    %6307 = vmatpush1.msra.mxu0 0.0
    %6308 = vmatprep.subr.mxu0 0.0
    %6309 = vmatpush1.msra.mxu0 0.0
    %6310 = vmatprep.subr.mxu0 0.0
    %6311 = vmatpush1.msra.mxu0 0.0
    %6312 = vmatprep.subr.mxu0 0.0
    %6313 = vmatpush1.msra.mxu0 0.0
    %6314 = vmatprep.subr.mxu0 0.0
    %6315 = vmatpush1.msra.mxu0 0.0
    %6316 = vmatprep.subr.mxu0 0.0
    %6317 = vmatpush1.msra.mxu0 0.0
    %6318 = vmatprep.subr.mxu0 0.0
    %6319 = vmatpush1.msra.mxu0 0.0
    %6320 = vmatprep.subr.mxu0 0.0
    %6321 = vmatpush1.msra.mxu0 0.0
    %6322 = vmatprep.subr.mxu0 0.0
    %6323 = vmatpush1.msra.mxu0 0.0
    %6324 = vmatprep.subr.mxu0 0.0
    %6325 = vmatpush1.msra.mxu0 0.0
    %6326 = vmatprep.subr.mxu0 0.0
    %6327 = vmatpush1.msra.mxu0 0.0
    %6328 = vmatprep.subr.mxu0 0.0
    %6329 = vmatpush1.msra.mxu0 0.0
    %6330 = vmatprep.subr.mxu0 0.0
    %6331 = vmatpush1.msra.mxu0 0.0
    %6332 = vmatprep.subr.mxu0 0.0
    %6333 = vmatpush1.msra.mxu0 0.0
    %6334 = vmatprep.subr.mxu0 0.0
    %6335 = vmatpush1.msra.mxu0 0.0
    %6336 = vmatprep.subr.mxu0 0.0
    %6337 = vmatpush1.msra.mxu0 0.0
    %6338 = vmatprep.subr.mxu0 0.0
    %6339 = vmatpush1.msra.mxu0 0.0
    %6340 = vmatprep.subr.mxu0 0.0
    %6341 = vmatpush1.msra.mxu0 0.0
    %6342 = vmatprep.subr.mxu0 0.0
    %6343 = vmatpush1.msra.mxu0 0.0
    %6344 = vmatprep.subr.mxu0 0.0
    %6345 = vmatpush1.msra.mxu0 0.0
    %6346 = vmatprep.subr.mxu0 0.0
    %6347 = vmatpush1.msra.mxu0 0.0
    %6348 = vmatprep.subr.mxu0 0.0
    %6349 = vmatpush1.msra.mxu0 0.0
    %6350 = vmatprep.mubr.f32.mxu0 0.0
    %6351 = vmatmul.mubr.f32.gmra.mrb[0].mxu0 %v6284
    %v6352 = vpop.f32.mrb[0].mxu0
    %v6353 = vadd.f32 0.0, %v6352
    %v6354 = vpop.f32.mrb[0].mxu0
    %6355 = vdwg.mxu0
    %6357 = vrot.lane.b32.xlu0 %v6353, 16
    %v6358 = vpop.permute.xlu0 %6357
    %v6360 = vadd.f32 %v5711, %v6358
    %v6361 = vxor.u32 %v6279, 2147483648
    %v6362 = vmul.f32 %v6361, 1.442695
    %v6363 = vpow.pop %v6362
    %v6364 = vadd.f32 %v6363, 1.0
    %v6365 = vrcp.pop %v6364
    %v6366 = vmul.f32 1.0, %v6365
    %v6367 = vtanh.pop %v6279
    %v6369 = vrot.slane %v6166, 6
    %v6371 = vmul.f32 %v6366, %v6369
    %6373 = vrot.lane.b32.xlu0 %v6367, 120
    %v6374 = vpop.permute.xlu0 %6373
    %v6376 = vmul.f32 %v6366, %v6374
    %6378 = vrot.lane.b32.xlu0 %v6376, 4
    %v6379 = vpop.permute.xlu0 %6378
    %v6381 = vadd.f32 %v6371, %v6379
    %v6382 = vtanh.pop %v6381
    %6384 = vrot.lane.b32.xlu0 %v6382, 8
    %v6385 = vpop.permute.xlu0 %6384
    %v6387 = vmul.f32 %v6366, %v6385
    %v6388 = vxor.u32 %v6360, 2147483648
    %v6389 = vmul.f32 %v6388, 1.442695
    %v6390 = vpow.pop %v6389
    %v6391 = vadd.f32 %v6390, 1.0
    %v6392 = vrcp.pop %v6391
    %v6393 = vmul.f32 1.0, %v6392
    %v6394 = vtanh.pop %v6360
    %v6396 = vrot.slane %v6193, 2
    %v6398 = vmul.f32 %v6393, %v6396
    %6400 = vrot.lane.b32.xlu0 %v6394, 120
    %v6401 = vpop.permute.xlu0 %6400
    %v6403 = vmul.f32 %v6393, %v6401
    %6405 = vrot.lane.b32.xlu0 %v6403, 4
    %v6406 = vpop.permute.xlu0 %6405
    %v6408 = vadd.f32 %v6398, %v6406
    %v6409 = vtanh.pop %v6408
    %6411 = vrot.lane.b32.xlu0 %v6409, 8
    %v6412 = vpop.permute.xlu0 %6411
    %v6414 = vmul.f32 %v6393, %v6412
    %v6416 = vrot.slane %v6387, 6
    %6417 = vrot.lane.b32.xlu0 %v6416, 116
    %v6418 = vpop.permute.xlu0 %6417
    %v6419 = vsel %vm5765, %v6418, 0
    %6421 = vmatprep.subr.mxu0 0.0
    %6422 = vmatpush1.msra.mxu0 %v5769
    %6423 = vmatprep.subr.mxu0 0.0
    %6424 = vmatpush1.msra.mxu0 0.0
    %6425 = vmatprep.subr.mxu0 0.0
    %6426 = vmatpush1.msra.mxu0 0.0
    %6427 = vmatprep.subr.mxu0 0.0
    %6428 = vmatpush1.msra.mxu0 0.0
    %6429 = vmatprep.subr.mxu0 0.0
    %6430 = vmatpush1.msra.mxu0 0.0
    %6431 = vmatprep.subr.mxu0 0.0
    %6432 = vmatpush1.msra.mxu0 0.0
    %6433 = vmatprep.subr.mxu0 0.0
    %6434 = vmatpush1.msra.mxu0 0.0
    %6435 = vmatprep.subr.mxu0 0.0
    %6436 = vmatpush1.msra.mxu0 0.0
    %6437 = vmatprep.subr.mxu0 0.0
    %6438 = vmatpush1.msra.mxu0 0.0
    %6439 = vmatprep.subr.mxu0 0.0
    %6440 = vmatpush1.msra.mxu0 0.0
    %6441 = vmatprep.subr.mxu0 0.0
    %6442 = vmatpush1.msra.mxu0 0.0
    %6443 = vmatprep.subr.mxu0 0.0
    %6444 = vmatpush1.msra.mxu0 0.0
    %6445 = vmatprep.subr.mxu0 0.0
    %6446 = vmatpush1.msra.mxu0 0.0
    %6447 = vmatprep.subr.mxu0 0.0
    %6448 = vmatpush1.msra.mxu0 0.0
    %6449 = vmatprep.subr.mxu0 0.0
    %6450 = vmatpush1.msra.mxu0 0.0
    %6451 = vmatprep.subr.mxu0 0.0
    %6452 = vmatpush1.msra.mxu0 0.0
    %6453 = vmatprep.subr.mxu0 0.0
    %6454 = vmatpush1.msra.mxu0 0.0
    %6455 = vmatprep.subr.mxu0 0.0
    %6456 = vmatpush1.msra.mxu0 0.0
    %6457 = vmatprep.subr.mxu0 0.0
    %6458 = vmatpush1.msra.mxu0 0.0
    %6459 = vmatprep.subr.mxu0 0.0
    %6460 = vmatpush1.msra.mxu0 0.0
    %6461 = vmatprep.subr.mxu0 0.0
    %6462 = vmatpush1.msra.mxu0 0.0
    %6463 = vmatprep.subr.mxu0 0.0
    %6464 = vmatpush1.msra.mxu0 0.0
    %6465 = vmatprep.subr.mxu0 0.0
    %6466 = vmatpush1.msra.mxu0 0.0
    %6467 = vmatprep.subr.mxu0 0.0
    %6468 = vmatpush1.msra.mxu0 0.0
    %6469 = vmatprep.subr.mxu0 0.0
    %6470 = vmatpush1.msra.mxu0 0.0
    %6471 = vmatprep.subr.mxu0 0.0
    %6472 = vmatpush1.msra.mxu0 0.0
    %6473 = vmatprep.subr.mxu0 0.0
    %6474 = vmatpush1.msra.mxu0 0.0
    %6475 = vmatprep.subr.mxu0 0.0
    %6476 = vmatpush1.msra.mxu0 0.0
    %6477 = vmatprep.subr.mxu0 0.0
    %6478 = vmatpush1.msra.mxu0 0.0
    %6479 = vmatprep.subr.mxu0 0.0
    %6480 = vmatpush1.msra.mxu0 0.0
    %6481 = vmatprep.subr.mxu0 0.0
    %6482 = vmatpush1.msra.mxu0 0.0
    %6483 = vmatprep.subr.mxu0 0.0
    %6484 = vmatpush1.msra.mxu0 0.0
    %6485 = vmatprep.mubr.f32.mxu0 0.0
    %6486 = vmatmul.mubr.f32.gmra.mrb[0].mxu0 %v6419
    %v6487 = vpop.f32.mrb[0].mxu0
    %v6488 = vadd.f32 0.0, %v6487
    %v6489 = vpop.f32.mrb[0].mxu0
    %6490 = vdwg.mxu0
    %v6491 = vadd.f32 %v5711, %v6488
    %6493 = vrot.lane.b32.xlu0 %v6414, 100
    %v6494 = vpop.permute.xlu0 %6493
    %v6495 = vsel %vm5765, %v6494, 0
    %6497 = vmatprep.subr.mxu0 0.0
    %6498 = vmatpush1.msra.mxu0 %v5852
    %6499 = vmatprep.subr.mxu0 0.0
    %6500 = vmatpush1.msra.mxu0 0.0
    %6501 = vmatprep.subr.mxu0 0.0
    %6502 = vmatpush1.msra.mxu0 0.0
    %6503 = vmatprep.subr.mxu0 0.0
    %6504 = vmatpush1.msra.mxu0 0.0
    %6505 = vmatprep.subr.mxu0 0.0
    %6506 = vmatpush1.msra.mxu0 0.0
    %6507 = vmatprep.subr.mxu0 0.0
    %6508 = vmatpush1.msra.mxu0 0.0
    %6509 = vmatprep.subr.mxu0 0.0
    %6510 = vmatpush1.msra.mxu0 0.0
    %6511 = vmatprep.subr.mxu0 0.0
    %6512 = vmatpush1.msra.mxu0 0.0
    %6513 = vmatprep.subr.mxu0 0.0
    %6514 = vmatpush1.msra.mxu0 0.0
    %6515 = vmatprep.subr.mxu0 0.0
    %6516 = vmatpush1.msra.mxu0 0.0
    %6517 = vmatprep.subr.mxu0 0.0
    %6518 = vmatpush1.msra.mxu0 0.0
    %6519 = vmatprep.subr.mxu0 0.0
    %6520 = vmatpush1.msra.mxu0 0.0
    %6521 = vmatprep.subr.mxu0 0.0
    %6522 = vmatpush1.msra.mxu0 0.0
    %6523 = vmatprep.subr.mxu0 0.0
    %6524 = vmatpush1.msra.mxu0 0.0
    %6525 = vmatprep.subr.mxu0 0.0
    %6526 = vmatpush1.msra.mxu0 0.0
    %6527 = vmatprep.subr.mxu0 0.0
    %6528 = vmatpush1.msra.mxu0 0.0
    %6529 = vmatprep.subr.mxu0 0.0
    %6530 = vmatpush1.msra.mxu0 0.0
    %6531 = vmatprep.subr.mxu0 0.0
    %6532 = vmatpush1.msra.mxu0 0.0
    %6533 = vmatprep.subr.mxu0 0.0
    %6534 = vmatpush1.msra.mxu0 0.0
    %6535 = vmatprep.subr.mxu0 0.0
    %6536 = vmatpush1.msra.mxu0 0.0
    %6537 = vmatprep.subr.mxu0 0.0
    %6538 = vmatpush1.msra.mxu0 0.0
    %6539 = vmatprep.subr.mxu0 0.0
    %6540 = vmatpush1.msra.mxu0 0.0
    %6541 = vmatprep.subr.mxu0 0.0
    %6542 = vmatpush1.msra.mxu0 0.0
    %6543 = vmatprep.subr.mxu0 0.0
    %6544 = vmatpush1.msra.mxu0 0.0
    %6545 = vmatprep.subr.mxu0 0.0
    %6546 = vmatpush1.msra.mxu0 0.0
    %6547 = vmatprep.subr.mxu0 0.0
    %6548 = vmatpush1.msra.mxu0 0.0
    %6549 = vmatprep.subr.mxu0 0.0
    %6550 = vmatpush1.msra.mxu0 0.0
    %6551 = vmatprep.subr.mxu0 0.0
    %6552 = vmatpush1.msra.mxu0 0.0
    %6553 = vmatprep.subr.mxu0 0.0
    %6554 = vmatpush1.msra.mxu0 0.0
    %6555 = vmatprep.subr.mxu0 0.0
    %6556 = vmatpush1.msra.mxu0 0.0
    %6557 = vmatprep.subr.mxu0 0.0
    %6558 = vmatpush1.msra.mxu0 0.0
    %6559 = vmatprep.subr.mxu0 0.0
    %6560 = vmatpush1.msra.mxu0 0.0
    %6561 = vmatprep.mubr.f32.mxu0 0.0
    %6562 = vmatmul.mubr.f32.gmra.mrb[0].mxu0 %v6495
    %v6563 = vpop.f32.mrb[0].mxu0
    %v6564 = vadd.f32 0.0, %v6563
    %v6565 = vpop.f32.mrb[0].mxu0
    %6566 = vdwg.mxu0
    %v6568 = vrot.slane %v6564, 2
    %6569 = vrot.lane.b32.xlu0 %v6568, 16
    %v6570 = vpop.permute.xlu0 %6569
    %v6572 = vadd.f32 %v5706, %v6570
    %v6573 = vxor.u32 %v6491, 2147483648
    %v6574 = vmul.f32 %v6573, 1.442695
    %v6575 = vpow.pop %v6574
    %v6576 = vadd.f32 %v6575, 1.0
    %v6577 = vrcp.pop %v6576
    %v6578 = vmul.f32 1.0, %v6577
    %v6579 = vtanh.pop %v6491
    %v6581 = vrot.slane %v6381, 6
    %v6583 = vmul.f32 %v6578, %v6581
    %6585 = vrot.lane.b32.xlu0 %v6579, 120
    %v6586 = vpop.permute.xlu0 %6585
    %v6588 = vmul.f32 %v6578, %v6586
    %6590 = vrot.lane.b32.xlu0 %v6588, 4
    %v6591 = vpop.permute.xlu0 %6590
    %v6593 = vadd.f32 %v6583, %v6591
    %v6594 = vtanh.pop %v6593
    %6596 = vrot.lane.b32.xlu0 %v6594, 8
    %v6597 = vpop.permute.xlu0 %6596
    %v6599 = vmul.f32 %v6578, %v6597
    %v6600 = vxor.u32 %v6572, 2147483648
    %v6601 = vmul.f32 %v6600, 1.442695
    %v6602 = vpow.pop %v6601
    %v6603 = vadd.f32 %v6602, 1.0
    %v6604 = vrcp.pop %v6603
    %v6605 = vmul.f32 1.0, %v6604
    %v6606 = vtanh.pop %v6572
    %v6608 = vrot.slane %v6408, 2
    %v6610 = vmul.f32 %v6605, %v6608
    %6612 = vrot.lane.b32.xlu0 %v6606, 120
    %v6613 = vpop.permute.xlu0 %6612
    %v6615 = vmul.f32 %v6605, %v6613
    %6617 = vrot.lane.b32.xlu0 %v6615, 4
    %v6618 = vpop.permute.xlu0 %6617
    %v6620 = vadd.f32 %v6610, %v6618
    %v6621 = vtanh.pop %v6620
    %6623 = vrot.lane.b32.xlu0 %v6621, 8
    %v6624 = vpop.permute.xlu0 %6623
    %v6626 = vmul.f32 %v6605, %v6624
    %6628 = vrot.lane.b32.xlu0 %v6599, 116
    %v6629 = vpop.permute.xlu0 %6628
    %v6630 = vsel %vm5765, %v6629, 0
    %6632 = vmatprep.subr.mxu0 0.0
    %6633 = vmatpush1.msra.mxu0 %v5769
    %6634 = vmatprep.subr.mxu0 0.0
    %6635 = vmatpush1.msra.mxu0 0.0
    %6636 = vmatprep.subr.mxu0 0.0
    %6637 = vmatpush1.msra.mxu0 0.0
    %6638 = vmatprep.subr.mxu0 0.0
    %6639 = vmatpush1.msra.mxu0 0.0
    %6640 = vmatprep.subr.mxu0 0.0
    %6641 = vmatpush1.msra.mxu0 0.0
    %6642 = vmatprep.subr.mxu0 0.0
    %6643 = vmatpush1.msra.mxu0 0.0
    %6644 = vmatprep.subr.mxu0 0.0
    %6645 = vmatpush1.msra.mxu0 0.0
    %6646 = vmatprep.subr.mxu0 0.0
    %6647 = vmatpush1.msra.mxu0 0.0
    %6648 = vmatprep.subr.mxu0 0.0
    %6649 = vmatpush1.msra.mxu0 0.0
    %6650 = vmatprep.subr.mxu0 0.0
    %6651 = vmatpush1.msra.mxu0 0.0
    %6652 = vmatprep.subr.mxu0 0.0
    %6653 = vmatpush1.msra.mxu0 0.0
    %6654 = vmatprep.subr.mxu0 0.0
    %6655 = vmatpush1.msra.mxu0 0.0
    %6656 = vmatprep.subr.mxu0 0.0
    %6657 = vmatpush1.msra.mxu0 0.0
    %6658 = vmatprep.subr.mxu0 0.0
    %6659 = vmatpush1.msra.mxu0 0.0
    %6660 = vmatprep.subr.mxu0 0.0
    %6661 = vmatpush1.msra.mxu0 0.0
    %6662 = vmatprep.subr.mxu0 0.0
    %6663 = vmatpush1.msra.mxu0 0.0
    %6664 = vmatprep.subr.mxu0 0.0
    %6665 = vmatpush1.msra.mxu0 0.0
    %6666 = vmatprep.subr.mxu0 0.0
    %6667 = vmatpush1.msra.mxu0 0.0
    %6668 = vmatprep.subr.mxu0 0.0
    %6669 = vmatpush1.msra.mxu0 0.0
    %6670 = vmatprep.subr.mxu0 0.0
    %6671 = vmatpush1.msra.mxu0 0.0
    %6672 = vmatprep.subr.mxu0 0.0
    %6673 = vmatpush1.msra.mxu0 0.0
    %6674 = vmatprep.subr.mxu0 0.0
    %6675 = vmatpush1.msra.mxu0 0.0
    %6676 = vmatprep.subr.mxu0 0.0
    %6677 = vmatpush1.msra.mxu0 0.0
    %6678 = vmatprep.subr.mxu0 0.0
    %6679 = vmatpush1.msra.mxu0 0.0
    %6680 = vmatprep.subr.mxu0 0.0
    %6681 = vmatpush1.msra.mxu0 0.0
    %6682 = vmatprep.subr.mxu0 0.0
    %6683 = vmatpush1.msra.mxu0 0.0
    %6684 = vmatprep.subr.mxu0 0.0
    %6685 = vmatpush1.msra.mxu0 0.0
    %6686 = vmatprep.subr.mxu0 0.0
    %6687 = vmatpush1.msra.mxu0 0.0
    %6688 = vmatprep.subr.mxu0 0.0
    %6689 = vmatpush1.msra.mxu0 0.0
    %6690 = vmatprep.subr.mxu0 0.0
    %6691 = vmatpush1.msra.mxu0 0.0
    %6692 = vmatprep.subr.mxu0 0.0
    %6693 = vmatpush1.msra.mxu0 0.0
    %6694 = vmatprep.subr.mxu0 0.0
    %6695 = vmatpush1.msra.mxu0 0.0
    %6696 = vmatprep.mubr.f32.mxu0 0.0
    %6697 = vmatmul.mubr.f32.gmra.mrb[0].mxu0 %v6630
    %v6698 = vpop.f32.mrb[0].mxu0
    %v6699 = vadd.f32 0.0, %v6698
    %v6700 = vpop.f32.mrb[0].mxu0
    %6701 = vdwg.mxu0
    %v6703 = vrot.slane %v6699, 6
    %v6705 = vadd.f32 %v5711, %v6703
    %v6707 = vrot.slane %v6626, 6
    %6708 = vrot.lane.b32.xlu0 %v6707, 100
    %v6709 = vpop.permute.xlu0 %6708
    %v6710 = vsel %vm5765, %v6709, 0
    %6712 = vmatprep.subr.mxu0 0.0
    %6713 = vmatpush1.msra.mxu0 %v5852
    %6714 = vmatprep.subr.mxu0 0.0
    %6715 = vmatpush1.msra.mxu0 0.0
    %6716 = vmatprep.subr.mxu0 0.0
    %6717 = vmatpush1.msra.mxu0 0.0
    %6718 = vmatprep.subr.mxu0 0.0
    %6719 = vmatpush1.msra.mxu0 0.0
    %6720 = vmatprep.subr.mxu0 0.0
    %6721 = vmatpush1.msra.mxu0 0.0
    %6722 = vmatprep.subr.mxu0 0.0
    %6723 = vmatpush1.msra.mxu0 0.0
    %6724 = vmatprep.subr.mxu0 0.0
    %6725 = vmatpush1.msra.mxu0 0.0
    %6726 = vmatprep.subr.mxu0 0.0
    %6727 = vmatpush1.msra.mxu0 0.0
    %6728 = vmatprep.subr.mxu0 0.0
    %6729 = vmatpush1.msra.mxu0 0.0
    %6730 = vmatprep.subr.mxu0 0.0
    %6731 = vmatpush1.msra.mxu0 0.0
    %6732 = vmatprep.subr.mxu0 0.0
    %6733 = vmatpush1.msra.mxu0 0.0
    %6734 = vmatprep.subr.mxu0 0.0
    %6735 = vmatpush1.msra.mxu0 0.0
    %6736 = vmatprep.subr.mxu0 0.0
    %6737 = vmatpush1.msra.mxu0 0.0
    %6738 = vmatprep.subr.mxu0 0.0
    %6739 = vmatpush1.msra.mxu0 0.0
    %6740 = vmatprep.subr.mxu0 0.0
    %6741 = vmatpush1.msra.mxu0 0.0
    %6742 = vmatprep.subr.mxu0 0.0
    %6743 = vmatpush1.msra.mxu0 0.0
    %6744 = vmatprep.subr.mxu0 0.0
    %6745 = vmatpush1.msra.mxu0 0.0
    %6746 = vmatprep.subr.mxu0 0.0
    %6747 = vmatpush1.msra.mxu0 0.0
    %6748 = vmatprep.subr.mxu0 0.0
    %6749 = vmatpush1.msra.mxu0 0.0
    %6750 = vmatprep.subr.mxu0 0.0
    %6751 = vmatpush1.msra.mxu0 0.0
    %6752 = vmatprep.subr.mxu0 0.0
    %6753 = vmatpush1.msra.mxu0 0.0
    %6754 = vmatprep.subr.mxu0 0.0
    %6755 = vmatpush1.msra.mxu0 0.0
    %6756 = vmatprep.subr.mxu0 0.0
    %6757 = vmatpush1.msra.mxu0 0.0
    %6758 = vmatprep.subr.mxu0 0.0
    %6759 = vmatpush1.msra.mxu0 0.0
    %6760 = vmatprep.subr.mxu0 0.0
    %6761 = vmatpush1.msra.mxu0 0.0
    %6762 = vmatprep.subr.mxu0 0.0
    %6763 = vmatpush1.msra.mxu0 0.0
    %6764 = vmatprep.subr.mxu0 0.0
    %6765 = vmatpush1.msra.mxu0 0.0
    %6766 = vmatprep.subr.mxu0 0.0
    %6767 = vmatpush1.msra.mxu0 0.0
    %6768 = vmatprep.subr.mxu0 0.0
    %6769 = vmatpush1.msra.mxu0 0.0
    %6770 = vmatprep.subr.mxu0 0.0
    %6771 = vmatpush1.msra.mxu0 0.0
    %6772 = vmatprep.subr.mxu0 0.0
    %6773 = vmatpush1.msra.mxu0 0.0
    %6774 = vmatprep.subr.mxu0 0.0
    %6775 = vmatpush1.msra.mxu0 0.0
    %6776 = vmatprep.mubr.f32.mxu0 0.0
    %6777 = vmatmul.mubr.f32.gmra.mrb[0].mxu0 %v6710
    %v6778 = vpop.f32.mrb[0].mxu0
    %v6779 = vadd.f32 0.0, %v6778
    %v6780 = vpop.f32.mrb[0].mxu0
    %6781 = vdwg.mxu0
    %v6783 = vrot.slane %v6779, 4
    %6784 = vrot.lane.b32.xlu0 %v6783, 16
    %v6785 = vpop.permute.xlu0 %6784
    %v6787 = vadd.f32 %v5706, %v6785
    %v6788 = vxor.u32 %v6705, 2147483648
    %v6789 = vmul.f32 %v6788, 1.442695
    %v6790 = vpow.pop %v6789
    %v6791 = vadd.f32 %v6790, 1.0
    %v6792 = vrcp.pop %v6791
    %v6793 = vmul.f32 1.0, %v6792
    %v6794 = vtanh.pop %v6705
    %v6796 = vrot.slane %v6593, 6
    %v6798 = vmul.f32 %v6793, %v6796
    %6800 = vrot.lane.b32.xlu0 %v6794, 120
    %v6801 = vpop.permute.xlu0 %6800
    %v6803 = vmul.f32 %v6793, %v6801
    %6805 = vrot.lane.b32.xlu0 %v6803, 4
    %v6806 = vpop.permute.xlu0 %6805
    %v6808 = vadd.f32 %v6798, %v6806
    %v6809 = vtanh.pop %v6808
    %6811 = vrot.lane.b32.xlu0 %v6809, 8
    %v6812 = vpop.permute.xlu0 %6811
    %v6814 = vmul.f32 %v6793, %v6812
    %v6815 = vxor.u32 %v6787, 2147483648
    %v6816 = vmul.f32 %v6815, 1.442695
    %v6817 = vpow.pop %v6816
    %v6818 = vadd.f32 %v6817, 1.0
    %v6819 = vrcp.pop %v6818
    %v6820 = vmul.f32 1.0, %v6819
    %v6821 = vtanh.pop %v6787
    %v6823 = vrot.slane %v6620, 2
    %v6825 = vmul.f32 %v6820, %v6823
    %6827 = vrot.lane.b32.xlu0 %v6821, 120
    %v6828 = vpop.permute.xlu0 %6827
    %v6830 = vmul.f32 %v6820, %v6828
    %6832 = vrot.lane.b32.xlu0 %v6830, 4
    %v6833 = vpop.permute.xlu0 %6832
    %v6835 = vadd.f32 %v6825, %v6833
    %v6836 = vtanh.pop %v6835
    %6838 = vrot.lane.b32.xlu0 %v6836, 8
    %v6839 = vpop.permute.xlu0 %6838
    %v6841 = vmul.f32 %v6820, %v6839
    %v6843 = vrot.slane %v6814, 2
    %6844 = vrot.lane.b32.xlu0 %v6843, 116
    %v6845 = vpop.permute.xlu0 %6844
    %v6846 = vsel %vm5765, %v6845, 0
    %6848 = vmatprep.subr.mxu0 0.0
    %6849 = vmatpush1.msra.mxu0 %v5769
    %6850 = vmatprep.subr.mxu0 0.0
    %6851 = vmatpush1.msra.mxu0 0.0
    %6852 = vmatprep.subr.mxu0 0.0
    %6853 = vmatpush1.msra.mxu0 0.0
    %6854 = vmatprep.subr.mxu0 0.0
    %6855 = vmatpush1.msra.mxu0 0.0
    %6856 = vmatprep.subr.mxu0 0.0
    %6857 = vmatpush1.msra.mxu0 0.0
    %6858 = vmatprep.subr.mxu0 0.0
    %6859 = vmatpush1.msra.mxu0 0.0
    %6860 = vmatprep.subr.mxu0 0.0
    %6861 = vmatpush1.msra.mxu0 0.0
    %6862 = vmatprep.subr.mxu0 0.0
    %6863 = vmatpush1.msra.mxu0 0.0
    %6864 = vmatprep.subr.mxu0 0.0
    %6865 = vmatpush1.msra.mxu0 0.0
    %6866 = vmatprep.subr.mxu0 0.0
    %6867 = vmatpush1.msra.mxu0 0.0
    %6868 = vmatprep.subr.mxu0 0.0
    %6869 = vmatpush1.msra.mxu0 0.0
    %6870 = vmatprep.subr.mxu0 0.0
    %6871 = vmatpush1.msra.mxu0 0.0
    %6872 = vmatprep.subr.mxu0 0.0
    %6873 = vmatpush1.msra.mxu0 0.0
    %6874 = vmatprep.subr.mxu0 0.0
    %6875 = vmatpush1.msra.mxu0 0.0
    %6876 = vmatprep.subr.mxu0 0.0
    %6877 = vmatpush1.msra.mxu0 0.0
    %6878 = vmatprep.subr.mxu0 0.0
    %6879 = vmatpush1.msra.mxu0 0.0
    %6880 = vmatprep.subr.mxu0 0.0
    %6881 = vmatpush1.msra.mxu0 0.0
    %6882 = vmatprep.subr.mxu0 0.0
    %6883 = vmatpush1.msra.mxu0 0.0
    %6884 = vmatprep.subr.mxu0 0.0
    %6885 = vmatpush1.msra.mxu0 0.0
    %6886 = vmatprep.subr.mxu0 0.0
    %6887 = vmatpush1.msra.mxu0 0.0
    %6888 = vmatprep.subr.mxu0 0.0
    %6889 = vmatpush1.msra.mxu0 0.0
    %6890 = vmatprep.subr.mxu0 0.0
    %6891 = vmatpush1.msra.mxu0 0.0
    %6892 = vmatprep.subr.mxu0 0.0
    %6893 = vmatpush1.msra.mxu0 0.0
    %6894 = vmatprep.subr.mxu0 0.0
    %6895 = vmatpush1.msra.mxu0 0.0
    %6896 = vmatprep.subr.mxu0 0.0
    %6897 = vmatpush1.msra.mxu0 0.0
    %6898 = vmatprep.subr.mxu0 0.0
    %6899 = vmatpush1.msra.mxu0 0.0
    %6900 = vmatprep.subr.mxu0 0.0
    %6901 = vmatpush1.msra.mxu0 0.0
    %6902 = vmatprep.subr.mxu0 0.0
    %6903 = vmatpush1.msra.mxu0 0.0
    %6904 = vmatprep.subr.mxu0 0.0
    %6905 = vmatpush1.msra.mxu0 0.0
    %6906 = vmatprep.subr.mxu0 0.0
    %6907 = vmatpush1.msra.mxu0 0.0
    %6908 = vmatprep.subr.mxu0 0.0
    %6909 = vmatpush1.msra.mxu0 0.0
    %6910 = vmatprep.subr.mxu0 0.0
    %6911 = vmatpush1.msra.mxu0 0.0
    %6912 = vmatprep.mubr.f32.mxu0 0.0
    %6913 = vmatmul.mubr.f32.gmra.mrb[0].mxu0 %v6846
    %v6914 = vpop.f32.mrb[0].mxu0
    %v6915 = vadd.f32 0.0, %v6914
    %v6916 = vpop.f32.mrb[0].mxu0
    %6917 = vdwg.mxu0
    %v6919 = vrot.slane %v6915, 4
    %v6921 = vadd.f32 %v5711, %v6919
    %v6923 = vrot.slane %v6841, 4
    %6924 = vrot.lane.b32.xlu0 %v6923, 100
    %v6925 = vpop.permute.xlu0 %6924
    %v6926 = vsel %vm5765, %v6925, 0
    %6928 = vmatprep.subr.mxu0 0.0
    %6929 = vmatpush1.msra.mxu0 %v5852
    %6930 = vmatprep.subr.mxu0 0.0
    %6931 = vmatpush1.msra.mxu0 0.0
    %6932 = vmatprep.subr.mxu0 0.0
    %6933 = vmatpush1.msra.mxu0 0.0
    %6934 = vmatprep.subr.mxu0 0.0
    %6935 = vmatpush1.msra.mxu0 0.0
    %6936 = vmatprep.subr.mxu0 0.0
    %6937 = vmatpush1.msra.mxu0 0.0
    %6938 = vmatprep.subr.mxu0 0.0
    %6939 = vmatpush1.msra.mxu0 0.0
    %6940 = vmatprep.subr.mxu0 0.0
    %6941 = vmatpush1.msra.mxu0 0.0
    %6942 = vmatprep.subr.mxu0 0.0
    %6943 = vmatpush1.msra.mxu0 0.0
    %6944 = vmatprep.subr.mxu0 0.0
    %6945 = vmatpush1.msra.mxu0 0.0
    %6946 = vmatprep.subr.mxu0 0.0
    %6947 = vmatpush1.msra.mxu0 0.0
    %6948 = vmatprep.subr.mxu0 0.0
    %6949 = vmatpush1.msra.mxu0 0.0
    %6950 = vmatprep.subr.mxu0 0.0
    %6951 = vmatpush1.msra.mxu0 0.0
    %6952 = vmatprep.subr.mxu0 0.0
    %6953 = vmatpush1.msra.mxu0 0.0
    %6954 = vmatprep.subr.mxu0 0.0
    %6955 = vmatpush1.msra.mxu0 0.0
    %6956 = vmatprep.subr.mxu0 0.0
    %6957 = vmatpush1.msra.mxu0 0.0
    %6958 = vmatprep.subr.mxu0 0.0
    %6959 = vmatpush1.msra.mxu0 0.0
    %6960 = vmatprep.subr.mxu0 0.0
    %6961 = vmatpush1.msra.mxu0 0.0
    %6962 = vmatprep.subr.mxu0 0.0
    %6963 = vmatpush1.msra.mxu0 0.0
    %6964 = vmatprep.subr.mxu0 0.0
    %6965 = vmatpush1.msra.mxu0 0.0
    %6966 = vmatprep.subr.mxu0 0.0
    %6967 = vmatpush1.msra.mxu0 0.0
    %6968 = vmatprep.subr.mxu0 0.0
    %6969 = vmatpush1.msra.mxu0 0.0
    %6970 = vmatprep.subr.mxu0 0.0
    %6971 = vmatpush1.msra.mxu0 0.0
    %6972 = vmatprep.subr.mxu0 0.0
    %6973 = vmatpush1.msra.mxu0 0.0
    %6974 = vmatprep.subr.mxu0 0.0
    %6975 = vmatpush1.msra.mxu0 0.0
    %6976 = vmatprep.subr.mxu0 0.0
    %6977 = vmatpush1.msra.mxu0 0.0
    %6978 = vmatprep.subr.mxu0 0.0
    %6979 = vmatpush1.msra.mxu0 0.0
    %6980 = vmatprep.subr.mxu0 0.0
    %6981 = vmatpush1.msra.mxu0 0.0
    %6982 = vmatprep.subr.mxu0 0.0
    %6983 = vmatpush1.msra.mxu0 0.0
    %6984 = vmatprep.subr.mxu0 0.0
    %6985 = vmatpush1.msra.mxu0 0.0
    %6986 = vmatprep.subr.mxu0 0.0
    %6987 = vmatpush1.msra.mxu0 0.0
    %6988 = vmatprep.subr.mxu0 0.0
    %6989 = vmatpush1.msra.mxu0 0.0
    %6990 = vmatprep.subr.mxu0 0.0
    %6991 = vmatpush1.msra.mxu0 0.0
    %6992 = vmatprep.mubr.f32.mxu0 0.0
    %6993 = vmatmul.mubr.f32.gmra.mrb[0].mxu0 %v6926
    %v6994 = vpop.f32.mrb[0].mxu0
    %v6995 = vadd.f32 0.0, %v6994
    %v6996 = vpop.f32.mrb[0].mxu0
    %6997 = vdwg.mxu0
    %v6999 = vrot.slane %v6995, 6
    %7000 = vrot.lane.b32.xlu0 %v6999, 16
    %v7001 = vpop.permute.xlu0 %7000
    %v7003 = vadd.f32 %v5706, %v7001
    %v7004 = vxor.u32 %v6921, 2147483648
    %v7005 = vmul.f32 %v7004, 1.442695
    %v7006 = vpow.pop %v7005
    %v7007 = vadd.f32 %v7006, 1.0
    %v7008 = vrcp.pop %v7007
    %v7009 = vmul.f32 1.0, %v7008
    %v7010 = vtanh.pop %v6921
    %v7012 = vrot.slane %v6808, 6
    %v7014 = vmul.f32 %v7009, %v7012
    %7016 = vrot.lane.b32.xlu0 %v7010, 120
    %v7017 = vpop.permute.xlu0 %7016
    %v7019 = vmul.f32 %v7009, %v7017
    %7021 = vrot.lane.b32.xlu0 %v7019, 4
    %v7022 = vpop.permute.xlu0 %7021
    %v7024 = vadd.f32 %v7014, %v7022
    %v7025 = vtanh.pop %v7024
    %7027 = vrot.lane.b32.xlu0 %v7025, 8
    %v7028 = vpop.permute.xlu0 %7027
    %v7030 = vmul.f32 %v7009, %v7028
    %v7031 = vxor.u32 %v7003, 2147483648
    %v7032 = vmul.f32 %v7031, 1.442695
    %v7033 = vpow.pop %v7032
    %v7034 = vadd.f32 %v7033, 1.0
    %v7035 = vrcp.pop %v7034
    %v7036 = vmul.f32 1.0, %v7035
    %v7037 = vtanh.pop %v7003
    %v7039 = vrot.slane %v6835, 2
    %v7041 = vmul.f32 %v7036, %v7039
    %7043 = vrot.lane.b32.xlu0 %v7037, 120
    %v7044 = vpop.permute.xlu0 %7043
    %v7046 = vmul.f32 %v7036, %v7044
    %7048 = vrot.lane.b32.xlu0 %v7046, 4
    %v7049 = vpop.permute.xlu0 %7048
    %v7051 = vadd.f32 %v7041, %v7049
    %v7052 = vtanh.pop %v7051
    %7054 = vrot.lane.b32.xlu0 %v7052, 8
    %v7055 = vpop.permute.xlu0 %7054
    %v7057 = vmul.f32 %v7036, %v7055
    %v7059 = vrot.slane %v7030, 4
    %7060 = vrot.lane.b32.xlu0 %v7059, 116
    %v7061 = vpop.permute.xlu0 %7060
    %v7062 = vsel %vm5765, %v7061, 0
    %7064 = vmatprep.subr.mxu0 0.0
    %7065 = vmatpush1.msra.mxu0 %v5769
    %7066 = vmatprep.subr.mxu0 0.0
    %7067 = vmatpush1.msra.mxu0 0.0
    %7068 = vmatprep.subr.mxu0 0.0
    %7069 = vmatpush1.msra.mxu0 0.0
    %7070 = vmatprep.subr.mxu0 0.0
    %7071 = vmatpush1.msra.mxu0 0.0
    %7072 = vmatprep.subr.mxu0 0.0
    %7073 = vmatpush1.msra.mxu0 0.0
    %7074 = vmatprep.subr.mxu0 0.0
    %7075 = vmatpush1.msra.mxu0 0.0
    %7076 = vmatprep.subr.mxu0 0.0
    %7077 = vmatpush1.msra.mxu0 0.0
    %7078 = vmatprep.subr.mxu0 0.0
    %7079 = vmatpush1.msra.mxu0 0.0
    %7080 = vmatprep.subr.mxu0 0.0
    %7081 = vmatpush1.msra.mxu0 0.0
    %7082 = vmatprep.subr.mxu0 0.0
    %7083 = vmatpush1.msra.mxu0 0.0
    %7084 = vmatprep.subr.mxu0 0.0
    %7085 = vmatpush1.msra.mxu0 0.0
    %7086 = vmatprep.subr.mxu0 0.0
    %7087 = vmatpush1.msra.mxu0 0.0
    %7088 = vmatprep.subr.mxu0 0.0
    %7089 = vmatpush1.msra.mxu0 0.0
    %7090 = vmatprep.subr.mxu0 0.0
    %7091 = vmatpush1.msra.mxu0 0.0
    %7092 = vmatprep.subr.mxu0 0.0
    %7093 = vmatpush1.msra.mxu0 0.0
    %7094 = vmatprep.subr.mxu0 0.0
    %7095 = vmatpush1.msra.mxu0 0.0
    %7096 = vmatprep.subr.mxu0 0.0
    %7097 = vmatpush1.msra.mxu0 0.0
    %7098 = vmatprep.subr.mxu0 0.0
    %7099 = vmatpush1.msra.mxu0 0.0
    %7100 = vmatprep.subr.mxu0 0.0
    %7101 = vmatpush1.msra.mxu0 0.0
    %7102 = vmatprep.subr.mxu0 0.0
    %7103 = vmatpush1.msra.mxu0 0.0
    %7104 = vmatprep.subr.mxu0 0.0
    %7105 = vmatpush1.msra.mxu0 0.0
    %7106 = vmatprep.subr.mxu0 0.0
    %7107 = vmatpush1.msra.mxu0 0.0
    %7108 = vmatprep.subr.mxu0 0.0
    %7109 = vmatpush1.msra.mxu0 0.0
    %7110 = vmatprep.subr.mxu0 0.0
    %7111 = vmatpush1.msra.mxu0 0.0
    %7112 = vmatprep.subr.mxu0 0.0
    %7113 = vmatpush1.msra.mxu0 0.0
    %7114 = vmatprep.subr.mxu0 0.0
    %7115 = vmatpush1.msra.mxu0 0.0
    %7116 = vmatprep.subr.mxu0 0.0
    %7117 = vmatpush1.msra.mxu0 0.0
    %7118 = vmatprep.subr.mxu0 0.0
    %7119 = vmatpush1.msra.mxu0 0.0
    %7120 = vmatprep.subr.mxu0 0.0
    %7121 = vmatpush1.msra.mxu0 0.0
    %7122 = vmatprep.subr.mxu0 0.0
    %7123 = vmatpush1.msra.mxu0 0.0
    %7124 = vmatprep.subr.mxu0 0.0
    %7125 = vmatpush1.msra.mxu0 0.0
    %7126 = vmatprep.subr.mxu0 0.0
    %7127 = vmatpush1.msra.mxu0 0.0
    %7128 = vmatprep.mubr.f32.mxu0 0.0
    %7129 = vmatmul.mubr.f32.gmra.mrb[0].mxu0 %v7062
    %v7130 = vpop.f32.mrb[0].mxu0
    %v7131 = vadd.f32 0.0, %v7130
    %v7132 = vpop.f32.mrb[0].mxu0
    %7133 = vdwg.mxu0
    %v7135 = vrot.slane %v7131, 2
    %v7137 = vadd.f32 %v5711, %v7135
    %v7139 = vrot.slane %v7057, 2
    %7140 = vrot.lane.b32.xlu0 %v7139, 100
    %v7141 = vpop.permute.xlu0 %7140
    %v7142 = vsel %vm5765, %v7141, 0
    %7144 = vmatprep.subr.mxu0 0.0
    %7145 = vmatpush1.msra.mxu0 %v5852
    %7146 = vmatprep.subr.mxu0 0.0
    %7147 = vmatpush1.msra.mxu0 0.0
    %7148 = vmatprep.subr.mxu0 0.0
    %7149 = vmatpush1.msra.mxu0 0.0
    %7150 = vmatprep.subr.mxu0 0.0
    %7151 = vmatpush1.msra.mxu0 0.0
    %7152 = vmatprep.subr.mxu0 0.0
    %7153 = vmatpush1.msra.mxu0 0.0
    %7154 = vmatprep.subr.mxu0 0.0
    %7155 = vmatpush1.msra.mxu0 0.0
    %7156 = vmatprep.subr.mxu0 0.0
    %7157 = vmatpush1.msra.mxu0 0.0
    %7158 = vmatprep.subr.mxu0 0.0
    %7159 = vmatpush1.msra.mxu0 0.0
    %7160 = vmatprep.subr.mxu0 0.0
    %7161 = vmatpush1.msra.mxu0 0.0
    %7162 = vmatprep.subr.mxu0 0.0
    %7163 = vmatpush1.msra.mxu0 0.0
    %7164 = vmatprep.subr.mxu0 0.0
    %7165 = vmatpush1.msra.mxu0 0.0
    %7166 = vmatprep.subr.mxu0 0.0
    %7167 = vmatpush1.msra.mxu0 0.0
    %7168 = vmatprep.subr.mxu0 0.0
    %7169 = vmatpush1.msra.mxu0 0.0
    %7170 = vmatprep.subr.mxu0 0.0
    %7171 = vmatpush1.msra.mxu0 0.0
    %7172 = vmatprep.subr.mxu0 0.0
    %7173 = vmatpush1.msra.mxu0 0.0
    %7174 = vmatprep.subr.mxu0 0.0
    %7175 = vmatpush1.msra.mxu0 0.0
    %7176 = vmatprep.subr.mxu0 0.0
    %7177 = vmatpush1.msra.mxu0 0.0
    %7178 = vmatprep.subr.mxu0 0.0
    %7179 = vmatpush1.msra.mxu0 0.0
    %7180 = vmatprep.subr.mxu0 0.0
    %7181 = vmatpush1.msra.mxu0 0.0
    %7182 = vmatprep.subr.mxu0 0.0
    %7183 = vmatpush1.msra.mxu0 0.0
    %7184 = vmatprep.subr.mxu0 0.0
    %7185 = vmatpush1.msra.mxu0 0.0
    %7186 = vmatprep.subr.mxu0 0.0
    %7187 = vmatpush1.msra.mxu0 0.0
    %7188 = vmatprep.subr.mxu0 0.0
    %7189 = vmatpush1.msra.mxu0 0.0
    %7190 = vmatprep.subr.mxu0 0.0
    %7191 = vmatpush1.msra.mxu0 0.0
    %7192 = vmatprep.subr.mxu0 0.0
    %7193 = vmatpush1.msra.mxu0 0.0
    %7194 = vmatprep.subr.mxu0 0.0
    %7195 = vmatpush1.msra.mxu0 0.0
    %7196 = vmatprep.subr.mxu0 0.0
    %7197 = vmatpush1.msra.mxu0 0.0
    %7198 = vmatprep.subr.mxu0 0.0
    %7199 = vmatpush1.msra.mxu0 0.0
    %7200 = vmatprep.subr.mxu0 0.0
    %7201 = vmatpush1.msra.mxu0 0.0
    %7202 = vmatprep.subr.mxu0 0.0
    %7203 = vmatpush1.msra.mxu0 0.0
    %7204 = vmatprep.subr.mxu0 0.0
    %7205 = vmatpush1.msra.mxu0 0.0
    %7206 = vmatprep.subr.mxu0 0.0
    %7207 = vmatpush1.msra.mxu0 0.0
    %7208 = vmatprep.mubr.f32.mxu0 0.0
    %7209 = vmatmul.mubr.f32.gmra.mrb[0].mxu0 %v7142
    %v7210 = vpop.f32.mrb[0].mxu0
    %v7211 = vadd.f32 0.0, %v7210
    %v7212 = vpop.f32.mrb[0].mxu0
    %7213 = vdwg.mxu0
    %7215 = vrot.lane.b32.xlu0 %v7211, 16
    %v7216 = vpop.permute.xlu0 %7215
    %v7218 = vadd.f32 %v5706, %v7216
    %v7219 = vxor.u32 %v7137, 2147483648
    %v7220 = vmul.f32 %v7219, 1.442695
    %v7221 = vpow.pop %v7220
    %v7222 = vadd.f32 %v7221, 1.0
    %v7223 = vrcp.pop %v7222
    %v7224 = vmul.f32 1.0, %v7223
    %v7225 = vtanh.pop %v7137
    %v7227 = vrot.slane %v7024, 6
    %v7229 = vmul.f32 %v7224, %v7227
    %7231 = vrot.lane.b32.xlu0 %v7225, 120
    %v7232 = vpop.permute.xlu0 %7231
    %v7234 = vmul.f32 %v7224, %v7232
    %7236 = vrot.lane.b32.xlu0 %v7234, 4
    %v7237 = vpop.permute.xlu0 %7236
    %v7239 = vadd.f32 %v7229, %v7237
    %v7240 = vtanh.pop %v7239
    %7242 = vrot.lane.b32.xlu0 %v7240, 8
    %v7243 = vpop.permute.xlu0 %7242
    %v7245 = vmul.f32 %v7224, %v7243
    %v7246 = vxor.u32 %v7218, 2147483648
    %v7247 = vmul.f32 %v7246, 1.442695
    %v7248 = vpow.pop %v7247
    %v7249 = vadd.f32 %v7248, 1.0
    %v7250 = vrcp.pop %v7249
    %v7251 = vmul.f32 1.0, %v7250
    %v7252 = vtanh.pop %v7218
    %v7254 = vrot.slane %v7051, 2
    %v7256 = vmul.f32 %v7251, %v7254
    %7258 = vrot.lane.b32.xlu0 %v7252, 120
    %v7259 = vpop.permute.xlu0 %7258
    %v7261 = vmul.f32 %v7251, %v7259
    %7263 = vrot.lane.b32.xlu0 %v7261, 4
    %v7264 = vpop.permute.xlu0 %7263
    %v7266 = vadd.f32 %v7256, %v7264
    %v7267 = vtanh.pop %v7266
    %7269 = vrot.lane.b32.xlu0 %v7267, 8
    %v7270 = vpop.permute.xlu0 %7269
    %v7272 = vmul.f32 %v7251, %v7270
    %7275 = vrot.lane.b32.xlu0 %v7272, 104
    %v7276 = vpop.permute.xlu0 %7275
    %v7278 = vsel %vm5765, %v5764, %v7276
    %7279 = vrot.lane.b32.xlu0 %v5956, 116
    %v7280 = vpop.permute.xlu0 %7279
    %7282 = vrot.lane.b32.xlu0 %v7057, 104
    %v7283 = vpop.permute.xlu0 %7282
    %v7285 = vsel %vm5765, %v7280, %v7283
    %7286 = vrot.lane.b32.xlu0 %v6172, 116
    %v7287 = vpop.permute.xlu0 %7286
    %7289 = vrot.lane.b32.xlu0 %v6841, 104
    %v7290 = vpop.permute.xlu0 %7289
    %v7292 = vsel %vm5765, %v7287, %v7290
    %7293 = vrot.lane.b32.xlu0 %v6387, 116
    %v7294 = vpop.permute.xlu0 %7293
    %7296 = vrot.lane.b32.xlu0 %v6626, 104
    %v7297 = vpop.permute.xlu0 %7296
    %v7299 = vsel %vm5765, %v7294, %v7297
    %7301 = vrot.lane.b32.xlu0 %v6414, 104
    %v7302 = vpop.permute.xlu0 %7301
    %v7304 = vsel %vm5765, %v6629, %v7302
    %7305 = vrot.lane.b32.xlu0 %v6814, 116
    %v7306 = vpop.permute.xlu0 %7305
    %7308 = vrot.lane.b32.xlu0 %v6199, 104
    %v7309 = vpop.permute.xlu0 %7308
    %v7311 = vsel %vm5765, %v7306, %v7309
    %7312 = vrot.lane.b32.xlu0 %v7030, 116
    %v7313 = vpop.permute.xlu0 %7312
    %7315 = vrot.lane.b32.xlu0 %v5983, 104
    %v7316 = vpop.permute.xlu0 %7315
    %v7318 = vsel %vm5765, %v7313, %v7316
    %7320 = vrot.lane.b32.xlu0 %v7245, 116
    %v7321 = vpop.permute.xlu0 %7320
    %7323 = vrot.lane.b32.xlu0 %v5761, 104
    %v7324 = vpop.permute.xlu0 %7323
    %v7326 = vsel %vm5765, %v7321, %v7324
    %v7327 = vld [vmem:[%s21] sm:$0x1]
    %v7328 = vld [vmem:[%s22] sm:$0x1]
    %v7329 = vld [vmem:[%s23] sm:$0x1]
    %v7330 = vld [vmem:[#allocation2] sm:$0x1]
    %vm7331 = vcmask 58368
    %v7332 = vsel %vm7331, %v7278, 0.0
    %7333 = vadd.xlane.f32.xlu0 %v7332
    %v7334 = vpop.xlane.xlu0 %7333
    %v7335 = vrcp.pop 8.0
    %v7336 = vmul.f32 %v7334, %v7335
    %v7337 = vsub.f32 %v7278, %v7336
    %v7338 = vmul.f32 %v7337, %v7337
    %v7339 = vsel %vm7331, %v7338, 0.0
    %7340 = vadd.xlane.f32.xlu0 %v7339
    %v7341 = vpop.xlane.xlu0 %7340
    %v7342 = vmul.f32 %v7341, %v7335
    %v7343 = vadd.f32 %v7342, 1e-05
    %v7344 = vrsqrt.pop %v7343
    %v7345 = vmul.f32 %v7337, %v7344
    %v7347 = vlaneseq
    %v7348 = vshrl.u32 %v7347, 7
    %v7349 = vsub.s32 0, %v7348
    %v7350 = vrot.slane %v7327, %v7349
    %v7352 = vmul.f32 %v7345, %v7350
    %v7354 = vlaneseq
    %v7355 = vshrl.u32 %v7354, 7
    %v7356 = vsub.s32 0, %v7355
    %v7357 = vrot.slane %v7328, %v7356
    %v7359 = vadd.f32 %v7352, %v7357
    %v7360 = vmul.f32 %v7359, 0.5
    %v7361 = vmul.f32 %v7359, 0.70710677
    %v7362 = verf.f32.pop %v7361
    %v7363 = vadd.f32 %v7362, 1.0
    %v7364 = vmul.f32 %v7360, %v7363
    %v7366 = vlaneseq
    %v7367 = vshrl.u32 %v7366, 7
    %v7368 = vsub.s32 0, %v7367
    %v7369 = vrot.slane %v7329, %v7368
    %v7371 = vmul.f32 %v7364, %v7369
    %v7372 = vsel %vm7331, %v7371, 0.0
    %7373 = vadd.xlane.f32.xlu0 %v7372
    %v7374 = vpop.xlane.xlu0 %7373
    %v7376 = vlaneseq
    %v7377 = vshrl.u32 %v7376, 7
    %v7378 = vsub.s32 0, %v7377
    %v7379 = vrot.slane %v7330, %v7378
    %v7381 = vadd.f32 %v7374, %v7379
    %vm7382 = vcmask 60418
    %v7383 = vsel %vm7382, %v7285, 0.0
    %7384 = vadd.xlane.f32.xlu0 %v7383
    %v7385 = vpop.xlane.xlu0 %7384
    %v7386 = vmul.f32 %v7385, %v7335
    %v7387 = vsub.f32 %v7285, %v7386
    %v7388 = vmul.f32 %v7387, %v7387
    %v7389 = vsel %vm7382, %v7388, 0.0
    %7390 = vadd.xlane.f32.xlu0 %v7389
    %v7391 = vpop.xlane.xlu0 %7390
    %v7392 = vmul.f32 %v7391, %v7335
    %v7393 = vadd.f32 %v7392, 1e-05
    %v7394 = vrsqrt.pop %v7393
    %v7395 = vmul.f32 %v7387, %v7394
    %v7396 = vmul.f32 %v7395, %v7350
    %v7397 = vadd.f32 %v7396, %v7357
    %v7398 = vmul.f32 %v7397, 0.5
    %v7399 = vmul.f32 %v7397, 0.70710677
    %v7400 = verf.f32.pop %v7399
    %v7401 = vadd.f32 %v7400, 1.0
    %v7402 = vmul.f32 %v7398, %v7401
    %v7403 = vmul.f32 %v7402, %v7369
    %v7404 = vsel %vm7382, %v7403, 0.0
    %7405 = vadd.xlane.f32.xlu0 %v7404
    %v7406 = vpop.xlane.xlu0 %7405
    %v7407 = vadd.f32 %v7406, %v7379
    %vm7408 = vcmask 62468
    %v7409 = vsel %vm7408, %v7292, 0.0
    %7410 = vadd.xlane.f32.xlu0 %v7409
    %v7411 = vpop.xlane.xlu0 %7410
    %v7412 = vmul.f32 %v7411, %v7335
    %v7413 = vsub.f32 %v7292, %v7412
    %v7414 = vmul.f32 %v7413, %v7413
    %v7415 = vsel %vm7408, %v7414, 0.0
    %7416 = vadd.xlane.f32.xlu0 %v7415
    %v7417 = vpop.xlane.xlu0 %7416
    %v7418 = vmul.f32 %v7417, %v7335
    %v7419 = vadd.f32 %v7418, 1e-05
    %v7420 = vrsqrt.pop %v7419
    %v7421 = vmul.f32 %v7413, %v7420
    %v7422 = vmul.f32 %v7421, %v7350
    %v7423 = vadd.f32 %v7422, %v7357
    %v7424 = vmul.f32 %v7423, 0.5
    %v7425 = vmul.f32 %v7423, 0.70710677
    %v7426 = verf.f32.pop %v7425
    %v7427 = vadd.f32 %v7426, 1.0
    %v7428 = vmul.f32 %v7424, %v7427
    %v7429 = vmul.f32 %v7428, %v7369
    %v7430 = vsel %vm7408, %v7429, 0.0
    %7431 = vadd.xlane.f32.xlu0 %v7430
    %v7432 = vpop.xlane.xlu0 %7431
    %v7433 = vadd.f32 %v7432, %v7379
    %vm7434 = vcmask 64518
    %v7435 = vsel %vm7434, %v7299, 0.0
    %7436 = vadd.xlane.f32.xlu0 %v7435
    %v7437 = vpop.xlane.xlu0 %7436
    %v7438 = vmul.f32 %v7437, %v7335
    %v7439 = vsub.f32 %v7299, %v7438
    %v7440 = vmul.f32 %v7439, %v7439
    %v7441 = vsel %vm7434, %v7440, 0.0
    %7442 = vadd.xlane.f32.xlu0 %v7441
    %v7443 = vpop.xlane.xlu0 %7442
    %v7444 = vmul.f32 %v7443, %v7335
    %v7445 = vadd.f32 %v7444, 1e-05
    %v7446 = vrsqrt.pop %v7445
    %v7447 = vmul.f32 %v7439, %v7446
    %v7448 = vmul.f32 %v7447, %v7350
    %v7449 = vadd.f32 %v7448, %v7357
    %v7450 = vmul.f32 %v7449, 0.5
    %v7451 = vmul.f32 %v7449, 0.70710677
    %v7452 = verf.f32.pop %v7451
    %v7453 = vadd.f32 %v7452, 1.0
    %v7454 = vmul.f32 %v7450, %v7453
    %v7455 = vmul.f32 %v7454, %v7369
    %v7456 = vsel %vm7434, %v7455, 0.0
    %7457 = vadd.xlane.f32.xlu0 %v7456
    %v7458 = vpop.xlane.xlu0 %7457
    %v7459 = vadd.f32 %v7458, %v7379
    %v7460 = vsel %vm7331, %v7304, 0.0
    %7461 = vadd.xlane.f32.xlu0 %v7460
    %v7462 = vpop.xlane.xlu0 %7461
    %v7463 = vmul.f32 %v7462, %v7335
    %v7464 = vsub.f32 %v7304, %v7463
    %v7465 = vmul.f32 %v7464, %v7464
    %v7466 = vsel %vm7331, %v7465, 0.0
    %7467 = vadd.xlane.f32.xlu0 %v7466
    %v7468 = vpop.xlane.xlu0 %7467
    %v7469 = vmul.f32 %v7468, %v7335
    %v7470 = vadd.f32 %v7469, 1e-05
    %v7471 = vrsqrt.pop %v7470
    %v7472 = vmul.f32 %v7464, %v7471
    %v7473 = vmul.f32 %v7472, %v7350
    %v7474 = vadd.f32 %v7473, %v7357
    %v7475 = vmul.f32 %v7474, 0.5
    %v7476 = vmul.f32 %v7474, 0.70710677
    %v7477 = verf.f32.pop %v7476
    %v7478 = vadd.f32 %v7477, 1.0
    %v7479 = vmul.f32 %v7475, %v7478
    %v7480 = vmul.f32 %v7479, %v7369
    %v7481 = vsel %vm7331, %v7480, 0.0
    %7482 = vadd.xlane.f32.xlu0 %v7481
    %v7483 = vpop.xlane.xlu0 %7482
    %v7484 = vadd.f32 %v7483, %v7379
    %v7485 = vsel %vm7382, %v7311, 0.0
    %7486 = vadd.xlane.f32.xlu0 %v7485
    %v7487 = vpop.xlane.xlu0 %7486
    %v7488 = vmul.f32 %v7487, %v7335
    %v7489 = vsub.f32 %v7311, %v7488
    %v7490 = vmul.f32 %v7489, %v7489
    %v7491 = vsel %vm7382, %v7490, 0.0
    %7492 = vadd.xlane.f32.xlu0 %v7491
    %v7493 = vpop.xlane.xlu0 %7492
    %v7494 = vmul.f32 %v7493, %v7335
    %v7495 = vadd.f32 %v7494, 1e-05
    %v7496 = vrsqrt.pop %v7495
    %v7497 = vmul.f32 %v7489, %v7496
    %v7498 = vmul.f32 %v7497, %v7350
    %v7499 = vadd.f32 %v7498, %v7357
    %v7500 = vmul.f32 %v7499, 0.5
    %v7501 = vmul.f32 %v7499, 0.70710677
    %v7502 = verf.f32.pop %v7501
    %v7503 = vadd.f32 %v7502, 1.0
    %v7504 = vmul.f32 %v7500, %v7503
    %v7505 = vmul.f32 %v7504, %v7369
    %v7506 = vsel %vm7382, %v7505, 0.0
    %7507 = vadd.xlane.f32.xlu0 %v7506
    %v7508 = vpop.xlane.xlu0 %7507
    %v7509 = vadd.f32 %v7508, %v7379
    %v7510 = vsel %vm7408, %v7318, 0.0
    %7511 = vadd.xlane.f32.xlu0 %v7510
    %v7512 = vpop.xlane.xlu0 %7511
    %v7513 = vmul.f32 %v7512, %v7335
    %v7514 = vsub.f32 %v7318, %v7513
    %v7515 = vmul.f32 %v7514, %v7514
    %v7516 = vsel %vm7408, %v7515, 0.0
    %7517 = vadd.xlane.f32.xlu0 %v7516
    %v7518 = vpop.xlane.xlu0 %7517
    %v7519 = vmul.f32 %v7518, %v7335
    %v7520 = vadd.f32 %v7519, 1e-05
    %v7521 = vrsqrt.pop %v7520
    %v7522 = vmul.f32 %v7514, %v7521
    %v7523 = vmul.f32 %v7522, %v7350
    %v7524 = vadd.f32 %v7523, %v7357
    %v7525 = vmul.f32 %v7524, 0.5
    %v7526 = vmul.f32 %v7524, 0.70710677
    %v7527 = verf.f32.pop %v7526
    %v7528 = vadd.f32 %v7527, 1.0
    %v7529 = vmul.f32 %v7525, %v7528
    %v7530 = vmul.f32 %v7529, %v7369
    %v7531 = vsel %vm7408, %v7530, 0.0
    %7532 = vadd.xlane.f32.xlu0 %v7531
    %v7533 = vpop.xlane.xlu0 %7532
    %v7534 = vadd.f32 %v7533, %v7379
    %v7535 = vsel %vm7434, %v7326, 0.0
    %7536 = vadd.xlane.f32.xlu0 %v7535
    %v7537 = vpop.xlane.xlu0 %7536
    %v7538 = vmul.f32 %v7537, %v7335
    %v7539 = vsub.f32 %v7326, %v7538
    %v7540 = vmul.f32 %v7539, %v7539
    %v7541 = vsel %vm7434, %v7540, 0.0
    %7542 = vadd.xlane.f32.xlu0 %v7541
    %v7543 = vpop.xlane.xlu0 %7542
    %v7544 = vmul.f32 %v7543, %v7335
    %v7545 = vadd.f32 %v7544, 1e-05
    %v7546 = vrsqrt.pop %v7545
    %v7547 = vmul.f32 %v7539, %v7546
    %v7548 = vmul.f32 %v7547, %v7350
    %v7549 = vadd.f32 %v7548, %v7357
    %v7550 = vmul.f32 %v7549, 0.5
    %v7551 = vmul.f32 %v7549, 0.70710677
    %v7552 = verf.f32.pop %v7551
    %v7553 = vadd.f32 %v7552, 1.0
    %v7554 = vmul.f32 %v7550, %v7553
    %v7555 = vmul.f32 %v7554, %v7369
    %v7556 = vsel %vm7434, %v7555, 0.0
    %7557 = vadd.xlane.f32.xlu0 %v7556
    %v7558 = vpop.xlane.xlu0 %7557
    %v7559 = vadd.f32 %v7558, %v7379
    %v7561 = vrot.slane %v7407, 2
    %7562 = vrot.lane.b32.xlu0 %v7561, 1
    %v7563 = vpop.permute.xlu0 %7562
    %v7566 = vrot.slane %v7433, 4
    %7567 = vrot.lane.b32.xlu0 %v7566, 2
    %v7568 = vpop.permute.xlu0 %7567
    %v7571 = vrot.slane %v7459, 6
    %7572 = vrot.lane.b32.xlu0 %v7571, 3
    %v7573 = vpop.permute.xlu0 %7572
    %7576 = vrot.lane.b32.xlu0 %v7484, 4
    %v7577 = vpop.permute.xlu0 %7576
    %v7580 = vrot.slane %v7509, 2
    %7581 = vrot.lane.b32.xlu0 %v7580, 5
    %v7582 = vpop.permute.xlu0 %7581
    %v7585 = vrot.slane %v7534, 4
    %7586 = vrot.lane.b32.xlu0 %v7585, 6
    %v7587 = vpop.permute.xlu0 %7586
    %v7590 = vrot.slane %v7559, 6
    %7591 = vrot.lane.b32.xlu0 %v7590, 7
    %v7592 = vpop.permute.xlu0 %7591
    %vm7594 = vcmask 7168
    %v7595 = vsel %vm7594, %v7381, %v7563
    %vm7596 = vcmask 15360
    %v7597 = vsel %vm7596, %v7595, %v7568
    %vm7598 = vcmask 23552
    %v7599 = vsel %vm7598, %v7597, %v7573
    %v7600 = vsel %vm5765, %v7599, %v7577
    %vm7601 = vcmask 39936
    %v7602 = vsel %vm7601, %v7600, %v7582
    %vm7603 = vcmask 48128
    %v7604 = vsel %vm7603, %v7602, %v7587
    %vm7605 = vcmask 56320
    %v7606 = vsel %vm7605, %v7604, %v7592
    %7607 = vst.msk [vmem:[#allocation27] sm:$0x3] %vm7331, %v7606
    // Predicated region
    $region162: #{forward.1} parent=1 // pred_check
      _
    $region163: #{forward.1} parent=1 // pred_check_branch
      %7609 = sbr.rel (0) target = $region165
    $region164: #{forward.1} parent=1 // pred_region
      %s7611 = ssub.s32 32, 32
      %7612 = vsyncadd [#allocation5], %s7611
      %s7614 = sshll.u32 [#allocation27], 4
      %s7615 = int_to_ptr.vmem [resolvable:$true] %s7614
      %7617 = dma.vmem_to_hbm [thread:$0]  %s7615, 32, %s25, [#allocation5]
    $region165: #{forward.1} parent=1 // pred_fallthru
      _
    // Predicated region
    $region166: #{forward.1} parent=1 // pred_check
      _
    $region167: #{forward.1} parent=1 // pred_check_branch
      %7619 = sbr.rel (0) target = $region169
    $region168: #{forward.1} parent=1 // pred_region
      %7620 = dma.done [#allocation5], 32
    $region169: #{forward.1} parent=1 // pred_fallthru
      _
    %7621 = vsyncpa [#allocation4], 1
    %7622 = vsyncpa [#allocation7], 1
    %7623 = vsyncpa [#allocation10], 1
    %7624 = vsyncpa [#allocation13], 1
    %7625 = vsyncpa [#allocation16], 1
    %7626 = vsyncpa [#allocation19], 1
    %7627 = vsyncpa [#allocation22], 1
    %7628 = vsyncpa [#allocation25], 1
    %7629 = vsyncpa [#allocation5], 1

</llo_original>
